<compile_context>
chip_gen: v5e
topology: v5e:2x2
jax: 0.10.0
libtpu: 0.0.40
codegen_flags: <defaults>
</compile_context>

<pallas_src>
import functools

import numpy as np
import jax
import jax.numpy as jnp
from jax import lax
from jax.experimental import pallas as pl
from jax.experimental.pallas import tpu as pltpu


# --------------------------- fused forward kernel ---------------------------
def _fused_kernel(slab5_ref, w5_ref, b5_ref, mask3_ref, w3_ref, b3_ref,
                  ptr_ref, pti_ref, qr_ref, qi_ref, wr_ref, wi_ref,
                  t_ref, fm_ref, wp_ref, bp_ref, wh_ref, bh_ref, o_ref,
                  *, H, W, n_layers):
    f32 = jnp.float32
    HW = H * W

    # ---- embedding: conv5x5 ('same') as one im2col matmul, + relu -> (C1, HW)
    h1 = jnp.dot(w5_ref[...], slab5_ref[0], preferred_element_type=f32)
    h1 = jnp.maximum(h1 + b5_ref[...], 0.0)

    # ---- lifting: conv3x3 ('same').  Nine neighbour taps via XLU lane-rolls
    #      + validity masks, stacked to (9*C1, HW), reduced with ONE matmul.
    mask3 = mask3_ref[...]                                   # (9, HW)
    taps = []
    for t in range(9):
        dy, dx = t // 3, t % 3
        off = (dy - 1) * W + (dx - 1)                        # flattened neighbour offset
        shifted = h1 if off == 0 else pltpu.roll(h1, (-off) % HW, 1)
        taps.append(shifted * mask3[t:t + 1, :])             # zero out-of-bounds taps
    stack = jnp.concatenate(taps, axis=0)                    # (9*C1, HW)
    x = jnp.dot(w3_ref[...], stack, preferred_element_type=f32) + b3_ref[...]  # (C, HW)

    # ---- 3x Fourier spectral layers: x = x + relu(irfft2(W * rfft2(x)))
    tmat = t_ref[...]                                        # (M, C*M)  lane-tiling matrix
    fmask = fm_ref[...]                                      # (C, C*M)  row-block selector
    ptr = ptr_ref[...]                                       # (HW, M)   Re of forward DFT
    pti = pti_ref[...]                                       # (HW, M)   Im of forward DFT
    qr2 = qr_ref[...]                                        # (M, HW)   Re of inverse DFT
    qi2 = qi_ref[...]                                        # (M, HW)  -Im of inverse DFT
    C = x.shape[0]
    ones_row = jnp.ones((1, C), f32)
    fold_dims = (((1,), (1,)), ((), ()))                     # contract the C*M lane axes
    for l in range(n_layers):
        xr = jnp.dot(x, ptr, preferred_element_type=f32)     # (C, M)  Re(rfft2 modes)
        xi = jnp.dot(x, pti, preferred_element_type=f32)     # (C, M)  Im(rfft2 modes)
        # tile modes across the full 128-lane axis: xr_t[i, o*M + m] = xr[i, m]
        xr_t = jnp.dot(xr, tmat, preferred_element_type=f32)  # (C, C*M)
        xi_t = jnp.dot(xi, tmat, preferred_element_type=f32)
        wr_l = wr_ref[l]                                      # (C, C*M) lane-dense Re(W)
        wi_l = wi_ref[l]                                      # (C, C*M) lane-dense Im(W)
        pr = xr_t * wr_l - xi_t * wi_l                        # Re(X * W) per (i, o, m)
        pi = xr_t * wi_l + xi_t * wr_l                        # Im(X * W)
        sr = jnp.dot(ones_row, pr, preferred_element_type=f32)   # (1, C*M) sum over C_in
        si = jnp.dot(ones_row, pi, preferred_element_type=f32)
        # fold the lane-flat (o*M + m) spectrum back to (C_out, M) rows
        yr = lax.dot_general(fmask * sr, tmat, fold_dims, preferred_element_type=f32)
        yi = lax.dot_general(fmask * si, tmat, fold_dims, preferred_element_type=f32)
        y = (jnp.dot(yr, qr2, preferred_element_type=f32)
             + jnp.dot(yi, qi2, preferred_element_type=f32))  # (C, HW) irfft2
        x = x + jnp.maximum(y, 0.0)

    # ---- head: projection (1x1) -> relu -> restoration (1x1), lane-dense dots
    h = jnp.dot(wp_ref[...], x, preferred_element_type=f32) + bp_ref[...]
    h = jnp.maximum(h, 0.0)                                   # (Cmid, HW)
    o_ref[0] = jnp.dot(wh_ref[...], h, preferred_element_type=f32) + bh_ref[...]


def neural_operator_forward(x_nchw, consts):
    """x_nchw: (B, in_ch, H, W).  consts: output of prepare_constants()."""
    B, in_ch, H, W = x_nchw.shape
    HW = H * W
    x = x_nchw.astype(jnp.float32)

    # im2col slab for the 5x5 'same' conv: (B, 25*in_ch, HW), channels-first.
    # TODO(synk): per review, build this in-kernel via pltpu.roll if in_ch/H/W
    #             grow; at in_ch=1, HW=256 the slab is only ~25 KiB per sample.
    xp = jnp.pad(x, ((0, 0), (0, 0), (2, 2), (2, 2)))
    cols = [xp[:, :, dy:dy + H, dx:dx + W].reshape(B, in_ch, HW)
            for dy in range(5) for dx in range(5)]
    slab5 = jnp.concatenate(cols, axis=1)

    out_ch = consts['wh'].shape[0]
    n_layers = consts['wr'].shape[0]
    kernel = functools.partial(_fused_kernel, H=H, W=W, n_layers=n_layers)

    def const_spec(a):                      # whole-array block, DMA'd exactly once
        nd = a.ndim
        return pl.BlockSpec(a.shape, lambda b, _nd=nd: (0,) * _nd)

    names = ['w5', 'b5', 'mask3', 'w3', 'b3', 'ptr', 'pti', 'qr2', 'qi2',
             'wr', 'wi', 'tmat', 'fmask', 'wp', 'bp', 'wh', 'bh']
    out = pl.pallas_call(
        kernel,
        out_shape=jax.ShapeDtypeStruct((B, out_ch, HW), jnp.float32),
        grid=(B,),
        in_specs=[pl.BlockSpec((1, slab5.shape[1], HW), lambda b: (b, 0, 0))]
                 + [const_spec(consts[n]) for n in names],
        out_specs=pl.BlockSpec((1, out_ch, HW), lambda b: (b, 0, 0)),
        compiler_params=pltpu.CompilerParams(
            dimension_semantics=("parallel",),
            # actual use is ~4 MiB (constants ~1.5 MiB x2 buffers + scratch)
            vmem_limit_bytes=32 * 1024 * 1024),
    )(slab5, *[consts[n] for n in names])
    return out.reshape(B, out_ch, H, W)                       # NCHW


# ------------------------------ constant prep -------------------------------
def dft_matrices(H, W, m1, m2):
    """Mode-restricted DFT matrices matching torch.fft.rfft2 / irfft2 semantics."""
    ky = np.concatenate([np.arange(m1), np.arange(H - m1, H)]).astype(np.float64)
    kx = np.arange(m2).astype(np.float64)
    h = np.arange(H).astype(np.float64)
    w = np.arange(W).astype(np.float64)
    ph = np.exp(-2j * np.pi * np.outer(ky, h) / H)                  # (2m1, H)
    pw = np.exp(-2j * np.pi * np.outer(kx, w) / W)                  # (m2, W)
    P = (ph[:, None, :, None] * pw[None, :, None, :]).reshape(2 * m1 * m2, H * W)
    # Hermitian doubling along the last axis (DC / Nyquist columns counted once)
    sc = np.where((kx == 0) | ((W % 2 == 0) & (kx == W // 2)), 1.0, 2.0)
    qh = np.exp(2j * np.pi * np.outer(h, ky) / H)                   # (H, 2m1)
    qw = np.exp(2j * np.pi * np.outer(w, kx) / W) * sc[None, :]     # (W, m2)
    Q = (qh[:, None, :, None] * qw[None, :, None, :]).reshape(H * W, 2 * m1 * m2)
    Q = Q / (H * W)
    return (jnp.asarray(P.real, jnp.float32), jnp.asarray(P.imag, jnp.float32),
            jnp.asarray(Q.real, jnp.float32), jnp.asarray(Q.imag, jnp.float32))


def pack_fno_weights(w1, w2, m1, m2):
    """(Cin, Cout, m1, m2) complex x2  ->  (2*m1*m2, Cin, Cout) real/imag."""
    cin, cout = w1.shape[0], w1.shape[1]
    wc = jnp.concatenate([
        jnp.transpose(w1, (2, 3, 0, 1)).reshape(m1 * m2, cin, cout),
        jnp.transpose(w2, (2, 3, 0, 1)).reshape(m1 * m2, cin, cout),
    ], axis=0)
    return jnp.real(wc).astype(jnp.float32), jnp.imag(wc).astype(jnp.float32)


def prepare_constants(params, H, W, m1=4, m2=4):
    """Pack weights / DFT matrices into the kernel's channels-first, lane-dense
    layout.  Computed ONCE (hoisted out of the jitted forward)."""
    HW = H * W
    M = 2 * m1 * m2
    pr_, pi_, qr_, qi_ = dft_matrices(H, W, m1, m2)         # (M,HW)x2, (HW,M)x2
    ptr = pr_.T                                             # (HW, M)
    pti = pi_.T                                             # (HW, M)
    qr2 = qr_.T                                             # (M, HW)
    qi2 = -qi_.T                                            # (M, HW)

    # embedding conv5x5 -> im2col matmul weights
    w5 = params['emb_w']                                    # (5,5,in,C1) HWIO
    in_ch, c1 = w5.shape[2], w5.shape[3]
    w5f = jnp.transpose(w5, (3, 0, 1, 2)).reshape(c1, 25 * in_ch)
    b5 = params['emb_b'].reshape(c1, 1)

    # lifting conv3x3 -> single fused (C2, 9*C1) weight + per-tap validity masks
    w3 = params['lift_w']                                   # (3,3,C1,C2)
    c2 = w3.shape[3]
    w3f = jnp.transpose(w3.reshape(9, c1, c2), (2, 0, 1)).reshape(c2, 9 * c1)
    b3 = params['lift_b'].reshape(c2, 1)
    yy, xx = np.meshgrid(np.arange(H), np.arange(W), indexing='ij')
    mask3 = np.zeros((9, HW), np.float32)
    for t in range(9):
        dy, dx = t // 3, t % 3
        ok = ((yy + dy - 1 >= 0) & (yy + dy - 1 < H) &
              (xx + dx - 1 >= 0) & (xx + dx - 1 < W))
        mask3[t] = ok.reshape(-1).astype(np.float32)
    mask3 = jnp.asarray(mask3)

    # FNO mix weights, lane-dense: (layer, C_in, C_out*M) with lane index o*M+m
    wrs, wis = [], []
    for l in range(3):
        wr_m, wi_m = pack_fno_weights(params[f'fno{l}_w1'],
                                      params[f'fno{l}_w2'], m1, m2)   # (M, C, C)
        wrs.append(jnp.transpose(wr_m, (1, 2, 0)).reshape(c2, c2 * M))
        wis.append(jnp.transpose(wi_m, (1, 2, 0)).reshape(c2, c2 * M))

    # mode-tiling matrix and row-block selection mask for the in-kernel mix
    tmat = jnp.asarray(np.tile(np.eye(M, dtype=np.float32), (1, c2)))        # (M, C*M)
    fmask = jnp.asarray(np.repeat(np.eye(c2, dtype=np.float32), M, axis=1))  # (C, C*M)

    return dict(
        w5=w5f, b5=b5, mask3=mask3, w3=w3f, b3=b3,
        ptr=ptr, pti=pti, qr2=qr2, qi2=qi2,
        wr=jnp.stack(wrs), wi=jnp.stack(wis), tmat=tmat, fmask=fmask,
        wp=params['proj_w'].T, bp=params['proj_b'].reshape(-1, 1),
        wh=params['rest_w'].T, bh=params['rest_b'].reshape(-1, 1),
    )


# --------------------------------- params -----------------------------------
def init_params(key, in_ch=1, out_ch=1, hid_ch=32, m1=4, m2=4):
    ks = jax.random.split(key, 16)
    c1 = hid_ch // 2
    p = {}

    def conv_w(k, kh, kw, ci, co):
        bound = 1.0 / np.sqrt(kh * kw * ci)
        return jax.random.uniform(k, (kh, kw, ci, co), jnp.float32, -bound, bound)

    def conv_b(k, fan_in, co):
        bound = 1.0 / np.sqrt(fan_in)
        return jax.random.uniform(k, (1, co), jnp.float32, -bound, bound)

    p['emb_w'] = conv_w(ks[0], 5, 5, in_ch, c1)
    p['emb_b'] = conv_b(ks[1], 5 * 5 * in_ch, c1)
    p['lift_w'] = conv_w(ks[2], 3, 3, c1, hid_ch)
    p['lift_b'] = conv_b(ks[3], 3 * 3 * c1, hid_ch)
    scale = 1.0 / (hid_ch * hid_ch)
    for l in range(3):
        kr1, ki1, kr2, ki2 = jax.random.split(ks[4 + l], 4)
        shp = (hid_ch, hid_ch, m1, m2)
        p[f'fno{l}_w1'] = (scale * (jax.random.uniform(kr1, shp)
                                    + 1j * jax.random.uniform(ki1, shp))).astype(jnp.complex64)
        p[f'fno{l}_w2'] = (scale * (jax.random.uniform(kr2, shp)
                                    + 1j * jax.random.uniform(ki2, shp))).astype(jnp.complex64)
    p['proj_w'] = conv_w(ks[8], 1, 1, hid_ch, c1).reshape(hid_ch, c1)
    p['proj_b'] = conv_b(ks[9], hid_ch, c1)
    p['rest_w'] = conv_w(ks[10], 1, 1, c1, out_ch).reshape(c1, out_ch)
    p['rest_b'] = conv_b(ks[11], c1, out_ch)
    return p


# ----------------------- pure-JAX reference (for check) ---------------------
def ref_forward(x, p, m1=4, m2=4):
    hp = jax.lax.Precision.HIGHEST

    def conv(h, w_hwio, b, pad):
        w = jnp.transpose(w_hwio, (3, 2, 0, 1))                     # OIHW
        y = jax.lax.conv_general_dilated(h, w, (1, 1), [(pad, pad), (pad, pad)],
                                         dimension_numbers=('NCHW', 'OIHW', 'NCHW'),
                                         precision=hp)
        return y + b.reshape(1, -1, 1, 1)

    h = jax.nn.relu(conv(x, p['emb_w'], p['emb_b'], 2))
    h = conv(h, p['lift_w'], p['lift_b'], 1)
    B, C, H, W = h.shape
    for l in range(3):
        xf = jnp.fft.rfft2(h)
        w1, w2 = p[f'fno{l}_w1'], p[f'fno{l}_w2']
        out_ft = jnp.zeros((B, C, H, W // 2 + 1), jnp.complex64)
        out_ft = out_ft.at[:, :, :m1, :m2].set(
            jnp.einsum('bixy,ioxy->boxy', xf[:, :, :m1, :m2], w1, precision=hp))
        out_ft = out_ft.at[:, :, H - m1:, :m2].set(
            jnp.einsum('bixy,ioxy->boxy', xf[:, :, H - m1:, :m2], w2, precision=hp))
        y = jnp.fft.irfft2(out_ft, s=(H, W))
        h = h + jax.nn.relu(y)
    hmid = jnp.einsum('bchw,cd->bdhw', h, p['proj_w'], precision=hp) \
        + p['proj_b'].reshape(1, -1, 1, 1)
    out = jnp.einsum('bchw,cd->bdhw', jax.nn.relu(hmid), p['rest_w'], precision=hp) \
        + p['rest_b'].reshape(1, -1, 1, 1)
    return out


if __name__ == "__main__":
    key = jax.random.PRNGKey(0)
    B, in_ch, out_ch, hid_ch, H, W = 2, 1, 1, 32, 16, 16
    m1 = m2 = 4
    kx_, kp = jax.random.split(key)
    x = jax.random.normal(kx_, (B, in_ch, H, W), jnp.float32)
    params = init_params(kp, in_ch, out_ch, hid_ch, m1, m2)

    consts = prepare_constants(params, H, W, m1, m2)        # hoisted: computed once
    fwd = jax.jit(neural_operator_forward)
    out = jax.block_until_ready(fwd(x, consts))
    assert out.shape == (B, out_ch, H, W)

    ref = ref_forward(x, params, m1, m2)
    np.testing.assert_allclose(np.asarray(out), np.asarray(ref),
                               rtol=2e-2, atol=2e-3)
    print("KERNEL_OK")
</pallas_src>

<mosaic_0001>
module attributes {stable_mosaic.version = 11 : i64} {
  func.func @_fused_kernel(%arg0: i32, %arg1: memref<1x25x256xf32, #tpu.memory_space<vmem>>, %arg2: memref<16x25xf32, #tpu.memory_space<vmem>>, %arg3: memref<16x1xf32, #tpu.memory_space<vmem>>, %arg4: memref<9x256xf32, #tpu.memory_space<vmem>>, %arg5: memref<32x144xf32, #tpu.memory_space<vmem>>, %arg6: memref<32x1xf32, #tpu.memory_space<vmem>>, %arg7: memref<256x32xf32, #tpu.memory_space<vmem>>, %arg8: memref<256x32xf32, #tpu.memory_space<vmem>>, %arg9: memref<32x256xf32, #tpu.memory_space<vmem>>, %arg10: memref<32x256xf32, #tpu.memory_space<vmem>>, %arg11: memref<3x32x1024xf32, #tpu.memory_space<vmem>>, %arg12: memref<3x32x1024xf32, #tpu.memory_space<vmem>>, %arg13: memref<32x1024xf32, #tpu.memory_space<vmem>>, %arg14: memref<32x1024xf32, #tpu.memory_space<vmem>>, %arg15: memref<16x32xf32, #tpu.memory_space<vmem>>, %arg16: memref<16x1xf32, #tpu.memory_space<vmem>>, %arg17: memref<1x16xf32, #tpu.memory_space<vmem>>, %arg18: memref<1x1xf32, #tpu.memory_space<vmem>>, %arg19: memref<1x1x256xf32, #tpu.memory_space<vmem>>) attributes {dimension_semantics = [#tpu.dimension_semantics<parallel>], iteration_bounds = array<i64: 2>, scalar_prefetch = 0 : i64, scratch_operands = 0 : i64, tpu.core_type = #tpu.core_type<tc>, window_params = [{transform_indices = @transform_0, window_bounds = array<i64: 1, 25, 256>}, {pipeline_mode = #tpu.pipeline_mode<synchronous>, transform_indices = @transform_1, window_bounds = array<i64: 16, 25>}, {pipeline_mode = #tpu.pipeline_mode<synchronous>, transform_indices = @transform_2, window_bounds = array<i64: 16, 1>}, {pipeline_mode = #tpu.pipeline_mode<synchronous>, transform_indices = @transform_3, window_bounds = array<i64: 9, 256>}, {pipeline_mode = #tpu.pipeline_mode<synchronous>, transform_indices = @transform_4, window_bounds = array<i64: 32, 144>}, {pipeline_mode = #tpu.pipeline_mode<synchronous>, transform_indices = @transform_5, window_bounds = array<i64: 32, 1>}, {pipeline_mode = #tpu.pipeline_mode<synchronous>, transform_indices = @transform_6, window_bounds = array<i64: 256, 32>}, {pipeline_mode = #tpu.pipeline_mode<synchronous>, transform_indices = @transform_7, window_bounds = array<i64: 256, 32>}, {pipeline_mode = #tpu.pipeline_mode<synchronous>, transform_indices = @transform_8, window_bounds = array<i64: 32, 256>}, {pipeline_mode = #tpu.pipeline_mode<synchronous>, transform_indices = @transform_9, window_bounds = array<i64: 32, 256>}, {pipeline_mode = #tpu.pipeline_mode<synchronous>, transform_indices = @transform_10, window_bounds = array<i64: 3, 32, 1024>}, {pipeline_mode = #tpu.pipeline_mode<synchronous>, transform_indices = @transform_11, window_bounds = array<i64: 3, 32, 1024>}, {pipeline_mode = #tpu.pipeline_mode<synchronous>, transform_indices = @transform_12, window_bounds = array<i64: 32, 1024>}, {pipeline_mode = #tpu.pipeline_mode<synchronous>, transform_indices = @transform_13, window_bounds = array<i64: 32, 1024>}, {pipeline_mode = #tpu.pipeline_mode<synchronous>, transform_indices = @transform_14, window_bounds = array<i64: 16, 32>}, {pipeline_mode = #tpu.pipeline_mode<synchronous>, transform_indices = @transform_15, window_bounds = array<i64: 16, 1>}, {pipeline_mode = #tpu.pipeline_mode<synchronous>, transform_indices = @transform_16, window_bounds = array<i64: 1, 16>}, {pipeline_mode = #tpu.pipeline_mode<synchronous>, transform_indices = @transform_17, window_bounds = array<i64: 1, 1>}, {transform_indices = @transform_18, window_bounds = array<i64: 1, 1, 256>}]} {
    %c0 = arith.constant 0 : index
    %c0_0 = arith.constant 0 : index
    %0 = vector.load %arg2[%c0, %c0_0] : memref<16x25xf32, #tpu.memory_space<vmem>>, vector<16x25xf32>
    %c0_1 = arith.constant 0 : index
    %c0_2 = arith.constant 0 : index
    %c0_3 = arith.constant 0 : index
    %1 = vector.load %arg1[%c0_1, %c0_2, %c0_3] : memref<1x25x256xf32, #tpu.memory_space<vmem>>, vector<1x25x256xf32>
    %2 = vector.shape_cast %1 : vector<1x25x256xf32> to vector<25x256xf32>
    %cst = arith.constant dense<0.000000e+00> : vector<16x256xf32>
    %3 = tpu.matmul %0, %2, %cst {dimension_numbers = #tpu.dot_dimension_numbers<[1], [0], [0], [1], [0, 0, 1, 1], [], []>} : vector<16x25xf32>, vector<25x256xf32>, vector<16x256xf32> -> vector<16x256xf32>
    %c0_4 = arith.constant 0 : index
    %c0_5 = arith.constant 0 : index
    %4 = vector.load %arg3[%c0_4, %c0_5] : memref<16x1xf32, #tpu.memory_space<vmem>>, vector<16x1xf32>
    %5 = vector.broadcast %4 : vector<16x1xf32> to vector<16x256xf32>
    %6 = arith.addf %3, %5 : vector<16x256xf32>
    %cst_6 = arith.constant 0.000000e+00 : f32
    %7 = vector.broadcast %cst_6 : f32 to vector<16x256xf32>
    %8 = arith.maximumf %6, %7 : vector<16x256xf32>
    %c0_7 = arith.constant 0 : index
    %c0_8 = arith.constant 0 : index
    %9 = vector.load %arg4[%c0_7, %c0_8] : memref<9x256xf32, #tpu.memory_space<vmem>>, vector<9x256xf32>
    %c17_i32 = arith.constant 17 : i32
    %10 = tpu.dynamic_rotate %8 by %c17_i32 dim 1 : vector<16x256xf32>, i32 -> vector<16x256xf32>
    %11 = vector.extract_strided_slice %9 {offsets = [0, 0], sizes = [1, 256], strides = [1, 1]} : vector<9x256xf32> to vector<1x256xf32>
    %12 = vector.broadcast %11 : vector<1x256xf32> to vector<16x256xf32>
    %13 = arith.mulf %10, %12 : vector<16x256xf32>
    %c16_i32 = arith.constant 16 : i32
    %14 = tpu.dynamic_rotate %8 by %c16_i32 dim 1 : vector<16x256xf32>, i32 -> vector<16x256xf32>
    %15 = vector.extract_strided_slice %9 {offsets = [1, 0], sizes = [1, 256], strides = [1, 1]} : vector<9x256xf32> to vector<1x256xf32>
    %16 = vector.broadcast %15 : vector<1x256xf32> to vector<16x256xf32>
    %17 = arith.mulf %14, %16 : vector<16x256xf32>
    %c15_i32 = arith.constant 15 : i32
    %18 = tpu.dynamic_rotate %8 by %c15_i32 dim 1 : vector<16x256xf32>, i32 -> vector<16x256xf32>
    %19 = vector.extract_strided_slice %9 {offsets = [2, 0], sizes = [1, 256], strides = [1, 1]} : vector<9x256xf32> to vector<1x256xf32>
    %20 = vector.broadcast %19 : vector<1x256xf32> to vector<16x256xf32>
    %21 = arith.mulf %18, %20 : vector<16x256xf32>
    %c1_i32 = arith.constant 1 : i32
    %22 = tpu.dynamic_rotate %8 by %c1_i32 dim 1 : vector<16x256xf32>, i32 -> vector<16x256xf32>
    %23 = vector.extract_strided_slice %9 {offsets = [3, 0], sizes = [1, 256], strides = [1, 1]} : vector<9x256xf32> to vector<1x256xf32>
    %24 = vector.broadcast %23 : vector<1x256xf32> to vector<16x256xf32>
    %25 = arith.mulf %22, %24 : vector<16x256xf32>
    %26 = vector.extract_strided_slice %9 {offsets = [4, 0], sizes = [1, 256], strides = [1, 1]} : vector<9x256xf32> to vector<1x256xf32>
    %27 = vector.broadcast %26 : vector<1x256xf32> to vector<16x256xf32>
    %28 = arith.mulf %8, %27 : vector<16x256xf32>
    %c255_i32 = arith.constant 255 : i32
    %29 = tpu.dynamic_rotate %8 by %c255_i32 dim 1 : vector<16x256xf32>, i32 -> vector<16x256xf32>
    %30 = vector.extract_strided_slice %9 {offsets = [5, 0], sizes = [1, 256], strides = [1, 1]} : vector<9x256xf32> to vector<1x256xf32>
    %31 = vector.broadcast %30 : vector<1x256xf32> to vector<16x256xf32>
    %32 = arith.mulf %29, %31 : vector<16x256xf32>
    %c241_i32 = arith.constant 241 : i32
    %33 = tpu.dynamic_rotate %8 by %c241_i32 dim 1 : vector<16x256xf32>, i32 -> vector<16x256xf32>
    %34 = vector.extract_strided_slice %9 {offsets = [6, 0], sizes = [1, 256], strides = [1, 1]} : vector<9x256xf32> to vector<1x256xf32>
    %35 = vector.broadcast %34 : vector<1x256xf32> to vector<16x256xf32>
    %36 = arith.mulf %33, %35 : vector<16x256xf32>
    %c240_i32 = arith.constant 240 : i32
    %37 = tpu.dynamic_rotate %8 by %c240_i32 dim 1 : vector<16x256xf32>, i32 -> vector<16x256xf32>
    %38 = vector.extract_strided_slice %9 {offsets = [7, 0], sizes = [1, 256], strides = [1, 1]} : vector<9x256xf32> to vector<1x256xf32>
    %39 = vector.broadcast %38 : vector<1x256xf32> to vector<16x256xf32>
    %40 = arith.mulf %37, %39 : vector<16x256xf32>
    %c239_i32 = arith.constant 239 : i32
    %41 = tpu.dynamic_rotate %8 by %c239_i32 dim 1 : vector<16x256xf32>, i32 -> vector<16x256xf32>
    %42 = vector.extract_strided_slice %9 {offsets = [8, 0], sizes = [1, 256], strides = [1, 1]} : vector<9x256xf32> to vector<1x256xf32>
    %43 = vector.broadcast %42 : vector<1x256xf32> to vector<16x256xf32>
    %44 = arith.mulf %41, %43 : vector<16x256xf32>
    %45 = tpu.concatenate %13, %17, %21, %25, %28, %32, %36, %40, %44 in 0 : vector<16x256xf32>, vector<16x256xf32>, vector<16x256xf32>, vector<16x256xf32>, vector<16x256xf32>, vector<16x256xf32>, vector<16x256xf32>, vector<16x256xf32>, vector<16x256xf32> -> vector<144x256xf32>
    %c0_9 = arith.constant 0 : index
    %c0_10 = arith.constant 0 : index
    %46 = vector.load %arg5[%c0_9, %c0_10] : memref<32x144xf32, #tpu.memory_space<vmem>>, vector<32x144xf32>
    %cst_11 = arith.constant dense<0.000000e+00> : vector<32x256xf32>
    %47 = tpu.matmul %46, %45, %cst_11 {dimension_numbers = #tpu.dot_dimension_numbers<[1], [0], [0], [1], [0, 0, 1, 1], [], []>} : vector<32x144xf32>, vector<144x256xf32>, vector<32x256xf32> -> vector<32x256xf32>
    %c0_12 = arith.constant 0 : index
    %c0_13 = arith.constant 0 : index
    %48 = vector.load %arg6[%c0_12, %c0_13] : memref<32x1xf32, #tpu.memory_space<vmem>>, vector<32x1xf32>
    %49 = vector.broadcast %48 : vector<32x1xf32> to vector<32x256xf32>
    %50 = arith.addf %47, %49 : vector<32x256xf32>
    %c0_14 = arith.constant 0 : index
    %c0_15 = arith.constant 0 : index
    %51 = vector.load %arg13[%c0_14, %c0_15] : memref<32x1024xf32, #tpu.memory_space<vmem>>, vector<32x1024xf32>
    %c0_16 = arith.constant 0 : index
    %c0_17 = arith.constant 0 : index
    %52 = vector.load %arg14[%c0_16, %c0_17] : memref<32x1024xf32, #tpu.memory_space<vmem>>, vector<32x1024xf32>
    %c0_18 = arith.constant 0 : index
    %c0_19 = arith.constant 0 : index
    %53 = vector.load %arg7[%c0_18, %c0_19] : memref<256x32xf32, #tpu.memory_space<vmem>>, vector<256x32xf32>
    %c0_20 = arith.constant 0 : index
    %c0_21 = arith.constant 0 : index
    %54 = vector.load %arg8[%c0_20, %c0_21] : memref<256x32xf32, #tpu.memory_space<vmem>>, vector<256x32xf32>
    %c0_22 = arith.constant 0 : index
    %c0_23 = arith.constant 0 : index
    %55 = vector.load %arg9[%c0_22, %c0_23] : memref<32x256xf32, #tpu.memory_space<vmem>>, vector<32x256xf32>
    %c0_24 = arith.constant 0 : index
    %c0_25 = arith.constant 0 : index
    %56 = vector.load %arg10[%c0_24, %c0_25] : memref<32x256xf32, #tpu.memory_space<vmem>>, vector<32x256xf32>
    %cst_26 = arith.constant 1.000000e+00 : f32
    %57 = vector.broadcast %cst_26 : f32 to vector<1x32xf32>
    %cst_27 = arith.constant dense<0.000000e+00> : vector<32x32xf32>
    %58 = tpu.matmul %50, %53, %cst_27 {dimension_numbers = #tpu.dot_dimension_numbers<[1], [0], [0], [1], [0, 0, 1, 1], [], []>} : vector<32x256xf32>, vector<256x32xf32>, vector<32x32xf32> -> vector<32x32xf32>
    %cst_28 = arith.constant dense<0.000000e+00> : vector<32x32xf32>
    %59 = tpu.matmul %50, %54, %cst_28 {dimension_numbers = #tpu.dot_dimension_numbers<[1], [0], [0], [1], [0, 0, 1, 1], [], []>} : vector<32x256xf32>, vector<256x32xf32>, vector<32x32xf32> -> vector<32x32xf32>
    %cst_29 = arith.constant dense<0.000000e+00> : vector<32x1024xf32>
    %60 = tpu.matmul %58, %51, %cst_29 {dimension_numbers = #tpu.dot_dimension_numbers<[1], [0], [0], [1], [0, 0, 1, 1], [], []>} : vector<32x32xf32>, vector<32x1024xf32>, vector<32x1024xf32> -> vector<32x1024xf32>
    %cst_30 = arith.constant dense<0.000000e+00> : vector<32x1024xf32>
    %61 = tpu.matmul %59, %51, %cst_30 {dimension_numbers = #tpu.dot_dimension_numbers<[1], [0], [0], [1], [0, 0, 1, 1], [], []>} : vector<32x32xf32>, vector<32x1024xf32>, vector<32x1024xf32> -> vector<32x1024xf32>
    %c0_31 = arith.constant 0 : index
    %c0_32 = arith.constant 0 : index
    %c0_33 = arith.constant 0 : index
    %62 = vector.load %arg11[%c0_31, %c0_32, %c0_33] : memref<3x32x1024xf32, #tpu.memory_space<vmem>>, vector<1x32x1024xf32>
    %63 = vector.shape_cast %62 : vector<1x32x1024xf32> to vector<32x1024xf32>
    %c0_34 = arith.constant 0 : index
    %c0_35 = arith.constant 0 : index
    %c0_36 = arith.constant 0 : index
    %64 = vector.load %arg12[%c0_34, %c0_35, %c0_36] : memref<3x32x1024xf32, #tpu.memory_space<vmem>>, vector<1x32x1024xf32>
    %65 = vector.shape_cast %64 : vector<1x32x1024xf32> to vector<32x1024xf32>
    %66 = arith.mulf %60, %63 : vector<32x1024xf32>
    %67 = arith.mulf %61, %65 : vector<32x1024xf32>
    %68 = arith.subf %66, %67 : vector<32x1024xf32>
    %69 = arith.mulf %60, %65 : vector<32x1024xf32>
    %70 = arith.mulf %61, %63 : vector<32x1024xf32>
    %71 = arith.addf %69, %70 : vector<32x1024xf32>
    %cst_37 = arith.constant dense<0.000000e+00> : vector<1x1024xf32>
    %72 = tpu.matmul %57, %68, %cst_37 {dimension_numbers = #tpu.dot_dimension_numbers<[1], [0], [0], [1], [0, 0, 1, 1], [], []>} : vector<1x32xf32>, vector<32x1024xf32>, vector<1x1024xf32> -> vector<1x1024xf32>
    %cst_38 = arith.constant dense<0.000000e+00> : vector<1x1024xf32>
    %73 = tpu.matmul %57, %71, %cst_38 {dimension_numbers = #tpu.dot_dimension_numbers<[1], [0], [0], [1], [0, 0, 1, 1], [], []>} : vector<1x32xf32>, vector<32x1024xf32>, vector<1x1024xf32> -> vector<1x1024xf32>
    %74 = vector.broadcast %72 : vector<1x1024xf32> to vector<32x1024xf32>
    %75 = arith.mulf %52, %74 : vector<32x1024xf32>
    %cst_39 = arith.constant dense<0.000000e+00> : vector<32x32xf32>
    %76 = tpu.matmul %75, %51, %cst_39 {dimension_numbers = #tpu.dot_dimension_numbers<[1], [1], [0], [0], [0, 0, 1, 0], [], []>} : vector<32x1024xf32>, vector<32x1024xf32>, vector<32x32xf32> -> vector<32x32xf32>
    %77 = vector.broadcast %73 : vector<1x1024xf32> to vector<32x1024xf32>
    %78 = arith.mulf %52, %77 : vector<32x1024xf32>
    %cst_40 = arith.constant dense<0.000000e+00> : vector<32x32xf32>
    %79 = tpu.matmul %78, %51, %cst_40 {dimension_numbers = #tpu.dot_dimension_numbers<[1], [1], [0], [0], [0, 0, 1, 0], [], []>} : vector<32x1024xf32>, vector<32x1024xf32>, vector<32x32xf32> -> vector<32x32xf32>
    %cst_41 = arith.constant dense<0.000000e+00> : vector<32x256xf32>
    %80 = tpu.matmul %76, %55, %cst_41 {dimension_numbers = #tpu.dot_dimension_numbers<[1], [0], [0], [1], [0, 0, 1, 1], [], []>} : vector<32x32xf32>, vector<32x256xf32>, vector<32x256xf32> -> vector<32x256xf32>
    %cst_42 = arith.constant dense<0.000000e+00> : vector<32x256xf32>
    %81 = tpu.matmul %79, %56, %cst_42 {dimension_numbers = #tpu.dot_dimension_numbers<[1], [0], [0], [1], [0, 0, 1, 1], [], []>} : vector<32x32xf32>, vector<32x256xf32>, vector<32x256xf32> -> vector<32x256xf32>
    %82 = arith.addf %80, %81 : vector<32x256xf32>
    %cst_43 = arith.constant 0.000000e+00 : f32
    %83 = vector.broadcast %cst_43 : f32 to vector<32x256xf32>
    %84 = arith.maximumf %82, %83 : vector<32x256xf32>
    %85 = arith.addf %50, %84 : vector<32x256xf32>
    %cst_44 = arith.constant dense<0.000000e+00> : vector<32x32xf32>
    %86 = tpu.matmul %85, %53, %cst_44 {dimension_numbers = #tpu.dot_dimension_numbers<[1], [0], [0], [1], [0, 0, 1, 1], [], []>} : vector<32x256xf32>, vector<256x32xf32>, vector<32x32xf32> -> vector<32x32xf32>
    %cst_45 = arith.constant dense<0.000000e+00> : vector<32x32xf32>
    %87 = tpu.matmul %85, %54, %cst_45 {dimension_numbers = #tpu.dot_dimension_numbers<[1], [0], [0], [1], [0, 0, 1, 1], [], []>} : vector<32x256xf32>, vector<256x32xf32>, vector<32x32xf32> -> vector<32x32xf32>
    %cst_46 = arith.constant dense<0.000000e+00> : vector<32x1024xf32>
    %88 = tpu.matmul %86, %51, %cst_46 {dimension_numbers = #tpu.dot_dimension_numbers<[1], [0], [0], [1], [0, 0, 1, 1], [], []>} : vector<32x32xf32>, vector<32x1024xf32>, vector<32x1024xf32> -> vector<32x1024xf32>
    %cst_47 = arith.constant dense<0.000000e+00> : vector<32x1024xf32>
    %89 = tpu.matmul %87, %51, %cst_47 {dimension_numbers = #tpu.dot_dimension_numbers<[1], [0], [0], [1], [0, 0, 1, 1], [], []>} : vector<32x32xf32>, vector<32x1024xf32>, vector<32x1024xf32> -> vector<32x1024xf32>
    %c1 = arith.constant 1 : index
    %c0_48 = arith.constant 0 : index
    %c0_49 = arith.constant 0 : index
    %90 = vector.load %arg11[%c1, %c0_48, %c0_49] : memref<3x32x1024xf32, #tpu.memory_space<vmem>>, vector<1x32x1024xf32>
    %91 = vector.shape_cast %90 : vector<1x32x1024xf32> to vector<32x1024xf32>
    %c1_50 = arith.constant 1 : index
    %c0_51 = arith.constant 0 : index
    %c0_52 = arith.constant 0 : index
    %92 = vector.load %arg12[%c1_50, %c0_51, %c0_52] : memref<3x32x1024xf32, #tpu.memory_space<vmem>>, vector<1x32x1024xf32>
    %93 = vector.shape_cast %92 : vector<1x32x1024xf32> to vector<32x1024xf32>
    %94 = arith.mulf %88, %91 : vector<32x1024xf32>
    %95 = arith.mulf %89, %93 : vector<32x1024xf32>
    %96 = arith.subf %94, %95 : vector<32x1024xf32>
    %97 = arith.mulf %88, %93 : vector<32x1024xf32>
    %98 = arith.mulf %89, %91 : vector<32x1024xf32>
    %99 = arith.addf %97, %98 : vector<32x1024xf32>
    %cst_53 = arith.constant dense<0.000000e+00> : vector<1x1024xf32>
    %100 = tpu.matmul %57, %96, %cst_53 {dimension_numbers = #tpu.dot_dimension_numbers<[1], [0], [0], [1], [0, 0, 1, 1], [], []>} : vector<1x32xf32>, vector<32x1024xf32>, vector<1x1024xf32> -> vector<1x1024xf32>
    %cst_54 = arith.constant dense<0.000000e+00> : vector<1x1024xf32>
    %101 = tpu.matmul %57, %99, %cst_54 {dimension_numbers = #tpu.dot_dimension_numbers<[1], [0], [0], [1], [0, 0, 1, 1], [], []>} : vector<1x32xf32>, vector<32x1024xf32>, vector<1x1024xf32> -> vector<1x1024xf32>
    %102 = vector.broadcast %100 : vector<1x1024xf32> to vector<32x1024xf32>
    %103 = arith.mulf %52, %102 : vector<32x1024xf32>
    %cst_55 = arith.constant dense<0.000000e+00> : vector<32x32xf32>
    %104 = tpu.matmul %103, %51, %cst_55 {dimension_numbers = #tpu.dot_dimension_numbers<[1], [1], [0], [0], [0, 0, 1, 0], [], []>} : vector<32x1024xf32>, vector<32x1024xf32>, vector<32x32xf32> -> vector<32x32xf32>
    %105 = vector.broadcast %101 : vector<1x1024xf32> to vector<32x1024xf32>
    %106 = arith.mulf %52, %105 : vector<32x1024xf32>
    %cst_56 = arith.constant dense<0.000000e+00> : vector<32x32xf32>
    %107 = tpu.matmul %106, %51, %cst_56 {dimension_numbers = #tpu.dot_dimension_numbers<[1], [1], [0], [0], [0, 0, 1, 0], [], []>} : vector<32x1024xf32>, vector<32x1024xf32>, vector<32x32xf32> -> vector<32x32xf32>
    %cst_57 = arith.constant dense<0.000000e+00> : vector<32x256xf32>
    %108 = tpu.matmul %104, %55, %cst_57 {dimension_numbers = #tpu.dot_dimension_numbers<[1], [0], [0], [1], [0, 0, 1, 1], [], []>} : vector<32x32xf32>, vector<32x256xf32>, vector<32x256xf32> -> vector<32x256xf32>
    %cst_58 = arith.constant dense<0.000000e+00> : vector<32x256xf32>
    %109 = tpu.matmul %107, %56, %cst_58 {dimension_numbers = #tpu.dot_dimension_numbers<[1], [0], [0], [1], [0, 0, 1, 1], [], []>} : vector<32x32xf32>, vector<32x256xf32>, vector<32x256xf32> -> vector<32x256xf32>
    %110 = arith.addf %108, %109 : vector<32x256xf32>
    %cst_59 = arith.constant 0.000000e+00 : f32
    %111 = vector.broadcast %cst_59 : f32 to vector<32x256xf32>
    %112 = arith.maximumf %110, %111 : vector<32x256xf32>
    %113 = arith.addf %85, %112 : vector<32x256xf32>
    %cst_60 = arith.constant dense<0.000000e+00> : vector<32x32xf32>
    %114 = tpu.matmul %113, %53, %cst_60 {dimension_numbers = #tpu.dot_dimension_numbers<[1], [0], [0], [1], [0, 0, 1, 1], [], []>} : vector<32x256xf32>, vector<256x32xf32>, vector<32x32xf32> -> vector<32x32xf32>
    %cst_61 = arith.constant dense<0.000000e+00> : vector<32x32xf32>
    %115 = tpu.matmul %113, %54, %cst_61 {dimension_numbers = #tpu.dot_dimension_numbers<[1], [0], [0], [1], [0, 0, 1, 1], [], []>} : vector<32x256xf32>, vector<256x32xf32>, vector<32x32xf32> -> vector<32x32xf32>
    %cst_62 = arith.constant dense<0.000000e+00> : vector<32x1024xf32>
    %116 = tpu.matmul %114, %51, %cst_62 {dimension_numbers = #tpu.dot_dimension_numbers<[1], [0], [0], [1], [0, 0, 1, 1], [], []>} : vector<32x32xf32>, vector<32x1024xf32>, vector<32x1024xf32> -> vector<32x1024xf32>
    %cst_63 = arith.constant dense<0.000000e+00> : vector<32x1024xf32>
    %117 = tpu.matmul %115, %51, %cst_63 {dimension_numbers = #tpu.dot_dimension_numbers<[1], [0], [0], [1], [0, 0, 1, 1], [], []>} : vector<32x32xf32>, vector<32x1024xf32>, vector<32x1024xf32> -> vector<32x1024xf32>
    %c2 = arith.constant 2 : index
    %c0_64 = arith.constant 0 : index
    %c0_65 = arith.constant 0 : index
    %118 = vector.load %arg11[%c2, %c0_64, %c0_65] : memref<3x32x1024xf32, #tpu.memory_space<vmem>>, vector<1x32x1024xf32>
    %119 = vector.shape_cast %118 : vector<1x32x1024xf32> to vector<32x1024xf32>
    %c2_66 = arith.constant 2 : index
    %c0_67 = arith.constant 0 : index
    %c0_68 = arith.constant 0 : index
    %120 = vector.load %arg12[%c2_66, %c0_67, %c0_68] : memref<3x32x1024xf32, #tpu.memory_space<vmem>>, vector<1x32x1024xf32>
    %121 = vector.shape_cast %120 : vector<1x32x1024xf32> to vector<32x1024xf32>
    %122 = arith.mulf %116, %119 : vector<32x1024xf32>
    %123 = arith.mulf %117, %121 : vector<32x1024xf32>
    %124 = arith.subf %122, %123 : vector<32x1024xf32>
    %125 = arith.mulf %116, %121 : vector<32x1024xf32>
    %126 = arith.mulf %117, %119 : vector<32x1024xf32>
    %127 = arith.addf %125, %126 : vector<32x1024xf32>
    %cst_69 = arith.constant dense<0.000000e+00> : vector<1x1024xf32>
    %128 = tpu.matmul %57, %124, %cst_69 {dimension_numbers = #tpu.dot_dimension_numbers<[1], [0], [0], [1], [0, 0, 1, 1], [], []>} : vector<1x32xf32>, vector<32x1024xf32>, vector<1x1024xf32> -> vector<1x1024xf32>
    %cst_70 = arith.constant dense<0.000000e+00> : vector<1x1024xf32>
    %129 = tpu.matmul %57, %127, %cst_70 {dimension_numbers = #tpu.dot_dimension_numbers<[1], [0], [0], [1], [0, 0, 1, 1], [], []>} : vector<1x32xf32>, vector<32x1024xf32>, vector<1x1024xf32> -> vector<1x1024xf32>
    %130 = vector.broadcast %128 : vector<1x1024xf32> to vector<32x1024xf32>
    %131 = arith.mulf %52, %130 : vector<32x1024xf32>
    %cst_71 = arith.constant dense<0.000000e+00> : vector<32x32xf32>
    %132 = tpu.matmul %131, %51, %cst_71 {dimension_numbers = #tpu.dot_dimension_numbers<[1], [1], [0], [0], [0, 0, 1, 0], [], []>} : vector<32x1024xf32>, vector<32x1024xf32>, vector<32x32xf32> -> vector<32x32xf32>
    %133 = vector.broadcast %129 : vector<1x1024xf32> to vector<32x1024xf32>
    %134 = arith.mulf %52, %133 : vector<32x1024xf32>
    %cst_72 = arith.constant dense<0.000000e+00> : vector<32x32xf32>
    %135 = tpu.matmul %134, %51, %cst_72 {dimension_numbers = #tpu.dot_dimension_numbers<[1], [1], [0], [0], [0, 0, 1, 0], [], []>} : vector<32x1024xf32>, vector<32x1024xf32>, vector<32x32xf32> -> vector<32x32xf32>
    %cst_73 = arith.constant dense<0.000000e+00> : vector<32x256xf32>
    %136 = tpu.matmul %132, %55, %cst_73 {dimension_numbers = #tpu.dot_dimension_numbers<[1], [0], [0], [1], [0, 0, 1, 1], [], []>} : vector<32x32xf32>, vector<32x256xf32>, vector<32x256xf32> -> vector<32x256xf32>
    %cst_74 = arith.constant dense<0.000000e+00> : vector<32x256xf32>
    %137 = tpu.matmul %135, %56, %cst_74 {dimension_numbers = #tpu.dot_dimension_numbers<[1], [0], [0], [1], [0, 0, 1, 1], [], []>} : vector<32x32xf32>, vector<32x256xf32>, vector<32x256xf32> -> vector<32x256xf32>
    %138 = arith.addf %136, %137 : vector<32x256xf32>
    %cst_75 = arith.constant 0.000000e+00 : f32
    %139 = vector.broadcast %cst_75 : f32 to vector<32x256xf32>
    %140 = arith.maximumf %138, %139 : vector<32x256xf32>
    %141 = arith.addf %113, %140 : vector<32x256xf32>
    %c0_76 = arith.constant 0 : index
    %c0_77 = arith.constant 0 : index
    %142 = vector.load %arg15[%c0_76, %c0_77] : memref<16x32xf32, #tpu.memory_space<vmem>>, vector<16x32xf32>
    %cst_78 = arith.constant dense<0.000000e+00> : vector<16x256xf32>
    %143 = tpu.matmul %142, %141, %cst_78 {dimension_numbers = #tpu.dot_dimension_numbers<[1], [0], [0], [1], [0, 0, 1, 1], [], []>} : vector<16x32xf32>, vector<32x256xf32>, vector<16x256xf32> -> vector<16x256xf32>
    %c0_79 = arith.constant 0 : index
    %c0_80 = arith.constant 0 : index
    %144 = vector.load %arg16[%c0_79, %c0_80] : memref<16x1xf32, #tpu.memory_space<vmem>>, vector<16x1xf32>
    %145 = vector.broadcast %144 : vector<16x1xf32> to vector<16x256xf32>
    %146 = arith.addf %143, %145 : vector<16x256xf32>
    %cst_81 = arith.constant 0.000000e+00 : f32
    %147 = vector.broadcast %cst_81 : f32 to vector<16x256xf32>
    %148 = arith.maximumf %146, %147 : vector<16x256xf32>
    %c0_82 = arith.constant 0 : index
    %c0_83 = arith.constant 0 : index
    %149 = vector.load %arg17[%c0_82, %c0_83] : memref<1x16xf32, #tpu.memory_space<vmem>>, vector<1x16xf32>
    %cst_84 = arith.constant dense<0.000000e+00> : vector<1x256xf32>
    %150 = tpu.matmul %149, %148, %cst_84 {dimension_numbers = #tpu.dot_dimension_numbers<[1], [0], [0], [1], [0, 0, 1, 1], [], []>} : vector<1x16xf32>, vector<16x256xf32>, vector<1x256xf32> -> vector<1x256xf32>
    %c0_85 = arith.constant 0 : index
    %c0_86 = arith.constant 0 : index
    %151 = vector.load %arg18[%c0_85, %c0_86] : memref<1x1xf32, #tpu.memory_space<vmem>>, vector<1x1xf32>
    %152 = vector.broadcast %151 : vector<1x1xf32> to vector<1x256xf32>
    %153 = arith.addf %150, %152 : vector<1x256xf32>
    %c0_87 = arith.constant 0 : index
    %c0_88 = arith.constant 0 : index
    %c0_89 = arith.constant 0 : index
    %154 = vector.load %arg19[%c0_87, %c0_88, %c0_89] : memref<1x1x256xf32, #tpu.memory_space<vmem>>, vector<1x1x256xf32>
    %155 = vector.shape_cast %154 : vector<1x1x256xf32> to vector<1x256xf32>
    %156 = vector.shape_cast %153 : vector<1x256xf32> to vector<1x1x256xf32>
    tpu.vector_store %arg19[%c0_87, %c0_88, %c0_89], %156 {strides = array<i32>} : memref<1x1x256xf32, #tpu.memory_space<vmem>>, vector<1x1x256xf32>,
    return
  }
  func.func @transform_0(%arg0: i32) -> (i32, i32, i32) {
    %c0_i32 = arith.constant 0 : i32
    %c0_i32_0 = arith.constant 0 : i32
    %c0_i32_1 = arith.constant 0 : i32
    return %arg0, %c0_i32, %c0_i32_0 : i32, i32, i32
  }
  func.func @transform_1(%arg0: i32) -> (i32, i32) {
    %c0_i32 = arith.constant 0 : i32
    %c0_i32_0 = arith.constant 0 : i32
    %c0_i32_1 = arith.constant 0 : i32
    return %c0_i32, %c0_i32_0 : i32, i32
  }
  func.func @transform_2(%arg0: i32) -> (i32, i32) {
    %c0_i32 = arith.constant 0 : i32
    %c0_i32_0 = arith.constant 0 : i32
    %c0_i32_1 = arith.constant 0 : i32
    return %c0_i32, %c0_i32_0 : i32, i32
  }
  func.func @transform_3(%arg0: i32) -> (i32, i32) {
    %c0_i32 = arith.constant 0 : i32
    %c0_i32_0 = arith.constant 0 : i32
    %c0_i32_1 = arith.constant 0 : i32
    return %c0_i32, %c0_i32_0 : i32, i32
  }
  func.func @transform_4(%arg0: i32) -> (i32, i32) {
    %c0_i32 = arith.constant 0 : i32
    %c0_i32_0 = arith.constant 0 : i32
    %c0_i32_1 = arith.constant 0 : i32
    return %c0_i32, %c0_i32_0 : i32, i32
  }
  func.func @transform_5(%arg0: i32) -> (i32, i32) {
    %c0_i32 = arith.constant 0 : i32
    %c0_i32_0 = arith.constant 0 : i32
    %c0_i32_1 = arith.constant 0 : i32
    return %c0_i32, %c0_i32_0 : i32, i32
  }
  func.func @transform_6(%arg0: i32) -> (i32, i32) {
    %c0_i32 = arith.constant 0 : i32
    %c0_i32_0 = arith.constant 0 : i32
    %c0_i32_1 = arith.constant 0 : i32
    return %c0_i32, %c0_i32_0 : i32, i32
  }
  func.func @transform_7(%arg0: i32) -> (i32, i32) {
    %c0_i32 = arith.constant 0 : i32
    %c0_i32_0 = arith.constant 0 : i32
    %c0_i32_1 = arith.constant 0 : i32
    return %c0_i32, %c0_i32_0 : i32, i32
  }
  func.func @transform_8(%arg0: i32) -> (i32, i32) {
    %c0_i32 = arith.constant 0 : i32
    %c0_i32_0 = arith.constant 0 : i32
    %c0_i32_1 = arith.constant 0 : i32
    return %c0_i32, %c0_i32_0 : i32, i32
  }
  func.func @transform_9(%arg0: i32) -> (i32, i32) {
    %c0_i32 = arith.constant 0 : i32
    %c0_i32_0 = arith.constant 0 : i32
    %c0_i32_1 = arith.constant 0 : i32
    return %c0_i32, %c0_i32_0 : i32, i32
  }
  func.func @transform_10(%arg0: i32) -> (i32, i32, i32) {
    %c0_i32 = arith.constant 0 : i32
    %c0_i32_0 = arith.constant 0 : i32
    %c0_i32_1 = arith.constant 0 : i32
    %c0_i32_2 = arith.constant 0 : i32
    return %c0_i32, %c0_i32_0, %c0_i32_1 : i32, i32, i32
  }
  func.func @transform_11(%arg0: i32) -> (i32, i32, i32) {
    %c0_i32 = arith.constant 0 : i32
    %c0_i32_0 = arith.constant 0 : i32
    %c0_i32_1 = arith.constant 0 : i32
    %c0_i32_2 = arith.constant 0 : i32
    return %c0_i32, %c0_i32_0, %c0_i32_1 : i32, i32, i32
  }
  func.func @transform_12(%arg0: i32) -> (i32, i32) {
    %c0_i32 = arith.constant 0 : i32
    %c0_i32_0 = arith.constant 0 : i32
    %c0_i32_1 = arith.constant 0 : i32
    return %c0_i32, %c0_i32_0 : i32, i32
  }
  func.func @transform_13(%arg0: i32) -> (i32, i32) {
    %c0_i32 = arith.constant 0 : i32
    %c0_i32_0 = arith.constant 0 : i32
    %c0_i32_1 = arith.constant 0 : i32
    return %c0_i32, %c0_i32_0 : i32, i32
  }
  func.func @transform_14(%arg0: i32) -> (i32, i32) {
    %c0_i32 = arith.constant 0 : i32
    %c0_i32_0 = arith.constant 0 : i32
    %c0_i32_1 = arith.constant 0 : i32
    return %c0_i32, %c0_i32_0 : i32, i32
  }
  func.func @transform_15(%arg0: i32) -> (i32, i32) {
    %c0_i32 = arith.constant 0 : i32
    %c0_i32_0 = arith.constant 0 : i32
    %c0_i32_1 = arith.constant 0 : i32
    return %c0_i32, %c0_i32_0 : i32, i32
  }
  func.func @transform_16(%arg0: i32) -> (i32, i32) {
    %c0_i32 = arith.constant 0 : i32
    %c0_i32_0 = arith.constant 0 : i32
    %c0_i32_1 = arith.constant 0 : i32
    return %c0_i32, %c0_i32_0 : i32, i32
  }
  func.func @transform_17(%arg0: i32) -> (i32, i32) {
    %c0_i32 = arith.constant 0 : i32
    %c0_i32_0 = arith.constant 0 : i32
    %c0_i32_1 = arith.constant 0 : i32
    return %c0_i32, %c0_i32_0 : i32, i32
  }
  func.func @transform_18(%arg0: i32) -> (i32, i32, i32) {
    %c0_i32 = arith.constant 0 : i32
    %c0_i32_0 = arith.constant 0 : i32
    %c0_i32_1 = arith.constant 0 : i32
    return %arg0, %c0_i32, %c0_i32_0 : i32, i32, i32
  }
}

</mosaic_0001>

<llo_original>
// kernel: neural_operator_forward.1
$region0: #{neural_operator_forward.1}
  #allocation0 [shape = 'u32[]', space=smem, size = 0x4, offset = 0x4, fixed_abs, tag = 'smem constant byte address 0x4 - core index']
  #allocation1 [shape = 'u32[72,128]{1,0:T(1,128)}', space=vmem, size = 0x9000, scoped, tag = 'internal scratch']
  #allocation2 [shape = 'f32[1,1]{1,0:T(1,128)S(1)}', space=vmem, size = 0x200, scoped, tag = 'scoped memory for neural_operator_forward.1']
  %s0 = inlined_call_operand.vmem [shape: f32[2,25,256], index: 0, kind: input, shape index: {}]
  %s1 = inlined_call_operand.vmem [shape: f32[16,25], index: 1, kind: input, shape index: {}]
  %s2 = inlined_call_operand.vmem [shape: f32[16,1], index: 2, kind: input, shape index: {}]
  %s3 = inlined_call_operand.vmem [shape: f32[9,256], index: 3, kind: input, shape index: {}]
  %s4 = inlined_call_operand.vmem [shape: f32[32,144], index: 4, kind: input, shape index: {}]
  %s5 = inlined_call_operand.vmem [shape: f32[32,1], index: 5, kind: input, shape index: {}]
  %s6 = inlined_call_operand.vmem [shape: f32[256,32], index: 6, kind: input, shape index: {}]
  %s7 = inlined_call_operand.vmem [shape: f32[256,32], index: 7, kind: input, shape index: {}]
  %s8 = inlined_call_operand.vmem [shape: f32[32,256], index: 8, kind: input, shape index: {}]
  %s9 = inlined_call_operand.vmem [shape: f32[32,256], index: 9, kind: input, shape index: {}]
  %s10 = inlined_call_operand.vmem [shape: f32[3,32,1024], index: 10, kind: input, shape index: {}]
  %s11 = inlined_call_operand.hbm [shape: f32[3,32,1024], index: 11, kind: input, shape index: {}]
  %s12 = inlined_call_operand.vmem [shape: f32[32,1024], index: 12, kind: input, shape index: {}]
  %s13 = inlined_call_operand.vmem [shape: f32[32,1024], index: 13, kind: input, shape index: {}]
  %s14 = inlined_call_operand.vmem [shape: f32[16,32], index: 14, kind: input, shape index: {}]
  %s15 = inlined_call_operand.vmem [shape: f32[16,1], index: 15, kind: input, shape index: {}]
  %s16 = inlined_call_operand.vmem [shape: f32[1,16], index: 16, kind: input, shape index: {}]
  %s17 = inlined_call_operand.<no memory space> [shape: f32[1,1], index: 17, kind: input, shape index: {}]
  %s18 = inlined_call_operand.vmem [shape: f32[2,1,256], index: 18, kind: output, shape index: {}]
  %s19 = sld [smem:[#allocation0]]
  $region109: #{neural_operator_forward.1} parent=0
    _
  %s21 = ssub.s32 1, %s19
  %s22 = scalar_select 0, %s21, %s19
  %v23 = vstv %s17
  %24 = vst [vmem:[#allocation2] sm:$0x1] %v23
  $region1: #{neural_operator_forward.1} parent=0
    #allocation3 [shape = 'u8[393216]{0}', space=vmem, size = 0x60000, scoped, tag = 'input window, operand 11, single buffered']
    #allocation4 [shape = 's32[2]{0}', space=sflag, size = 0x8, scoped, tag = 'scoped memory for neural_operator_forward.1']
    %25 = vsyncpa [#allocation4], 0
    loop: start=0, step=1, limit=4
    $region2: #{neural_operator_forward.1} parent=1 // loop_pre_header
      _
    $region3: #{neural_operator_forward.1} parent=1 // loop_header
      %s27 = sphi 0, %s31
      %p28 = scmp.ge.s32.totalorder %s27, 4
      %s37 = sphi 0, %s39
      %s40 = sphi 0, %s37
      %s41 = sphi 0, %s40
      %s57 = sphi 0, %s41
      %s61 = sphi 0, %s61
      %s63 = sphi 0, %s61
      %s64 = sphi 0, %s63
      %s78 = sphi 0, %s64
      %s82 = sphi 0, %s82
      %s84 = sphi 0, %s82
      %s85 = sphi 0, %s84
      %s99 = sphi 0, %s85
      %s103 = sphi 0, %s103
      %s105 = sphi 0, %s103
      %s106 = sphi 0, %s105
      %s120 = sphi 0, %s106
      %s124 = sphi 0, %s124
      %s126 = sphi 0, %s124
      %s127 = sphi 0, %s126
      %s141 = sphi 0, %s127
      %s145 = sphi 0, %s145
      %s147 = sphi 0, %s145
      %s148 = sphi 0, %s147
      %s162 = sphi 0, %s148
      %s166 = sphi 0, %s166
      %s168 = sphi 0, %s166
      %s169 = sphi 0, %s168
      %s183 = sphi 0, %s169
      %s187 = sphi 0, %s187
      %s189 = sphi 0, %s187
      %s190 = sphi 0, %s189
      %s204 = sphi 0, %s190
      %s208 = sphi 0, %s208
      %s210 = sphi 0, %s208
      %s211 = sphi 0, %s210
      %s225 = sphi 0, %s211
      %s229 = sphi 0, %s229
      %s231 = sphi 0, %s229
      %s232 = sphi 0, %s231
      %s246 = sphi 0, %s232
      %s250 = sphi 0, %s250
      %s252 = sphi 0, %s250
      %s253 = sphi 0, %s252
      %s267 = sphi 0, %s253
      %s271 = sphi 0, %s271
      %s273 = sphi 0, %s271
      %s274 = sphi 0, %s273
      %s288 = sphi 0, %s274
      %s292 = sphi 0, %s292
      %s294 = sphi 0, %s292
      %s295 = sphi 0, %s294
      %s309 = sphi 0, %s295
      %s313 = sphi 0, %s313
      %s315 = sphi 0, %s313
      %s316 = sphi 0, %s315
      %s330 = sphi 0, %s316
      %s334 = sphi 0, %s334
      %s336 = sphi 0, %s334
      %s337 = sphi 0, %s336
      %s351 = sphi 0, %s337
      %s355 = sphi 0, %s355
      %s357 = sphi 0, %s355
      %s358 = sphi 0, %s357
      %s372 = sphi 0, %s358
      %s376 = sphi 0, %s376
      %s378 = sphi 0, %s376
      %s379 = sphi 0, %s378
      %s393 = sphi 0, %s379
      %s397 = sphi 0, %s397
      %s399 = sphi 0, %s397
      %s400 = sphi 0, %s399
      %s414 = sphi 0, %s400
      %s420 = sphi 0, %s422
      %s423 = sphi 0, %s420
      %s424 = sphi 0, %s423
      %s440 = sphi 0, %s424
    $region4: #{neural_operator_forward.1} parent=1 // loop_header_branch
      %30 = sbr.rel (%p28) target = $region8
    $region5: #{neural_operator_forward.1} parent=1 // loop_body
      %s32 = ssub.s32 %s27, 1
      %s33 = ssub.s32 %s27, 2
      %s34 = sadd.s32 %s27, 1
      %s35 = ssub.s32 %s27, %s34
      %p36 = scmp.eq.s32.totalorder %s35, 0
      %s38 = sadd.s32 %s37, 1
      %s39 = scalar_select %p36, %s37, %s38
      %p42 = pneg %p36
      %p43 = scmp.eq.s32.totalorder %s27, 1
      %p44 = por %p42, %p43
      %p45 = scmp.ne.s32.totalorder %s37, %s40
      %p46 = scmp.eq.s32.totalorder %s27, 0
      %p47 = por %p45, %p46
      %p48 = scmp.ne.s32.totalorder %s37, %s40
      %p49 = scmp.eq.s32.totalorder %s32, 1
      %p50 = por %p48, %p49
      %p51 = scmp.ne.s32.totalorder %s40, %s41
      %p52 = scmp.eq.s32.totalorder %s32, 0
      %p53 = por %p51, %p52
      %p54 = scmp.ne.s32.totalorder %s40, %s41
      %p55 = scmp.eq.s32.totalorder %s33, 1
      %p56 = por %p54, %p55
      %p58 = scmp.ne.s32.totalorder %s41, %s57
      %p59 = scmp.eq.s32.totalorder %s33, 0
      %p60 = por %p58, %p59
      %s62 = sadd.s32 %s61, 1
      %p65 = scmp.eq.s32.totalorder %s27, 1
      %p66 = scmp.ne.s32.totalorder %s61, %s63
      %p67 = scmp.eq.s32.totalorder %s27, 0
      %p68 = por %p66, %p67
      %p69 = scmp.ne.s32.totalorder %s61, %s63
      %p70 = scmp.eq.s32.totalorder %s32, 1
      %p71 = por %p69, %p70
      %p72 = scmp.ne.s32.totalorder %s63, %s64
      %p73 = scmp.eq.s32.totalorder %s32, 0
      %p74 = por %p72, %p73
      %p75 = scmp.ne.s32.totalorder %s63, %s64
      %p76 = scmp.eq.s32.totalorder %s33, 1
      %p77 = por %p75, %p76
      %p79 = scmp.ne.s32.totalorder %s64, %s78
      %p80 = scmp.eq.s32.totalorder %s33, 0
      %p81 = por %p79, %p80
      %s83 = sadd.s32 %s82, 1
      %p86 = scmp.eq.s32.totalorder %s27, 1
      %p87 = scmp.ne.s32.totalorder %s82, %s84
      %p88 = scmp.eq.s32.totalorder %s27, 0
      %p89 = por %p87, %p88
      %p90 = scmp.ne.s32.totalorder %s82, %s84
      %p91 = scmp.eq.s32.totalorder %s32, 1
      %p92 = por %p90, %p91
      %p93 = scmp.ne.s32.totalorder %s84, %s85
      %p94 = scmp.eq.s32.totalorder %s32, 0
      %p95 = por %p93, %p94
      %p96 = scmp.ne.s32.totalorder %s84, %s85
      %p97 = scmp.eq.s32.totalorder %s33, 1
      %p98 = por %p96, %p97
      %p100 = scmp.ne.s32.totalorder %s85, %s99
      %p101 = scmp.eq.s32.totalorder %s33, 0
      %p102 = por %p100, %p101
      %s104 = sadd.s32 %s103, 1
      %p107 = scmp.eq.s32.totalorder %s27, 1
      %p108 = scmp.ne.s32.totalorder %s103, %s105
      %p109 = scmp.eq.s32.totalorder %s27, 0
      %p110 = por %p108, %p109
      %p111 = scmp.ne.s32.totalorder %s103, %s105
      %p112 = scmp.eq.s32.totalorder %s32, 1
      %p113 = por %p111, %p112
      %p114 = scmp.ne.s32.totalorder %s105, %s106
      %p115 = scmp.eq.s32.totalorder %s32, 0
      %p116 = por %p114, %p115
      %p117 = scmp.ne.s32.totalorder %s105, %s106
      %p118 = scmp.eq.s32.totalorder %s33, 1
      %p119 = por %p117, %p118
      %p121 = scmp.ne.s32.totalorder %s106, %s120
      %p122 = scmp.eq.s32.totalorder %s33, 0
      %p123 = por %p121, %p122
      %s125 = sadd.s32 %s124, 1
      %p128 = scmp.eq.s32.totalorder %s27, 1
      %p129 = scmp.ne.s32.totalorder %s124, %s126
      %p130 = scmp.eq.s32.totalorder %s27, 0
      %p131 = por %p129, %p130
      %p132 = scmp.ne.s32.totalorder %s124, %s126
      %p133 = scmp.eq.s32.totalorder %s32, 1
      %p134 = por %p132, %p133
      %p135 = scmp.ne.s32.totalorder %s126, %s127
      %p136 = scmp.eq.s32.totalorder %s32, 0
      %p137 = por %p135, %p136
      %p138 = scmp.ne.s32.totalorder %s126, %s127
      %p139 = scmp.eq.s32.totalorder %s33, 1
      %p140 = por %p138, %p139
      %p142 = scmp.ne.s32.totalorder %s127, %s141
      %p143 = scmp.eq.s32.totalorder %s33, 0
      %p144 = por %p142, %p143
      %s146 = sadd.s32 %s145, 1
      %p149 = scmp.eq.s32.totalorder %s27, 1
      %p150 = scmp.ne.s32.totalorder %s145, %s147
      %p151 = scmp.eq.s32.totalorder %s27, 0
      %p152 = por %p150, %p151
      %p153 = scmp.ne.s32.totalorder %s145, %s147
      %p154 = scmp.eq.s32.totalorder %s32, 1
      %p155 = por %p153, %p154
      %p156 = scmp.ne.s32.totalorder %s147, %s148
      %p157 = scmp.eq.s32.totalorder %s32, 0
      %p158 = por %p156, %p157
      %p159 = scmp.ne.s32.totalorder %s147, %s148
      %p160 = scmp.eq.s32.totalorder %s33, 1
      %p161 = por %p159, %p160
      %p163 = scmp.ne.s32.totalorder %s148, %s162
      %p164 = scmp.eq.s32.totalorder %s33, 0
      %p165 = por %p163, %p164
      %s167 = sadd.s32 %s166, 1
      %p170 = scmp.eq.s32.totalorder %s27, 1
      %p171 = scmp.ne.s32.totalorder %s166, %s168
      %p172 = scmp.eq.s32.totalorder %s27, 0
      %p173 = por %p171, %p172
      %p174 = scmp.ne.s32.totalorder %s166, %s168
      %p175 = scmp.eq.s32.totalorder %s32, 1
      %p176 = por %p174, %p175
      %p177 = scmp.ne.s32.totalorder %s168, %s169
      %p178 = scmp.eq.s32.totalorder %s32, 0
      %p179 = por %p177, %p178
      %p180 = scmp.ne.s32.totalorder %s168, %s169
      %p181 = scmp.eq.s32.totalorder %s33, 1
      %p182 = por %p180, %p181
      %p184 = scmp.ne.s32.totalorder %s169, %s183
      %p185 = scmp.eq.s32.totalorder %s33, 0
      %p186 = por %p184, %p185
      %s188 = sadd.s32 %s187, 1
      %p191 = scmp.eq.s32.totalorder %s27, 1
      %p192 = scmp.ne.s32.totalorder %s187, %s189
      %p193 = scmp.eq.s32.totalorder %s27, 0
      %p194 = por %p192, %p193
      %p195 = scmp.ne.s32.totalorder %s187, %s189
      %p196 = scmp.eq.s32.totalorder %s32, 1
      %p197 = por %p195, %p196
      %p198 = scmp.ne.s32.totalorder %s189, %s190
      %p199 = scmp.eq.s32.totalorder %s32, 0
      %p200 = por %p198, %p199
      %p201 = scmp.ne.s32.totalorder %s189, %s190
      %p202 = scmp.eq.s32.totalorder %s33, 1
      %p203 = por %p201, %p202
      %p205 = scmp.ne.s32.totalorder %s190, %s204
      %p206 = scmp.eq.s32.totalorder %s33, 0
      %p207 = por %p205, %p206
      %s209 = sadd.s32 %s208, 1
      %p212 = scmp.eq.s32.totalorder %s27, 1
      %p213 = scmp.ne.s32.totalorder %s208, %s210
      %p214 = scmp.eq.s32.totalorder %s27, 0
      %p215 = por %p213, %p214
      %p216 = scmp.ne.s32.totalorder %s208, %s210
      %p217 = scmp.eq.s32.totalorder %s32, 1
      %p218 = por %p216, %p217
      %p219 = scmp.ne.s32.totalorder %s210, %s211
      %p220 = scmp.eq.s32.totalorder %s32, 0
      %p221 = por %p219, %p220
      %p222 = scmp.ne.s32.totalorder %s210, %s211
      %p223 = scmp.eq.s32.totalorder %s33, 1
      %p224 = por %p222, %p223
      %p226 = scmp.ne.s32.totalorder %s211, %s225
      %p227 = scmp.eq.s32.totalorder %s33, 0
      %p228 = por %p226, %p227
      %s230 = sadd.s32 %s229, 1
      %p233 = scmp.eq.s32.totalorder %s27, 1
      %p234 = scmp.ne.s32.totalorder %s229, %s231
      %p235 = scmp.eq.s32.totalorder %s27, 0
      %p236 = por %p234, %p235
      %p237 = scmp.ne.s32.totalorder %s229, %s231
      %p238 = scmp.eq.s32.totalorder %s32, 1
      %p239 = por %p237, %p238
      %p240 = scmp.ne.s32.totalorder %s231, %s232
      %p241 = scmp.eq.s32.totalorder %s32, 0
      %p242 = por %p240, %p241
      %p243 = scmp.ne.s32.totalorder %s231, %s232
      %p244 = scmp.eq.s32.totalorder %s33, 1
      %p245 = por %p243, %p244
      %p247 = scmp.ne.s32.totalorder %s232, %s246
      %p248 = scmp.eq.s32.totalorder %s33, 0
      %p249 = por %p247, %p248
      %s251 = sadd.s32 %s250, 1
      %p254 = scmp.eq.s32.totalorder %s27, 1
      %p255 = scmp.ne.s32.totalorder %s250, %s252
      %p256 = scmp.eq.s32.totalorder %s27, 0
      %p257 = por %p255, %p256
      %p258 = scmp.ne.s32.totalorder %s250, %s252
      %p259 = scmp.eq.s32.totalorder %s32, 1
      %p260 = por %p258, %p259
      %p261 = scmp.ne.s32.totalorder %s252, %s253
      %p262 = scmp.eq.s32.totalorder %s32, 0
      %p263 = por %p261, %p262
      %p264 = scmp.ne.s32.totalorder %s252, %s253
      %p265 = scmp.eq.s32.totalorder %s33, 1
      %p266 = por %p264, %p265
      %p268 = scmp.ne.s32.totalorder %s253, %s267
      %p269 = scmp.eq.s32.totalorder %s33, 0
      %p270 = por %p268, %p269
      %s272 = sadd.s32 %s271, 1
      %p275 = scmp.eq.s32.totalorder %s27, 1
      %p276 = scmp.ne.s32.totalorder %s271, %s273
      %p277 = scmp.eq.s32.totalorder %s27, 0
      %p278 = por %p276, %p277
      %p279 = scmp.ne.s32.totalorder %s271, %s273
      %p280 = scmp.eq.s32.totalorder %s32, 1
      %p281 = por %p279, %p280
      %p282 = scmp.ne.s32.totalorder %s273, %s274
      %p283 = scmp.eq.s32.totalorder %s32, 0
      %p284 = por %p282, %p283
      %p285 = scmp.ne.s32.totalorder %s273, %s274
      %p286 = scmp.eq.s32.totalorder %s33, 1
      %p287 = por %p285, %p286
      %p289 = scmp.ne.s32.totalorder %s274, %s288
      %p290 = scmp.eq.s32.totalorder %s33, 0
      %p291 = por %p289, %p290
      %s293 = sadd.s32 %s292, 1
      %p296 = scmp.eq.s32.totalorder %s27, 1
      %p297 = scmp.ne.s32.totalorder %s292, %s294
      %p298 = scmp.eq.s32.totalorder %s27, 0
      %p299 = por %p297, %p298
      %p300 = scmp.ne.s32.totalorder %s292, %s294
      %p301 = scmp.eq.s32.totalorder %s32, 1
      %p302 = por %p300, %p301
      %p303 = scmp.ne.s32.totalorder %s294, %s295
      %p304 = scmp.eq.s32.totalorder %s32, 0
      %p305 = por %p303, %p304
      %p306 = scmp.ne.s32.totalorder %s294, %s295
      %p307 = scmp.eq.s32.totalorder %s33, 1
      %p308 = por %p306, %p307
      %p310 = scmp.ne.s32.totalorder %s295, %s309
      %p311 = scmp.eq.s32.totalorder %s33, 0
      %p312 = por %p310, %p311
      %s314 = sadd.s32 %s313, 1
      %p317 = scmp.eq.s32.totalorder %s27, 1
      %p318 = scmp.ne.s32.totalorder %s313, %s315
      %p319 = scmp.eq.s32.totalorder %s27, 0
      %p320 = por %p318, %p319
      %p321 = scmp.ne.s32.totalorder %s313, %s315
      %p322 = scmp.eq.s32.totalorder %s32, 1
      %p323 = por %p321, %p322
      %p324 = scmp.ne.s32.totalorder %s315, %s316
      %p325 = scmp.eq.s32.totalorder %s32, 0
      %p326 = por %p324, %p325
      %p327 = scmp.ne.s32.totalorder %s315, %s316
      %p328 = scmp.eq.s32.totalorder %s33, 1
      %p329 = por %p327, %p328
      %p331 = scmp.ne.s32.totalorder %s316, %s330
      %p332 = scmp.eq.s32.totalorder %s33, 0
      %p333 = por %p331, %p332
      %s335 = sadd.s32 %s334, 1
      %p338 = scmp.eq.s32.totalorder %s27, 1
      %p339 = scmp.ne.s32.totalorder %s334, %s336
      %p340 = scmp.eq.s32.totalorder %s27, 0
      %p341 = por %p339, %p340
      %p342 = scmp.ne.s32.totalorder %s334, %s336
      %p343 = scmp.eq.s32.totalorder %s32, 1
      %p344 = por %p342, %p343
      %p345 = scmp.ne.s32.totalorder %s336, %s337
      %p346 = scmp.eq.s32.totalorder %s32, 0
      %p347 = por %p345, %p346
      %p348 = scmp.ne.s32.totalorder %s336, %s337
      %p349 = scmp.eq.s32.totalorder %s33, 1
      %p350 = por %p348, %p349
      %p352 = scmp.ne.s32.totalorder %s337, %s351
      %p353 = scmp.eq.s32.totalorder %s33, 0
      %p354 = por %p352, %p353
      %s356 = sadd.s32 %s355, 1
      %p359 = scmp.eq.s32.totalorder %s27, 1
      %p360 = scmp.ne.s32.totalorder %s355, %s357
      %p361 = scmp.eq.s32.totalorder %s27, 0
      %p362 = por %p360, %p361
      %p363 = scmp.ne.s32.totalorder %s355, %s357
      %p364 = scmp.eq.s32.totalorder %s32, 1
      %p365 = por %p363, %p364
      %p366 = scmp.ne.s32.totalorder %s357, %s358
      %p367 = scmp.eq.s32.totalorder %s32, 0
      %p368 = por %p366, %p367
      %p369 = scmp.ne.s32.totalorder %s357, %s358
      %p370 = scmp.eq.s32.totalorder %s33, 1
      %p371 = por %p369, %p370
      %p373 = scmp.ne.s32.totalorder %s358, %s372
      %p374 = scmp.eq.s32.totalorder %s33, 0
      %p375 = por %p373, %p374
      %s377 = sadd.s32 %s376, 1
      %p380 = scmp.eq.s32.totalorder %s27, 1
      %p381 = scmp.ne.s32.totalorder %s376, %s378
      %p382 = scmp.eq.s32.totalorder %s27, 0
      %p383 = por %p381, %p382
      %p384 = scmp.ne.s32.totalorder %s376, %s378
      %p385 = scmp.eq.s32.totalorder %s32, 1
      %p386 = por %p384, %p385
      %p387 = scmp.ne.s32.totalorder %s378, %s379
      %p388 = scmp.eq.s32.totalorder %s32, 0
      %p389 = por %p387, %p388
      %p390 = scmp.ne.s32.totalorder %s378, %s379
      %p391 = scmp.eq.s32.totalorder %s33, 1
      %p392 = por %p390, %p391
      %p394 = scmp.ne.s32.totalorder %s379, %s393
      %p395 = scmp.eq.s32.totalorder %s33, 0
      %p396 = por %p394, %p395
      %s398 = sadd.s32 %s397, 1
      %p401 = scmp.eq.s32.totalorder %s27, 1
      %p402 = scmp.ne.s32.totalorder %s397, %s399
      %p403 = scmp.eq.s32.totalorder %s27, 0
      %p404 = por %p402, %p403
      %p405 = scmp.ne.s32.totalorder %s397, %s399
      %p406 = scmp.eq.s32.totalorder %s32, 1
      %p407 = por %p405, %p406
      %p408 = scmp.ne.s32.totalorder %s399, %s400
      %p409 = scmp.eq.s32.totalorder %s32, 0
      %p410 = por %p408, %p409
      %p411 = scmp.ne.s32.totalorder %s399, %s400
      %p412 = scmp.eq.s32.totalorder %s33, 1
      %p413 = por %p411, %p412
      %p415 = scmp.ne.s32.totalorder %s400, %s414
      %p416 = scmp.eq.s32.totalorder %s33, 0
      %p417 = por %p415, %p416
      %s418 = ssub.s32 %s27, %s34
      %p419 = scmp.eq.s32.totalorder %s418, 0
      %s421 = sadd.s32 %s420, 1
      %s422 = scalar_select %p419, %s420, %s421
      %p425 = pneg %p419
      %p426 = scmp.eq.s32.totalorder %s27, 1
      %p427 = por %p425, %p426
      %p428 = scmp.ne.s32.totalorder %s420, %s423
      %p429 = scmp.eq.s32.totalorder %s27, 0
      %p430 = por %p428, %p429
      %p431 = scmp.ne.s32.totalorder %s420, %s423
      %p432 = scmp.eq.s32.totalorder %s32, 1
      %p433 = por %p431, %p432
      %p434 = scmp.ne.s32.totalorder %s423, %s424
      %p435 = scmp.eq.s32.totalorder %s32, 0
      %p436 = por %p434, %p435
      %p437 = scmp.ne.s32.totalorder %s423, %s424
      %p438 = scmp.eq.s32.totalorder %s33, 1
      %p439 = por %p437, %p438
      %p441 = scmp.ne.s32.totalorder %s424, %s440
      %p442 = scmp.eq.s32.totalorder %s33, 0
      %p443 = por %p441, %p442
      %p444 = scmp.le.s32.totalorder 1, %s27
      %p445 = scmp.lt.s32.totalorder %s27, 3
      %p446 = pnand %p444, %p445
      %p447 = pneg %p446
      // Predicated region
      $region9: #{neural_operator_forward.1} parent=5 // pred_check
        _
      $region10: #{neural_operator_forward.1} parent=5 // pred_check_branch
        %449 = sbr.rel (%p446) target = $region12
      $region11: #{neural_operator_forward.1} parent=5 // pred_region
        %s450 = ssub.s32 %s27, 1
        // Predicated region
        $region13: #{neural_operator_forward.1} parent=11 // pred_check
          %p451 = pneg %p74
        $region14: #{neural_operator_forward.1} parent=11 // pred_check_branch
          %453 = sbr.rel (%p451) target = $region16
        $region15: #{neural_operator_forward.1} parent=11 // pred_region
          _
        $region16: #{neural_operator_forward.1} parent=11 // pred_fallthru
          _
        // Predicated region
        $region17: #{neural_operator_forward.1} parent=11 // pred_check
          %p454 = pneg %p95
        $region18: #{neural_operator_forward.1} parent=11 // pred_check_branch
          %456 = sbr.rel (%p454) target = $region20
        $region19: #{neural_operator_forward.1} parent=11 // pred_region
          _
        $region20: #{neural_operator_forward.1} parent=11 // pred_fallthru
          _
        // Predicated region
        $region21: #{neural_operator_forward.1} parent=11 // pred_check
          %p457 = pneg %p116
        $region22: #{neural_operator_forward.1} parent=11 // pred_check_branch
          %459 = sbr.rel (%p457) target = $region24
        $region23: #{neural_operator_forward.1} parent=11 // pred_region
          _
        $region24: #{neural_operator_forward.1} parent=11 // pred_fallthru
          _
        // Predicated region
        $region25: #{neural_operator_forward.1} parent=11 // pred_check
          %p460 = pneg %p137
        $region26: #{neural_operator_forward.1} parent=11 // pred_check_branch
          %462 = sbr.rel (%p460) target = $region28
        $region27: #{neural_operator_forward.1} parent=11 // pred_region
          _
        $region28: #{neural_operator_forward.1} parent=11 // pred_fallthru
          _
        // Predicated region
        $region29: #{neural_operator_forward.1} parent=11 // pred_check
          %p463 = pneg %p158
        $region30: #{neural_operator_forward.1} parent=11 // pred_check_branch
          %465 = sbr.rel (%p463) target = $region32
        $region31: #{neural_operator_forward.1} parent=11 // pred_region
          _
        $region32: #{neural_operator_forward.1} parent=11 // pred_fallthru
          _
        // Predicated region
        $region33: #{neural_operator_forward.1} parent=11 // pred_check
          %p466 = pneg %p179
        $region34: #{neural_operator_forward.1} parent=11 // pred_check_branch
          %468 = sbr.rel (%p466) target = $region36
        $region35: #{neural_operator_forward.1} parent=11 // pred_region
          _
        $region36: #{neural_operator_forward.1} parent=11 // pred_fallthru
          _
        // Predicated region
        $region37: #{neural_operator_forward.1} parent=11 // pred_check
          %p469 = pneg %p200
        $region38: #{neural_operator_forward.1} parent=11 // pred_check_branch
          %471 = sbr.rel (%p469) target = $region40
        $region39: #{neural_operator_forward.1} parent=11 // pred_region
          _
        $region40: #{neural_operator_forward.1} parent=11 // pred_fallthru
          _
        // Predicated region
        $region41: #{neural_operator_forward.1} parent=11 // pred_check
          %p472 = pneg %p221
        $region42: #{neural_operator_forward.1} parent=11 // pred_check_branch
          %474 = sbr.rel (%p472) target = $region44
        $region43: #{neural_operator_forward.1} parent=11 // pred_region
          _
        $region44: #{neural_operator_forward.1} parent=11 // pred_fallthru
          _
        // Predicated region
        $region45: #{neural_operator_forward.1} parent=11 // pred_check
          %p475 = pneg %p242
        $region46: #{neural_operator_forward.1} parent=11 // pred_check_branch
          %477 = sbr.rel (%p475) target = $region48
        $region47: #{neural_operator_forward.1} parent=11 // pred_region
          _
        $region48: #{neural_operator_forward.1} parent=11 // pred_fallthru
          _
        // Predicated region
        $region49: #{neural_operator_forward.1} parent=11 // pred_check
          %p478 = pneg %p263
        $region50: #{neural_operator_forward.1} parent=11 // pred_check_branch
          %480 = sbr.rel (%p478) target = $region52
        $region51: #{neural_operator_forward.1} parent=11 // pred_region
          _
        $region52: #{neural_operator_forward.1} parent=11 // pred_fallthru
          _
        // Predicated region
        $region53: #{neural_operator_forward.1} parent=11 // pred_check
          %p481 = pneg %p284
        $region54: #{neural_operator_forward.1} parent=11 // pred_check_branch
          %483 = sbr.rel (%p481) target = $region56
        $region55: #{neural_operator_forward.1} parent=11 // pred_region
          %485 = vsyncadd [#allocation4], 0
          %s486 = sshll.u32 %s11, 4
          %s487 = int_to_ptr.hbm [resolvable:$true] %s486
          %s488 = sshll.u32 [#allocation3], 4
          %s489 = int_to_ptr.vmem [resolvable:$true] %s488
          %494 = dma.hbm_to_vmem [thread:$0]  %s487, 12288, %s489, [#allocation4], 1024, 1024, 64
        $region56: #{neural_operator_forward.1} parent=11 // pred_fallthru
          _
        // Predicated region
        $region57: #{neural_operator_forward.1} parent=11 // pred_check
          %p495 = pneg %p305
        $region58: #{neural_operator_forward.1} parent=11 // pred_check_branch
          %497 = sbr.rel (%p495) target = $region60
        $region59: #{neural_operator_forward.1} parent=11 // pred_region
          _
        $region60: #{neural_operator_forward.1} parent=11 // pred_fallthru
          _
        // Predicated region
        $region61: #{neural_operator_forward.1} parent=11 // pred_check
          %p498 = pneg %p326
        $region62: #{neural_operator_forward.1} parent=11 // pred_check_branch
          %500 = sbr.rel (%p498) target = $region64
        $region63: #{neural_operator_forward.1} parent=11 // pred_region
          _
        $region64: #{neural_operator_forward.1} parent=11 // pred_fallthru
          _
        // Predicated region
        $region65: #{neural_operator_forward.1} parent=11 // pred_check
          %p501 = pneg %p347
        $region66: #{neural_operator_forward.1} parent=11 // pred_check_branch
          %503 = sbr.rel (%p501) target = $region68
        $region67: #{neural_operator_forward.1} parent=11 // pred_region
          _
        $region68: #{neural_operator_forward.1} parent=11 // pred_fallthru
          _
        // Predicated region
        $region69: #{neural_operator_forward.1} parent=11 // pred_check
          %p504 = pneg %p368
        $region70: #{neural_operator_forward.1} parent=11 // pred_check_branch
          %506 = sbr.rel (%p504) target = $region72
        $region71: #{neural_operator_forward.1} parent=11 // pred_region
          _
        $region72: #{neural_operator_forward.1} parent=11 // pred_fallthru
          _
        // Predicated region
        $region73: #{neural_operator_forward.1} parent=11 // pred_check
          %p507 = pneg %p389
        $region74: #{neural_operator_forward.1} parent=11 // pred_check_branch
          %509 = sbr.rel (%p507) target = $region76
        $region75: #{neural_operator_forward.1} parent=11 // pred_region
          _
        $region76: #{neural_operator_forward.1} parent=11 // pred_fallthru
          _
        // Predicated region
        $region77: #{neural_operator_forward.1} parent=11 // pred_check
          %p510 = pneg %p410
        $region78: #{neural_operator_forward.1} parent=11 // pred_check_branch
          %512 = sbr.rel (%p510) target = $region80
        $region79: #{neural_operator_forward.1} parent=11 // pred_region
          _
        $region80: #{neural_operator_forward.1} parent=11 // pred_fallthru
          _
      $region12: #{neural_operator_forward.1} parent=5 // pred_fallthru
        _
      %p513 = scmp.lt.s32.totalorder %s27, 2
      // Predicated region
      $region81: #{neural_operator_forward.1} parent=5 // pred_check
        %p514 = pneg %p513
      $region82: #{neural_operator_forward.1} parent=5 // pred_check_branch
        %516 = sbr.rel (%p514) target = $region84
      $region83: #{neural_operator_forward.1} parent=5 // pred_region
        // Predicated region
        $region85: #{neural_operator_forward.1} parent=83 // pred_check
          %p517 = pneg %p47
        $region86: #{neural_operator_forward.1} parent=83 // pred_check_branch
          %519 = sbr.rel (%p517) target = $region88
        $region87: #{neural_operator_forward.1} parent=83 // pred_region
          %p520 = scmp.lt.s32.totalorder %s27, 1
          %s521 = scalar_select %p520, %s27, 1
          %s522 = smul.addr %s521, 8
          %s523 = smul.addr %s522, 8
          %s524 = scalar_lea.vmem %s0, %s523
        $region88: #{neural_operator_forward.1} parent=83 // pred_fallthru
          _
      $region84: #{neural_operator_forward.1} parent=5 // pred_fallthru
        _
      %p525 = scmp.le.s32.totalorder 1, %s27
      %p526 = scmp.lt.s32.totalorder %s27, 3
      %p527 = pnand %p525, %p526
      %p528 = pneg %p527
      // Predicated region
      $region89: #{neural_operator_forward.1} parent=5 // pred_check
        _
      $region90: #{neural_operator_forward.1} parent=5 // pred_check_branch
        %530 = sbr.rel (%p527) target = $region92
      $region91: #{neural_operator_forward.1} parent=5 // pred_region
        %s531 = ssub.s32 %s27, 1
        // Predicated region
        $region93: #{neural_operator_forward.1} parent=91 // pred_check
          %p532 = pneg %p284
        $region94: #{neural_operator_forward.1} parent=91 // pred_check_branch
          %534 = sbr.rel (%p532) target = $region96
        $region95: #{neural_operator_forward.1} parent=91 // pred_region
          %536 = dma.done [#allocation4], 12288
        $region96: #{neural_operator_forward.1} parent=91 // pred_fallthru
          _
        %p537 = scmp.lt.s32.totalorder %s32, 1
        %s538 = scalar_select %p537, %s32, 1
        %s539 = smul.addr %s538, 8
        %s540 = smul.addr %s539, 8
        %s541 = scalar_lea.vmem %s0, %s540
        %p542 = pneg %p53
        %p543 = pneg %p50
        %p544 = pneg %p74
        %p545 = pneg %p71
        %p546 = pneg %p95
        %p547 = pneg %p92
        %p548 = pneg %p116
        %p549 = pneg %p113
        %p550 = pneg %p137
        %p551 = pneg %p134
        %p552 = pneg %p158
        %p553 = pneg %p155
        %p554 = pneg %p179
        %p555 = pneg %p176
        %p556 = pneg %p200
        %p557 = pneg %p197
        %p558 = pneg %p221
        %p559 = pneg %p218
        %p560 = pneg %p242
        %p561 = pneg %p239
        %p562 = pneg %p263
        %p563 = pneg %p260
        %p564 = pneg %p284
        %p565 = pneg %p281
        %p566 = pneg %p305
        %p567 = pneg %p302
        %p568 = pneg %p326
        %p569 = pneg %p323
        %p570 = pneg %p347
        %p571 = pneg %p344
        %p572 = pneg %p368
        %p573 = pneg %p365
        %p574 = pneg %p389
        %p575 = pneg %p386
        %p576 = pneg %p410
        %p577 = pneg %p407
        %p578 = pneg %p436
        %p579 = pneg %p433
        %p580 = scmp.lt.s32.totalorder %s32, 1
        %s581 = scalar_select %p580, %s32, 1
        %s582 = smul.addr %s581, 2
        %s583 = scalar_lea.vmem %s18, %s582
        %p584 = scmp.lt.s32.totalorder %s32, 1
        %s585 = scalar_select %p584, %s32, 1
        %s586 = smul.addr %s585, 8
        %s587 = smul.addr %s586, 8
        %s588 = scalar_lea.vmem %s0, %s587
        %p589 = scmp.lt.s32.totalorder %s32, 1
        %s590 = scalar_select %p589, %s32, 1
        %s591 = smul.addr %s590, 2
        %s592 = scalar_lea.vmem %s18, %s591
        %v593 = vld [vmem:[%s1] sm:$0xff]
        %v594 = vld [vmem:[%s1 + $0x8] sm:$0xff]
        %v595 = vld [vmem:[%s588] sm:$0xff]
        %v596 = vld [vmem:[%s588 + $0x8] sm:$0xff]
        %v597 = vld [vmem:[%s588 + $0x10] sm:$0xff]
        %v598 = vld [vmem:[%s588 + $0x18] sm:$0xff]
        %v599 = vld [vmem:[%s588 + $0x20] sm:$0xff]
        %v600 = vld [vmem:[%s588 + $0x28] sm:$0xff]
        %v601 = vld [vmem:[%s588 + $0x30] sm:$0x1]
        %v602 = vld [vmem:[%s588 + $0x38] sm:$0x1]
        %v603 = vld [vmem:[%s2] sm:$0xff]
        %v604 = vld [vmem:[%s2 + $0x8] sm:$0xff]
        %606 = vset.pattern.permute.xlu0 0
        %607 = vperm.xlu0 %606, %v603
        %v608 = vpop.permute.xlu0 %607
        %611 = vset.pattern.permute.xlu0 0
        %612 = vperm.xlu0 %611, %v604
        %v613 = vpop.permute.xlu0 %612
        %vm615 = vcmask 203776
        %v617 = vsel %vm615, %v593, 0
        %v620 = vsel %vm615, %v594, 0
        %vm622 = vcmask 1040384
        %v624 = vsel %vm622, %v601, 0
        %v627 = vsel %vm622, %v602, 0
        %629 = vmatpush.msra.mxu0 0.0
        %630 = vmatpush.msra.mxu0 0.0
        %631 = vmatpush.msra.mxu0 0.0
        %632 = vmatpush.msra.mxu0 0.0
        %633 = vmatpush.msra.mxu0 0.0
        %634 = vmatpush.msra.mxu0 0.0
        %635 = vmatpush.msra.mxu0 0.0
        %636 = vmatpush.msra.mxu0 0.0
        %637 = vmatpush.msra.mxu0 0.0
        %638 = vmatpush.msra.mxu0 0.0
        %639 = vmatpush.msra.mxu0 0.0
        %640 = vmatpush.msra.mxu0 0.0
        %641 = vmatpush.msra.mxu0 %v624
        %642 = vmatpush.msra.mxu0 %v599
        %643 = vmatpush.msra.mxu0 %v597
        %644 = vmatpush.msra.mxu0 %v595
        %645 = vmatmul.f32.gmra.mxu0 %v617
        %v646 = vpop.f32.mrf.mxu0
        %v647 = vadd.f32 %v608, %v646
        %648 = vmatmul.f32.gmra.mxu0 %v620
        %v649 = vpop.f32.mrf.mxu0
        %v650 = vadd.f32 %v613, %v649
        %651 = vdwg.mxu0
        %652 = vmatpush.msra.mxu0 0.0
        %653 = vmatpush.msra.mxu0 0.0
        %654 = vmatpush.msra.mxu0 0.0
        %655 = vmatpush.msra.mxu0 0.0
        %656 = vmatpush.msra.mxu0 0.0
        %657 = vmatpush.msra.mxu0 0.0
        %658 = vmatpush.msra.mxu0 0.0
        %659 = vmatpush.msra.mxu0 0.0
        %660 = vmatpush.msra.mxu0 0.0
        %661 = vmatpush.msra.mxu0 0.0
        %662 = vmatpush.msra.mxu0 0.0
        %663 = vmatpush.msra.mxu0 0.0
        %664 = vmatpush.msra.mxu0 %v627
        %665 = vmatpush.msra.mxu0 %v600
        %666 = vmatpush.msra.mxu0 %v598
        %667 = vmatpush.msra.mxu0 %v596
        %668 = vmatmul.f32.gmra.mxu0 %v617
        %v669 = vpop.f32.mrf.mxu0
        %v670 = vadd.f32 %v608, %v669
        %671 = vmatmul.f32.gmra.mxu0 %v620
        %v672 = vpop.f32.mrf.mxu0
        %v673 = vadd.f32 %v613, %v672
        %674 = vdwg.mxu0
        %v675 = vmax.f32 %v647, 0.0
        %v676 = vmax.f32 %v670, 0.0
        %v677 = vmax.f32 %v650, 0.0
        %v678 = vmax.f32 %v673, 0.0
        %v679 = vld [vmem:[%s3] sm:$0xff]
        %v680 = vld [vmem:[%s3 + $0x8] sm:$0xff]
        %v681 = vld [vmem:[%s3 + $0x10] sm:$0x1]
        %v682 = vld [vmem:[%s3 + $0x18] sm:$0x1]
        %683 = vrot.lane.b32.xlu0 %v675, 17
        %v684 = vpop.permute.xlu0 %683
        %685 = vrot.lane.b32.xlu0 %v677, 17
        %v686 = vpop.permute.xlu0 %685
        %687 = vrot.lane.b32.xlu0 %v676, 17
        %v688 = vpop.permute.xlu0 %687
        %689 = vrot.lane.b32.xlu0 %v678, 17
        %v690 = vpop.permute.xlu0 %689
        %v691 = vlaneseq
        %v692 = vand.u32 %v691, 127
        %vm693 = vcmp.lt.s32.totalorder %v692, 17
        %v694 = vsel %vm693, %v684, %v688
        %v695 = vsel %vm693, %v686, %v690
        %v696 = vsel %vm693, %v688, %v684
        %v697 = vsel %vm693, %v690, %v686
        %v698 = vperm.slane %v679, 0
        %v699 = vperm.slane %v680, 0
        %v700 = vmul.f32 %v696, %v698
        %v701 = vmul.f32 %v694, %v699
        %v702 = vmul.f32 %v697, %v698
        %v703 = vmul.f32 %v695, %v699
        %704 = vrot.lane.b32.xlu0 %v675, 16
        %v705 = vpop.permute.xlu0 %704
        %706 = vrot.lane.b32.xlu0 %v677, 16
        %v707 = vpop.permute.xlu0 %706
        %708 = vrot.lane.b32.xlu0 %v676, 16
        %v709 = vpop.permute.xlu0 %708
        %710 = vrot.lane.b32.xlu0 %v678, 16
        %v711 = vpop.permute.xlu0 %710
        %vm712 = vcmp.lt.s32.totalorder %v692, 16
        %v713 = vsel %vm712, %v705, %v709
        %v714 = vsel %vm712, %v707, %v711
        %v715 = vsel %vm712, %v709, %v705
        %v716 = vsel %vm712, %v711, %v707
        %v717 = vperm.slane %v679, 1
        %v718 = vperm.slane %v680, 1
        %v719 = vmul.f32 %v715, %v717
        %v720 = vmul.f32 %v713, %v718
        %v721 = vmul.f32 %v716, %v717
        %v722 = vmul.f32 %v714, %v718
        %723 = vrot.lane.b32.xlu0 %v675, 15
        %v724 = vpop.permute.xlu0 %723
        %725 = vrot.lane.b32.xlu0 %v677, 15
        %v726 = vpop.permute.xlu0 %725
        %727 = vrot.lane.b32.xlu0 %v676, 15
        %v728 = vpop.permute.xlu0 %727
        %729 = vrot.lane.b32.xlu0 %v678, 15
        %v730 = vpop.permute.xlu0 %729
        %vm731 = vcmp.lt.s32.totalorder %v692, 15
        %v732 = vsel %vm731, %v724, %v728
        %v733 = vsel %vm731, %v726, %v730
        %v734 = vsel %vm731, %v728, %v724
        %v735 = vsel %vm731, %v730, %v726
        %v736 = vperm.slane %v679, 2
        %v737 = vperm.slane %v680, 2
        %v738 = vmul.f32 %v734, %v736
        %v739 = vmul.f32 %v732, %v737
        %v740 = vmul.f32 %v735, %v736
        %v741 = vmul.f32 %v733, %v737
        %742 = vrot.lane.b32.xlu0 %v675, 1
        %v743 = vpop.permute.xlu0 %742
        %744 = vrot.lane.b32.xlu0 %v677, 1
        %v745 = vpop.permute.xlu0 %744
        %746 = vrot.lane.b32.xlu0 %v676, 1
        %v747 = vpop.permute.xlu0 %746
        %748 = vrot.lane.b32.xlu0 %v678, 1
        %v749 = vpop.permute.xlu0 %748
        %vm750 = vcmp.lt.s32.totalorder %v692, 1
        %v751 = vsel %vm750, %v743, %v747
        %v752 = vsel %vm750, %v745, %v749
        %v753 = vsel %vm750, %v747, %v743
        %v754 = vsel %vm750, %v749, %v745
        %v755 = vperm.slane %v679, 3
        %v756 = vperm.slane %v680, 3
        %v757 = vmul.f32 %v753, %v755
        %v758 = vmul.f32 %v751, %v756
        %v759 = vmul.f32 %v754, %v755
        %v760 = vmul.f32 %v752, %v756
        %v761 = vperm.slane %v679, 4
        %v762 = vperm.slane %v680, 4
        %v763 = vmul.f32 %v675, %v761
        %v764 = vmul.f32 %v676, %v762
        %v765 = vmul.f32 %v677, %v761
        %v766 = vmul.f32 %v678, %v762
        %767 = vrot.lane.b32.xlu0 %v675, 127
        %v768 = vpop.permute.xlu0 %767
        %769 = vrot.lane.b32.xlu0 %v677, 127
        %v770 = vpop.permute.xlu0 %769
        %771 = vrot.lane.b32.xlu0 %v676, 127
        %v772 = vpop.permute.xlu0 %771
        %773 = vrot.lane.b32.xlu0 %v678, 127
        %v774 = vpop.permute.xlu0 %773
        %vm775 = vcmp.lt.s32.totalorder %v692, 127
        %v776 = vsel %vm775, %v768, %v772
        %v777 = vsel %vm775, %v770, %v774
        %v778 = vsel %vm775, %v772, %v768
        %v779 = vsel %vm775, %v774, %v770
        %v780 = vperm.slane %v679, 5
        %v781 = vperm.slane %v680, 5
        %v782 = vmul.f32 %v776, %v780
        %v783 = vmul.f32 %v778, %v781
        %v784 = vmul.f32 %v777, %v780
        %v785 = vmul.f32 %v779, %v781
        %786 = vrot.lane.b32.xlu0 %v675, 113
        %v787 = vpop.permute.xlu0 %786
        %788 = vrot.lane.b32.xlu0 %v677, 113
        %v789 = vpop.permute.xlu0 %788
        %790 = vrot.lane.b32.xlu0 %v676, 113
        %v791 = vpop.permute.xlu0 %790
        %792 = vrot.lane.b32.xlu0 %v678, 113
        %v793 = vpop.permute.xlu0 %792
        %vm794 = vcmp.lt.s32.totalorder %v692, 113
        %v795 = vsel %vm794, %v787, %v791
        %v796 = vsel %vm794, %v789, %v793
        %v797 = vsel %vm794, %v791, %v787
        %v798 = vsel %vm794, %v793, %v789
        %v799 = vperm.slane %v679, 6
        %v800 = vperm.slane %v680, 6
        %v801 = vmul.f32 %v795, %v799
        %v802 = vmul.f32 %v797, %v800
        %v803 = vmul.f32 %v796, %v799
        %v804 = vmul.f32 %v798, %v800
        %805 = vrot.lane.b32.xlu0 %v675, 112
        %v806 = vpop.permute.xlu0 %805
        %807 = vrot.lane.b32.xlu0 %v677, 112
        %v808 = vpop.permute.xlu0 %807
        %809 = vrot.lane.b32.xlu0 %v676, 112
        %v810 = vpop.permute.xlu0 %809
        %811 = vrot.lane.b32.xlu0 %v678, 112
        %v812 = vpop.permute.xlu0 %811
        %vm813 = vcmp.lt.s32.totalorder %v692, 112
        %v814 = vsel %vm813, %v806, %v810
        %v815 = vsel %vm813, %v808, %v812
        %v816 = vsel %vm813, %v810, %v806
        %v817 = vsel %vm813, %v812, %v808
        %v818 = vperm.slane %v679, 7
        %v819 = vperm.slane %v680, 7
        %v820 = vmul.f32 %v814, %v818
        %v821 = vmul.f32 %v816, %v819
        %v822 = vmul.f32 %v815, %v818
        %v823 = vmul.f32 %v817, %v819
        %824 = vrot.lane.b32.xlu0 %v675, 111
        %v825 = vpop.permute.xlu0 %824
        %826 = vrot.lane.b32.xlu0 %v677, 111
        %v827 = vpop.permute.xlu0 %826
        %828 = vrot.lane.b32.xlu0 %v676, 111
        %v829 = vpop.permute.xlu0 %828
        %830 = vrot.lane.b32.xlu0 %v678, 111
        %v831 = vpop.permute.xlu0 %830
        %vm832 = vcmp.lt.s32.totalorder %v692, 111
        %v833 = vsel %vm832, %v825, %v829
        %v834 = vsel %vm832, %v827, %v831
        %v835 = vsel %vm832, %v829, %v825
        %v836 = vsel %vm832, %v831, %v827
        %v837 = vperm.slane %v681, 0
        %v838 = vperm.slane %v682, 0
        %v839 = vmul.f32 %v833, %v837
        %v840 = vmul.f32 %v835, %v838
        %v841 = vmul.f32 %v834, %v837
        %v842 = vmul.f32 %v836, %v838
        %v843 = vld [vmem:[%s4] sm:$0xff]
        %v844 = vld [vmem:[%s4 + $0x8] sm:$0xff]
        %v845 = vld [vmem:[%s4 + $0x10] sm:$0xff]
        %v846 = vld [vmem:[%s4 + $0x18] sm:$0xff]
        %v847 = vld [vmem:[%s4 + $0x20] sm:$0xff]
        %v848 = vld [vmem:[%s4 + $0x28] sm:$0xff]
        %v849 = vld [vmem:[%s4 + $0x30] sm:$0xff]
        %v850 = vld [vmem:[%s4 + $0x38] sm:$0xff]
        %v851 = vld [vmem:[%s5] sm:$0xff]
        %v852 = vld [vmem:[%s5 + $0x8] sm:$0xff]
        %v853 = vld [vmem:[%s5 + $0x10] sm:$0xff]
        %v854 = vld [vmem:[%s5 + $0x18] sm:$0xff]
        %856 = vset.pattern.permute.xlu0 0
        %857 = vperm.xlu0 %856, %v851
        %v858 = vpop.permute.xlu0 %857
        %861 = vset.pattern.permute.xlu0 0
        %862 = vperm.xlu0 %861, %v852
        %v863 = vpop.permute.xlu0 %862
        %866 = vset.pattern.permute.xlu0 0
        %867 = vperm.xlu0 %866, %v853
        %v868 = vpop.permute.xlu0 %867
        %871 = vset.pattern.permute.xlu0 0
        %872 = vperm.xlu0 %871, %v854
        %v873 = vpop.permute.xlu0 %872
        %vm875 = vcmask 130048
        %v877 = vsel %vm875, %v844, 0
        %v880 = vsel %vm875, %v846, 0
        %v883 = vsel %vm875, %v848, 0
        %v886 = vsel %vm875, %v850, 0
        %888 = vmatpush.msra.mxu0 %v822
        %889 = vmatpush.msra.mxu0 %v820
        %890 = vmatpush.msra.mxu0 %v803
        %891 = vmatpush.msra.mxu0 %v801
        %892 = vmatpush.msra.mxu0 %v784
        %893 = vmatpush.msra.mxu0 %v782
        %894 = vmatpush.msra.mxu0 %v765
        %895 = vmatpush.msra.mxu0 %v763
        %896 = vmatpush.msra.mxu0 %v759
        %897 = vmatpush.msra.mxu0 %v757
        %898 = vmatpush.msra.mxu0 %v740
        %899 = vmatpush.msra.mxu0 %v738
        %900 = vmatpush.msra.mxu0 %v721
        %901 = vmatpush.msra.mxu0 %v719
        %902 = vmatpush.msra.mxu0 %v702
        %903 = vmatpush.msra.mxu0 %v700
        %904 = vmatmul.f32.gmra.mxu0 %v843
        %v905 = vpop.f32.mrf.mxu0
        %v906 = vadd.f32 %v858, %v905
        %907 = vmatmul.f32.gmra.mxu0 %v845
        %v908 = vpop.f32.mrf.mxu0
        %v909 = vadd.f32 %v863, %v908
        %910 = vmatmul.f32.gmra.mxu0 %v847
        %v911 = vpop.f32.mrf.mxu0
        %v912 = vadd.f32 %v868, %v911
        %913 = vmatmul.f32.gmra.mxu0 %v849
        %v914 = vpop.f32.mrf.mxu0
        %v915 = vadd.f32 %v873, %v914
        %916 = vdwg.mxu0
        %917 = vmatpush.msra.mxu0 0.0
        %918 = vmatpush.msra.mxu0 0.0
        %919 = vmatpush.msra.mxu0 0.0
        %920 = vmatpush.msra.mxu0 0.0
        %921 = vmatpush.msra.mxu0 0.0
        %922 = vmatpush.msra.mxu0 0.0
        %923 = vmatpush.msra.mxu0 0.0
        %924 = vmatpush.msra.mxu0 0.0
        %925 = vmatpush.msra.mxu0 0.0
        %926 = vmatpush.msra.mxu0 0.0
        %927 = vmatpush.msra.mxu0 0.0
        %928 = vmatpush.msra.mxu0 0.0
        %929 = vmatpush.msra.mxu0 0.0
        %930 = vmatpush.msra.mxu0 0.0
        %931 = vmatpush.msra.mxu0 %v841
        %932 = vmatpush.msra.mxu0 %v839
        %933 = vmatmul.f32.gmra.mxu0 %v877
        %v934 = vpop.f32.mrf.mxu0
        %v935 = vadd.f32 %v906, %v934
        %936 = vmatmul.f32.gmra.mxu0 %v880
        %v937 = vpop.f32.mrf.mxu0
        %v938 = vadd.f32 %v909, %v937
        %939 = vmatmul.f32.gmra.mxu0 %v883
        %v940 = vpop.f32.mrf.mxu0
        %v941 = vadd.f32 %v912, %v940
        %942 = vmatmul.f32.gmra.mxu0 %v886
        %v943 = vpop.f32.mrf.mxu0
        %v944 = vadd.f32 %v915, %v943
        %945 = vdwg.mxu0
        %946 = vmatpush.msra.mxu0 %v823
        %947 = vmatpush.msra.mxu0 %v821
        %948 = vmatpush.msra.mxu0 %v804
        %949 = vmatpush.msra.mxu0 %v802
        %950 = vmatpush.msra.mxu0 %v785
        %951 = vmatpush.msra.mxu0 %v783
        %952 = vmatpush.msra.mxu0 %v766
        %953 = vmatpush.msra.mxu0 %v764
        %954 = vmatpush.msra.mxu0 %v760
        %955 = vmatpush.msra.mxu0 %v758
        %956 = vmatpush.msra.mxu0 %v741
        %957 = vmatpush.msra.mxu0 %v739
        %958 = vmatpush.msra.mxu0 %v722
        %959 = vmatpush.msra.mxu0 %v720
        %960 = vmatpush.msra.mxu0 %v703
        %961 = vmatpush.msra.mxu0 %v701
        %962 = vmatmul.f32.gmra.mxu0 %v843
        %v963 = vpop.f32.mrf.mxu0
        %v964 = vadd.f32 %v858, %v963
        %965 = vmatmul.f32.gmra.mxu0 %v845
        %v966 = vpop.f32.mrf.mxu0
        %v967 = vadd.f32 %v863, %v966
        %968 = vmatmul.f32.gmra.mxu0 %v847
        %v969 = vpop.f32.mrf.mxu0
        %v970 = vadd.f32 %v868, %v969
        %971 = vmatmul.f32.gmra.mxu0 %v849
        %v972 = vpop.f32.mrf.mxu0
        %v973 = vadd.f32 %v873, %v972
        %974 = vdwg.mxu0
        %975 = vmatpush.msra.mxu0 0.0
        %976 = vmatpush.msra.mxu0 0.0
        %977 = vmatpush.msra.mxu0 0.0
        %978 = vmatpush.msra.mxu0 0.0
        %979 = vmatpush.msra.mxu0 0.0
        %980 = vmatpush.msra.mxu0 0.0
        %981 = vmatpush.msra.mxu0 0.0
        %982 = vmatpush.msra.mxu0 0.0
        %983 = vmatpush.msra.mxu0 0.0
        %984 = vmatpush.msra.mxu0 0.0
        %985 = vmatpush.msra.mxu0 0.0
        %986 = vmatpush.msra.mxu0 0.0
        %987 = vmatpush.msra.mxu0 0.0
        %988 = vmatpush.msra.mxu0 0.0
        %989 = vmatpush.msra.mxu0 %v842
        %990 = vmatpush.msra.mxu0 %v840
        %991 = vmatmul.f32.gmra.mxu0 %v877
        %v992 = vpop.f32.mrf.mxu0
        %v993 = vadd.f32 %v964, %v992
        %994 = vmatmul.f32.gmra.mxu0 %v880
        %v995 = vpop.f32.mrf.mxu0
        %v996 = vadd.f32 %v967, %v995
        %997 = vmatmul.f32.gmra.mxu0 %v883
        %v998 = vpop.f32.mrf.mxu0
        %v999 = vadd.f32 %v970, %v998
        %1000 = vmatmul.f32.gmra.mxu0 %v886
        %v1001 = vpop.f32.mrf.mxu0
        %v1002 = vadd.f32 %v973, %v1001
        %1003 = vdwg.mxu0
        %v1004 = vld [vmem:[%s12] sm:$0xff]
        %v1005 = vld [vmem:[%s12 + $0x8] sm:$0xff]
        %v1006 = vld [vmem:[%s12 + $0x10] sm:$0xff]
        %v1007 = vld [vmem:[%s12 + $0x18] sm:$0xff]
        %v1008 = vld [vmem:[%s12 + $0x20] sm:$0xff]
        %v1009 = vld [vmem:[%s12 + $0x28] sm:$0xff]
        %v1010 = vld [vmem:[%s12 + $0x30] sm:$0xff]
        %v1011 = vld [vmem:[%s12 + $0x38] sm:$0xff]
        %v1012 = vld [vmem:[%s12 + $0x40] sm:$0xff]
        %v1013 = vld [vmem:[%s12 + $0x48] sm:$0xff]
        %v1014 = vld [vmem:[%s12 + $0x50] sm:$0xff]
        %v1015 = vld [vmem:[%s12 + $0x58] sm:$0xff]
        %v1016 = vld [vmem:[%s12 + $0x60] sm:$0xff]
        %v1017 = vld [vmem:[%s12 + $0x68] sm:$0xff]
        %v1018 = vld [vmem:[%s12 + $0x70] sm:$0xff]
        %v1019 = vld [vmem:[%s12 + $0x78] sm:$0xff]
        %v1020 = vld [vmem:[%s12 + $0x80] sm:$0xff]
        %v1021 = vld [vmem:[%s12 + $0x88] sm:$0xff]
        %v1022 = vld [vmem:[%s12 + $0x90] sm:$0xff]
        %v1023 = vld [vmem:[%s12 + $0x98] sm:$0xff]
        %v1024 = vld [vmem:[%s12 + $0xa0] sm:$0xff]
        %v1025 = vld [vmem:[%s12 + $0xa8] sm:$0xff]
        %v1026 = vld [vmem:[%s12 + $0xb0] sm:$0xff]
        %v1027 = vld [vmem:[%s12 + $0xb8] sm:$0xff]
        %v1028 = vld [vmem:[%s12 + $0xc0] sm:$0xff]
        %v1029 = vld [vmem:[%s12 + $0xc8] sm:$0xff]
        %v1030 = vld [vmem:[%s12 + $0xd0] sm:$0xff]
        %v1031 = vld [vmem:[%s12 + $0xd8] sm:$0xff]
        %v1032 = vld [vmem:[%s12 + $0xe0] sm:$0xff]
        %v1033 = vld [vmem:[%s12 + $0xe8] sm:$0xff]
        %v1034 = vld [vmem:[%s12 + $0xf0] sm:$0xff]
        %v1035 = vld [vmem:[%s12 + $0xf8] sm:$0xff]
        %v1036 = vld [vmem:[%s13] sm:$0xff]
        %v1037 = vld [vmem:[%s13 + $0x8] sm:$0xff]
        %v1038 = vld [vmem:[%s13 + $0x10] sm:$0xff]
        %v1039 = vld [vmem:[%s13 + $0x18] sm:$0xff]
        %v1040 = vld [vmem:[%s13 + $0x20] sm:$0xff]
        %v1041 = vld [vmem:[%s13 + $0x28] sm:$0xff]
        %v1042 = vld [vmem:[%s13 + $0x30] sm:$0xff]
        %v1043 = vld [vmem:[%s13 + $0x38] sm:$0xff]
        %v1044 = vld [vmem:[%s13 + $0x40] sm:$0xff]
        %v1045 = vld [vmem:[%s13 + $0x48] sm:$0xff]
        %v1046 = vld [vmem:[%s13 + $0x50] sm:$0xff]
        %v1047 = vld [vmem:[%s13 + $0x58] sm:$0xff]
        %v1048 = vld [vmem:[%s13 + $0x60] sm:$0xff]
        %v1049 = vld [vmem:[%s13 + $0x68] sm:$0xff]
        %v1050 = vld [vmem:[%s13 + $0x70] sm:$0xff]
        %v1051 = vld [vmem:[%s13 + $0x78] sm:$0xff]
        %v1052 = vld [vmem:[%s13 + $0x80] sm:$0xff]
        %v1053 = vld [vmem:[%s13 + $0x88] sm:$0xff]
        %v1054 = vld [vmem:[%s13 + $0x90] sm:$0xff]
        %v1055 = vld [vmem:[%s13 + $0x98] sm:$0xff]
        %v1056 = vld [vmem:[%s13 + $0xa0] sm:$0xff]
        %v1057 = vld [vmem:[%s13 + $0xa8] sm:$0xff]
        %v1058 = vld [vmem:[%s13 + $0xb0] sm:$0xff]
        %v1059 = vld [vmem:[%s13 + $0xb8] sm:$0xff]
        %v1060 = vld [vmem:[%s13 + $0xc0] sm:$0xff]
        %v1061 = vld [vmem:[%s13 + $0xc8] sm:$0xff]
        %v1062 = vld [vmem:[%s13 + $0xd0] sm:$0xff]
        %v1063 = vld [vmem:[%s13 + $0xd8] sm:$0xff]
        %v1064 = vld [vmem:[%s13 + $0xe0] sm:$0xff]
        %v1065 = vld [vmem:[%s13 + $0xe8] sm:$0xff]
        %v1066 = vld [vmem:[%s13 + $0xf0] sm:$0xff]
        %v1067 = vld [vmem:[%s13 + $0xf8] sm:$0xff]
        %v1068 = vld [vmem:[%s6] sm:$0xff]
        %v1069 = vld [vmem:[%s6 + $0x8] sm:$0xff]
        %v1070 = vld [vmem:[%s6 + $0x10] sm:$0xff]
        %v1071 = vld [vmem:[%s6 + $0x18] sm:$0xff]
        %v1072 = vld [vmem:[%s6 + $0x20] sm:$0xff]
        %v1073 = vld [vmem:[%s6 + $0x28] sm:$0xff]
        %v1074 = vld [vmem:[%s6 + $0x30] sm:$0xff]
        %v1075 = vld [vmem:[%s6 + $0x38] sm:$0xff]
        %v1076 = vld [vmem:[%s6 + $0x40] sm:$0xff]
        %v1077 = vld [vmem:[%s6 + $0x48] sm:$0xff]
        %v1078 = vld [vmem:[%s6 + $0x50] sm:$0xff]
        %v1079 = vld [vmem:[%s6 + $0x58] sm:$0xff]
        %v1080 = vld [vmem:[%s6 + $0x60] sm:$0xff]
        %v1081 = vld [vmem:[%s6 + $0x68] sm:$0xff]
        %v1082 = vld [vmem:[%s6 + $0x70] sm:$0xff]
        %v1083 = vld [vmem:[%s6 + $0x78] sm:$0xff]
        %v1084 = vld [vmem:[%s6 + $0x80] sm:$0xff]
        %v1085 = vld [vmem:[%s6 + $0x88] sm:$0xff]
        %v1086 = vld [vmem:[%s6 + $0x90] sm:$0xff]
        %v1087 = vld [vmem:[%s6 + $0x98] sm:$0xff]
        %v1088 = vld [vmem:[%s6 + $0xa0] sm:$0xff]
        %v1089 = vld [vmem:[%s6 + $0xa8] sm:$0xff]
        %v1090 = vld [vmem:[%s6 + $0xb0] sm:$0xff]
        %v1091 = vld [vmem:[%s6 + $0xb8] sm:$0xff]
        %v1092 = vld [vmem:[%s6 + $0xc0] sm:$0xff]
        %v1093 = vld [vmem:[%s6 + $0xc8] sm:$0xff]
        %v1094 = vld [vmem:[%s6 + $0xd0] sm:$0xff]
        %v1095 = vld [vmem:[%s6 + $0xd8] sm:$0xff]
        %v1096 = vld [vmem:[%s6 + $0xe0] sm:$0xff]
        %v1097 = vld [vmem:[%s6 + $0xe8] sm:$0xff]
        %v1098 = vld [vmem:[%s6 + $0xf0] sm:$0xff]
        %v1099 = vld [vmem:[%s6 + $0xf8] sm:$0xff]
        %v1100 = vld [vmem:[%s7] sm:$0xff]
        %v1101 = vld [vmem:[%s7 + $0x8] sm:$0xff]
        %v1102 = vld [vmem:[%s7 + $0x10] sm:$0xff]
        %v1103 = vld [vmem:[%s7 + $0x18] sm:$0xff]
        %v1104 = vld [vmem:[%s7 + $0x20] sm:$0xff]
        %v1105 = vld [vmem:[%s7 + $0x28] sm:$0xff]
        %v1106 = vld [vmem:[%s7 + $0x30] sm:$0xff]
        %v1107 = vld [vmem:[%s7 + $0x38] sm:$0xff]
        %v1108 = vld [vmem:[%s7 + $0x40] sm:$0xff]
        %v1109 = vld [vmem:[%s7 + $0x48] sm:$0xff]
        %v1110 = vld [vmem:[%s7 + $0x50] sm:$0xff]
        %v1111 = vld [vmem:[%s7 + $0x58] sm:$0xff]
        %v1112 = vld [vmem:[%s7 + $0x60] sm:$0xff]
        %v1113 = vld [vmem:[%s7 + $0x68] sm:$0xff]
        %v1114 = vld [vmem:[%s7 + $0x70] sm:$0xff]
        %v1115 = vld [vmem:[%s7 + $0x78] sm:$0xff]
        %v1116 = vld [vmem:[%s7 + $0x80] sm:$0xff]
        %v1117 = vld [vmem:[%s7 + $0x88] sm:$0xff]
        %v1118 = vld [vmem:[%s7 + $0x90] sm:$0xff]
        %v1119 = vld [vmem:[%s7 + $0x98] sm:$0xff]
        %v1120 = vld [vmem:[%s7 + $0xa0] sm:$0xff]
        %v1121 = vld [vmem:[%s7 + $0xa8] sm:$0xff]
        %v1122 = vld [vmem:[%s7 + $0xb0] sm:$0xff]
        %v1123 = vld [vmem:[%s7 + $0xb8] sm:$0xff]
        %v1124 = vld [vmem:[%s7 + $0xc0] sm:$0xff]
        %v1125 = vld [vmem:[%s7 + $0xc8] sm:$0xff]
        %v1126 = vld [vmem:[%s7 + $0xd0] sm:$0xff]
        %v1127 = vld [vmem:[%s7 + $0xd8] sm:$0xff]
        %v1128 = vld [vmem:[%s7 + $0xe0] sm:$0xff]
        %v1129 = vld [vmem:[%s7 + $0xe8] sm:$0xff]
        %v1130 = vld [vmem:[%s7 + $0xf0] sm:$0xff]
        %v1131 = vld [vmem:[%s7 + $0xf8] sm:$0xff]
        %v1132 = vld [vmem:[%s8] sm:$0xff]
        %v1133 = vld [vmem:[%s8 + $0x8] sm:$0xff]
        %v1134 = vld [vmem:[%s8 + $0x10] sm:$0xff]
        %v1135 = vld [vmem:[%s8 + $0x18] sm:$0xff]
        %v1136 = vld [vmem:[%s8 + $0x20] sm:$0xff]
        %v1137 = vld [vmem:[%s8 + $0x28] sm:$0xff]
        %v1138 = vld [vmem:[%s8 + $0x30] sm:$0xff]
        %v1139 = vld [vmem:[%s8 + $0x38] sm:$0xff]
        %v1140 = vld [vmem:[%s9] sm:$0xff]
        %v1141 = vld [vmem:[%s9 + $0x8] sm:$0xff]
        %v1142 = vld [vmem:[%s9 + $0x10] sm:$0xff]
        %v1143 = vld [vmem:[%s9 + $0x18] sm:$0xff]
        %v1144 = vld [vmem:[%s9 + $0x20] sm:$0xff]
        %v1145 = vld [vmem:[%s9 + $0x28] sm:$0xff]
        %v1146 = vld [vmem:[%s9 + $0x30] sm:$0xff]
        %v1147 = vld [vmem:[%s9 + $0x38] sm:$0xff]
        %1148 = vmatpush.msra.mxu0 %v1083
        %1149 = vmatpush.msra.mxu0 %v1082
        %1150 = vmatpush.msra.mxu0 %v1081
        %1151 = vmatpush.msra.mxu0 %v1080
        %1152 = vmatpush.msra.mxu0 %v1079
        %1153 = vmatpush.msra.mxu0 %v1078
        %1154 = vmatpush.msra.mxu0 %v1077
        %1155 = vmatpush.msra.mxu0 %v1076
        %1156 = vmatpush.msra.mxu0 %v1075
        %1157 = vmatpush.msra.mxu0 %v1074
        %1158 = vmatpush.msra.mxu0 %v1073
        %1159 = vmatpush.msra.mxu0 %v1072
        %1160 = vmatpush.msra.mxu0 %v1071
        %1161 = vmatpush.msra.mxu0 %v1070
        %1162 = vmatpush.msra.mxu0 %v1069
        %1163 = vmatpush.msra.mxu0 %v1068
        %1164 = vmatmul.f32.gmra.mxu0 %v935
        %v1165 = vpop.f32.mrf.mxu0
        %v1166 = vadd.f32 0.0, %v1165
        %1167 = vmatmul.f32.gmra.mxu0 %v938
        %v1168 = vpop.f32.mrf.mxu0
        %v1169 = vadd.f32 0.0, %v1168
        %1170 = vmatmul.f32.gmra.mxu0 %v941
        %v1171 = vpop.f32.mrf.mxu0
        %v1172 = vadd.f32 0.0, %v1171
        %1173 = vmatmul.f32.gmra.mxu0 %v944
        %v1174 = vpop.f32.mrf.mxu0
        %v1175 = vadd.f32 0.0, %v1174
        %1176 = vdwg.mxu0
        %1177 = vmatpush.msra.mxu0 %v1099
        %1178 = vmatpush.msra.mxu0 %v1098
        %1179 = vmatpush.msra.mxu0 %v1097
        %1180 = vmatpush.msra.mxu0 %v1096
        %1181 = vmatpush.msra.mxu0 %v1095
        %1182 = vmatpush.msra.mxu0 %v1094
        %1183 = vmatpush.msra.mxu0 %v1093
        %1184 = vmatpush.msra.mxu0 %v1092
        %1185 = vmatpush.msra.mxu0 %v1091
        %1186 = vmatpush.msra.mxu0 %v1090
        %1187 = vmatpush.msra.mxu0 %v1089
        %1188 = vmatpush.msra.mxu0 %v1088
        %1189 = vmatpush.msra.mxu0 %v1087
        %1190 = vmatpush.msra.mxu0 %v1086
        %1191 = vmatpush.msra.mxu0 %v1085
        %1192 = vmatpush.msra.mxu0 %v1084
        %1193 = vmatmul.f32.gmra.mxu0 %v993
        %v1194 = vpop.f32.mrf.mxu0
        %v1195 = vadd.f32 %v1166, %v1194
        %1196 = vmatmul.f32.gmra.mxu0 %v996
        %v1197 = vpop.f32.mrf.mxu0
        %v1198 = vadd.f32 %v1169, %v1197
        %1199 = vmatmul.f32.gmra.mxu0 %v999
        %v1200 = vpop.f32.mrf.mxu0
        %v1201 = vadd.f32 %v1172, %v1200
        %1202 = vmatmul.f32.gmra.mxu0 %v1002
        %v1203 = vpop.f32.mrf.mxu0
        %v1204 = vadd.f32 %v1175, %v1203
        %1205 = vdwg.mxu0
        %1206 = vmatpush.msra.mxu0 %v1115
        %1207 = vmatpush.msra.mxu0 %v1114
        %1208 = vmatpush.msra.mxu0 %v1113
        %1209 = vmatpush.msra.mxu0 %v1112
        %1210 = vmatpush.msra.mxu0 %v1111
        %1211 = vmatpush.msra.mxu0 %v1110
        %1212 = vmatpush.msra.mxu0 %v1109
        %1213 = vmatpush.msra.mxu0 %v1108
        %1214 = vmatpush.msra.mxu0 %v1107
        %1215 = vmatpush.msra.mxu0 %v1106
        %1216 = vmatpush.msra.mxu0 %v1105
        %1217 = vmatpush.msra.mxu0 %v1104
        %1218 = vmatpush.msra.mxu0 %v1103
        %1219 = vmatpush.msra.mxu0 %v1102
        %1220 = vmatpush.msra.mxu0 %v1101
        %1221 = vmatpush.msra.mxu0 %v1100
        %1222 = vmatmul.f32.gmra.mxu0 %v935
        %v1223 = vpop.f32.mrf.mxu0
        %v1224 = vadd.f32 0.0, %v1223
        %1225 = vmatmul.f32.gmra.mxu0 %v938
        %v1226 = vpop.f32.mrf.mxu0
        %v1227 = vadd.f32 0.0, %v1226
        %1228 = vmatmul.f32.gmra.mxu0 %v941
        %v1229 = vpop.f32.mrf.mxu0
        %v1230 = vadd.f32 0.0, %v1229
        %1231 = vmatmul.f32.gmra.mxu0 %v944
        %v1232 = vpop.f32.mrf.mxu0
        %v1233 = vadd.f32 0.0, %v1232
        %1234 = vdwg.mxu0
        %1235 = vmatpush.msra.mxu0 %v1131
        %1236 = vmatpush.msra.mxu0 %v1130
        %1237 = vmatpush.msra.mxu0 %v1129
        %1238 = vmatpush.msra.mxu0 %v1128
        %1239 = vmatpush.msra.mxu0 %v1127
        %1240 = vmatpush.msra.mxu0 %v1126
        %1241 = vmatpush.msra.mxu0 %v1125
        %1242 = vmatpush.msra.mxu0 %v1124
        %1243 = vmatpush.msra.mxu0 %v1123
        %1244 = vmatpush.msra.mxu0 %v1122
        %1245 = vmatpush.msra.mxu0 %v1121
        %1246 = vmatpush.msra.mxu0 %v1120
        %1247 = vmatpush.msra.mxu0 %v1119
        %1248 = vmatpush.msra.mxu0 %v1118
        %1249 = vmatpush.msra.mxu0 %v1117
        %1250 = vmatpush.msra.mxu0 %v1116
        %1251 = vmatmul.f32.gmra.mxu0 %v993
        %v1252 = vpop.f32.mrf.mxu0
        %v1253 = vadd.f32 %v1224, %v1252
        %1254 = vmatmul.f32.gmra.mxu0 %v996
        %v1255 = vpop.f32.mrf.mxu0
        %v1256 = vadd.f32 %v1227, %v1255
        %1257 = vmatmul.f32.gmra.mxu0 %v999
        %v1258 = vpop.f32.mrf.mxu0
        %v1259 = vadd.f32 %v1230, %v1258
        %1260 = vmatmul.f32.gmra.mxu0 %v1002
        %v1261 = vpop.f32.mrf.mxu0
        %v1262 = vadd.f32 %v1233, %v1261
        %1263 = vdwg.mxu0
        %vm1264 = vcmask 261120
        %v1266 = vsel %vm1264, %v1195, 0
        %v1269 = vsel %vm1264, %v1198, 0
        %v1272 = vsel %vm1264, %v1201, 0
        %v1275 = vsel %vm1264, %v1204, 0
        %1277 = vmatpush.msra.mxu0 0.0
        %1278 = vmatpush.msra.mxu0 0.0
        %1279 = vmatpush.msra.mxu0 0.0
        %1280 = vmatpush.msra.mxu0 0.0
        %1281 = vmatpush.msra.mxu0 0.0
        %1282 = vmatpush.msra.mxu0 0.0
        %1283 = vmatpush.msra.mxu0 0.0
        %1284 = vmatpush.msra.mxu0 0.0
        %1285 = vmatpush.msra.mxu0 0.0
        %1286 = vmatpush.msra.mxu0 0.0
        %1287 = vmatpush.msra.mxu0 0.0
        %1288 = vmatpush.msra.mxu0 0.0
        %1289 = vmatpush.msra.mxu0 %v1028
        %1290 = vmatpush.msra.mxu0 %v1020
        %1291 = vmatpush.msra.mxu0 %v1012
        %1292 = vmatpush.msra.mxu0 %v1004
        %1293 = vmatmul.f32.gmra.mxu0 %v1266
        %v1294 = vpop.f32.mrf.mxu0
        %v1295 = vadd.f32 0.0, %v1294
        %1296 = vmatmul.f32.gmra.mxu0 %v1269
        %v1297 = vpop.f32.mrf.mxu0
        %v1298 = vadd.f32 0.0, %v1297
        %1299 = vmatmul.f32.gmra.mxu0 %v1272
        %v1300 = vpop.f32.mrf.mxu0
        %v1301 = vadd.f32 0.0, %v1300
        %1302 = vmatmul.f32.gmra.mxu0 %v1275
        %v1303 = vpop.f32.mrf.mxu0
        %v1304 = vadd.f32 0.0, %v1303
        %1305 = vdwg.mxu0
        %1306 = vmatpush.msra.mxu0 0.0
        %1307 = vmatpush.msra.mxu0 0.0
        %1308 = vmatpush.msra.mxu0 0.0
        %1309 = vmatpush.msra.mxu0 0.0
        %1310 = vmatpush.msra.mxu0 0.0
        %1311 = vmatpush.msra.mxu0 0.0
        %1312 = vmatpush.msra.mxu0 0.0
        %1313 = vmatpush.msra.mxu0 0.0
        %1314 = vmatpush.msra.mxu0 0.0
        %1315 = vmatpush.msra.mxu0 0.0
        %1316 = vmatpush.msra.mxu0 0.0
        %1317 = vmatpush.msra.mxu0 0.0
        %1318 = vmatpush.msra.mxu0 %v1029
        %1319 = vmatpush.msra.mxu0 %v1021
        %1320 = vmatpush.msra.mxu0 %v1013
        %1321 = vmatpush.msra.mxu0 %v1005
        %1322 = vmatmul.f32.gmra.mxu0 %v1266
        %v1323 = vpop.f32.mrf.mxu0
        %v1324 = vadd.f32 0.0, %v1323
        %1325 = vmatmul.f32.gmra.mxu0 %v1269
        %v1326 = vpop.f32.mrf.mxu0
        %v1327 = vadd.f32 0.0, %v1326
        %1328 = vmatmul.f32.gmra.mxu0 %v1272
        %v1329 = vpop.f32.mrf.mxu0
        %v1330 = vadd.f32 0.0, %v1329
        %1331 = vmatmul.f32.gmra.mxu0 %v1275
        %v1332 = vpop.f32.mrf.mxu0
        %v1333 = vadd.f32 0.0, %v1332
        %1334 = vdwg.mxu0
        %1335 = vmatpush.msra.mxu0 0.0
        %1336 = vmatpush.msra.mxu0 0.0
        %1337 = vmatpush.msra.mxu0 0.0
        %1338 = vmatpush.msra.mxu0 0.0
        %1339 = vmatpush.msra.mxu0 0.0
        %1340 = vmatpush.msra.mxu0 0.0
        %1341 = vmatpush.msra.mxu0 0.0
        %1342 = vmatpush.msra.mxu0 0.0
        %1343 = vmatpush.msra.mxu0 0.0
        %1344 = vmatpush.msra.mxu0 0.0
        %1345 = vmatpush.msra.mxu0 0.0
        %1346 = vmatpush.msra.mxu0 0.0
        %1347 = vmatpush.msra.mxu0 %v1030
        %1348 = vmatpush.msra.mxu0 %v1022
        %1349 = vmatpush.msra.mxu0 %v1014
        %1350 = vmatpush.msra.mxu0 %v1006
        %1351 = vmatmul.f32.gmra.mxu0 %v1266
        %v1352 = vpop.f32.mrf.mxu0
        %v1353 = vadd.f32 0.0, %v1352
        %1354 = vmatmul.f32.gmra.mxu0 %v1269
        %v1355 = vpop.f32.mrf.mxu0
        %v1356 = vadd.f32 0.0, %v1355
        %1357 = vmatmul.f32.gmra.mxu0 %v1272
        %v1358 = vpop.f32.mrf.mxu0
        %v1359 = vadd.f32 0.0, %v1358
        %1360 = vmatmul.f32.gmra.mxu0 %v1275
        %v1361 = vpop.f32.mrf.mxu0
        %v1362 = vadd.f32 0.0, %v1361
        %1363 = vdwg.mxu0
        %1364 = vmatpush.msra.mxu0 0.0
        %1365 = vmatpush.msra.mxu0 0.0
        %1366 = vmatpush.msra.mxu0 0.0
        %1367 = vmatpush.msra.mxu0 0.0
        %1368 = vmatpush.msra.mxu0 0.0
        %1369 = vmatpush.msra.mxu0 0.0
        %1370 = vmatpush.msra.mxu0 0.0
        %1371 = vmatpush.msra.mxu0 0.0
        %1372 = vmatpush.msra.mxu0 0.0
        %1373 = vmatpush.msra.mxu0 0.0
        %1374 = vmatpush.msra.mxu0 0.0
        %1375 = vmatpush.msra.mxu0 0.0
        %1376 = vmatpush.msra.mxu0 %v1031
        %1377 = vmatpush.msra.mxu0 %v1023
        %1378 = vmatpush.msra.mxu0 %v1015
        %1379 = vmatpush.msra.mxu0 %v1007
        %1380 = vmatmul.f32.gmra.mxu0 %v1266
        %v1381 = vpop.f32.mrf.mxu0
        %v1382 = vadd.f32 0.0, %v1381
        %1383 = vmatmul.f32.gmra.mxu0 %v1269
        %v1384 = vpop.f32.mrf.mxu0
        %v1385 = vadd.f32 0.0, %v1384
        %1386 = vmatmul.f32.gmra.mxu0 %v1272
        %v1387 = vpop.f32.mrf.mxu0
        %v1388 = vadd.f32 0.0, %v1387
        %1389 = vmatmul.f32.gmra.mxu0 %v1275
        %v1390 = vpop.f32.mrf.mxu0
        %v1391 = vadd.f32 0.0, %v1390
        %1392 = vdwg.mxu0
        %1393 = vmatpush.msra.mxu0 0.0
        %1394 = vmatpush.msra.mxu0 0.0
        %1395 = vmatpush.msra.mxu0 0.0
        %1396 = vmatpush.msra.mxu0 0.0
        %1397 = vmatpush.msra.mxu0 0.0
        %1398 = vmatpush.msra.mxu0 0.0
        %1399 = vmatpush.msra.mxu0 0.0
        %1400 = vmatpush.msra.mxu0 0.0
        %1401 = vmatpush.msra.mxu0 0.0
        %1402 = vmatpush.msra.mxu0 0.0
        %1403 = vmatpush.msra.mxu0 0.0
        %1404 = vmatpush.msra.mxu0 0.0
        %1405 = vmatpush.msra.mxu0 %v1032
        %1406 = vmatpush.msra.mxu0 %v1024
        %1407 = vmatpush.msra.mxu0 %v1016
        %1408 = vmatpush.msra.mxu0 %v1008
        %1409 = vmatmul.f32.gmra.mxu0 %v1266
        %v1410 = vpop.f32.mrf.mxu0
        %v1411 = vadd.f32 0.0, %v1410
        %1412 = vmatmul.f32.gmra.mxu0 %v1269
        %v1413 = vpop.f32.mrf.mxu0
        %v1414 = vadd.f32 0.0, %v1413
        %1415 = vmatmul.f32.gmra.mxu0 %v1272
        %v1416 = vpop.f32.mrf.mxu0
        %v1417 = vadd.f32 0.0, %v1416
        %1418 = vmatmul.f32.gmra.mxu0 %v1275
        %v1419 = vpop.f32.mrf.mxu0
        %v1420 = vadd.f32 0.0, %v1419
        %1421 = vdwg.mxu0
        %1422 = vmatpush.msra.mxu0 0.0
        %1423 = vmatpush.msra.mxu0 0.0
        %1424 = vmatpush.msra.mxu0 0.0
        %1425 = vmatpush.msra.mxu0 0.0
        %1426 = vmatpush.msra.mxu0 0.0
        %1427 = vmatpush.msra.mxu0 0.0
        %1428 = vmatpush.msra.mxu0 0.0
        %1429 = vmatpush.msra.mxu0 0.0
        %1430 = vmatpush.msra.mxu0 0.0
        %1431 = vmatpush.msra.mxu0 0.0
        %1432 = vmatpush.msra.mxu0 0.0
        %1433 = vmatpush.msra.mxu0 0.0
        %1434 = vmatpush.msra.mxu0 %v1033
        %1435 = vmatpush.msra.mxu0 %v1025
        %1436 = vmatpush.msra.mxu0 %v1017
        %1437 = vmatpush.msra.mxu0 %v1009
        %1438 = vmatmul.f32.gmra.mxu0 %v1266
        %v1439 = vpop.f32.mrf.mxu0
        %v1440 = vadd.f32 0.0, %v1439
        %1441 = vmatmul.f32.gmra.mxu0 %v1269
        %v1442 = vpop.f32.mrf.mxu0
        %v1443 = vadd.f32 0.0, %v1442
        %1444 = vmatmul.f32.gmra.mxu0 %v1272
        %v1445 = vpop.f32.mrf.mxu0
        %v1446 = vadd.f32 0.0, %v1445
        %1447 = vmatmul.f32.gmra.mxu0 %v1275
        %v1448 = vpop.f32.mrf.mxu0
        %v1449 = vadd.f32 0.0, %v1448
        %1450 = vdwg.mxu0
        %1451 = vmatpush.msra.mxu0 0.0
        %1452 = vmatpush.msra.mxu0 0.0
        %1453 = vmatpush.msra.mxu0 0.0
        %1454 = vmatpush.msra.mxu0 0.0
        %1455 = vmatpush.msra.mxu0 0.0
        %1456 = vmatpush.msra.mxu0 0.0
        %1457 = vmatpush.msra.mxu0 0.0
        %1458 = vmatpush.msra.mxu0 0.0
        %1459 = vmatpush.msra.mxu0 0.0
        %1460 = vmatpush.msra.mxu0 0.0
        %1461 = vmatpush.msra.mxu0 0.0
        %1462 = vmatpush.msra.mxu0 0.0
        %1463 = vmatpush.msra.mxu0 %v1034
        %1464 = vmatpush.msra.mxu0 %v1026
        %1465 = vmatpush.msra.mxu0 %v1018
        %1466 = vmatpush.msra.mxu0 %v1010
        %1467 = vmatmul.f32.gmra.mxu0 %v1266
        %v1468 = vpop.f32.mrf.mxu0
        %v1469 = vadd.f32 0.0, %v1468
        %1470 = vmatmul.f32.gmra.mxu0 %v1269
        %v1471 = vpop.f32.mrf.mxu0
        %v1472 = vadd.f32 0.0, %v1471
        %1473 = vmatmul.f32.gmra.mxu0 %v1272
        %v1474 = vpop.f32.mrf.mxu0
        %v1475 = vadd.f32 0.0, %v1474
        %1476 = vmatmul.f32.gmra.mxu0 %v1275
        %v1477 = vpop.f32.mrf.mxu0
        %v1478 = vadd.f32 0.0, %v1477
        %1479 = vdwg.mxu0
        %1480 = vmatpush.msra.mxu0 0.0
        %1481 = vmatpush.msra.mxu0 0.0
        %1482 = vmatpush.msra.mxu0 0.0
        %1483 = vmatpush.msra.mxu0 0.0
        %1484 = vmatpush.msra.mxu0 0.0
        %1485 = vmatpush.msra.mxu0 0.0
        %1486 = vmatpush.msra.mxu0 0.0
        %1487 = vmatpush.msra.mxu0 0.0
        %1488 = vmatpush.msra.mxu0 0.0
        %1489 = vmatpush.msra.mxu0 0.0
        %1490 = vmatpush.msra.mxu0 0.0
        %1491 = vmatpush.msra.mxu0 0.0
        %1492 = vmatpush.msra.mxu0 %v1035
        %1493 = vmatpush.msra.mxu0 %v1027
        %1494 = vmatpush.msra.mxu0 %v1019
        %1495 = vmatpush.msra.mxu0 %v1011
        %1496 = vmatmul.f32.gmra.mxu0 %v1266
        %v1497 = vpop.f32.mrf.mxu0
        %v1498 = vadd.f32 0.0, %v1497
        %1499 = vmatmul.f32.gmra.mxu0 %v1269
        %v1500 = vpop.f32.mrf.mxu0
        %v1501 = vadd.f32 0.0, %v1500
        %1502 = vmatmul.f32.gmra.mxu0 %v1272
        %v1503 = vpop.f32.mrf.mxu0
        %v1504 = vadd.f32 0.0, %v1503
        %1505 = vmatmul.f32.gmra.mxu0 %v1275
        %v1506 = vpop.f32.mrf.mxu0
        %v1507 = vadd.f32 0.0, %v1506
        %1508 = vdwg.mxu0
        %v1510 = vsel %vm1264, %v1253, 0
        %v1513 = vsel %vm1264, %v1256, 0
        %v1516 = vsel %vm1264, %v1259, 0
        %v1519 = vsel %vm1264, %v1262, 0
        %1521 = vmatpush.msra.mxu0 0.0
        %1522 = vmatpush.msra.mxu0 0.0
        %1523 = vmatpush.msra.mxu0 0.0
        %1524 = vmatpush.msra.mxu0 0.0
        %1525 = vmatpush.msra.mxu0 0.0
        %1526 = vmatpush.msra.mxu0 0.0
        %1527 = vmatpush.msra.mxu0 0.0
        %1528 = vmatpush.msra.mxu0 0.0
        %1529 = vmatpush.msra.mxu0 0.0
        %1530 = vmatpush.msra.mxu0 0.0
        %1531 = vmatpush.msra.mxu0 0.0
        %1532 = vmatpush.msra.mxu0 0.0
        %1533 = vmatpush.msra.mxu0 %v1028
        %1534 = vmatpush.msra.mxu0 %v1020
        %1535 = vmatpush.msra.mxu0 %v1012
        %1536 = vmatpush.msra.mxu0 %v1004
        %1537 = vmatmul.f32.gmra.mxu0 %v1510
        %v1538 = vpop.f32.mrf.mxu0
        %v1539 = vadd.f32 0.0, %v1538
        %1540 = vmatmul.f32.gmra.mxu0 %v1513
        %v1541 = vpop.f32.mrf.mxu0
        %v1542 = vadd.f32 0.0, %v1541
        %1543 = vmatmul.f32.gmra.mxu0 %v1516
        %v1544 = vpop.f32.mrf.mxu0
        %v1545 = vadd.f32 0.0, %v1544
        %1546 = vmatmul.f32.gmra.mxu0 %v1519
        %v1547 = vpop.f32.mrf.mxu0
        %v1548 = vadd.f32 0.0, %v1547
        %1549 = vdwg.mxu0
        %1550 = vmatpush.msra.mxu0 0.0
        %1551 = vmatpush.msra.mxu0 0.0
        %1552 = vmatpush.msra.mxu0 0.0
        %1553 = vmatpush.msra.mxu0 0.0
        %1554 = vmatpush.msra.mxu0 0.0
        %1555 = vmatpush.msra.mxu0 0.0
        %1556 = vmatpush.msra.mxu0 0.0
        %1557 = vmatpush.msra.mxu0 0.0
        %1558 = vmatpush.msra.mxu0 0.0
        %1559 = vmatpush.msra.mxu0 0.0
        %1560 = vmatpush.msra.mxu0 0.0
        %1561 = vmatpush.msra.mxu0 0.0
        %1562 = vmatpush.msra.mxu0 %v1029
        %1563 = vmatpush.msra.mxu0 %v1021
        %1564 = vmatpush.msra.mxu0 %v1013
        %1565 = vmatpush.msra.mxu0 %v1005
        %1566 = vmatmul.f32.gmra.mxu0 %v1510
        %v1567 = vpop.f32.mrf.mxu0
        %v1568 = vadd.f32 0.0, %v1567
        %1569 = vmatmul.f32.gmra.mxu0 %v1513
        %v1570 = vpop.f32.mrf.mxu0
        %v1571 = vadd.f32 0.0, %v1570
        %1572 = vmatmul.f32.gmra.mxu0 %v1516
        %v1573 = vpop.f32.mrf.mxu0
        %v1574 = vadd.f32 0.0, %v1573
        %1575 = vmatmul.f32.gmra.mxu0 %v1519
        %v1576 = vpop.f32.mrf.mxu0
        %v1577 = vadd.f32 0.0, %v1576
        %1578 = vdwg.mxu0
        %1579 = vmatpush.msra.mxu0 0.0
        %1580 = vmatpush.msra.mxu0 0.0
        %1581 = vmatpush.msra.mxu0 0.0
        %1582 = vmatpush.msra.mxu0 0.0
        %1583 = vmatpush.msra.mxu0 0.0
        %1584 = vmatpush.msra.mxu0 0.0
        %1585 = vmatpush.msra.mxu0 0.0
        %1586 = vmatpush.msra.mxu0 0.0
        %1587 = vmatpush.msra.mxu0 0.0
        %1588 = vmatpush.msra.mxu0 0.0
        %1589 = vmatpush.msra.mxu0 0.0
        %1590 = vmatpush.msra.mxu0 0.0
        %1591 = vmatpush.msra.mxu0 %v1030
        %1592 = vmatpush.msra.mxu0 %v1022
        %1593 = vmatpush.msra.mxu0 %v1014
        %1594 = vmatpush.msra.mxu0 %v1006
        %1595 = vmatmul.f32.gmra.mxu0 %v1510
        %v1596 = vpop.f32.mrf.mxu0
        %v1597 = vadd.f32 0.0, %v1596
        %1598 = vmatmul.f32.gmra.mxu0 %v1513
        %v1599 = vpop.f32.mrf.mxu0
        %v1600 = vadd.f32 0.0, %v1599
        %1601 = vmatmul.f32.gmra.mxu0 %v1516
        %v1602 = vpop.f32.mrf.mxu0
        %v1603 = vadd.f32 0.0, %v1602
        %1604 = vmatmul.f32.gmra.mxu0 %v1519
        %v1605 = vpop.f32.mrf.mxu0
        %v1606 = vadd.f32 0.0, %v1605
        %1607 = vdwg.mxu0
        %1608 = vmatpush.msra.mxu0 0.0
        %1609 = vmatpush.msra.mxu0 0.0
        %1610 = vmatpush.msra.mxu0 0.0
        %1611 = vmatpush.msra.mxu0 0.0
        %1612 = vmatpush.msra.mxu0 0.0
        %1613 = vmatpush.msra.mxu0 0.0
        %1614 = vmatpush.msra.mxu0 0.0
        %1615 = vmatpush.msra.mxu0 0.0
        %1616 = vmatpush.msra.mxu0 0.0
        %1617 = vmatpush.msra.mxu0 0.0
        %1618 = vmatpush.msra.mxu0 0.0
        %1619 = vmatpush.msra.mxu0 0.0
        %1620 = vmatpush.msra.mxu0 %v1031
        %1621 = vmatpush.msra.mxu0 %v1023
        %1622 = vmatpush.msra.mxu0 %v1015
        %1623 = vmatpush.msra.mxu0 %v1007
        %1624 = vmatmul.f32.gmra.mxu0 %v1510
        %v1625 = vpop.f32.mrf.mxu0
        %v1626 = vadd.f32 0.0, %v1625
        %1627 = vmatmul.f32.gmra.mxu0 %v1513
        %v1628 = vpop.f32.mrf.mxu0
        %v1629 = vadd.f32 0.0, %v1628
        %1630 = vmatmul.f32.gmra.mxu0 %v1516
        %v1631 = vpop.f32.mrf.mxu0
        %v1632 = vadd.f32 0.0, %v1631
        %1633 = vmatmul.f32.gmra.mxu0 %v1519
        %v1634 = vpop.f32.mrf.mxu0
        %v1635 = vadd.f32 0.0, %v1634
        %1636 = vdwg.mxu0
        %1637 = vmatpush.msra.mxu0 0.0
        %1638 = vmatpush.msra.mxu0 0.0
        %1639 = vmatpush.msra.mxu0 0.0
        %1640 = vmatpush.msra.mxu0 0.0
        %1641 = vmatpush.msra.mxu0 0.0
        %1642 = vmatpush.msra.mxu0 0.0
        %1643 = vmatpush.msra.mxu0 0.0
        %1644 = vmatpush.msra.mxu0 0.0
        %1645 = vmatpush.msra.mxu0 0.0
        %1646 = vmatpush.msra.mxu0 0.0
        %1647 = vmatpush.msra.mxu0 0.0
        %1648 = vmatpush.msra.mxu0 0.0
        %1649 = vmatpush.msra.mxu0 %v1032
        %1650 = vmatpush.msra.mxu0 %v1024
        %1651 = vmatpush.msra.mxu0 %v1016
        %1652 = vmatpush.msra.mxu0 %v1008
        %1653 = vmatmul.f32.gmra.mxu0 %v1510
        %v1654 = vpop.f32.mrf.mxu0
        %v1655 = vadd.f32 0.0, %v1654
        %1656 = vmatmul.f32.gmra.mxu0 %v1513
        %v1657 = vpop.f32.mrf.mxu0
        %v1658 = vadd.f32 0.0, %v1657
        %1659 = vmatmul.f32.gmra.mxu0 %v1516
        %v1660 = vpop.f32.mrf.mxu0
        %v1661 = vadd.f32 0.0, %v1660
        %1662 = vmatmul.f32.gmra.mxu0 %v1519
        %v1663 = vpop.f32.mrf.mxu0
        %v1664 = vadd.f32 0.0, %v1663
        %1665 = vdwg.mxu0
        %1666 = vmatpush.msra.mxu0 0.0
        %1667 = vmatpush.msra.mxu0 0.0
        %1668 = vmatpush.msra.mxu0 0.0
        %1669 = vmatpush.msra.mxu0 0.0
        %1670 = vmatpush.msra.mxu0 0.0
        %1671 = vmatpush.msra.mxu0 0.0
        %1672 = vmatpush.msra.mxu0 0.0
        %1673 = vmatpush.msra.mxu0 0.0
        %1674 = vmatpush.msra.mxu0 0.0
        %1675 = vmatpush.msra.mxu0 0.0
        %1676 = vmatpush.msra.mxu0 0.0
        %1677 = vmatpush.msra.mxu0 0.0
        %1678 = vmatpush.msra.mxu0 %v1033
        %1679 = vmatpush.msra.mxu0 %v1025
        %1680 = vmatpush.msra.mxu0 %v1017
        %1681 = vmatpush.msra.mxu0 %v1009
        %1682 = vmatmul.f32.gmra.mxu0 %v1510
        %v1683 = vpop.f32.mrf.mxu0
        %v1684 = vadd.f32 0.0, %v1683
        %1685 = vmatmul.f32.gmra.mxu0 %v1513
        %v1686 = vpop.f32.mrf.mxu0
        %v1687 = vadd.f32 0.0, %v1686
        %1688 = vmatmul.f32.gmra.mxu0 %v1516
        %v1689 = vpop.f32.mrf.mxu0
        %v1690 = vadd.f32 0.0, %v1689
        %1691 = vmatmul.f32.gmra.mxu0 %v1519
        %v1692 = vpop.f32.mrf.mxu0
        %v1693 = vadd.f32 0.0, %v1692
        %1694 = vdwg.mxu0
        %1695 = vmatpush.msra.mxu0 0.0
        %1696 = vmatpush.msra.mxu0 0.0
        %1697 = vmatpush.msra.mxu0 0.0
        %1698 = vmatpush.msra.mxu0 0.0
        %1699 = vmatpush.msra.mxu0 0.0
        %1700 = vmatpush.msra.mxu0 0.0
        %1701 = vmatpush.msra.mxu0 0.0
        %1702 = vmatpush.msra.mxu0 0.0
        %1703 = vmatpush.msra.mxu0 0.0
        %1704 = vmatpush.msra.mxu0 0.0
        %1705 = vmatpush.msra.mxu0 0.0
        %1706 = vmatpush.msra.mxu0 0.0
        %1707 = vmatpush.msra.mxu0 %v1034
        %1708 = vmatpush.msra.mxu0 %v1026
        %1709 = vmatpush.msra.mxu0 %v1018
        %1710 = vmatpush.msra.mxu0 %v1010
        %1711 = vmatmul.f32.gmra.mxu0 %v1510
        %v1712 = vpop.f32.mrf.mxu0
        %v1713 = vadd.f32 0.0, %v1712
        %1714 = vmatmul.f32.gmra.mxu0 %v1513
        %v1715 = vpop.f32.mrf.mxu0
        %v1716 = vadd.f32 0.0, %v1715
        %1717 = vmatmul.f32.gmra.mxu0 %v1516
        %v1718 = vpop.f32.mrf.mxu0
        %v1719 = vadd.f32 0.0, %v1718
        %1720 = vmatmul.f32.gmra.mxu0 %v1519
        %v1721 = vpop.f32.mrf.mxu0
        %v1722 = vadd.f32 0.0, %v1721
        %1723 = vdwg.mxu0
        %1724 = vmatpush.msra.mxu0 0.0
        %1725 = vmatpush.msra.mxu0 0.0
        %1726 = vmatpush.msra.mxu0 0.0
        %1727 = vmatpush.msra.mxu0 0.0
        %1728 = vmatpush.msra.mxu0 0.0
        %1729 = vmatpush.msra.mxu0 0.0
        %1730 = vmatpush.msra.mxu0 0.0
        %1731 = vmatpush.msra.mxu0 0.0
        %1732 = vmatpush.msra.mxu0 0.0
        %1733 = vmatpush.msra.mxu0 0.0
        %1734 = vmatpush.msra.mxu0 0.0
        %1735 = vmatpush.msra.mxu0 0.0
        %1736 = vmatpush.msra.mxu0 %v1035
        %1737 = vmatpush.msra.mxu0 %v1027
        %1738 = vmatpush.msra.mxu0 %v1019
        %1739 = vmatpush.msra.mxu0 %v1011
        %1740 = vmatmul.f32.gmra.mxu0 %v1510
        %v1741 = vpop.f32.mrf.mxu0
        %v1742 = vadd.f32 0.0, %v1741
        %1743 = vmatmul.f32.gmra.mxu0 %v1513
        %v1744 = vpop.f32.mrf.mxu0
        %v1745 = vadd.f32 0.0, %v1744
        %1746 = vmatmul.f32.gmra.mxu0 %v1516
        %v1747 = vpop.f32.mrf.mxu0
        %v1748 = vadd.f32 0.0, %v1747
        %1749 = vmatmul.f32.gmra.mxu0 %v1519
        %v1750 = vpop.f32.mrf.mxu0
        %v1751 = vadd.f32 0.0, %v1750
        %1752 = vdwg.mxu0
        %v1753 = vld [vmem:[%s10] sm:$0xff]
        %v1754 = vld [vmem:[%s10 + $0x8] sm:$0xff]
        %v1755 = vld [vmem:[%s10 + $0x10] sm:$0xff]
        %v1756 = vld [vmem:[%s10 + $0x18] sm:$0xff]
        %v1757 = vld [vmem:[%s10 + $0x20] sm:$0xff]
        %v1758 = vld [vmem:[%s10 + $0x28] sm:$0xff]
        %v1759 = vld [vmem:[%s10 + $0x30] sm:$0xff]
        %v1760 = vld [vmem:[%s10 + $0x38] sm:$0xff]
        %v1761 = vld [vmem:[%s10 + $0x40] sm:$0xff]
        %v1762 = vld [vmem:[%s10 + $0x48] sm:$0xff]
        %v1763 = vld [vmem:[%s10 + $0x50] sm:$0xff]
        %v1764 = vld [vmem:[%s10 + $0x58] sm:$0xff]
        %v1765 = vld [vmem:[%s10 + $0x60] sm:$0xff]
        %v1766 = vld [vmem:[%s10 + $0x68] sm:$0xff]
        %v1767 = vld [vmem:[%s10 + $0x70] sm:$0xff]
        %v1768 = vld [vmem:[%s10 + $0x78] sm:$0xff]
        %v1769 = vld [vmem:[%s10 + $0x80] sm:$0xff]
        %v1770 = vld [vmem:[%s10 + $0x88] sm:$0xff]
        %v1771 = vld [vmem:[%s10 + $0x90] sm:$0xff]
        %v1772 = vld [vmem:[%s10 + $0x98] sm:$0xff]
        %v1773 = vld [vmem:[%s10 + $0xa0] sm:$0xff]
        %v1774 = vld [vmem:[%s10 + $0xa8] sm:$0xff]
        %v1775 = vld [vmem:[%s10 + $0xb0] sm:$0xff]
        %v1776 = vld [vmem:[%s10 + $0xb8] sm:$0xff]
        %v1777 = vld [vmem:[%s10 + $0xc0] sm:$0xff]
        %v1778 = vld [vmem:[%s10 + $0xc8] sm:$0xff]
        %v1779 = vld [vmem:[%s10 + $0xd0] sm:$0xff]
        %v1780 = vld [vmem:[%s10 + $0xd8] sm:$0xff]
        %v1781 = vld [vmem:[%s10 + $0xe0] sm:$0xff]
        %v1782 = vld [vmem:[%s10 + $0xe8] sm:$0xff]
        %v1783 = vld [vmem:[%s10 + $0xf0] sm:$0xff]
        %v1784 = vld [vmem:[%s10 + $0xf8] sm:$0xff]
        %v1785 = vld [vmem:[#allocation3] sm:$0xff]
        %v1786 = vld [vmem:[#allocation3 + $0x8] sm:$0xff]
        %v1787 = vld [vmem:[#allocation3 + $0x10] sm:$0xff]
        %v1788 = vld [vmem:[#allocation3 + $0x18] sm:$0xff]
        %v1789 = vld [vmem:[#allocation3 + $0x20] sm:$0xff]
        %v1790 = vld [vmem:[#allocation3 + $0x28] sm:$0xff]
        %v1791 = vld [vmem:[#allocation3 + $0x30] sm:$0xff]
        %v1792 = vld [vmem:[#allocation3 + $0x38] sm:$0xff]
        %v1793 = vld [vmem:[#allocation3 + $0x40] sm:$0xff]
        %v1794 = vld [vmem:[#allocation3 + $0x48] sm:$0xff]
        %v1795 = vld [vmem:[#allocation3 + $0x50] sm:$0xff]
        %v1796 = vld [vmem:[#allocation3 + $0x58] sm:$0xff]
        %v1797 = vld [vmem:[#allocation3 + $0x60] sm:$0xff]
        %v1798 = vld [vmem:[#allocation3 + $0x68] sm:$0xff]
        %v1799 = vld [vmem:[#allocation3 + $0x70] sm:$0xff]
        %v1800 = vld [vmem:[#allocation3 + $0x78] sm:$0xff]
        %v1801 = vld [vmem:[#allocation3 + $0x80] sm:$0xff]
        %v1802 = vld [vmem:[#allocation3 + $0x88] sm:$0xff]
        %v1803 = vld [vmem:[#allocation3 + $0x90] sm:$0xff]
        %v1804 = vld [vmem:[#allocation3 + $0x98] sm:$0xff]
        %v1805 = vld [vmem:[#allocation3 + $0xa0] sm:$0xff]
        %v1806 = vld [vmem:[#allocation3 + $0xa8] sm:$0xff]
        %v1807 = vld [vmem:[#allocation3 + $0xb0] sm:$0xff]
        %v1808 = vld [vmem:[#allocation3 + $0xb8] sm:$0xff]
        %v1809 = vld [vmem:[#allocation3 + $0xc0] sm:$0xff]
        %v1810 = vld [vmem:[#allocation3 + $0xc8] sm:$0xff]
        %v1811 = vld [vmem:[#allocation3 + $0xd0] sm:$0xff]
        %v1812 = vld [vmem:[#allocation3 + $0xd8] sm:$0xff]
        %v1813 = vld [vmem:[#allocation3 + $0xe0] sm:$0xff]
        %v1814 = vld [vmem:[#allocation3 + $0xe8] sm:$0xff]
        %v1815 = vld [vmem:[#allocation3 + $0xf0] sm:$0xff]
        %v1816 = vld [vmem:[#allocation3 + $0xf8] sm:$0xff]
        %v1817 = vmul.f32 %v1295, %v1753
        %v1818 = vmul.f32 %v1324, %v1754
        %v1819 = vmul.f32 %v1353, %v1755
        %v1820 = vmul.f32 %v1382, %v1756
        %v1821 = vmul.f32 %v1411, %v1757
        %v1822 = vmul.f32 %v1440, %v1758
        %v1823 = vmul.f32 %v1469, %v1759
        %v1824 = vmul.f32 %v1498, %v1760
        %v1825 = vmul.f32 %v1298, %v1761
        %v1826 = vmul.f32 %v1327, %v1762
        %v1827 = vmul.f32 %v1356, %v1763
        %v1828 = vmul.f32 %v1385, %v1764
        %v1829 = vmul.f32 %v1414, %v1765
        %v1830 = vmul.f32 %v1443, %v1766
        %v1831 = vmul.f32 %v1472, %v1767
        %v1832 = vmul.f32 %v1501, %v1768
        %v1833 = vmul.f32 %v1301, %v1769
        %v1834 = vmul.f32 %v1330, %v1770
        %v1835 = vmul.f32 %v1359, %v1771
        %v1836 = vmul.f32 %v1388, %v1772
        %v1837 = vmul.f32 %v1417, %v1773
        %v1838 = vmul.f32 %v1446, %v1774
        %v1839 = vmul.f32 %v1475, %v1775
        %v1840 = vmul.f32 %v1504, %v1776
        %v1841 = vmul.f32 %v1304, %v1777
        %v1842 = vmul.f32 %v1333, %v1778
        %v1843 = vmul.f32 %v1362, %v1779
        %v1844 = vmul.f32 %v1391, %v1780
        %v1845 = vmul.f32 %v1420, %v1781
        %v1846 = vmul.f32 %v1449, %v1782
        %v1847 = vmul.f32 %v1478, %v1783
        %v1848 = vmul.f32 %v1507, %v1784
        %v1849 = vmul.f32 %v1539, %v1785
        %v1850 = vmul.f32 %v1568, %v1786
        %v1851 = vmul.f32 %v1597, %v1787
        %v1852 = vmul.f32 %v1626, %v1788
        %v1853 = vmul.f32 %v1655, %v1789
        %v1854 = vmul.f32 %v1684, %v1790
        %v1855 = vmul.f32 %v1713, %v1791
        %v1856 = vmul.f32 %v1742, %v1792
        %v1857 = vmul.f32 %v1542, %v1793
        %v1858 = vmul.f32 %v1571, %v1794
        %v1859 = vmul.f32 %v1600, %v1795
        %v1860 = vmul.f32 %v1629, %v1796
        %v1861 = vmul.f32 %v1658, %v1797
        %v1862 = vmul.f32 %v1687, %v1798
        %v1863 = vmul.f32 %v1716, %v1799
        %v1864 = vmul.f32 %v1745, %v1800
        %v1865 = vmul.f32 %v1545, %v1801
        %v1866 = vmul.f32 %v1574, %v1802
        %v1867 = vmul.f32 %v1603, %v1803
        %v1868 = vmul.f32 %v1632, %v1804
        %v1869 = vmul.f32 %v1661, %v1805
        %v1870 = vmul.f32 %v1690, %v1806
        %v1871 = vmul.f32 %v1719, %v1807
        %v1872 = vmul.f32 %v1748, %v1808
        %v1873 = vmul.f32 %v1548, %v1809
        %v1874 = vmul.f32 %v1577, %v1810
        %v1875 = vmul.f32 %v1606, %v1811
        %v1876 = vmul.f32 %v1635, %v1812
        %v1877 = vmul.f32 %v1664, %v1813
        %v1878 = vmul.f32 %v1693, %v1814
        %v1879 = vmul.f32 %v1722, %v1815
        %v1880 = vmul.f32 %v1751, %v1816
        %v1881 = vsub.f32 %v1817, %v1849
        %v1882 = vsub.f32 %v1818, %v1850
        %v1883 = vsub.f32 %v1819, %v1851
        %v1884 = vsub.f32 %v1820, %v1852
        %v1885 = vsub.f32 %v1821, %v1853
        %v1886 = vsub.f32 %v1822, %v1854
        %v1887 = vsub.f32 %v1823, %v1855
        %v1888 = vsub.f32 %v1824, %v1856
        %v1889 = vsub.f32 %v1825, %v1857
        %v1890 = vsub.f32 %v1826, %v1858
        %v1891 = vsub.f32 %v1827, %v1859
        %v1892 = vsub.f32 %v1828, %v1860
        %v1893 = vsub.f32 %v1829, %v1861
        %v1894 = vsub.f32 %v1830, %v1862
        %v1895 = vsub.f32 %v1831, %v1863
        %v1896 = vsub.f32 %v1832, %v1864
        %v1897 = vsub.f32 %v1833, %v1865
        %v1898 = vsub.f32 %v1834, %v1866
        %v1899 = vsub.f32 %v1835, %v1867
        %v1900 = vsub.f32 %v1836, %v1868
        %v1901 = vsub.f32 %v1837, %v1869
        %v1902 = vsub.f32 %v1838, %v1870
        %v1903 = vsub.f32 %v1839, %v1871
        %v1904 = vsub.f32 %v1840, %v1872
        %v1905 = vsub.f32 %v1841, %v1873
        %v1906 = vsub.f32 %v1842, %v1874
        %v1907 = vsub.f32 %v1843, %v1875
        %v1908 = vsub.f32 %v1844, %v1876
        %v1909 = vsub.f32 %v1845, %v1877
        %v1910 = vsub.f32 %v1846, %v1878
        %v1911 = vsub.f32 %v1847, %v1879
        %v1912 = vsub.f32 %v1848, %v1880
        %v1913 = vmul.f32 %v1295, %v1785
        %v1914 = vmul.f32 %v1324, %v1786
        %v1915 = vmul.f32 %v1353, %v1787
        %v1916 = vmul.f32 %v1382, %v1788
        %v1917 = vmul.f32 %v1411, %v1789
        %v1918 = vmul.f32 %v1440, %v1790
        %v1919 = vmul.f32 %v1469, %v1791
        %v1920 = vmul.f32 %v1498, %v1792
        %v1921 = vmul.f32 %v1298, %v1793
        %v1922 = vmul.f32 %v1327, %v1794
        %v1923 = vmul.f32 %v1356, %v1795
        %v1924 = vmul.f32 %v1385, %v1796
        %v1925 = vmul.f32 %v1414, %v1797
        %v1926 = vmul.f32 %v1443, %v1798
        %v1927 = vmul.f32 %v1472, %v1799
        %v1928 = vmul.f32 %v1501, %v1800
        %v1929 = vmul.f32 %v1301, %v1801
        %v1930 = vmul.f32 %v1330, %v1802
        %v1931 = vmul.f32 %v1359, %v1803
        %v1932 = vmul.f32 %v1388, %v1804
        %v1933 = vmul.f32 %v1417, %v1805
        %v1934 = vmul.f32 %v1446, %v1806
        %v1935 = vmul.f32 %v1475, %v1807
        %v1936 = vmul.f32 %v1504, %v1808
        %v1937 = vmul.f32 %v1304, %v1809
        %v1938 = vmul.f32 %v1333, %v1810
        %v1939 = vmul.f32 %v1362, %v1811
        %v1940 = vmul.f32 %v1391, %v1812
        %v1941 = vmul.f32 %v1420, %v1813
        %v1942 = vmul.f32 %v1449, %v1814
        %v1943 = vmul.f32 %v1478, %v1815
        %v1944 = vmul.f32 %v1507, %v1816
        %v1945 = vmul.f32 %v1539, %v1753
        %v1946 = vmul.f32 %v1568, %v1754
        %v1947 = vmul.f32 %v1597, %v1755
        %v1948 = vmul.f32 %v1626, %v1756
        %v1949 = vmul.f32 %v1655, %v1757
        %v1950 = vmul.f32 %v1684, %v1758
        %v1951 = vmul.f32 %v1713, %v1759
        %v1952 = vmul.f32 %v1742, %v1760
        %v1953 = vmul.f32 %v1542, %v1761
        %v1954 = vmul.f32 %v1571, %v1762
        %v1955 = vmul.f32 %v1600, %v1763
        %v1956 = vmul.f32 %v1629, %v1764
        %v1957 = vmul.f32 %v1658, %v1765
        %v1958 = vmul.f32 %v1687, %v1766
        %v1959 = vmul.f32 %v1716, %v1767
        %v1960 = vmul.f32 %v1745, %v1768
        %v1961 = vmul.f32 %v1545, %v1769
        %v1962 = vmul.f32 %v1574, %v1770
        %v1963 = vmul.f32 %v1603, %v1771
        %v1964 = vmul.f32 %v1632, %v1772
        %v1965 = vmul.f32 %v1661, %v1773
        %v1966 = vmul.f32 %v1690, %v1774
        %v1967 = vmul.f32 %v1719, %v1775
        %v1968 = vmul.f32 %v1748, %v1776
        %v1969 = vmul.f32 %v1548, %v1777
        %v1970 = vmul.f32 %v1577, %v1778
        %v1971 = vmul.f32 %v1606, %v1779
        %v1972 = vmul.f32 %v1635, %v1780
        %v1973 = vmul.f32 %v1664, %v1781
        %v1974 = vmul.f32 %v1693, %v1782
        %v1975 = vmul.f32 %v1722, %v1783
        %v1976 = vmul.f32 %v1751, %v1784
        %v1977 = vadd.f32 %v1913, %v1945
        %v1978 = vadd.f32 %v1914, %v1946
        %v1979 = vadd.f32 %v1915, %v1947
        %v1980 = vadd.f32 %v1916, %v1948
        %v1981 = vadd.f32 %v1917, %v1949
        %v1982 = vadd.f32 %v1918, %v1950
        %v1983 = vadd.f32 %v1919, %v1951
        %v1984 = vadd.f32 %v1920, %v1952
        %v1985 = vadd.f32 %v1921, %v1953
        %v1986 = vadd.f32 %v1922, %v1954
        %v1987 = vadd.f32 %v1923, %v1955
        %v1988 = vadd.f32 %v1924, %v1956
        %v1989 = vadd.f32 %v1925, %v1957
        %v1990 = vadd.f32 %v1926, %v1958
        %v1991 = vadd.f32 %v1927, %v1959
        %v1992 = vadd.f32 %v1928, %v1960
        %v1993 = vadd.f32 %v1929, %v1961
        %v1994 = vadd.f32 %v1930, %v1962
        %v1995 = vadd.f32 %v1931, %v1963
        %v1996 = vadd.f32 %v1932, %v1964
        %v1997 = vadd.f32 %v1933, %v1965
        %v1998 = vadd.f32 %v1934, %v1966
        %v1999 = vadd.f32 %v1935, %v1967
        %v2000 = vadd.f32 %v1936, %v1968
        %v2001 = vadd.f32 %v1937, %v1969
        %v2002 = vadd.f32 %v1938, %v1970
        %v2003 = vadd.f32 %v1939, %v1971
        %v2004 = vadd.f32 %v1940, %v1972
        %v2005 = vadd.f32 %v1941, %v1973
        %v2006 = vadd.f32 %v1942, %v1974
        %v2007 = vadd.f32 %v1943, %v1975
        %v2008 = vadd.f32 %v1944, %v1976
        %v2010 = vsel %vm1264, 1.0, 0
        %2012 = vmatpush.msra.mxu0 0.0
        %2013 = vmatpush.msra.mxu0 0.0
        %2014 = vmatpush.msra.mxu0 0.0
        %2015 = vmatpush.msra.mxu0 0.0
        %2016 = vmatpush.msra.mxu0 0.0
        %2017 = vmatpush.msra.mxu0 0.0
        %2018 = vmatpush.msra.mxu0 0.0
        %2019 = vmatpush.msra.mxu0 0.0
        %2020 = vmatpush.msra.mxu0 0.0
        %2021 = vmatpush.msra.mxu0 0.0
        %2022 = vmatpush.msra.mxu0 0.0
        %2023 = vmatpush.msra.mxu0 0.0
        %2024 = vmatpush.msra.mxu0 %v1905
        %2025 = vmatpush.msra.mxu0 %v1897
        %2026 = vmatpush.msra.mxu0 %v1889
        %2027 = vmatpush.msra.mxu0 %v1881
        %2028 = vmatmul.f32.gmra.mxu0 %v2010
        %v2029 = vpop.f32.mrf.mxu0
        %v2030 = vadd.f32 0.0, %v2029
        %2031 = vdwg.mxu0
        %2032 = vmatpush.msra.mxu0 0.0
        %2033 = vmatpush.msra.mxu0 0.0
        %2034 = vmatpush.msra.mxu0 0.0
        %2035 = vmatpush.msra.mxu0 0.0
        %2036 = vmatpush.msra.mxu0 0.0
        %2037 = vmatpush.msra.mxu0 0.0
        %2038 = vmatpush.msra.mxu0 0.0
        %2039 = vmatpush.msra.mxu0 0.0
        %2040 = vmatpush.msra.mxu0 0.0
        %2041 = vmatpush.msra.mxu0 0.0
        %2042 = vmatpush.msra.mxu0 0.0
        %2043 = vmatpush.msra.mxu0 0.0
        %2044 = vmatpush.msra.mxu0 %v1906
        %2045 = vmatpush.msra.mxu0 %v1898
        %2046 = vmatpush.msra.mxu0 %v1890
        %2047 = vmatpush.msra.mxu0 %v1882
        %2048 = vmatmul.f32.gmra.mxu0 %v2010
        %v2049 = vpop.f32.mrf.mxu0
        %v2050 = vadd.f32 0.0, %v2049
        %2051 = vdwg.mxu0
        %2052 = vmatpush.msra.mxu0 0.0
        %2053 = vmatpush.msra.mxu0 0.0
        %2054 = vmatpush.msra.mxu0 0.0
        %2055 = vmatpush.msra.mxu0 0.0
        %2056 = vmatpush.msra.mxu0 0.0
        %2057 = vmatpush.msra.mxu0 0.0
        %2058 = vmatpush.msra.mxu0 0.0
        %2059 = vmatpush.msra.mxu0 0.0
        %2060 = vmatpush.msra.mxu0 0.0
        %2061 = vmatpush.msra.mxu0 0.0
        %2062 = vmatpush.msra.mxu0 0.0
        %2063 = vmatpush.msra.mxu0 0.0
        %2064 = vmatpush.msra.mxu0 %v1907
        %2065 = vmatpush.msra.mxu0 %v1899
        %2066 = vmatpush.msra.mxu0 %v1891
        %2067 = vmatpush.msra.mxu0 %v1883
        %2068 = vmatmul.f32.gmra.mxu0 %v2010
        %v2069 = vpop.f32.mrf.mxu0
        %v2070 = vadd.f32 0.0, %v2069
        %2071 = vdwg.mxu0
        %2072 = vmatpush.msra.mxu0 0.0
        %2073 = vmatpush.msra.mxu0 0.0
        %2074 = vmatpush.msra.mxu0 0.0
        %2075 = vmatpush.msra.mxu0 0.0
        %2076 = vmatpush.msra.mxu0 0.0
        %2077 = vmatpush.msra.mxu0 0.0
        %2078 = vmatpush.msra.mxu0 0.0
        %2079 = vmatpush.msra.mxu0 0.0
        %2080 = vmatpush.msra.mxu0 0.0
        %2081 = vmatpush.msra.mxu0 0.0
        %2082 = vmatpush.msra.mxu0 0.0
        %2083 = vmatpush.msra.mxu0 0.0
        %2084 = vmatpush.msra.mxu0 %v1908
        %2085 = vmatpush.msra.mxu0 %v1900
        %2086 = vmatpush.msra.mxu0 %v1892
        %2087 = vmatpush.msra.mxu0 %v1884
        %2088 = vmatmul.f32.gmra.mxu0 %v2010
        %v2089 = vpop.f32.mrf.mxu0
        %v2090 = vadd.f32 0.0, %v2089
        %2091 = vdwg.mxu0
        %2092 = vmatpush.msra.mxu0 0.0
        %2093 = vmatpush.msra.mxu0 0.0
        %2094 = vmatpush.msra.mxu0 0.0
        %2095 = vmatpush.msra.mxu0 0.0
        %2096 = vmatpush.msra.mxu0 0.0
        %2097 = vmatpush.msra.mxu0 0.0
        %2098 = vmatpush.msra.mxu0 0.0
        %2099 = vmatpush.msra.mxu0 0.0
        %2100 = vmatpush.msra.mxu0 0.0
        %2101 = vmatpush.msra.mxu0 0.0
        %2102 = vmatpush.msra.mxu0 0.0
        %2103 = vmatpush.msra.mxu0 0.0
        %2104 = vmatpush.msra.mxu0 %v1909
        %2105 = vmatpush.msra.mxu0 %v1901
        %2106 = vmatpush.msra.mxu0 %v1893
        %2107 = vmatpush.msra.mxu0 %v1885
        %2108 = vmatmul.f32.gmra.mxu0 %v2010
        %v2109 = vpop.f32.mrf.mxu0
        %v2110 = vadd.f32 0.0, %v2109
        %2111 = vdwg.mxu0
        %2112 = vmatpush.msra.mxu0 0.0
        %2113 = vmatpush.msra.mxu0 0.0
        %2114 = vmatpush.msra.mxu0 0.0
        %2115 = vmatpush.msra.mxu0 0.0
        %2116 = vmatpush.msra.mxu0 0.0
        %2117 = vmatpush.msra.mxu0 0.0
        %2118 = vmatpush.msra.mxu0 0.0
        %2119 = vmatpush.msra.mxu0 0.0
        %2120 = vmatpush.msra.mxu0 0.0
        %2121 = vmatpush.msra.mxu0 0.0
        %2122 = vmatpush.msra.mxu0 0.0
        %2123 = vmatpush.msra.mxu0 0.0
        %2124 = vmatpush.msra.mxu0 %v1910
        %2125 = vmatpush.msra.mxu0 %v1902
        %2126 = vmatpush.msra.mxu0 %v1894
        %2127 = vmatpush.msra.mxu0 %v1886
        %2128 = vmatmul.f32.gmra.mxu0 %v2010
        %v2129 = vpop.f32.mrf.mxu0
        %v2130 = vadd.f32 0.0, %v2129
        %2131 = vdwg.mxu0
        %2132 = vmatpush.msra.mxu0 0.0
        %2133 = vmatpush.msra.mxu0 0.0
        %2134 = vmatpush.msra.mxu0 0.0
        %2135 = vmatpush.msra.mxu0 0.0
        %2136 = vmatpush.msra.mxu0 0.0
        %2137 = vmatpush.msra.mxu0 0.0
        %2138 = vmatpush.msra.mxu0 0.0
        %2139 = vmatpush.msra.mxu0 0.0
        %2140 = vmatpush.msra.mxu0 0.0
        %2141 = vmatpush.msra.mxu0 0.0
        %2142 = vmatpush.msra.mxu0 0.0
        %2143 = vmatpush.msra.mxu0 0.0
        %2144 = vmatpush.msra.mxu0 %v1911
        %2145 = vmatpush.msra.mxu0 %v1903
        %2146 = vmatpush.msra.mxu0 %v1895
        %2147 = vmatpush.msra.mxu0 %v1887
        %2148 = vmatmul.f32.gmra.mxu0 %v2010
        %v2149 = vpop.f32.mrf.mxu0
        %v2150 = vadd.f32 0.0, %v2149
        %2151 = vdwg.mxu0
        %2152 = vmatpush.msra.mxu0 0.0
        %2153 = vmatpush.msra.mxu0 0.0
        %2154 = vmatpush.msra.mxu0 0.0
        %2155 = vmatpush.msra.mxu0 0.0
        %2156 = vmatpush.msra.mxu0 0.0
        %2157 = vmatpush.msra.mxu0 0.0
        %2158 = vmatpush.msra.mxu0 0.0
        %2159 = vmatpush.msra.mxu0 0.0
        %2160 = vmatpush.msra.mxu0 0.0
        %2161 = vmatpush.msra.mxu0 0.0
        %2162 = vmatpush.msra.mxu0 0.0
        %2163 = vmatpush.msra.mxu0 0.0
        %2164 = vmatpush.msra.mxu0 %v1912
        %2165 = vmatpush.msra.mxu0 %v1904
        %2166 = vmatpush.msra.mxu0 %v1896
        %2167 = vmatpush.msra.mxu0 %v1888
        %2168 = vmatmul.f32.gmra.mxu0 %v2010
        %v2169 = vpop.f32.mrf.mxu0
        %v2170 = vadd.f32 0.0, %v2169
        %2171 = vdwg.mxu0
        %2172 = vmatpush.msra.mxu0 0.0
        %2173 = vmatpush.msra.mxu0 0.0
        %2174 = vmatpush.msra.mxu0 0.0
        %2175 = vmatpush.msra.mxu0 0.0
        %2176 = vmatpush.msra.mxu0 0.0
        %2177 = vmatpush.msra.mxu0 0.0
        %2178 = vmatpush.msra.mxu0 0.0
        %2179 = vmatpush.msra.mxu0 0.0
        %2180 = vmatpush.msra.mxu0 0.0
        %2181 = vmatpush.msra.mxu0 0.0
        %2182 = vmatpush.msra.mxu0 0.0
        %2183 = vmatpush.msra.mxu0 0.0
        %2184 = vmatpush.msra.mxu0 %v2001
        %2185 = vmatpush.msra.mxu0 %v1993
        %2186 = vmatpush.msra.mxu0 %v1985
        %2187 = vmatpush.msra.mxu0 %v1977
        %2188 = vmatmul.f32.gmra.mxu0 %v2010
        %v2189 = vpop.f32.mrf.mxu0
        %v2190 = vadd.f32 0.0, %v2189
        %2191 = vdwg.mxu0
        %2192 = vmatpush.msra.mxu0 0.0
        %2193 = vmatpush.msra.mxu0 0.0
        %2194 = vmatpush.msra.mxu0 0.0
        %2195 = vmatpush.msra.mxu0 0.0
        %2196 = vmatpush.msra.mxu0 0.0
        %2197 = vmatpush.msra.mxu0 0.0
        %2198 = vmatpush.msra.mxu0 0.0
        %2199 = vmatpush.msra.mxu0 0.0
        %2200 = vmatpush.msra.mxu0 0.0
        %2201 = vmatpush.msra.mxu0 0.0
        %2202 = vmatpush.msra.mxu0 0.0
        %2203 = vmatpush.msra.mxu0 0.0
        %2204 = vmatpush.msra.mxu0 %v2002
        %2205 = vmatpush.msra.mxu0 %v1994
        %2206 = vmatpush.msra.mxu0 %v1986
        %2207 = vmatpush.msra.mxu0 %v1978
        %2208 = vmatmul.f32.gmra.mxu0 %v2010
        %v2209 = vpop.f32.mrf.mxu0
        %v2210 = vadd.f32 0.0, %v2209
        %2211 = vdwg.mxu0
        %2212 = vmatpush.msra.mxu0 0.0
        %2213 = vmatpush.msra.mxu0 0.0
        %2214 = vmatpush.msra.mxu0 0.0
        %2215 = vmatpush.msra.mxu0 0.0
        %2216 = vmatpush.msra.mxu0 0.0
        %2217 = vmatpush.msra.mxu0 0.0
        %2218 = vmatpush.msra.mxu0 0.0
        %2219 = vmatpush.msra.mxu0 0.0
        %2220 = vmatpush.msra.mxu0 0.0
        %2221 = vmatpush.msra.mxu0 0.0
        %2222 = vmatpush.msra.mxu0 0.0
        %2223 = vmatpush.msra.mxu0 0.0
        %2224 = vmatpush.msra.mxu0 %v2003
        %2225 = vmatpush.msra.mxu0 %v1995
        %2226 = vmatpush.msra.mxu0 %v1987
        %2227 = vmatpush.msra.mxu0 %v1979
        %2228 = vmatmul.f32.gmra.mxu0 %v2010
        %v2229 = vpop.f32.mrf.mxu0
        %v2230 = vadd.f32 0.0, %v2229
        %2231 = vdwg.mxu0
        %2232 = vmatpush.msra.mxu0 0.0
        %2233 = vmatpush.msra.mxu0 0.0
        %2234 = vmatpush.msra.mxu0 0.0
        %2235 = vmatpush.msra.mxu0 0.0
        %2236 = vmatpush.msra.mxu0 0.0
        %2237 = vmatpush.msra.mxu0 0.0
        %2238 = vmatpush.msra.mxu0 0.0
        %2239 = vmatpush.msra.mxu0 0.0
        %2240 = vmatpush.msra.mxu0 0.0
        %2241 = vmatpush.msra.mxu0 0.0
        %2242 = vmatpush.msra.mxu0 0.0
        %2243 = vmatpush.msra.mxu0 0.0
        %2244 = vmatpush.msra.mxu0 %v2004
        %2245 = vmatpush.msra.mxu0 %v1996
        %2246 = vmatpush.msra.mxu0 %v1988
        %2247 = vmatpush.msra.mxu0 %v1980
        %2248 = vmatmul.f32.gmra.mxu0 %v2010
        %v2249 = vpop.f32.mrf.mxu0
        %v2250 = vadd.f32 0.0, %v2249
        %2251 = vdwg.mxu0
        %2252 = vmatpush.msra.mxu0 0.0
        %2253 = vmatpush.msra.mxu0 0.0
        %2254 = vmatpush.msra.mxu0 0.0
        %2255 = vmatpush.msra.mxu0 0.0
        %2256 = vmatpush.msra.mxu0 0.0
        %2257 = vmatpush.msra.mxu0 0.0
        %2258 = vmatpush.msra.mxu0 0.0
        %2259 = vmatpush.msra.mxu0 0.0
        %2260 = vmatpush.msra.mxu0 0.0
        %2261 = vmatpush.msra.mxu0 0.0
        %2262 = vmatpush.msra.mxu0 0.0
        %2263 = vmatpush.msra.mxu0 0.0
        %2264 = vmatpush.msra.mxu0 %v2005
        %2265 = vmatpush.msra.mxu0 %v1997
        %2266 = vmatpush.msra.mxu0 %v1989
        %2267 = vmatpush.msra.mxu0 %v1981
        %2268 = vmatmul.f32.gmra.mxu0 %v2010
        %v2269 = vpop.f32.mrf.mxu0
        %v2270 = vadd.f32 0.0, %v2269
        %2271 = vdwg.mxu0
        %2272 = vmatpush.msra.mxu0 0.0
        %2273 = vmatpush.msra.mxu0 0.0
        %2274 = vmatpush.msra.mxu0 0.0
        %2275 = vmatpush.msra.mxu0 0.0
        %2276 = vmatpush.msra.mxu0 0.0
        %2277 = vmatpush.msra.mxu0 0.0
        %2278 = vmatpush.msra.mxu0 0.0
        %2279 = vmatpush.msra.mxu0 0.0
        %2280 = vmatpush.msra.mxu0 0.0
        %2281 = vmatpush.msra.mxu0 0.0
        %2282 = vmatpush.msra.mxu0 0.0
        %2283 = vmatpush.msra.mxu0 0.0
        %2284 = vmatpush.msra.mxu0 %v2006
        %2285 = vmatpush.msra.mxu0 %v1998
        %2286 = vmatpush.msra.mxu0 %v1990
        %2287 = vmatpush.msra.mxu0 %v1982
        %2288 = vmatmul.f32.gmra.mxu0 %v2010
        %v2289 = vpop.f32.mrf.mxu0
        %v2290 = vadd.f32 0.0, %v2289
        %2291 = vdwg.mxu0
        %2292 = vmatpush.msra.mxu0 0.0
        %2293 = vmatpush.msra.mxu0 0.0
        %2294 = vmatpush.msra.mxu0 0.0
        %2295 = vmatpush.msra.mxu0 0.0
        %2296 = vmatpush.msra.mxu0 0.0
        %2297 = vmatpush.msra.mxu0 0.0
        %2298 = vmatpush.msra.mxu0 0.0
        %2299 = vmatpush.msra.mxu0 0.0
        %2300 = vmatpush.msra.mxu0 0.0
        %2301 = vmatpush.msra.mxu0 0.0
        %2302 = vmatpush.msra.mxu0 0.0
        %2303 = vmatpush.msra.mxu0 0.0
        %2304 = vmatpush.msra.mxu0 %v2007
        %2305 = vmatpush.msra.mxu0 %v1999
        %2306 = vmatpush.msra.mxu0 %v1991
        %2307 = vmatpush.msra.mxu0 %v1983
        %2308 = vmatmul.f32.gmra.mxu0 %v2010
        %v2309 = vpop.f32.mrf.mxu0
        %v2310 = vadd.f32 0.0, %v2309
        %2311 = vdwg.mxu0
        %2312 = vmatpush.msra.mxu0 0.0
        %2313 = vmatpush.msra.mxu0 0.0
        %2314 = vmatpush.msra.mxu0 0.0
        %2315 = vmatpush.msra.mxu0 0.0
        %2316 = vmatpush.msra.mxu0 0.0
        %2317 = vmatpush.msra.mxu0 0.0
        %2318 = vmatpush.msra.mxu0 0.0
        %2319 = vmatpush.msra.mxu0 0.0
        %2320 = vmatpush.msra.mxu0 0.0
        %2321 = vmatpush.msra.mxu0 0.0
        %2322 = vmatpush.msra.mxu0 0.0
        %2323 = vmatpush.msra.mxu0 0.0
        %2324 = vmatpush.msra.mxu0 %v2008
        %2325 = vmatpush.msra.mxu0 %v2000
        %2326 = vmatpush.msra.mxu0 %v1992
        %2327 = vmatpush.msra.mxu0 %v1984
        %2328 = vmatmul.f32.gmra.mxu0 %v2010
        %v2329 = vpop.f32.mrf.mxu0
        %v2330 = vadd.f32 0.0, %v2329
        %2331 = vdwg.mxu0
        %v2332 = vperm.slane %v2030, 0
        %v2333 = vperm.slane %v2050, 0
        %v2334 = vperm.slane %v2070, 0
        %v2335 = vperm.slane %v2090, 0
        %v2336 = vperm.slane %v2110, 0
        %v2337 = vperm.slane %v2130, 0
        %v2338 = vperm.slane %v2150, 0
        %v2339 = vperm.slane %v2170, 0
        %v2340 = vmul.f32 %v1036, %v2332
        %v2341 = vmul.f32 %v1037, %v2333
        %v2342 = vmul.f32 %v1038, %v2334
        %v2343 = vmul.f32 %v1039, %v2335
        %v2344 = vmul.f32 %v1040, %v2336
        %v2345 = vmul.f32 %v1041, %v2337
        %v2346 = vmul.f32 %v1042, %v2338
        %v2347 = vmul.f32 %v1043, %v2339
        %v2348 = vmul.f32 %v1044, %v2332
        %v2349 = vmul.f32 %v1045, %v2333
        %v2350 = vmul.f32 %v1046, %v2334
        %v2351 = vmul.f32 %v1047, %v2335
        %v2352 = vmul.f32 %v1048, %v2336
        %v2353 = vmul.f32 %v1049, %v2337
        %v2354 = vmul.f32 %v1050, %v2338
        %v2355 = vmul.f32 %v1051, %v2339
        %v2356 = vmul.f32 %v1052, %v2332
        %v2357 = vmul.f32 %v1053, %v2333
        %v2358 = vmul.f32 %v1054, %v2334
        %v2359 = vmul.f32 %v1055, %v2335
        %v2360 = vmul.f32 %v1056, %v2336
        %v2361 = vmul.f32 %v1057, %v2337
        %v2362 = vmul.f32 %v1058, %v2338
        %v2363 = vmul.f32 %v1059, %v2339
        %v2364 = vmul.f32 %v1060, %v2332
        %v2365 = vmul.f32 %v1061, %v2333
        %v2366 = vmul.f32 %v1062, %v2334
        %v2367 = vmul.f32 %v1063, %v2335
        %v2368 = vmul.f32 %v1064, %v2336
        %v2369 = vmul.f32 %v1065, %v2337
        %v2370 = vmul.f32 %v1066, %v2338
        %v2371 = vmul.f32 %v1067, %v2339
        %2372 = vmatpush.xpose.msra.mxu0 0.0
        %2373 = vmatpush.xpose.msra.mxu0 0.0
        %2374 = vmatpush.xpose.msra.mxu0 0.0
        %2375 = vmatpush.xpose.msra.mxu0 0.0
        %2376 = vmatpush.xpose.msra.mxu0 0.0
        %2377 = vmatpush.xpose.msra.mxu0 0.0
        %2378 = vmatpush.xpose.msra.mxu0 0.0
        %2379 = vmatpush.xpose.msra.mxu0 0.0
        %2380 = vmatpush.xpose.msra.mxu0 0.0
        %2381 = vmatpush.xpose.msra.mxu0 0.0
        %2382 = vmatpush.xpose.msra.mxu0 0.0
        %2383 = vmatpush.xpose.msra.mxu0 0.0
        %2384 = vmatpush.xpose.msra.mxu0 %v1028
        %2385 = vmatpush.xpose.msra.mxu0 %v1020
        %2386 = vmatpush.xpose.msra.mxu0 %v1012
        %2387 = vmatpush.xpose.msra.mxu0 %v1004
        %2388 = vmatmul.f32.gmra.mxu0 %v2340
        %v2389 = vpop.f32.mrf.mxu0
        %v2390 = vadd.f32 0.0, %v2389
        %2391 = vmatmul.f32.gmra.mxu0 %v2348
        %v2392 = vpop.f32.mrf.mxu0
        %v2393 = vadd.f32 0.0, %v2392
        %2394 = vmatmul.f32.gmra.mxu0 %v2356
        %v2395 = vpop.f32.mrf.mxu0
        %v2396 = vadd.f32 0.0, %v2395
        %2397 = vmatmul.f32.gmra.mxu0 %v2364
        %v2398 = vpop.f32.mrf.mxu0
        %v2399 = vadd.f32 0.0, %v2398
        %2400 = vdwg.mxu0
        %2401 = vmatpush.xpose.msra.mxu0 0.0
        %2402 = vmatpush.xpose.msra.mxu0 0.0
        %2403 = vmatpush.xpose.msra.mxu0 0.0
        %2404 = vmatpush.xpose.msra.mxu0 0.0
        %2405 = vmatpush.xpose.msra.mxu0 0.0
        %2406 = vmatpush.xpose.msra.mxu0 0.0
        %2407 = vmatpush.xpose.msra.mxu0 0.0
        %2408 = vmatpush.xpose.msra.mxu0 0.0
        %2409 = vmatpush.xpose.msra.mxu0 0.0
        %2410 = vmatpush.xpose.msra.mxu0 0.0
        %2411 = vmatpush.xpose.msra.mxu0 0.0
        %2412 = vmatpush.xpose.msra.mxu0 0.0
        %2413 = vmatpush.xpose.msra.mxu0 %v1029
        %2414 = vmatpush.xpose.msra.mxu0 %v1021
        %2415 = vmatpush.xpose.msra.mxu0 %v1013
        %2416 = vmatpush.xpose.msra.mxu0 %v1005
        %2417 = vmatmul.f32.gmra.mxu0 %v2341
        %v2418 = vpop.f32.mrf.mxu0
        %v2419 = vadd.f32 %v2390, %v2418
        %2420 = vmatmul.f32.gmra.mxu0 %v2349
        %v2421 = vpop.f32.mrf.mxu0
        %v2422 = vadd.f32 %v2393, %v2421
        %2423 = vmatmul.f32.gmra.mxu0 %v2357
        %v2424 = vpop.f32.mrf.mxu0
        %v2425 = vadd.f32 %v2396, %v2424
        %2426 = vmatmul.f32.gmra.mxu0 %v2365
        %v2427 = vpop.f32.mrf.mxu0
        %v2428 = vadd.f32 %v2399, %v2427
        %2429 = vdwg.mxu0
        %2430 = vmatpush.xpose.msra.mxu0 0.0
        %2431 = vmatpush.xpose.msra.mxu0 0.0
        %2432 = vmatpush.xpose.msra.mxu0 0.0
        %2433 = vmatpush.xpose.msra.mxu0 0.0
        %2434 = vmatpush.xpose.msra.mxu0 0.0
        %2435 = vmatpush.xpose.msra.mxu0 0.0
        %2436 = vmatpush.xpose.msra.mxu0 0.0
        %2437 = vmatpush.xpose.msra.mxu0 0.0
        %2438 = vmatpush.xpose.msra.mxu0 0.0
        %2439 = vmatpush.xpose.msra.mxu0 0.0
        %2440 = vmatpush.xpose.msra.mxu0 0.0
        %2441 = vmatpush.xpose.msra.mxu0 0.0
        %2442 = vmatpush.xpose.msra.mxu0 %v1030
        %2443 = vmatpush.xpose.msra.mxu0 %v1022
        %2444 = vmatpush.xpose.msra.mxu0 %v1014
        %2445 = vmatpush.xpose.msra.mxu0 %v1006
        %2446 = vmatmul.f32.gmra.mxu0 %v2342
        %v2447 = vpop.f32.mrf.mxu0
        %v2448 = vadd.f32 %v2419, %v2447
        %2449 = vmatmul.f32.gmra.mxu0 %v2350
        %v2450 = vpop.f32.mrf.mxu0
        %v2451 = vadd.f32 %v2422, %v2450
        %2452 = vmatmul.f32.gmra.mxu0 %v2358
        %v2453 = vpop.f32.mrf.mxu0
        %v2454 = vadd.f32 %v2425, %v2453
        %2455 = vmatmul.f32.gmra.mxu0 %v2366
        %v2456 = vpop.f32.mrf.mxu0
        %v2457 = vadd.f32 %v2428, %v2456
        %2458 = vdwg.mxu0
        %2459 = vmatpush.xpose.msra.mxu0 0.0
        %2460 = vmatpush.xpose.msra.mxu0 0.0
        %2461 = vmatpush.xpose.msra.mxu0 0.0
        %2462 = vmatpush.xpose.msra.mxu0 0.0
        %2463 = vmatpush.xpose.msra.mxu0 0.0
        %2464 = vmatpush.xpose.msra.mxu0 0.0
        %2465 = vmatpush.xpose.msra.mxu0 0.0
        %2466 = vmatpush.xpose.msra.mxu0 0.0
        %2467 = vmatpush.xpose.msra.mxu0 0.0
        %2468 = vmatpush.xpose.msra.mxu0 0.0
        %2469 = vmatpush.xpose.msra.mxu0 0.0
        %2470 = vmatpush.xpose.msra.mxu0 0.0
        %2471 = vmatpush.xpose.msra.mxu0 %v1031
        %2472 = vmatpush.xpose.msra.mxu0 %v1023
        %2473 = vmatpush.xpose.msra.mxu0 %v1015
        %2474 = vmatpush.xpose.msra.mxu0 %v1007
        %2475 = vmatmul.f32.gmra.mxu0 %v2343
        %v2476 = vpop.f32.mrf.mxu0
        %v2477 = vadd.f32 %v2448, %v2476
        %2478 = vmatmul.f32.gmra.mxu0 %v2351
        %v2479 = vpop.f32.mrf.mxu0
        %v2480 = vadd.f32 %v2451, %v2479
        %2481 = vmatmul.f32.gmra.mxu0 %v2359
        %v2482 = vpop.f32.mrf.mxu0
        %v2483 = vadd.f32 %v2454, %v2482
        %2484 = vmatmul.f32.gmra.mxu0 %v2367
        %v2485 = vpop.f32.mrf.mxu0
        %v2486 = vadd.f32 %v2457, %v2485
        %2487 = vdwg.mxu0
        %2488 = vmatpush.xpose.msra.mxu0 0.0
        %2489 = vmatpush.xpose.msra.mxu0 0.0
        %2490 = vmatpush.xpose.msra.mxu0 0.0
        %2491 = vmatpush.xpose.msra.mxu0 0.0
        %2492 = vmatpush.xpose.msra.mxu0 0.0
        %2493 = vmatpush.xpose.msra.mxu0 0.0
        %2494 = vmatpush.xpose.msra.mxu0 0.0
        %2495 = vmatpush.xpose.msra.mxu0 0.0
        %2496 = vmatpush.xpose.msra.mxu0 0.0
        %2497 = vmatpush.xpose.msra.mxu0 0.0
        %2498 = vmatpush.xpose.msra.mxu0 0.0
        %2499 = vmatpush.xpose.msra.mxu0 0.0
        %2500 = vmatpush.xpose.msra.mxu0 %v1032
        %2501 = vmatpush.xpose.msra.mxu0 %v1024
        %2502 = vmatpush.xpose.msra.mxu0 %v1016
        %2503 = vmatpush.xpose.msra.mxu0 %v1008
        %2504 = vmatmul.f32.gmra.mxu0 %v2344
        %v2505 = vpop.f32.mrf.mxu0
        %v2506 = vadd.f32 %v2477, %v2505
        %2507 = vmatmul.f32.gmra.mxu0 %v2352
        %v2508 = vpop.f32.mrf.mxu0
        %v2509 = vadd.f32 %v2480, %v2508
        %2510 = vmatmul.f32.gmra.mxu0 %v2360
        %v2511 = vpop.f32.mrf.mxu0
        %v2512 = vadd.f32 %v2483, %v2511
        %2513 = vmatmul.f32.gmra.mxu0 %v2368
        %v2514 = vpop.f32.mrf.mxu0
        %v2515 = vadd.f32 %v2486, %v2514
        %2516 = vdwg.mxu0
        %2517 = vmatpush.xpose.msra.mxu0 0.0
        %2518 = vmatpush.xpose.msra.mxu0 0.0
        %2519 = vmatpush.xpose.msra.mxu0 0.0
        %2520 = vmatpush.xpose.msra.mxu0 0.0
        %2521 = vmatpush.xpose.msra.mxu0 0.0
        %2522 = vmatpush.xpose.msra.mxu0 0.0
        %2523 = vmatpush.xpose.msra.mxu0 0.0
        %2524 = vmatpush.xpose.msra.mxu0 0.0
        %2525 = vmatpush.xpose.msra.mxu0 0.0
        %2526 = vmatpush.xpose.msra.mxu0 0.0
        %2527 = vmatpush.xpose.msra.mxu0 0.0
        %2528 = vmatpush.xpose.msra.mxu0 0.0
        %2529 = vmatpush.xpose.msra.mxu0 %v1033
        %2530 = vmatpush.xpose.msra.mxu0 %v1025
        %2531 = vmatpush.xpose.msra.mxu0 %v1017
        %2532 = vmatpush.xpose.msra.mxu0 %v1009
        %2533 = vmatmul.f32.gmra.mxu0 %v2345
        %v2534 = vpop.f32.mrf.mxu0
        %v2535 = vadd.f32 %v2506, %v2534
        %2536 = vmatmul.f32.gmra.mxu0 %v2353
        %v2537 = vpop.f32.mrf.mxu0
        %v2538 = vadd.f32 %v2509, %v2537
        %2539 = vmatmul.f32.gmra.mxu0 %v2361
        %v2540 = vpop.f32.mrf.mxu0
        %v2541 = vadd.f32 %v2512, %v2540
        %2542 = vmatmul.f32.gmra.mxu0 %v2369
        %v2543 = vpop.f32.mrf.mxu0
        %v2544 = vadd.f32 %v2515, %v2543
        %2545 = vdwg.mxu0
        %2546 = vmatpush.xpose.msra.mxu0 0.0
        %2547 = vmatpush.xpose.msra.mxu0 0.0
        %2548 = vmatpush.xpose.msra.mxu0 0.0
        %2549 = vmatpush.xpose.msra.mxu0 0.0
        %2550 = vmatpush.xpose.msra.mxu0 0.0
        %2551 = vmatpush.xpose.msra.mxu0 0.0
        %2552 = vmatpush.xpose.msra.mxu0 0.0
        %2553 = vmatpush.xpose.msra.mxu0 0.0
        %2554 = vmatpush.xpose.msra.mxu0 0.0
        %2555 = vmatpush.xpose.msra.mxu0 0.0
        %2556 = vmatpush.xpose.msra.mxu0 0.0
        %2557 = vmatpush.xpose.msra.mxu0 0.0
        %2558 = vmatpush.xpose.msra.mxu0 %v1034
        %2559 = vmatpush.xpose.msra.mxu0 %v1026
        %2560 = vmatpush.xpose.msra.mxu0 %v1018
        %2561 = vmatpush.xpose.msra.mxu0 %v1010
        %2562 = vmatmul.f32.gmra.mxu0 %v2346
        %v2563 = vpop.f32.mrf.mxu0
        %v2564 = vadd.f32 %v2535, %v2563
        %2565 = vmatmul.f32.gmra.mxu0 %v2354
        %v2566 = vpop.f32.mrf.mxu0
        %v2567 = vadd.f32 %v2538, %v2566
        %2568 = vmatmul.f32.gmra.mxu0 %v2362
        %v2569 = vpop.f32.mrf.mxu0
        %v2570 = vadd.f32 %v2541, %v2569
        %2571 = vmatmul.f32.gmra.mxu0 %v2370
        %v2572 = vpop.f32.mrf.mxu0
        %v2573 = vadd.f32 %v2544, %v2572
        %2574 = vdwg.mxu0
        %2575 = vmatpush.xpose.msra.mxu0 0.0
        %2576 = vmatpush.xpose.msra.mxu0 0.0
        %2577 = vmatpush.xpose.msra.mxu0 0.0
        %2578 = vmatpush.xpose.msra.mxu0 0.0
        %2579 = vmatpush.xpose.msra.mxu0 0.0
        %2580 = vmatpush.xpose.msra.mxu0 0.0
        %2581 = vmatpush.xpose.msra.mxu0 0.0
        %2582 = vmatpush.xpose.msra.mxu0 0.0
        %2583 = vmatpush.xpose.msra.mxu0 0.0
        %2584 = vmatpush.xpose.msra.mxu0 0.0
        %2585 = vmatpush.xpose.msra.mxu0 0.0
        %2586 = vmatpush.xpose.msra.mxu0 0.0
        %2587 = vmatpush.xpose.msra.mxu0 %v1035
        %2588 = vmatpush.xpose.msra.mxu0 %v1027
        %2589 = vmatpush.xpose.msra.mxu0 %v1019
        %2590 = vmatpush.xpose.msra.mxu0 %v1011
        %2591 = vmatmul.f32.gmra.mxu0 %v2347
        %v2592 = vpop.f32.mrf.mxu0
        %v2593 = vadd.f32 %v2564, %v2592
        %2594 = vmatmul.f32.gmra.mxu0 %v2355
        %v2595 = vpop.f32.mrf.mxu0
        %v2596 = vadd.f32 %v2567, %v2595
        %2597 = vmatmul.f32.gmra.mxu0 %v2363
        %v2598 = vpop.f32.mrf.mxu0
        %v2599 = vadd.f32 %v2570, %v2598
        %2600 = vmatmul.f32.gmra.mxu0 %v2371
        %v2601 = vpop.f32.mrf.mxu0
        %v2602 = vadd.f32 %v2573, %v2601
        %2603 = vdwg.mxu0
        %v2604 = vperm.slane %v2190, 0
        %v2605 = vperm.slane %v2210, 0
        %v2606 = vperm.slane %v2230, 0
        %v2607 = vperm.slane %v2250, 0
        %v2608 = vperm.slane %v2270, 0
        %v2609 = vperm.slane %v2290, 0
        %v2610 = vperm.slane %v2310, 0
        %v2611 = vperm.slane %v2330, 0
        %v2612 = vmul.f32 %v1036, %v2604
        %v2613 = vmul.f32 %v1037, %v2605
        %v2614 = vmul.f32 %v1038, %v2606
        %v2615 = vmul.f32 %v1039, %v2607
        %v2616 = vmul.f32 %v1040, %v2608
        %v2617 = vmul.f32 %v1041, %v2609
        %v2618 = vmul.f32 %v1042, %v2610
        %v2619 = vmul.f32 %v1043, %v2611
        %v2620 = vmul.f32 %v1044, %v2604
        %v2621 = vmul.f32 %v1045, %v2605
        %v2622 = vmul.f32 %v1046, %v2606
        %v2623 = vmul.f32 %v1047, %v2607
        %v2624 = vmul.f32 %v1048, %v2608
        %v2625 = vmul.f32 %v1049, %v2609
        %v2626 = vmul.f32 %v1050, %v2610
        %v2627 = vmul.f32 %v1051, %v2611
        %v2628 = vmul.f32 %v1052, %v2604
        %v2629 = vmul.f32 %v1053, %v2605
        %v2630 = vmul.f32 %v1054, %v2606
        %v2631 = vmul.f32 %v1055, %v2607
        %v2632 = vmul.f32 %v1056, %v2608
        %v2633 = vmul.f32 %v1057, %v2609
        %v2634 = vmul.f32 %v1058, %v2610
        %v2635 = vmul.f32 %v1059, %v2611
        %v2636 = vmul.f32 %v1060, %v2604
        %v2637 = vmul.f32 %v1061, %v2605
        %v2638 = vmul.f32 %v1062, %v2606
        %v2639 = vmul.f32 %v1063, %v2607
        %v2640 = vmul.f32 %v1064, %v2608
        %v2641 = vmul.f32 %v1065, %v2609
        %v2642 = vmul.f32 %v1066, %v2610
        %v2643 = vmul.f32 %v1067, %v2611
        %2644 = vmatpush.xpose.msra.mxu0 0.0
        %2645 = vmatpush.xpose.msra.mxu0 0.0
        %2646 = vmatpush.xpose.msra.mxu0 0.0
        %2647 = vmatpush.xpose.msra.mxu0 0.0
        %2648 = vmatpush.xpose.msra.mxu0 0.0
        %2649 = vmatpush.xpose.msra.mxu0 0.0
        %2650 = vmatpush.xpose.msra.mxu0 0.0
        %2651 = vmatpush.xpose.msra.mxu0 0.0
        %2652 = vmatpush.xpose.msra.mxu0 0.0
        %2653 = vmatpush.xpose.msra.mxu0 0.0
        %2654 = vmatpush.xpose.msra.mxu0 0.0
        %2655 = vmatpush.xpose.msra.mxu0 0.0
        %2656 = vmatpush.xpose.msra.mxu0 %v1028
        %2657 = vmatpush.xpose.msra.mxu0 %v1020
        %2658 = vmatpush.xpose.msra.mxu0 %v1012
        %2659 = vmatpush.xpose.msra.mxu0 %v1004
        %2660 = vmatmul.f32.gmra.mxu0 %v2612
        %v2661 = vpop.f32.mrf.mxu0
        %v2662 = vadd.f32 0.0, %v2661
        %2663 = vmatmul.f32.gmra.mxu0 %v2620
        %v2664 = vpop.f32.mrf.mxu0
        %v2665 = vadd.f32 0.0, %v2664
        %2666 = vmatmul.f32.gmra.mxu0 %v2628
        %v2667 = vpop.f32.mrf.mxu0
        %v2668 = vadd.f32 0.0, %v2667
        %2669 = vmatmul.f32.gmra.mxu0 %v2636
        %v2670 = vpop.f32.mrf.mxu0
        %v2671 = vadd.f32 0.0, %v2670
        %2672 = vdwg.mxu0
        %2673 = vmatpush.xpose.msra.mxu0 0.0
        %2674 = vmatpush.xpose.msra.mxu0 0.0
        %2675 = vmatpush.xpose.msra.mxu0 0.0
        %2676 = vmatpush.xpose.msra.mxu0 0.0
        %2677 = vmatpush.xpose.msra.mxu0 0.0
        %2678 = vmatpush.xpose.msra.mxu0 0.0
        %2679 = vmatpush.xpose.msra.mxu0 0.0
        %2680 = vmatpush.xpose.msra.mxu0 0.0
        %2681 = vmatpush.xpose.msra.mxu0 0.0
        %2682 = vmatpush.xpose.msra.mxu0 0.0
        %2683 = vmatpush.xpose.msra.mxu0 0.0
        %2684 = vmatpush.xpose.msra.mxu0 0.0
        %2685 = vmatpush.xpose.msra.mxu0 %v1029
        %2686 = vmatpush.xpose.msra.mxu0 %v1021
        %2687 = vmatpush.xpose.msra.mxu0 %v1013
        %2688 = vmatpush.xpose.msra.mxu0 %v1005
        %2689 = vmatmul.f32.gmra.mxu0 %v2613
        %v2690 = vpop.f32.mrf.mxu0
        %v2691 = vadd.f32 %v2662, %v2690
        %2692 = vmatmul.f32.gmra.mxu0 %v2621
        %v2693 = vpop.f32.mrf.mxu0
        %v2694 = vadd.f32 %v2665, %v2693
        %2695 = vmatmul.f32.gmra.mxu0 %v2629
        %v2696 = vpop.f32.mrf.mxu0
        %v2697 = vadd.f32 %v2668, %v2696
        %2698 = vmatmul.f32.gmra.mxu0 %v2637
        %v2699 = vpop.f32.mrf.mxu0
        %v2700 = vadd.f32 %v2671, %v2699
        %2701 = vdwg.mxu0
        %2702 = vmatpush.xpose.msra.mxu0 0.0
        %2703 = vmatpush.xpose.msra.mxu0 0.0
        %2704 = vmatpush.xpose.msra.mxu0 0.0
        %2705 = vmatpush.xpose.msra.mxu0 0.0
        %2706 = vmatpush.xpose.msra.mxu0 0.0
        %2707 = vmatpush.xpose.msra.mxu0 0.0
        %2708 = vmatpush.xpose.msra.mxu0 0.0
        %2709 = vmatpush.xpose.msra.mxu0 0.0
        %2710 = vmatpush.xpose.msra.mxu0 0.0
        %2711 = vmatpush.xpose.msra.mxu0 0.0
        %2712 = vmatpush.xpose.msra.mxu0 0.0
        %2713 = vmatpush.xpose.msra.mxu0 0.0
        %2714 = vmatpush.xpose.msra.mxu0 %v1030
        %2715 = vmatpush.xpose.msra.mxu0 %v1022
        %2716 = vmatpush.xpose.msra.mxu0 %v1014
        %2717 = vmatpush.xpose.msra.mxu0 %v1006
        %2718 = vmatmul.f32.gmra.mxu0 %v2614
        %v2719 = vpop.f32.mrf.mxu0
        %v2720 = vadd.f32 %v2691, %v2719
        %2721 = vmatmul.f32.gmra.mxu0 %v2622
        %v2722 = vpop.f32.mrf.mxu0
        %v2723 = vadd.f32 %v2694, %v2722
        %2724 = vmatmul.f32.gmra.mxu0 %v2630
        %v2725 = vpop.f32.mrf.mxu0
        %v2726 = vadd.f32 %v2697, %v2725
        %2727 = vmatmul.f32.gmra.mxu0 %v2638
        %v2728 = vpop.f32.mrf.mxu0
        %v2729 = vadd.f32 %v2700, %v2728
        %2730 = vdwg.mxu0
        %2731 = vmatpush.xpose.msra.mxu0 0.0
        %2732 = vmatpush.xpose.msra.mxu0 0.0
        %2733 = vmatpush.xpose.msra.mxu0 0.0
        %2734 = vmatpush.xpose.msra.mxu0 0.0
        %2735 = vmatpush.xpose.msra.mxu0 0.0
        %2736 = vmatpush.xpose.msra.mxu0 0.0
        %2737 = vmatpush.xpose.msra.mxu0 0.0
        %2738 = vmatpush.xpose.msra.mxu0 0.0
        %2739 = vmatpush.xpose.msra.mxu0 0.0
        %2740 = vmatpush.xpose.msra.mxu0 0.0
        %2741 = vmatpush.xpose.msra.mxu0 0.0
        %2742 = vmatpush.xpose.msra.mxu0 0.0
        %2743 = vmatpush.xpose.msra.mxu0 %v1031
        %2744 = vmatpush.xpose.msra.mxu0 %v1023
        %2745 = vmatpush.xpose.msra.mxu0 %v1015
        %2746 = vmatpush.xpose.msra.mxu0 %v1007
        %2747 = vmatmul.f32.gmra.mxu0 %v2615
        %v2748 = vpop.f32.mrf.mxu0
        %v2749 = vadd.f32 %v2720, %v2748
        %2750 = vmatmul.f32.gmra.mxu0 %v2623
        %v2751 = vpop.f32.mrf.mxu0
        %v2752 = vadd.f32 %v2723, %v2751
        %2753 = vmatmul.f32.gmra.mxu0 %v2631
        %v2754 = vpop.f32.mrf.mxu0
        %v2755 = vadd.f32 %v2726, %v2754
        %2756 = vmatmul.f32.gmra.mxu0 %v2639
        %v2757 = vpop.f32.mrf.mxu0
        %v2758 = vadd.f32 %v2729, %v2757
        %2759 = vdwg.mxu0
        %2760 = vmatpush.xpose.msra.mxu0 0.0
        %2761 = vmatpush.xpose.msra.mxu0 0.0
        %2762 = vmatpush.xpose.msra.mxu0 0.0
        %2763 = vmatpush.xpose.msra.mxu0 0.0
        %2764 = vmatpush.xpose.msra.mxu0 0.0
        %2765 = vmatpush.xpose.msra.mxu0 0.0
        %2766 = vmatpush.xpose.msra.mxu0 0.0
        %2767 = vmatpush.xpose.msra.mxu0 0.0
        %2768 = vmatpush.xpose.msra.mxu0 0.0
        %2769 = vmatpush.xpose.msra.mxu0 0.0
        %2770 = vmatpush.xpose.msra.mxu0 0.0
        %2771 = vmatpush.xpose.msra.mxu0 0.0
        %2772 = vmatpush.xpose.msra.mxu0 %v1032
        %2773 = vmatpush.xpose.msra.mxu0 %v1024
        %2774 = vmatpush.xpose.msra.mxu0 %v1016
        %2775 = vmatpush.xpose.msra.mxu0 %v1008
        %2776 = vmatmul.f32.gmra.mxu0 %v2616
        %v2777 = vpop.f32.mrf.mxu0
        %v2778 = vadd.f32 %v2749, %v2777
        %2779 = vmatmul.f32.gmra.mxu0 %v2624
        %v2780 = vpop.f32.mrf.mxu0
        %v2781 = vadd.f32 %v2752, %v2780
        %2782 = vmatmul.f32.gmra.mxu0 %v2632
        %v2783 = vpop.f32.mrf.mxu0
        %v2784 = vadd.f32 %v2755, %v2783
        %2785 = vmatmul.f32.gmra.mxu0 %v2640
        %v2786 = vpop.f32.mrf.mxu0
        %v2787 = vadd.f32 %v2758, %v2786
        %2788 = vdwg.mxu0
        %2789 = vmatpush.xpose.msra.mxu0 0.0
        %2790 = vmatpush.xpose.msra.mxu0 0.0
        %2791 = vmatpush.xpose.msra.mxu0 0.0
        %2792 = vmatpush.xpose.msra.mxu0 0.0
        %2793 = vmatpush.xpose.msra.mxu0 0.0
        %2794 = vmatpush.xpose.msra.mxu0 0.0
        %2795 = vmatpush.xpose.msra.mxu0 0.0
        %2796 = vmatpush.xpose.msra.mxu0 0.0
        %2797 = vmatpush.xpose.msra.mxu0 0.0
        %2798 = vmatpush.xpose.msra.mxu0 0.0
        %2799 = vmatpush.xpose.msra.mxu0 0.0
        %2800 = vmatpush.xpose.msra.mxu0 0.0
        %2801 = vmatpush.xpose.msra.mxu0 %v1033
        %2802 = vmatpush.xpose.msra.mxu0 %v1025
        %2803 = vmatpush.xpose.msra.mxu0 %v1017
        %2804 = vmatpush.xpose.msra.mxu0 %v1009
        %2805 = vmatmul.f32.gmra.mxu0 %v2617
        %v2806 = vpop.f32.mrf.mxu0
        %v2807 = vadd.f32 %v2778, %v2806
        %2808 = vmatmul.f32.gmra.mxu0 %v2625
        %v2809 = vpop.f32.mrf.mxu0
        %v2810 = vadd.f32 %v2781, %v2809
        %2811 = vmatmul.f32.gmra.mxu0 %v2633
        %v2812 = vpop.f32.mrf.mxu0
        %v2813 = vadd.f32 %v2784, %v2812
        %2814 = vmatmul.f32.gmra.mxu0 %v2641
        %v2815 = vpop.f32.mrf.mxu0
        %v2816 = vadd.f32 %v2787, %v2815
        %2817 = vdwg.mxu0
        %2818 = vmatpush.xpose.msra.mxu0 0.0
        %2819 = vmatpush.xpose.msra.mxu0 0.0
        %2820 = vmatpush.xpose.msra.mxu0 0.0
        %2821 = vmatpush.xpose.msra.mxu0 0.0
        %2822 = vmatpush.xpose.msra.mxu0 0.0
        %2823 = vmatpush.xpose.msra.mxu0 0.0
        %2824 = vmatpush.xpose.msra.mxu0 0.0
        %2825 = vmatpush.xpose.msra.mxu0 0.0
        %2826 = vmatpush.xpose.msra.mxu0 0.0
        %2827 = vmatpush.xpose.msra.mxu0 0.0
        %2828 = vmatpush.xpose.msra.mxu0 0.0
        %2829 = vmatpush.xpose.msra.mxu0 0.0
        %2830 = vmatpush.xpose.msra.mxu0 %v1034
        %2831 = vmatpush.xpose.msra.mxu0 %v1026
        %2832 = vmatpush.xpose.msra.mxu0 %v1018
        %2833 = vmatpush.xpose.msra.mxu0 %v1010
        %2834 = vmatmul.f32.gmra.mxu0 %v2618
        %v2835 = vpop.f32.mrf.mxu0
        %v2836 = vadd.f32 %v2807, %v2835
        %2837 = vmatmul.f32.gmra.mxu0 %v2626
        %v2838 = vpop.f32.mrf.mxu0
        %v2839 = vadd.f32 %v2810, %v2838
        %2840 = vmatmul.f32.gmra.mxu0 %v2634
        %v2841 = vpop.f32.mrf.mxu0
        %v2842 = vadd.f32 %v2813, %v2841
        %2843 = vmatmul.f32.gmra.mxu0 %v2642
        %v2844 = vpop.f32.mrf.mxu0
        %v2845 = vadd.f32 %v2816, %v2844
        %2846 = vdwg.mxu0
        %2847 = vmatpush.xpose.msra.mxu0 0.0
        %2848 = vmatpush.xpose.msra.mxu0 0.0
        %2849 = vmatpush.xpose.msra.mxu0 0.0
        %2850 = vmatpush.xpose.msra.mxu0 0.0
        %2851 = vmatpush.xpose.msra.mxu0 0.0
        %2852 = vmatpush.xpose.msra.mxu0 0.0
        %2853 = vmatpush.xpose.msra.mxu0 0.0
        %2854 = vmatpush.xpose.msra.mxu0 0.0
        %2855 = vmatpush.xpose.msra.mxu0 0.0
        %2856 = vmatpush.xpose.msra.mxu0 0.0
        %2857 = vmatpush.xpose.msra.mxu0 0.0
        %2858 = vmatpush.xpose.msra.mxu0 0.0
        %2859 = vmatpush.xpose.msra.mxu0 %v1035
        %2860 = vmatpush.xpose.msra.mxu0 %v1027
        %2861 = vmatpush.xpose.msra.mxu0 %v1019
        %2862 = vmatpush.xpose.msra.mxu0 %v1011
        %2863 = vmatmul.f32.gmra.mxu0 %v2619
        %v2864 = vpop.f32.mrf.mxu0
        %v2865 = vadd.f32 %v2836, %v2864
        %2866 = vmatmul.f32.gmra.mxu0 %v2627
        %v2867 = vpop.f32.mrf.mxu0
        %v2868 = vadd.f32 %v2839, %v2867
        %2869 = vmatmul.f32.gmra.mxu0 %v2635
        %v2870 = vpop.f32.mrf.mxu0
        %v2871 = vadd.f32 %v2842, %v2870
        %2872 = vmatmul.f32.gmra.mxu0 %v2643
        %v2873 = vpop.f32.mrf.mxu0
        %v2874 = vadd.f32 %v2845, %v2873
        %2875 = vdwg.mxu0
        %v2877 = vsel %vm1264, %v2865, 0
        %v2880 = vsel %vm1264, %v2868, 0
        %v2883 = vsel %vm1264, %v2871, 0
        %v2886 = vsel %vm1264, %v2874, 0
        %2888 = vmatpush.msra.mxu0 0.0
        %2889 = vmatpush.msra.mxu0 0.0
        %2890 = vmatpush.msra.mxu0 0.0
        %2891 = vmatpush.msra.mxu0 0.0
        %2892 = vmatpush.msra.mxu0 0.0
        %2893 = vmatpush.msra.mxu0 0.0
        %2894 = vmatpush.msra.mxu0 0.0
        %2895 = vmatpush.msra.mxu0 0.0
        %2896 = vmatpush.msra.mxu0 0.0
        %2897 = vmatpush.msra.mxu0 0.0
        %2898 = vmatpush.msra.mxu0 0.0
        %2899 = vmatpush.msra.mxu0 0.0
        %2900 = vmatpush.msra.mxu0 %v1146
        %2901 = vmatpush.msra.mxu0 %v1144
        %2902 = vmatpush.msra.mxu0 %v1142
        %2903 = vmatpush.msra.mxu0 %v1140
        %2904 = vmatmul.f32.gmra.mxu0 %v2877
        %v2905 = vpop.f32.mrf.mxu0
        %v2906 = vadd.f32 0.0, %v2905
        %2907 = vmatmul.f32.gmra.mxu0 %v2880
        %v2908 = vpop.f32.mrf.mxu0
        %v2909 = vadd.f32 0.0, %v2908
        %2910 = vmatmul.f32.gmra.mxu0 %v2883
        %v2911 = vpop.f32.mrf.mxu0
        %v2912 = vadd.f32 0.0, %v2911
        %2913 = vmatmul.f32.gmra.mxu0 %v2886
        %v2914 = vpop.f32.mrf.mxu0
        %v2915 = vadd.f32 0.0, %v2914
        %2916 = vdwg.mxu0
        %2917 = vmatpush.msra.mxu0 0.0
        %2918 = vmatpush.msra.mxu0 0.0
        %2919 = vmatpush.msra.mxu0 0.0
        %2920 = vmatpush.msra.mxu0 0.0
        %2921 = vmatpush.msra.mxu0 0.0
        %2922 = vmatpush.msra.mxu0 0.0
        %2923 = vmatpush.msra.mxu0 0.0
        %2924 = vmatpush.msra.mxu0 0.0
        %2925 = vmatpush.msra.mxu0 0.0
        %2926 = vmatpush.msra.mxu0 0.0
        %2927 = vmatpush.msra.mxu0 0.0
        %2928 = vmatpush.msra.mxu0 0.0
        %2929 = vmatpush.msra.mxu0 %v1147
        %2930 = vmatpush.msra.mxu0 %v1145
        %2931 = vmatpush.msra.mxu0 %v1143
        %2932 = vmatpush.msra.mxu0 %v1141
        %2933 = vmatmul.f32.gmra.mxu0 %v2877
        %v2934 = vpop.f32.mrf.mxu0
        %v2935 = vadd.f32 0.0, %v2934
        %2936 = vmatmul.f32.gmra.mxu0 %v2880
        %v2937 = vpop.f32.mrf.mxu0
        %v2938 = vadd.f32 0.0, %v2937
        %2939 = vmatmul.f32.gmra.mxu0 %v2883
        %v2940 = vpop.f32.mrf.mxu0
        %v2941 = vadd.f32 0.0, %v2940
        %2942 = vmatmul.f32.gmra.mxu0 %v2886
        %v2943 = vpop.f32.mrf.mxu0
        %v2944 = vadd.f32 0.0, %v2943
        %2945 = vdwg.mxu0
        %v2947 = vsel %vm1264, %v2593, 0
        %v2950 = vsel %vm1264, %v2596, 0
        %v2953 = vsel %vm1264, %v2599, 0
        %v2956 = vsel %vm1264, %v2602, 0
        %2958 = vmatpush.msra.mxu0 0.0
        %2959 = vmatpush.msra.mxu0 0.0
        %2960 = vmatpush.msra.mxu0 0.0
        %2961 = vmatpush.msra.mxu0 0.0
        %2962 = vmatpush.msra.mxu0 0.0
        %2963 = vmatpush.msra.mxu0 0.0
        %2964 = vmatpush.msra.mxu0 0.0
        %2965 = vmatpush.msra.mxu0 0.0
        %2966 = vmatpush.msra.mxu0 0.0
        %2967 = vmatpush.msra.mxu0 0.0
        %2968 = vmatpush.msra.mxu0 0.0
        %2969 = vmatpush.msra.mxu0 0.0
        %2970 = vmatpush.msra.mxu0 %v1138
        %2971 = vmatpush.msra.mxu0 %v1136
        %2972 = vmatpush.msra.mxu0 %v1134
        %2973 = vmatpush.msra.mxu0 %v1132
        %2974 = vmatmul.f32.gmra.mxu0 %v2947
        %v2975 = vpop.f32.mrf.mxu0
        %v2976 = vadd.f32 %v2906, %v2975
        %2977 = vmatmul.f32.gmra.mxu0 %v2950
        %v2978 = vpop.f32.mrf.mxu0
        %v2979 = vadd.f32 %v2909, %v2978
        %2980 = vmatmul.f32.gmra.mxu0 %v2953
        %v2981 = vpop.f32.mrf.mxu0
        %v2982 = vadd.f32 %v2912, %v2981
        %2983 = vmatmul.f32.gmra.mxu0 %v2956
        %v2984 = vpop.f32.mrf.mxu0
        %v2985 = vadd.f32 %v2915, %v2984
        %2986 = vdwg.mxu0
        %2987 = vmatpush.msra.mxu0 0.0
        %2988 = vmatpush.msra.mxu0 0.0
        %2989 = vmatpush.msra.mxu0 0.0
        %2990 = vmatpush.msra.mxu0 0.0
        %2991 = vmatpush.msra.mxu0 0.0
        %2992 = vmatpush.msra.mxu0 0.0
        %2993 = vmatpush.msra.mxu0 0.0
        %2994 = vmatpush.msra.mxu0 0.0
        %2995 = vmatpush.msra.mxu0 0.0
        %2996 = vmatpush.msra.mxu0 0.0
        %2997 = vmatpush.msra.mxu0 0.0
        %2998 = vmatpush.msra.mxu0 0.0
        %2999 = vmatpush.msra.mxu0 %v1139
        %3000 = vmatpush.msra.mxu0 %v1137
        %3001 = vmatpush.msra.mxu0 %v1135
        %3002 = vmatpush.msra.mxu0 %v1133
        %3003 = vmatmul.f32.gmra.mxu0 %v2947
        %v3004 = vpop.f32.mrf.mxu0
        %v3005 = vadd.f32 %v2935, %v3004
        %3006 = vmatmul.f32.gmra.mxu0 %v2950
        %v3007 = vpop.f32.mrf.mxu0
        %v3008 = vadd.f32 %v2938, %v3007
        %3009 = vmatmul.f32.gmra.mxu0 %v2953
        %v3010 = vpop.f32.mrf.mxu0
        %v3011 = vadd.f32 %v2941, %v3010
        %3012 = vmatmul.f32.gmra.mxu0 %v2956
        %v3013 = vpop.f32.mrf.mxu0
        %v3014 = vadd.f32 %v2944, %v3013
        %3015 = vdwg.mxu0
        %v3016 = vmax.f32 %v2976, 0.0
        %v3017 = vmax.f32 %v3005, 0.0
        %v3018 = vmax.f32 %v2979, 0.0
        %v3019 = vmax.f32 %v3008, 0.0
        %v3020 = vmax.f32 %v2982, 0.0
        %v3021 = vmax.f32 %v3011, 0.0
        %v3022 = vmax.f32 %v2985, 0.0
        %v3023 = vmax.f32 %v3014, 0.0
        %v3024 = vadd.f32 %v935, %v3016
        %v3025 = vadd.f32 %v993, %v3017
        %v3026 = vadd.f32 %v938, %v3018
        %v3027 = vadd.f32 %v996, %v3019
        %v3028 = vadd.f32 %v941, %v3020
        %v3029 = vadd.f32 %v999, %v3021
        %v3030 = vadd.f32 %v944, %v3022
        %v3031 = vadd.f32 %v1002, %v3023
        %3032 = vmatpush.msra.mxu0 %v1083
        %3033 = vmatpush.msra.mxu0 %v1082
        %3034 = vmatpush.msra.mxu0 %v1081
        %3035 = vmatpush.msra.mxu0 %v1080
        %3036 = vmatpush.msra.mxu0 %v1079
        %3037 = vmatpush.msra.mxu0 %v1078
        %3038 = vmatpush.msra.mxu0 %v1077
        %3039 = vmatpush.msra.mxu0 %v1076
        %3040 = vmatpush.msra.mxu0 %v1075
        %3041 = vmatpush.msra.mxu0 %v1074
        %3042 = vmatpush.msra.mxu0 %v1073
        %3043 = vmatpush.msra.mxu0 %v1072
        %3044 = vmatpush.msra.mxu0 %v1071
        %3045 = vmatpush.msra.mxu0 %v1070
        %3046 = vmatpush.msra.mxu0 %v1069
        %3047 = vmatpush.msra.mxu0 %v1068
        %3048 = vmatmul.f32.gmra.mxu0 %v3024
        %v3049 = vpop.f32.mrf.mxu0
        %v3050 = vadd.f32 0.0, %v3049
        %3051 = vmatmul.f32.gmra.mxu0 %v3026
        %v3052 = vpop.f32.mrf.mxu0
        %v3053 = vadd.f32 0.0, %v3052
        %3054 = vmatmul.f32.gmra.mxu0 %v3028
        %v3055 = vpop.f32.mrf.mxu0
        %v3056 = vadd.f32 0.0, %v3055
        %3057 = vmatmul.f32.gmra.mxu0 %v3030
        %v3058 = vpop.f32.mrf.mxu0
        %v3059 = vadd.f32 0.0, %v3058
        %3060 = vdwg.mxu0
        %3061 = vmatpush.msra.mxu0 %v1099
        %3062 = vmatpush.msra.mxu0 %v1098
        %3063 = vmatpush.msra.mxu0 %v1097
        %3064 = vmatpush.msra.mxu0 %v1096
        %3065 = vmatpush.msra.mxu0 %v1095
        %3066 = vmatpush.msra.mxu0 %v1094
        %3067 = vmatpush.msra.mxu0 %v1093
        %3068 = vmatpush.msra.mxu0 %v1092
        %3069 = vmatpush.msra.mxu0 %v1091
        %3070 = vmatpush.msra.mxu0 %v1090
        %3071 = vmatpush.msra.mxu0 %v1089
        %3072 = vmatpush.msra.mxu0 %v1088
        %3073 = vmatpush.msra.mxu0 %v1087
        %3074 = vmatpush.msra.mxu0 %v1086
        %3075 = vmatpush.msra.mxu0 %v1085
        %3076 = vmatpush.msra.mxu0 %v1084
        %3077 = vmatmul.f32.gmra.mxu0 %v3025
        %v3078 = vpop.f32.mrf.mxu0
        %v3079 = vadd.f32 %v3050, %v3078
        %3080 = vmatmul.f32.gmra.mxu0 %v3027
        %v3081 = vpop.f32.mrf.mxu0
        %v3082 = vadd.f32 %v3053, %v3081
        %3083 = vmatmul.f32.gmra.mxu0 %v3029
        %v3084 = vpop.f32.mrf.mxu0
        %v3085 = vadd.f32 %v3056, %v3084
        %3086 = vmatmul.f32.gmra.mxu0 %v3031
        %v3087 = vpop.f32.mrf.mxu0
        %v3088 = vadd.f32 %v3059, %v3087
        %3089 = vdwg.mxu0
        %3090 = vmatpush.msra.mxu0 %v1115
        %3091 = vmatpush.msra.mxu0 %v1114
        %3092 = vmatpush.msra.mxu0 %v1113
        %3093 = vmatpush.msra.mxu0 %v1112
        %3094 = vmatpush.msra.mxu0 %v1111
        %3095 = vmatpush.msra.mxu0 %v1110
        %3096 = vmatpush.msra.mxu0 %v1109
        %3097 = vmatpush.msra.mxu0 %v1108
        %3098 = vmatpush.msra.mxu0 %v1107
        %3099 = vmatpush.msra.mxu0 %v1106
        %3100 = vmatpush.msra.mxu0 %v1105
        %3101 = vmatpush.msra.mxu0 %v1104
        %3102 = vmatpush.msra.mxu0 %v1103
        %3103 = vmatpush.msra.mxu0 %v1102
        %3104 = vmatpush.msra.mxu0 %v1101
        %3105 = vmatpush.msra.mxu0 %v1100
        %3106 = vmatmul.f32.gmra.mxu0 %v3024
        %v3107 = vpop.f32.mrf.mxu0
        %v3108 = vadd.f32 0.0, %v3107
        %3109 = vmatmul.f32.gmra.mxu0 %v3026
        %v3110 = vpop.f32.mrf.mxu0
        %v3111 = vadd.f32 0.0, %v3110
        %3112 = vmatmul.f32.gmra.mxu0 %v3028
        %v3113 = vpop.f32.mrf.mxu0
        %v3114 = vadd.f32 0.0, %v3113
        %3115 = vmatmul.f32.gmra.mxu0 %v3030
        %v3116 = vpop.f32.mrf.mxu0
        %v3117 = vadd.f32 0.0, %v3116
        %3118 = vdwg.mxu0
        %3119 = vmatpush.msra.mxu0 %v1131
        %3120 = vmatpush.msra.mxu0 %v1130
        %3121 = vmatpush.msra.mxu0 %v1129
        %3122 = vmatpush.msra.mxu0 %v1128
        %3123 = vmatpush.msra.mxu0 %v1127
        %3124 = vmatpush.msra.mxu0 %v1126
        %3125 = vmatpush.msra.mxu0 %v1125
        %3126 = vmatpush.msra.mxu0 %v1124
        %3127 = vmatpush.msra.mxu0 %v1123
        %3128 = vmatpush.msra.mxu0 %v1122
        %3129 = vmatpush.msra.mxu0 %v1121
        %3130 = vmatpush.msra.mxu0 %v1120
        %3131 = vmatpush.msra.mxu0 %v1119
        %3132 = vmatpush.msra.mxu0 %v1118
        %3133 = vmatpush.msra.mxu0 %v1117
        %3134 = vmatpush.msra.mxu0 %v1116
        %3135 = vmatmul.f32.gmra.mxu0 %v3025
        %v3136 = vpop.f32.mrf.mxu0
        %v3137 = vadd.f32 %v3108, %v3136
        %3138 = vmatmul.f32.gmra.mxu0 %v3027
        %v3139 = vpop.f32.mrf.mxu0
        %v3140 = vadd.f32 %v3111, %v3139
        %3141 = vmatmul.f32.gmra.mxu0 %v3029
        %v3142 = vpop.f32.mrf.mxu0
        %v3143 = vadd.f32 %v3114, %v3142
        %3144 = vmatmul.f32.gmra.mxu0 %v3031
        %v3145 = vpop.f32.mrf.mxu0
        %v3146 = vadd.f32 %v3117, %v3145
        %3147 = vdwg.mxu0
        %v3149 = vsel %vm1264, %v3079, 0
        %v3152 = vsel %vm1264, %v3082, 0
        %v3155 = vsel %vm1264, %v3085, 0
        %v3158 = vsel %vm1264, %v3088, 0
        %3160 = vmatpush.msra.mxu0 0.0
        %3161 = vmatpush.msra.mxu0 0.0
        %3162 = vmatpush.msra.mxu0 0.0
        %3163 = vmatpush.msra.mxu0 0.0
        %3164 = vmatpush.msra.mxu0 0.0
        %3165 = vmatpush.msra.mxu0 0.0
        %3166 = vmatpush.msra.mxu0 0.0
        %3167 = vmatpush.msra.mxu0 0.0
        %3168 = vmatpush.msra.mxu0 0.0
        %3169 = vmatpush.msra.mxu0 0.0
        %3170 = vmatpush.msra.mxu0 0.0
        %3171 = vmatpush.msra.mxu0 0.0
        %3172 = vmatpush.msra.mxu0 %v1028
        %3173 = vmatpush.msra.mxu0 %v1020
        %3174 = vmatpush.msra.mxu0 %v1012
        %3175 = vmatpush.msra.mxu0 %v1004
        %3176 = vmatmul.f32.gmra.mxu0 %v3149
        %v3177 = vpop.f32.mrf.mxu0
        %v3178 = vadd.f32 0.0, %v3177
        %3179 = vmatmul.f32.gmra.mxu0 %v3152
        %v3180 = vpop.f32.mrf.mxu0
        %v3181 = vadd.f32 0.0, %v3180
        %3182 = vmatmul.f32.gmra.mxu0 %v3155
        %v3183 = vpop.f32.mrf.mxu0
        %v3184 = vadd.f32 0.0, %v3183
        %3185 = vmatmul.f32.gmra.mxu0 %v3158
        %v3186 = vpop.f32.mrf.mxu0
        %v3187 = vadd.f32 0.0, %v3186
        %3188 = vdwg.mxu0
        %3189 = vmatpush.msra.mxu0 0.0
        %3190 = vmatpush.msra.mxu0 0.0
        %3191 = vmatpush.msra.mxu0 0.0
        %3192 = vmatpush.msra.mxu0 0.0
        %3193 = vmatpush.msra.mxu0 0.0
        %3194 = vmatpush.msra.mxu0 0.0
        %3195 = vmatpush.msra.mxu0 0.0
        %3196 = vmatpush.msra.mxu0 0.0
        %3197 = vmatpush.msra.mxu0 0.0
        %3198 = vmatpush.msra.mxu0 0.0
        %3199 = vmatpush.msra.mxu0 0.0
        %3200 = vmatpush.msra.mxu0 0.0
        %3201 = vmatpush.msra.mxu0 %v1029
        %3202 = vmatpush.msra.mxu0 %v1021
        %3203 = vmatpush.msra.mxu0 %v1013
        %3204 = vmatpush.msra.mxu0 %v1005
        %3205 = vmatmul.f32.gmra.mxu0 %v3149
        %v3206 = vpop.f32.mrf.mxu0
        %v3207 = vadd.f32 0.0, %v3206
        %3208 = vmatmul.f32.gmra.mxu0 %v3152
        %v3209 = vpop.f32.mrf.mxu0
        %v3210 = vadd.f32 0.0, %v3209
        %3211 = vmatmul.f32.gmra.mxu0 %v3155
        %v3212 = vpop.f32.mrf.mxu0
        %v3213 = vadd.f32 0.0, %v3212
        %3214 = vmatmul.f32.gmra.mxu0 %v3158
        %v3215 = vpop.f32.mrf.mxu0
        %v3216 = vadd.f32 0.0, %v3215
        %3217 = vdwg.mxu0
        %3218 = vmatpush.msra.mxu0 0.0
        %3219 = vmatpush.msra.mxu0 0.0
        %3220 = vmatpush.msra.mxu0 0.0
        %3221 = vmatpush.msra.mxu0 0.0
        %3222 = vmatpush.msra.mxu0 0.0
        %3223 = vmatpush.msra.mxu0 0.0
        %3224 = vmatpush.msra.mxu0 0.0
        %3225 = vmatpush.msra.mxu0 0.0
        %3226 = vmatpush.msra.mxu0 0.0
        %3227 = vmatpush.msra.mxu0 0.0
        %3228 = vmatpush.msra.mxu0 0.0
        %3229 = vmatpush.msra.mxu0 0.0
        %3230 = vmatpush.msra.mxu0 %v1030
        %3231 = vmatpush.msra.mxu0 %v1022
        %3232 = vmatpush.msra.mxu0 %v1014
        %3233 = vmatpush.msra.mxu0 %v1006
        %3234 = vmatmul.f32.gmra.mxu0 %v3149
        %v3235 = vpop.f32.mrf.mxu0
        %v3236 = vadd.f32 0.0, %v3235
        %3237 = vmatmul.f32.gmra.mxu0 %v3152
        %v3238 = vpop.f32.mrf.mxu0
        %v3239 = vadd.f32 0.0, %v3238
        %3240 = vmatmul.f32.gmra.mxu0 %v3155
        %v3241 = vpop.f32.mrf.mxu0
        %v3242 = vadd.f32 0.0, %v3241
        %3243 = vmatmul.f32.gmra.mxu0 %v3158
        %v3244 = vpop.f32.mrf.mxu0
        %v3245 = vadd.f32 0.0, %v3244
        %3246 = vdwg.mxu0
        %3247 = vmatpush.msra.mxu0 0.0
        %3248 = vmatpush.msra.mxu0 0.0
        %3249 = vmatpush.msra.mxu0 0.0
        %3250 = vmatpush.msra.mxu0 0.0
        %3251 = vmatpush.msra.mxu0 0.0
        %3252 = vmatpush.msra.mxu0 0.0
        %3253 = vmatpush.msra.mxu0 0.0
        %3254 = vmatpush.msra.mxu0 0.0
        %3255 = vmatpush.msra.mxu0 0.0
        %3256 = vmatpush.msra.mxu0 0.0
        %3257 = vmatpush.msra.mxu0 0.0
        %3258 = vmatpush.msra.mxu0 0.0
        %3259 = vmatpush.msra.mxu0 %v1031
        %3260 = vmatpush.msra.mxu0 %v1023
        %3261 = vmatpush.msra.mxu0 %v1015
        %3262 = vmatpush.msra.mxu0 %v1007
        %3263 = vmatmul.f32.gmra.mxu0 %v3149
        %v3264 = vpop.f32.mrf.mxu0
        %v3265 = vadd.f32 0.0, %v3264
        %3266 = vmatmul.f32.gmra.mxu0 %v3152
        %v3267 = vpop.f32.mrf.mxu0
        %v3268 = vadd.f32 0.0, %v3267
        %3269 = vmatmul.f32.gmra.mxu0 %v3155
        %v3270 = vpop.f32.mrf.mxu0
        %v3271 = vadd.f32 0.0, %v3270
        %3272 = vmatmul.f32.gmra.mxu0 %v3158
        %v3273 = vpop.f32.mrf.mxu0
        %v3274 = vadd.f32 0.0, %v3273
        %3275 = vdwg.mxu0
        %3276 = vmatpush.msra.mxu0 0.0
        %3277 = vmatpush.msra.mxu0 0.0
        %3278 = vmatpush.msra.mxu0 0.0
        %3279 = vmatpush.msra.mxu0 0.0
        %3280 = vmatpush.msra.mxu0 0.0
        %3281 = vmatpush.msra.mxu0 0.0
        %3282 = vmatpush.msra.mxu0 0.0
        %3283 = vmatpush.msra.mxu0 0.0
        %3284 = vmatpush.msra.mxu0 0.0
        %3285 = vmatpush.msra.mxu0 0.0
        %3286 = vmatpush.msra.mxu0 0.0
        %3287 = vmatpush.msra.mxu0 0.0
        %3288 = vmatpush.msra.mxu0 %v1032
        %3289 = vmatpush.msra.mxu0 %v1024
        %3290 = vmatpush.msra.mxu0 %v1016
        %3291 = vmatpush.msra.mxu0 %v1008
        %3292 = vmatmul.f32.gmra.mxu0 %v3149
        %v3293 = vpop.f32.mrf.mxu0
        %v3294 = vadd.f32 0.0, %v3293
        %3295 = vmatmul.f32.gmra.mxu0 %v3152
        %v3296 = vpop.f32.mrf.mxu0
        %v3297 = vadd.f32 0.0, %v3296
        %3298 = vmatmul.f32.gmra.mxu0 %v3155
        %v3299 = vpop.f32.mrf.mxu0
        %v3300 = vadd.f32 0.0, %v3299
        %3301 = vmatmul.f32.gmra.mxu0 %v3158
        %v3302 = vpop.f32.mrf.mxu0
        %v3303 = vadd.f32 0.0, %v3302
        %3304 = vdwg.mxu0
        %3305 = vmatpush.msra.mxu0 0.0
        %3306 = vmatpush.msra.mxu0 0.0
        %3307 = vmatpush.msra.mxu0 0.0
        %3308 = vmatpush.msra.mxu0 0.0
        %3309 = vmatpush.msra.mxu0 0.0
        %3310 = vmatpush.msra.mxu0 0.0
        %3311 = vmatpush.msra.mxu0 0.0
        %3312 = vmatpush.msra.mxu0 0.0
        %3313 = vmatpush.msra.mxu0 0.0
        %3314 = vmatpush.msra.mxu0 0.0
        %3315 = vmatpush.msra.mxu0 0.0
        %3316 = vmatpush.msra.mxu0 0.0
        %3317 = vmatpush.msra.mxu0 %v1033
        %3318 = vmatpush.msra.mxu0 %v1025
        %3319 = vmatpush.msra.mxu0 %v1017
        %3320 = vmatpush.msra.mxu0 %v1009
        %3321 = vmatmul.f32.gmra.mxu0 %v3149
        %v3322 = vpop.f32.mrf.mxu0
        %v3323 = vadd.f32 0.0, %v3322
        %3324 = vmatmul.f32.gmra.mxu0 %v3152
        %v3325 = vpop.f32.mrf.mxu0
        %v3326 = vadd.f32 0.0, %v3325
        %3327 = vmatmul.f32.gmra.mxu0 %v3155
        %v3328 = vpop.f32.mrf.mxu0
        %v3329 = vadd.f32 0.0, %v3328
        %3330 = vmatmul.f32.gmra.mxu0 %v3158
        %v3331 = vpop.f32.mrf.mxu0
        %v3332 = vadd.f32 0.0, %v3331
        %3333 = vdwg.mxu0
        %3334 = vmatpush.msra.mxu0 0.0
        %3335 = vmatpush.msra.mxu0 0.0
        %3336 = vmatpush.msra.mxu0 0.0
        %3337 = vmatpush.msra.mxu0 0.0
        %3338 = vmatpush.msra.mxu0 0.0
        %3339 = vmatpush.msra.mxu0 0.0
        %3340 = vmatpush.msra.mxu0 0.0
        %3341 = vmatpush.msra.mxu0 0.0
        %3342 = vmatpush.msra.mxu0 0.0
        %3343 = vmatpush.msra.mxu0 0.0
        %3344 = vmatpush.msra.mxu0 0.0
        %3345 = vmatpush.msra.mxu0 0.0
        %3346 = vmatpush.msra.mxu0 %v1034
        %3347 = vmatpush.msra.mxu0 %v1026
        %3348 = vmatpush.msra.mxu0 %v1018
        %3349 = vmatpush.msra.mxu0 %v1010
        %3350 = vmatmul.f32.gmra.mxu0 %v3149
        %v3351 = vpop.f32.mrf.mxu0
        %v3352 = vadd.f32 0.0, %v3351
        %3353 = vmatmul.f32.gmra.mxu0 %v3152
        %v3354 = vpop.f32.mrf.mxu0
        %v3355 = vadd.f32 0.0, %v3354
        %3356 = vmatmul.f32.gmra.mxu0 %v3155
        %v3357 = vpop.f32.mrf.mxu0
        %v3358 = vadd.f32 0.0, %v3357
        %3359 = vmatmul.f32.gmra.mxu0 %v3158
        %v3360 = vpop.f32.mrf.mxu0
        %v3361 = vadd.f32 0.0, %v3360
        %3362 = vdwg.mxu0
        %3363 = vmatpush.msra.mxu0 0.0
        %3364 = vmatpush.msra.mxu0 0.0
        %3365 = vmatpush.msra.mxu0 0.0
        %3366 = vmatpush.msra.mxu0 0.0
        %3367 = vmatpush.msra.mxu0 0.0
        %3368 = vmatpush.msra.mxu0 0.0
        %3369 = vmatpush.msra.mxu0 0.0
        %3370 = vmatpush.msra.mxu0 0.0
        %3371 = vmatpush.msra.mxu0 0.0
        %3372 = vmatpush.msra.mxu0 0.0
        %3373 = vmatpush.msra.mxu0 0.0
        %3374 = vmatpush.msra.mxu0 0.0
        %3375 = vmatpush.msra.mxu0 %v1035
        %3376 = vmatpush.msra.mxu0 %v1027
        %3377 = vmatpush.msra.mxu0 %v1019
        %3378 = vmatpush.msra.mxu0 %v1011
        %3379 = vmatmul.f32.gmra.mxu0 %v3149
        %v3380 = vpop.f32.mrf.mxu0
        %v3381 = vadd.f32 0.0, %v3380
        %3382 = vmatmul.f32.gmra.mxu0 %v3152
        %v3383 = vpop.f32.mrf.mxu0
        %v3384 = vadd.f32 0.0, %v3383
        %3385 = vmatmul.f32.gmra.mxu0 %v3155
        %v3386 = vpop.f32.mrf.mxu0
        %v3387 = vadd.f32 0.0, %v3386
        %3388 = vmatmul.f32.gmra.mxu0 %v3158
        %v3389 = vpop.f32.mrf.mxu0
        %v3390 = vadd.f32 0.0, %v3389
        %3391 = vdwg.mxu0
        %v3393 = vsel %vm1264, %v3137, 0
        %v3396 = vsel %vm1264, %v3140, 0
        %v3399 = vsel %vm1264, %v3143, 0
        %v3402 = vsel %vm1264, %v3146, 0
        %3404 = vmatpush.msra.mxu0 0.0
        %3405 = vmatpush.msra.mxu0 0.0
        %3406 = vmatpush.msra.mxu0 0.0
        %3407 = vmatpush.msra.mxu0 0.0
        %3408 = vmatpush.msra.mxu0 0.0
        %3409 = vmatpush.msra.mxu0 0.0
        %3410 = vmatpush.msra.mxu0 0.0
        %3411 = vmatpush.msra.mxu0 0.0
        %3412 = vmatpush.msra.mxu0 0.0
        %3413 = vmatpush.msra.mxu0 0.0
        %3414 = vmatpush.msra.mxu0 0.0
        %3415 = vmatpush.msra.mxu0 0.0
        %3416 = vmatpush.msra.mxu0 %v1028
        %3417 = vmatpush.msra.mxu0 %v1020
        %3418 = vmatpush.msra.mxu0 %v1012
        %3419 = vmatpush.msra.mxu0 %v1004
        %3420 = vmatmul.f32.gmra.mxu0 %v3393
        %v3421 = vpop.f32.mrf.mxu0
        %v3422 = vadd.f32 0.0, %v3421
        %3423 = vmatmul.f32.gmra.mxu0 %v3396
        %v3424 = vpop.f32.mrf.mxu0
        %v3425 = vadd.f32 0.0, %v3424
        %3426 = vmatmul.f32.gmra.mxu0 %v3399
        %v3427 = vpop.f32.mrf.mxu0
        %v3428 = vadd.f32 0.0, %v3427
        %3429 = vmatmul.f32.gmra.mxu0 %v3402
        %v3430 = vpop.f32.mrf.mxu0
        %v3431 = vadd.f32 0.0, %v3430
        %3432 = vdwg.mxu0
        %3433 = vmatpush.msra.mxu0 0.0
        %3434 = vmatpush.msra.mxu0 0.0
        %3435 = vmatpush.msra.mxu0 0.0
        %3436 = vmatpush.msra.mxu0 0.0
        %3437 = vmatpush.msra.mxu0 0.0
        %3438 = vmatpush.msra.mxu0 0.0
        %3439 = vmatpush.msra.mxu0 0.0
        %3440 = vmatpush.msra.mxu0 0.0
        %3441 = vmatpush.msra.mxu0 0.0
        %3442 = vmatpush.msra.mxu0 0.0
        %3443 = vmatpush.msra.mxu0 0.0
        %3444 = vmatpush.msra.mxu0 0.0
        %3445 = vmatpush.msra.mxu0 %v1029
        %3446 = vmatpush.msra.mxu0 %v1021
        %3447 = vmatpush.msra.mxu0 %v1013
        %3448 = vmatpush.msra.mxu0 %v1005
        %3449 = vmatmul.f32.gmra.mxu0 %v3393
        %v3450 = vpop.f32.mrf.mxu0
        %v3451 = vadd.f32 0.0, %v3450
        %3452 = vmatmul.f32.gmra.mxu0 %v3396
        %v3453 = vpop.f32.mrf.mxu0
        %v3454 = vadd.f32 0.0, %v3453
        %3455 = vmatmul.f32.gmra.mxu0 %v3399
        %v3456 = vpop.f32.mrf.mxu0
        %v3457 = vadd.f32 0.0, %v3456
        %3458 = vmatmul.f32.gmra.mxu0 %v3402
        %v3459 = vpop.f32.mrf.mxu0
        %v3460 = vadd.f32 0.0, %v3459
        %3461 = vdwg.mxu0
        %3462 = vmatpush.msra.mxu0 0.0
        %3463 = vmatpush.msra.mxu0 0.0
        %3464 = vmatpush.msra.mxu0 0.0
        %3465 = vmatpush.msra.mxu0 0.0
        %3466 = vmatpush.msra.mxu0 0.0
        %3467 = vmatpush.msra.mxu0 0.0
        %3468 = vmatpush.msra.mxu0 0.0
        %3469 = vmatpush.msra.mxu0 0.0
        %3470 = vmatpush.msra.mxu0 0.0
        %3471 = vmatpush.msra.mxu0 0.0
        %3472 = vmatpush.msra.mxu0 0.0
        %3473 = vmatpush.msra.mxu0 0.0
        %3474 = vmatpush.msra.mxu0 %v1030
        %3475 = vmatpush.msra.mxu0 %v1022
        %3476 = vmatpush.msra.mxu0 %v1014
        %3477 = vmatpush.msra.mxu0 %v1006
        %3478 = vmatmul.f32.gmra.mxu0 %v3393
        %v3479 = vpop.f32.mrf.mxu0
        %v3480 = vadd.f32 0.0, %v3479
        %3481 = vmatmul.f32.gmra.mxu0 %v3396
        %v3482 = vpop.f32.mrf.mxu0
        %v3483 = vadd.f32 0.0, %v3482
        %3484 = vmatmul.f32.gmra.mxu0 %v3399
        %v3485 = vpop.f32.mrf.mxu0
        %v3486 = vadd.f32 0.0, %v3485
        %3487 = vmatmul.f32.gmra.mxu0 %v3402
        %v3488 = vpop.f32.mrf.mxu0
        %v3489 = vadd.f32 0.0, %v3488
        %3490 = vdwg.mxu0
        %3491 = vmatpush.msra.mxu0 0.0
        %3492 = vmatpush.msra.mxu0 0.0
        %3493 = vmatpush.msra.mxu0 0.0
        %3494 = vmatpush.msra.mxu0 0.0
        %3495 = vmatpush.msra.mxu0 0.0
        %3496 = vmatpush.msra.mxu0 0.0
        %3497 = vmatpush.msra.mxu0 0.0
        %3498 = vmatpush.msra.mxu0 0.0
        %3499 = vmatpush.msra.mxu0 0.0
        %3500 = vmatpush.msra.mxu0 0.0
        %3501 = vmatpush.msra.mxu0 0.0
        %3502 = vmatpush.msra.mxu0 0.0
        %3503 = vmatpush.msra.mxu0 %v1031
        %3504 = vmatpush.msra.mxu0 %v1023
        %3505 = vmatpush.msra.mxu0 %v1015
        %3506 = vmatpush.msra.mxu0 %v1007
        %3507 = vmatmul.f32.gmra.mxu0 %v3393
        %v3508 = vpop.f32.mrf.mxu0
        %v3509 = vadd.f32 0.0, %v3508
        %3510 = vmatmul.f32.gmra.mxu0 %v3396
        %v3511 = vpop.f32.mrf.mxu0
        %v3512 = vadd.f32 0.0, %v3511
        %3513 = vmatmul.f32.gmra.mxu0 %v3399
        %v3514 = vpop.f32.mrf.mxu0
        %v3515 = vadd.f32 0.0, %v3514
        %3516 = vmatmul.f32.gmra.mxu0 %v3402
        %v3517 = vpop.f32.mrf.mxu0
        %v3518 = vadd.f32 0.0, %v3517
        %3519 = vdwg.mxu0
        %3520 = vmatpush.msra.mxu0 0.0
        %3521 = vmatpush.msra.mxu0 0.0
        %3522 = vmatpush.msra.mxu0 0.0
        %3523 = vmatpush.msra.mxu0 0.0
        %3524 = vmatpush.msra.mxu0 0.0
        %3525 = vmatpush.msra.mxu0 0.0
        %3526 = vmatpush.msra.mxu0 0.0
        %3527 = vmatpush.msra.mxu0 0.0
        %3528 = vmatpush.msra.mxu0 0.0
        %3529 = vmatpush.msra.mxu0 0.0
        %3530 = vmatpush.msra.mxu0 0.0
        %3531 = vmatpush.msra.mxu0 0.0
        %3532 = vmatpush.msra.mxu0 %v1032
        %3533 = vmatpush.msra.mxu0 %v1024
        %3534 = vmatpush.msra.mxu0 %v1016
        %3535 = vmatpush.msra.mxu0 %v1008
        %3536 = vmatmul.f32.gmra.mxu0 %v3393
        %v3537 = vpop.f32.mrf.mxu0
        %v3538 = vadd.f32 0.0, %v3537
        %3539 = vmatmul.f32.gmra.mxu0 %v3396
        %v3540 = vpop.f32.mrf.mxu0
        %v3541 = vadd.f32 0.0, %v3540
        %3542 = vmatmul.f32.gmra.mxu0 %v3399
        %v3543 = vpop.f32.mrf.mxu0
        %v3544 = vadd.f32 0.0, %v3543
        %3545 = vmatmul.f32.gmra.mxu0 %v3402
        %v3546 = vpop.f32.mrf.mxu0
        %v3547 = vadd.f32 0.0, %v3546
        %3548 = vdwg.mxu0
        %3549 = vmatpush.msra.mxu0 0.0
        %3550 = vmatpush.msra.mxu0 0.0
        %3551 = vmatpush.msra.mxu0 0.0
        %3552 = vmatpush.msra.mxu0 0.0
        %3553 = vmatpush.msra.mxu0 0.0
        %3554 = vmatpush.msra.mxu0 0.0
        %3555 = vmatpush.msra.mxu0 0.0
        %3556 = vmatpush.msra.mxu0 0.0
        %3557 = vmatpush.msra.mxu0 0.0
        %3558 = vmatpush.msra.mxu0 0.0
        %3559 = vmatpush.msra.mxu0 0.0
        %3560 = vmatpush.msra.mxu0 0.0
        %3561 = vmatpush.msra.mxu0 %v1033
        %3562 = vmatpush.msra.mxu0 %v1025
        %3563 = vmatpush.msra.mxu0 %v1017
        %3564 = vmatpush.msra.mxu0 %v1009
        %3565 = vmatmul.f32.gmra.mxu0 %v3393
        %v3566 = vpop.f32.mrf.mxu0
        %v3567 = vadd.f32 0.0, %v3566
        %3568 = vmatmul.f32.gmra.mxu0 %v3396
        %v3569 = vpop.f32.mrf.mxu0
        %v3570 = vadd.f32 0.0, %v3569
        %3571 = vmatmul.f32.gmra.mxu0 %v3399
        %v3572 = vpop.f32.mrf.mxu0
        %v3573 = vadd.f32 0.0, %v3572
        %3574 = vmatmul.f32.gmra.mxu0 %v3402
        %v3575 = vpop.f32.mrf.mxu0
        %v3576 = vadd.f32 0.0, %v3575
        %3577 = vdwg.mxu0
        %3578 = vmatpush.msra.mxu0 0.0
        %3579 = vmatpush.msra.mxu0 0.0
        %3580 = vmatpush.msra.mxu0 0.0
        %3581 = vmatpush.msra.mxu0 0.0
        %3582 = vmatpush.msra.mxu0 0.0
        %3583 = vmatpush.msra.mxu0 0.0
        %3584 = vmatpush.msra.mxu0 0.0
        %3585 = vmatpush.msra.mxu0 0.0
        %3586 = vmatpush.msra.mxu0 0.0
        %3587 = vmatpush.msra.mxu0 0.0
        %3588 = vmatpush.msra.mxu0 0.0
        %3589 = vmatpush.msra.mxu0 0.0
        %3590 = vmatpush.msra.mxu0 %v1034
        %3591 = vmatpush.msra.mxu0 %v1026
        %3592 = vmatpush.msra.mxu0 %v1018
        %3593 = vmatpush.msra.mxu0 %v1010
        %3594 = vmatmul.f32.gmra.mxu0 %v3393
        %v3595 = vpop.f32.mrf.mxu0
        %v3596 = vadd.f32 0.0, %v3595
        %3597 = vmatmul.f32.gmra.mxu0 %v3396
        %v3598 = vpop.f32.mrf.mxu0
        %v3599 = vadd.f32 0.0, %v3598
        %3600 = vmatmul.f32.gmra.mxu0 %v3399
        %v3601 = vpop.f32.mrf.mxu0
        %v3602 = vadd.f32 0.0, %v3601
        %3603 = vmatmul.f32.gmra.mxu0 %v3402
        %v3604 = vpop.f32.mrf.mxu0
        %v3605 = vadd.f32 0.0, %v3604
        %3606 = vdwg.mxu0
        %3607 = vmatpush.msra.mxu0 0.0
        %3608 = vmatpush.msra.mxu0 0.0
        %3609 = vmatpush.msra.mxu0 0.0
        %3610 = vmatpush.msra.mxu0 0.0
        %3611 = vmatpush.msra.mxu0 0.0
        %3612 = vmatpush.msra.mxu0 0.0
        %3613 = vmatpush.msra.mxu0 0.0
        %3614 = vmatpush.msra.mxu0 0.0
        %3615 = vmatpush.msra.mxu0 0.0
        %3616 = vmatpush.msra.mxu0 0.0
        %3617 = vmatpush.msra.mxu0 0.0
        %3618 = vmatpush.msra.mxu0 0.0
        %3619 = vmatpush.msra.mxu0 %v1035
        %3620 = vmatpush.msra.mxu0 %v1027
        %3621 = vmatpush.msra.mxu0 %v1019
        %3622 = vmatpush.msra.mxu0 %v1011
        %3623 = vmatmul.f32.gmra.mxu0 %v3393
        %v3624 = vpop.f32.mrf.mxu0
        %v3625 = vadd.f32 0.0, %v3624
        %3626 = vmatmul.f32.gmra.mxu0 %v3396
        %v3627 = vpop.f32.mrf.mxu0
        %v3628 = vadd.f32 0.0, %v3627
        %3629 = vmatmul.f32.gmra.mxu0 %v3399
        %v3630 = vpop.f32.mrf.mxu0
        %v3631 = vadd.f32 0.0, %v3630
        %3632 = vmatmul.f32.gmra.mxu0 %v3402
        %v3633 = vpop.f32.mrf.mxu0
        %v3634 = vadd.f32 0.0, %v3633
        %3635 = vdwg.mxu0
        %s3636 = scalar_lea.vmem %s10, 256
        %v3637 = vld [vmem:[%s3636] sm:$0xff]
        %v3638 = vld [vmem:[%s3636 + $0x8] sm:$0xff]
        %v3639 = vld [vmem:[%s3636 + $0x10] sm:$0xff]
        %v3640 = vld [vmem:[%s3636 + $0x18] sm:$0xff]
        %v3641 = vld [vmem:[%s3636 + $0x20] sm:$0xff]
        %v3642 = vld [vmem:[%s3636 + $0x28] sm:$0xff]
        %v3643 = vld [vmem:[%s3636 + $0x30] sm:$0xff]
        %v3644 = vld [vmem:[%s3636 + $0x38] sm:$0xff]
        %v3645 = vld [vmem:[%s3636 + $0x40] sm:$0xff]
        %v3646 = vld [vmem:[%s3636 + $0x48] sm:$0xff]
        %v3647 = vld [vmem:[%s3636 + $0x50] sm:$0xff]
        %v3648 = vld [vmem:[%s3636 + $0x58] sm:$0xff]
        %v3649 = vld [vmem:[%s3636 + $0x60] sm:$0xff]
        %v3650 = vld [vmem:[%s3636 + $0x68] sm:$0xff]
        %v3651 = vld [vmem:[%s3636 + $0x70] sm:$0xff]
        %v3652 = vld [vmem:[%s3636 + $0x78] sm:$0xff]
        %v3653 = vld [vmem:[%s3636 + $0x80] sm:$0xff]
        %v3654 = vld [vmem:[%s3636 + $0x88] sm:$0xff]
        %v3655 = vld [vmem:[%s3636 + $0x90] sm:$0xff]
        %v3656 = vld [vmem:[%s3636 + $0x98] sm:$0xff]
        %v3657 = vld [vmem:[%s3636 + $0xa0] sm:$0xff]
        %v3658 = vld [vmem:[%s3636 + $0xa8] sm:$0xff]
        %v3659 = vld [vmem:[%s3636 + $0xb0] sm:$0xff]
        %v3660 = vld [vmem:[%s3636 + $0xb8] sm:$0xff]
        %v3661 = vld [vmem:[%s3636 + $0xc0] sm:$0xff]
        %v3662 = vld [vmem:[%s3636 + $0xc8] sm:$0xff]
        %v3663 = vld [vmem:[%s3636 + $0xd0] sm:$0xff]
        %v3664 = vld [vmem:[%s3636 + $0xd8] sm:$0xff]
        %v3665 = vld [vmem:[%s3636 + $0xe0] sm:$0xff]
        %v3666 = vld [vmem:[%s3636 + $0xe8] sm:$0xff]
        %v3667 = vld [vmem:[%s3636 + $0xf0] sm:$0xff]
        %v3668 = vld [vmem:[%s3636 + $0xf8] sm:$0xff]
        %s3669 = scalar_lea.vmem [#allocation3], 256
        %v3670 = vld [vmem:[%s3669] sm:$0xff]
        %v3671 = vld [vmem:[%s3669 + $0x8] sm:$0xff]
        %v3672 = vld [vmem:[%s3669 + $0x10] sm:$0xff]
        %v3673 = vld [vmem:[%s3669 + $0x18] sm:$0xff]
        %v3674 = vld [vmem:[%s3669 + $0x20] sm:$0xff]
        %v3675 = vld [vmem:[%s3669 + $0x28] sm:$0xff]
        %v3676 = vld [vmem:[%s3669 + $0x30] sm:$0xff]
        %v3677 = vld [vmem:[%s3669 + $0x38] sm:$0xff]
        %v3678 = vld [vmem:[%s3669 + $0x40] sm:$0xff]
        %v3679 = vld [vmem:[%s3669 + $0x48] sm:$0xff]
        %v3680 = vld [vmem:[%s3669 + $0x50] sm:$0xff]
        %v3681 = vld [vmem:[%s3669 + $0x58] sm:$0xff]
        %v3682 = vld [vmem:[%s3669 + $0x60] sm:$0xff]
        %v3683 = vld [vmem:[%s3669 + $0x68] sm:$0xff]
        %v3684 = vld [vmem:[%s3669 + $0x70] sm:$0xff]
        %v3685 = vld [vmem:[%s3669 + $0x78] sm:$0xff]
        %v3686 = vld [vmem:[%s3669 + $0x80] sm:$0xff]
        %v3687 = vld [vmem:[%s3669 + $0x88] sm:$0xff]
        %v3688 = vld [vmem:[%s3669 + $0x90] sm:$0xff]
        %v3689 = vld [vmem:[%s3669 + $0x98] sm:$0xff]
        %v3690 = vld [vmem:[%s3669 + $0xa0] sm:$0xff]
        %v3691 = vld [vmem:[%s3669 + $0xa8] sm:$0xff]
        %v3692 = vld [vmem:[%s3669 + $0xb0] sm:$0xff]
        %v3693 = vld [vmem:[%s3669 + $0xb8] sm:$0xff]
        %v3694 = vld [vmem:[%s3669 + $0xc0] sm:$0xff]
        %v3695 = vld [vmem:[%s3669 + $0xc8] sm:$0xff]
        %v3696 = vld [vmem:[%s3669 + $0xd0] sm:$0xff]
        %v3697 = vld [vmem:[%s3669 + $0xd8] sm:$0xff]
        %v3698 = vld [vmem:[%s3669 + $0xe0] sm:$0xff]
        %v3699 = vld [vmem:[%s3669 + $0xe8] sm:$0xff]
        %v3700 = vld [vmem:[%s3669 + $0xf0] sm:$0xff]
        %v3701 = vld [vmem:[%s3669 + $0xf8] sm:$0xff]
        %v3702 = vmul.f32 %v3178, %v3637
        %v3703 = vmul.f32 %v3207, %v3638
        %v3704 = vmul.f32 %v3236, %v3639
        %v3705 = vmul.f32 %v3265, %v3640
        %v3706 = vmul.f32 %v3294, %v3641
        %v3707 = vmul.f32 %v3323, %v3642
        %v3708 = vmul.f32 %v3352, %v3643
        %v3709 = vmul.f32 %v3381, %v3644
        %v3710 = vmul.f32 %v3181, %v3645
        %v3711 = vmul.f32 %v3210, %v3646
        %v3712 = vmul.f32 %v3239, %v3647
        %v3713 = vmul.f32 %v3268, %v3648
        %v3714 = vmul.f32 %v3297, %v3649
        %v3715 = vmul.f32 %v3326, %v3650
        %v3716 = vmul.f32 %v3355, %v3651
        %v3717 = vmul.f32 %v3384, %v3652
        %v3718 = vmul.f32 %v3184, %v3653
        %v3719 = vmul.f32 %v3213, %v3654
        %v3720 = vmul.f32 %v3242, %v3655
        %v3721 = vmul.f32 %v3271, %v3656
        %v3722 = vmul.f32 %v3300, %v3657
        %v3723 = vmul.f32 %v3329, %v3658
        %v3724 = vmul.f32 %v3358, %v3659
        %v3725 = vmul.f32 %v3387, %v3660
        %v3726 = vmul.f32 %v3187, %v3661
        %v3727 = vmul.f32 %v3216, %v3662
        %v3728 = vmul.f32 %v3245, %v3663
        %v3729 = vmul.f32 %v3274, %v3664
        %v3730 = vmul.f32 %v3303, %v3665
        %v3731 = vmul.f32 %v3332, %v3666
        %v3732 = vmul.f32 %v3361, %v3667
        %v3733 = vmul.f32 %v3390, %v3668
        %v3734 = vmul.f32 %v3422, %v3670
        %v3735 = vmul.f32 %v3451, %v3671
        %v3736 = vmul.f32 %v3480, %v3672
        %v3737 = vmul.f32 %v3509, %v3673
        %v3738 = vmul.f32 %v3538, %v3674
        %v3739 = vmul.f32 %v3567, %v3675
        %v3740 = vmul.f32 %v3596, %v3676
        %v3741 = vmul.f32 %v3625, %v3677
        %v3742 = vmul.f32 %v3425, %v3678
        %v3743 = vmul.f32 %v3454, %v3679
        %v3744 = vmul.f32 %v3483, %v3680
        %v3745 = vmul.f32 %v3512, %v3681
        %v3746 = vmul.f32 %v3541, %v3682
        %v3747 = vmul.f32 %v3570, %v3683
        %v3748 = vmul.f32 %v3599, %v3684
        %v3749 = vmul.f32 %v3628, %v3685
        %v3750 = vmul.f32 %v3428, %v3686
        %v3751 = vmul.f32 %v3457, %v3687
        %v3752 = vmul.f32 %v3486, %v3688
        %v3753 = vmul.f32 %v3515, %v3689
        %v3754 = vmul.f32 %v3544, %v3690
        %v3755 = vmul.f32 %v3573, %v3691
        %v3756 = vmul.f32 %v3602, %v3692
        %v3757 = vmul.f32 %v3631, %v3693
        %v3758 = vmul.f32 %v3431, %v3694
        %v3759 = vmul.f32 %v3460, %v3695
        %v3760 = vmul.f32 %v3489, %v3696
        %v3761 = vmul.f32 %v3518, %v3697
        %v3762 = vmul.f32 %v3547, %v3698
        %v3763 = vmul.f32 %v3576, %v3699
        %v3764 = vmul.f32 %v3605, %v3700
        %v3765 = vmul.f32 %v3634, %v3701
        %v3766 = vsub.f32 %v3702, %v3734
        %v3767 = vsub.f32 %v3703, %v3735
        %v3768 = vsub.f32 %v3704, %v3736
        %v3769 = vsub.f32 %v3705, %v3737
        %v3770 = vsub.f32 %v3706, %v3738
        %v3771 = vsub.f32 %v3707, %v3739
        %v3772 = vsub.f32 %v3708, %v3740
        %v3773 = vsub.f32 %v3709, %v3741
        %v3774 = vsub.f32 %v3710, %v3742
        %v3775 = vsub.f32 %v3711, %v3743
        %v3776 = vsub.f32 %v3712, %v3744
        %v3777 = vsub.f32 %v3713, %v3745
        %v3778 = vsub.f32 %v3714, %v3746
        %v3779 = vsub.f32 %v3715, %v3747
        %v3780 = vsub.f32 %v3716, %v3748
        %v3781 = vsub.f32 %v3717, %v3749
        %v3782 = vsub.f32 %v3718, %v3750
        %v3783 = vsub.f32 %v3719, %v3751
        %v3784 = vsub.f32 %v3720, %v3752
        %v3785 = vsub.f32 %v3721, %v3753
        %v3786 = vsub.f32 %v3722, %v3754
        %v3787 = vsub.f32 %v3723, %v3755
        %v3788 = vsub.f32 %v3724, %v3756
        %v3789 = vsub.f32 %v3725, %v3757
        %v3790 = vsub.f32 %v3726, %v3758
        %v3791 = vsub.f32 %v3727, %v3759
        %v3792 = vsub.f32 %v3728, %v3760
        %v3793 = vsub.f32 %v3729, %v3761
        %v3794 = vsub.f32 %v3730, %v3762
        %v3795 = vsub.f32 %v3731, %v3763
        %v3796 = vsub.f32 %v3732, %v3764
        %v3797 = vsub.f32 %v3733, %v3765
        %v3798 = vmul.f32 %v3178, %v3670
        %v3799 = vmul.f32 %v3207, %v3671
        %v3800 = vmul.f32 %v3236, %v3672
        %v3801 = vmul.f32 %v3265, %v3673
        %v3802 = vmul.f32 %v3294, %v3674
        %v3803 = vmul.f32 %v3323, %v3675
        %v3804 = vmul.f32 %v3352, %v3676
        %v3805 = vmul.f32 %v3381, %v3677
        %v3806 = vmul.f32 %v3181, %v3678
        %v3807 = vmul.f32 %v3210, %v3679
        %v3808 = vmul.f32 %v3239, %v3680
        %v3809 = vmul.f32 %v3268, %v3681
        %v3810 = vmul.f32 %v3297, %v3682
        %v3811 = vmul.f32 %v3326, %v3683
        %v3812 = vmul.f32 %v3355, %v3684
        %v3813 = vmul.f32 %v3384, %v3685
        %v3814 = vmul.f32 %v3184, %v3686
        %v3815 = vmul.f32 %v3213, %v3687
        %v3816 = vmul.f32 %v3242, %v3688
        %v3817 = vmul.f32 %v3271, %v3689
        %v3818 = vmul.f32 %v3300, %v3690
        %v3819 = vmul.f32 %v3329, %v3691
        %v3820 = vmul.f32 %v3358, %v3692
        %v3821 = vmul.f32 %v3387, %v3693
        %v3822 = vmul.f32 %v3187, %v3694
        %v3823 = vmul.f32 %v3216, %v3695
        %v3824 = vmul.f32 %v3245, %v3696
        %v3825 = vmul.f32 %v3274, %v3697
        %v3826 = vmul.f32 %v3303, %v3698
        %v3827 = vmul.f32 %v3332, %v3699
        %v3828 = vmul.f32 %v3361, %v3700
        %v3829 = vmul.f32 %v3390, %v3701
        %v3830 = vmul.f32 %v3422, %v3637
        %v3831 = vmul.f32 %v3451, %v3638
        %v3832 = vmul.f32 %v3480, %v3639
        %v3833 = vmul.f32 %v3509, %v3640
        %v3834 = vmul.f32 %v3538, %v3641
        %v3835 = vmul.f32 %v3567, %v3642
        %v3836 = vmul.f32 %v3596, %v3643
        %v3837 = vmul.f32 %v3625, %v3644
        %v3838 = vmul.f32 %v3425, %v3645
        %v3839 = vmul.f32 %v3454, %v3646
        %v3840 = vmul.f32 %v3483, %v3647
        %v3841 = vmul.f32 %v3512, %v3648
        %v3842 = vmul.f32 %v3541, %v3649
        %v3843 = vmul.f32 %v3570, %v3650
        %v3844 = vmul.f32 %v3599, %v3651
        %v3845 = vmul.f32 %v3628, %v3652
        %v3846 = vmul.f32 %v3428, %v3653
        %v3847 = vmul.f32 %v3457, %v3654
        %v3848 = vmul.f32 %v3486, %v3655
        %v3849 = vmul.f32 %v3515, %v3656
        %v3850 = vmul.f32 %v3544, %v3657
        %v3851 = vmul.f32 %v3573, %v3658
        %v3852 = vmul.f32 %v3602, %v3659
        %v3853 = vmul.f32 %v3631, %v3660
        %v3854 = vmul.f32 %v3431, %v3661
        %v3855 = vmul.f32 %v3460, %v3662
        %v3856 = vmul.f32 %v3489, %v3663
        %v3857 = vmul.f32 %v3518, %v3664
        %v3858 = vmul.f32 %v3547, %v3665
        %v3859 = vmul.f32 %v3576, %v3666
        %v3860 = vmul.f32 %v3605, %v3667
        %v3861 = vmul.f32 %v3634, %v3668
        %v3862 = vadd.f32 %v3798, %v3830
        %v3863 = vadd.f32 %v3799, %v3831
        %v3864 = vadd.f32 %v3800, %v3832
        %v3865 = vadd.f32 %v3801, %v3833
        %v3866 = vadd.f32 %v3802, %v3834
        %v3867 = vadd.f32 %v3803, %v3835
        %v3868 = vadd.f32 %v3804, %v3836
        %v3869 = vadd.f32 %v3805, %v3837
        %v3870 = vadd.f32 %v3806, %v3838
        %v3871 = vadd.f32 %v3807, %v3839
        %v3872 = vadd.f32 %v3808, %v3840
        %v3873 = vadd.f32 %v3809, %v3841
        %v3874 = vadd.f32 %v3810, %v3842
        %v3875 = vadd.f32 %v3811, %v3843
        %v3876 = vadd.f32 %v3812, %v3844
        %v3877 = vadd.f32 %v3813, %v3845
        %v3878 = vadd.f32 %v3814, %v3846
        %v3879 = vadd.f32 %v3815, %v3847
        %v3880 = vadd.f32 %v3816, %v3848
        %v3881 = vadd.f32 %v3817, %v3849
        %v3882 = vadd.f32 %v3818, %v3850
        %v3883 = vadd.f32 %v3819, %v3851
        %v3884 = vadd.f32 %v3820, %v3852
        %v3885 = vadd.f32 %v3821, %v3853
        %v3886 = vadd.f32 %v3822, %v3854
        %v3887 = vadd.f32 %v3823, %v3855
        %v3888 = vadd.f32 %v3824, %v3856
        %v3889 = vadd.f32 %v3825, %v3857
        %v3890 = vadd.f32 %v3826, %v3858
        %v3891 = vadd.f32 %v3827, %v3859
        %v3892 = vadd.f32 %v3828, %v3860
        %v3893 = vadd.f32 %v3829, %v3861
        %3894 = vmatpush.msra.mxu0 0.0
        %3895 = vmatpush.msra.mxu0 0.0
        %3896 = vmatpush.msra.mxu0 0.0
        %3897 = vmatpush.msra.mxu0 0.0
        %3898 = vmatpush.msra.mxu0 0.0
        %3899 = vmatpush.msra.mxu0 0.0
        %3900 = vmatpush.msra.mxu0 0.0
        %3901 = vmatpush.msra.mxu0 0.0
        %3902 = vmatpush.msra.mxu0 0.0
        %3903 = vmatpush.msra.mxu0 0.0
        %3904 = vmatpush.msra.mxu0 0.0
        %3905 = vmatpush.msra.mxu0 0.0
        %3906 = vmatpush.msra.mxu0 %v3790
        %3907 = vmatpush.msra.mxu0 %v3782
        %3908 = vmatpush.msra.mxu0 %v3774
        %3909 = vmatpush.msra.mxu0 %v3766
        %3910 = vmatmul.f32.gmra.mxu0 %v2010
        %v3911 = vpop.f32.mrf.mxu0
        %v3912 = vadd.f32 0.0, %v3911
        %3913 = vdwg.mxu0
        %3914 = vmatpush.msra.mxu0 0.0
        %3915 = vmatpush.msra.mxu0 0.0
        %3916 = vmatpush.msra.mxu0 0.0
        %3917 = vmatpush.msra.mxu0 0.0
        %3918 = vmatpush.msra.mxu0 0.0
        %3919 = vmatpush.msra.mxu0 0.0
        %3920 = vmatpush.msra.mxu0 0.0
        %3921 = vmatpush.msra.mxu0 0.0
        %3922 = vmatpush.msra.mxu0 0.0
        %3923 = vmatpush.msra.mxu0 0.0
        %3924 = vmatpush.msra.mxu0 0.0
        %3925 = vmatpush.msra.mxu0 0.0
        %3926 = vmatpush.msra.mxu0 %v3791
        %3927 = vmatpush.msra.mxu0 %v3783
        %3928 = vmatpush.msra.mxu0 %v3775
        %3929 = vmatpush.msra.mxu0 %v3767
        %3930 = vmatmul.f32.gmra.mxu0 %v2010
        %v3931 = vpop.f32.mrf.mxu0
        %v3932 = vadd.f32 0.0, %v3931
        %3933 = vdwg.mxu0
        %3934 = vmatpush.msra.mxu0 0.0
        %3935 = vmatpush.msra.mxu0 0.0
        %3936 = vmatpush.msra.mxu0 0.0
        %3937 = vmatpush.msra.mxu0 0.0
        %3938 = vmatpush.msra.mxu0 0.0
        %3939 = vmatpush.msra.mxu0 0.0
        %3940 = vmatpush.msra.mxu0 0.0
        %3941 = vmatpush.msra.mxu0 0.0
        %3942 = vmatpush.msra.mxu0 0.0
        %3943 = vmatpush.msra.mxu0 0.0
        %3944 = vmatpush.msra.mxu0 0.0
        %3945 = vmatpush.msra.mxu0 0.0
        %3946 = vmatpush.msra.mxu0 %v3792
        %3947 = vmatpush.msra.mxu0 %v3784
        %3948 = vmatpush.msra.mxu0 %v3776
        %3949 = vmatpush.msra.mxu0 %v3768
        %3950 = vmatmul.f32.gmra.mxu0 %v2010
        %v3951 = vpop.f32.mrf.mxu0
        %v3952 = vadd.f32 0.0, %v3951
        %3953 = vdwg.mxu0
        %3954 = vmatpush.msra.mxu0 0.0
        %3955 = vmatpush.msra.mxu0 0.0
        %3956 = vmatpush.msra.mxu0 0.0
        %3957 = vmatpush.msra.mxu0 0.0
        %3958 = vmatpush.msra.mxu0 0.0
        %3959 = vmatpush.msra.mxu0 0.0
        %3960 = vmatpush.msra.mxu0 0.0
        %3961 = vmatpush.msra.mxu0 0.0
        %3962 = vmatpush.msra.mxu0 0.0
        %3963 = vmatpush.msra.mxu0 0.0
        %3964 = vmatpush.msra.mxu0 0.0
        %3965 = vmatpush.msra.mxu0 0.0
        %3966 = vmatpush.msra.mxu0 %v3793
        %3967 = vmatpush.msra.mxu0 %v3785
        %3968 = vmatpush.msra.mxu0 %v3777
        %3969 = vmatpush.msra.mxu0 %v3769
        %3970 = vmatmul.f32.gmra.mxu0 %v2010
        %v3971 = vpop.f32.mrf.mxu0
        %v3972 = vadd.f32 0.0, %v3971
        %3973 = vdwg.mxu0
        %3974 = vmatpush.msra.mxu0 0.0
        %3975 = vmatpush.msra.mxu0 0.0
        %3976 = vmatpush.msra.mxu0 0.0
        %3977 = vmatpush.msra.mxu0 0.0
        %3978 = vmatpush.msra.mxu0 0.0
        %3979 = vmatpush.msra.mxu0 0.0
        %3980 = vmatpush.msra.mxu0 0.0
        %3981 = vmatpush.msra.mxu0 0.0
        %3982 = vmatpush.msra.mxu0 0.0
        %3983 = vmatpush.msra.mxu0 0.0
        %3984 = vmatpush.msra.mxu0 0.0
        %3985 = vmatpush.msra.mxu0 0.0
        %3986 = vmatpush.msra.mxu0 %v3794
        %3987 = vmatpush.msra.mxu0 %v3786
        %3988 = vmatpush.msra.mxu0 %v3778
        %3989 = vmatpush.msra.mxu0 %v3770
        %3990 = vmatmul.f32.gmra.mxu0 %v2010
        %v3991 = vpop.f32.mrf.mxu0
        %v3992 = vadd.f32 0.0, %v3991
        %3993 = vdwg.mxu0
        %3994 = vmatpush.msra.mxu0 0.0
        %3995 = vmatpush.msra.mxu0 0.0
        %3996 = vmatpush.msra.mxu0 0.0
        %3997 = vmatpush.msra.mxu0 0.0
        %3998 = vmatpush.msra.mxu0 0.0
        %3999 = vmatpush.msra.mxu0 0.0
        %4000 = vmatpush.msra.mxu0 0.0
        %4001 = vmatpush.msra.mxu0 0.0
        %4002 = vmatpush.msra.mxu0 0.0
        %4003 = vmatpush.msra.mxu0 0.0
        %4004 = vmatpush.msra.mxu0 0.0
        %4005 = vmatpush.msra.mxu0 0.0
        %4006 = vmatpush.msra.mxu0 %v3795
        %4007 = vmatpush.msra.mxu0 %v3787
        %4008 = vmatpush.msra.mxu0 %v3779
        %4009 = vmatpush.msra.mxu0 %v3771
        %4010 = vmatmul.f32.gmra.mxu0 %v2010
        %v4011 = vpop.f32.mrf.mxu0
        %v4012 = vadd.f32 0.0, %v4011
        %4013 = vdwg.mxu0
        %4014 = vmatpush.msra.mxu0 0.0
        %4015 = vmatpush.msra.mxu0 0.0
        %4016 = vmatpush.msra.mxu0 0.0
        %4017 = vmatpush.msra.mxu0 0.0
        %4018 = vmatpush.msra.mxu0 0.0
        %4019 = vmatpush.msra.mxu0 0.0
        %4020 = vmatpush.msra.mxu0 0.0
        %4021 = vmatpush.msra.mxu0 0.0
        %4022 = vmatpush.msra.mxu0 0.0
        %4023 = vmatpush.msra.mxu0 0.0
        %4024 = vmatpush.msra.mxu0 0.0
        %4025 = vmatpush.msra.mxu0 0.0
        %4026 = vmatpush.msra.mxu0 %v3796
        %4027 = vmatpush.msra.mxu0 %v3788
        %4028 = vmatpush.msra.mxu0 %v3780
        %4029 = vmatpush.msra.mxu0 %v3772
        %4030 = vmatmul.f32.gmra.mxu0 %v2010
        %v4031 = vpop.f32.mrf.mxu0
        %v4032 = vadd.f32 0.0, %v4031
        %4033 = vdwg.mxu0
        %4034 = vmatpush.msra.mxu0 0.0
        %4035 = vmatpush.msra.mxu0 0.0
        %4036 = vmatpush.msra.mxu0 0.0
        %4037 = vmatpush.msra.mxu0 0.0
        %4038 = vmatpush.msra.mxu0 0.0
        %4039 = vmatpush.msra.mxu0 0.0
        %4040 = vmatpush.msra.mxu0 0.0
        %4041 = vmatpush.msra.mxu0 0.0
        %4042 = vmatpush.msra.mxu0 0.0
        %4043 = vmatpush.msra.mxu0 0.0
        %4044 = vmatpush.msra.mxu0 0.0
        %4045 = vmatpush.msra.mxu0 0.0
        %4046 = vmatpush.msra.mxu0 %v3797
        %4047 = vmatpush.msra.mxu0 %v3789
        %4048 = vmatpush.msra.mxu0 %v3781
        %4049 = vmatpush.msra.mxu0 %v3773
        %4050 = vmatmul.f32.gmra.mxu0 %v2010
        %v4051 = vpop.f32.mrf.mxu0
        %v4052 = vadd.f32 0.0, %v4051
        %4053 = vdwg.mxu0
        %4054 = vmatpush.msra.mxu0 0.0
        %4055 = vmatpush.msra.mxu0 0.0
        %4056 = vmatpush.msra.mxu0 0.0
        %4057 = vmatpush.msra.mxu0 0.0
        %4058 = vmatpush.msra.mxu0 0.0
        %4059 = vmatpush.msra.mxu0 0.0
        %4060 = vmatpush.msra.mxu0 0.0
        %4061 = vmatpush.msra.mxu0 0.0
        %4062 = vmatpush.msra.mxu0 0.0
        %4063 = vmatpush.msra.mxu0 0.0
        %4064 = vmatpush.msra.mxu0 0.0
        %4065 = vmatpush.msra.mxu0 0.0
        %4066 = vmatpush.msra.mxu0 %v3886
        %4067 = vmatpush.msra.mxu0 %v3878
        %4068 = vmatpush.msra.mxu0 %v3870
        %4069 = vmatpush.msra.mxu0 %v3862
        %4070 = vmatmul.f32.gmra.mxu0 %v2010
        %v4071 = vpop.f32.mrf.mxu0
        %v4072 = vadd.f32 0.0, %v4071
        %4073 = vdwg.mxu0
        %4074 = vmatpush.msra.mxu0 0.0
        %4075 = vmatpush.msra.mxu0 0.0
        %4076 = vmatpush.msra.mxu0 0.0
        %4077 = vmatpush.msra.mxu0 0.0
        %4078 = vmatpush.msra.mxu0 0.0
        %4079 = vmatpush.msra.mxu0 0.0
        %4080 = vmatpush.msra.mxu0 0.0
        %4081 = vmatpush.msra.mxu0 0.0
        %4082 = vmatpush.msra.mxu0 0.0
        %4083 = vmatpush.msra.mxu0 0.0
        %4084 = vmatpush.msra.mxu0 0.0
        %4085 = vmatpush.msra.mxu0 0.0
        %4086 = vmatpush.msra.mxu0 %v3887
        %4087 = vmatpush.msra.mxu0 %v3879
        %4088 = vmatpush.msra.mxu0 %v3871
        %4089 = vmatpush.msra.mxu0 %v3863
        %4090 = vmatmul.f32.gmra.mxu0 %v2010
        %v4091 = vpop.f32.mrf.mxu0
        %v4092 = vadd.f32 0.0, %v4091
        %4093 = vdwg.mxu0
        %4094 = vmatpush.msra.mxu0 0.0
        %4095 = vmatpush.msra.mxu0 0.0
        %4096 = vmatpush.msra.mxu0 0.0
        %4097 = vmatpush.msra.mxu0 0.0
        %4098 = vmatpush.msra.mxu0 0.0
        %4099 = vmatpush.msra.mxu0 0.0
        %4100 = vmatpush.msra.mxu0 0.0
        %4101 = vmatpush.msra.mxu0 0.0
        %4102 = vmatpush.msra.mxu0 0.0
        %4103 = vmatpush.msra.mxu0 0.0
        %4104 = vmatpush.msra.mxu0 0.0
        %4105 = vmatpush.msra.mxu0 0.0
        %4106 = vmatpush.msra.mxu0 %v3888
        %4107 = vmatpush.msra.mxu0 %v3880
        %4108 = vmatpush.msra.mxu0 %v3872
        %4109 = vmatpush.msra.mxu0 %v3864
        %4110 = vmatmul.f32.gmra.mxu0 %v2010
        %v4111 = vpop.f32.mrf.mxu0
        %v4112 = vadd.f32 0.0, %v4111
        %4113 = vdwg.mxu0
        %4114 = vmatpush.msra.mxu0 0.0
        %4115 = vmatpush.msra.mxu0 0.0
        %4116 = vmatpush.msra.mxu0 0.0
        %4117 = vmatpush.msra.mxu0 0.0
        %4118 = vmatpush.msra.mxu0 0.0
        %4119 = vmatpush.msra.mxu0 0.0
        %4120 = vmatpush.msra.mxu0 0.0
        %4121 = vmatpush.msra.mxu0 0.0
        %4122 = vmatpush.msra.mxu0 0.0
        %4123 = vmatpush.msra.mxu0 0.0
        %4124 = vmatpush.msra.mxu0 0.0
        %4125 = vmatpush.msra.mxu0 0.0
        %4126 = vmatpush.msra.mxu0 %v3889
        %4127 = vmatpush.msra.mxu0 %v3881
        %4128 = vmatpush.msra.mxu0 %v3873
        %4129 = vmatpush.msra.mxu0 %v3865
        %4130 = vmatmul.f32.gmra.mxu0 %v2010
        %v4131 = vpop.f32.mrf.mxu0
        %v4132 = vadd.f32 0.0, %v4131
        %4133 = vdwg.mxu0
        %4134 = vmatpush.msra.mxu0 0.0
        %4135 = vmatpush.msra.mxu0 0.0
        %4136 = vmatpush.msra.mxu0 0.0
        %4137 = vmatpush.msra.mxu0 0.0
        %4138 = vmatpush.msra.mxu0 0.0
        %4139 = vmatpush.msra.mxu0 0.0
        %4140 = vmatpush.msra.mxu0 0.0
        %4141 = vmatpush.msra.mxu0 0.0
        %4142 = vmatpush.msra.mxu0 0.0
        %4143 = vmatpush.msra.mxu0 0.0
        %4144 = vmatpush.msra.mxu0 0.0
        %4145 = vmatpush.msra.mxu0 0.0
        %4146 = vmatpush.msra.mxu0 %v3890
        %4147 = vmatpush.msra.mxu0 %v3882
        %4148 = vmatpush.msra.mxu0 %v3874
        %4149 = vmatpush.msra.mxu0 %v3866
        %4150 = vmatmul.f32.gmra.mxu0 %v2010
        %v4151 = vpop.f32.mrf.mxu0
        %v4152 = vadd.f32 0.0, %v4151
        %4153 = vdwg.mxu0
        %4154 = vmatpush.msra.mxu0 0.0
        %4155 = vmatpush.msra.mxu0 0.0
        %4156 = vmatpush.msra.mxu0 0.0
        %4157 = vmatpush.msra.mxu0 0.0
        %4158 = vmatpush.msra.mxu0 0.0
        %4159 = vmatpush.msra.mxu0 0.0
        %4160 = vmatpush.msra.mxu0 0.0
        %4161 = vmatpush.msra.mxu0 0.0
        %4162 = vmatpush.msra.mxu0 0.0
        %4163 = vmatpush.msra.mxu0 0.0
        %4164 = vmatpush.msra.mxu0 0.0
        %4165 = vmatpush.msra.mxu0 0.0
        %4166 = vmatpush.msra.mxu0 %v3891
        %4167 = vmatpush.msra.mxu0 %v3883
        %4168 = vmatpush.msra.mxu0 %v3875
        %4169 = vmatpush.msra.mxu0 %v3867
        %4170 = vmatmul.f32.gmra.mxu0 %v2010
        %v4171 = vpop.f32.mrf.mxu0
        %v4172 = vadd.f32 0.0, %v4171
        %4173 = vdwg.mxu0
        %4174 = vmatpush.msra.mxu0 0.0
        %4175 = vmatpush.msra.mxu0 0.0
        %4176 = vmatpush.msra.mxu0 0.0
        %4177 = vmatpush.msra.mxu0 0.0
        %4178 = vmatpush.msra.mxu0 0.0
        %4179 = vmatpush.msra.mxu0 0.0
        %4180 = vmatpush.msra.mxu0 0.0
        %4181 = vmatpush.msra.mxu0 0.0
        %4182 = vmatpush.msra.mxu0 0.0
        %4183 = vmatpush.msra.mxu0 0.0
        %4184 = vmatpush.msra.mxu0 0.0
        %4185 = vmatpush.msra.mxu0 0.0
        %4186 = vmatpush.msra.mxu0 %v3892
        %4187 = vmatpush.msra.mxu0 %v3884
        %4188 = vmatpush.msra.mxu0 %v3876
        %4189 = vmatpush.msra.mxu0 %v3868
        %4190 = vmatmul.f32.gmra.mxu0 %v2010
        %v4191 = vpop.f32.mrf.mxu0
        %v4192 = vadd.f32 0.0, %v4191
        %4193 = vdwg.mxu0
        %4194 = vmatpush.msra.mxu0 0.0
        %4195 = vmatpush.msra.mxu0 0.0
        %4196 = vmatpush.msra.mxu0 0.0
        %4197 = vmatpush.msra.mxu0 0.0
        %4198 = vmatpush.msra.mxu0 0.0
        %4199 = vmatpush.msra.mxu0 0.0
        %4200 = vmatpush.msra.mxu0 0.0
        %4201 = vmatpush.msra.mxu0 0.0
        %4202 = vmatpush.msra.mxu0 0.0
        %4203 = vmatpush.msra.mxu0 0.0
        %4204 = vmatpush.msra.mxu0 0.0
        %4205 = vmatpush.msra.mxu0 0.0
        %4206 = vmatpush.msra.mxu0 %v3893
        %4207 = vmatpush.msra.mxu0 %v3885
        %4208 = vmatpush.msra.mxu0 %v3877
        %4209 = vmatpush.msra.mxu0 %v3869
        %4210 = vmatmul.f32.gmra.mxu0 %v2010
        %v4211 = vpop.f32.mrf.mxu0
        %v4212 = vadd.f32 0.0, %v4211
        %4213 = vdwg.mxu0
        %v4214 = vperm.slane %v3912, 0
        %v4215 = vperm.slane %v3932, 0
        %v4216 = vperm.slane %v3952, 0
        %v4217 = vperm.slane %v3972, 0
        %v4218 = vperm.slane %v3992, 0
        %v4219 = vperm.slane %v4012, 0
        %v4220 = vperm.slane %v4032, 0
        %v4221 = vperm.slane %v4052, 0
        %v4222 = vmul.f32 %v1036, %v4214
        %v4223 = vmul.f32 %v1037, %v4215
        %v4224 = vmul.f32 %v1038, %v4216
        %v4225 = vmul.f32 %v1039, %v4217
        %v4226 = vmul.f32 %v1040, %v4218
        %v4227 = vmul.f32 %v1041, %v4219
        %v4228 = vmul.f32 %v1042, %v4220
        %v4229 = vmul.f32 %v1043, %v4221
        %v4230 = vmul.f32 %v1044, %v4214
        %v4231 = vmul.f32 %v1045, %v4215
        %v4232 = vmul.f32 %v1046, %v4216
        %v4233 = vmul.f32 %v1047, %v4217
        %v4234 = vmul.f32 %v1048, %v4218
        %v4235 = vmul.f32 %v1049, %v4219
        %v4236 = vmul.f32 %v1050, %v4220
        %v4237 = vmul.f32 %v1051, %v4221
        %v4238 = vmul.f32 %v1052, %v4214
        %v4239 = vmul.f32 %v1053, %v4215
        %v4240 = vmul.f32 %v1054, %v4216
        %v4241 = vmul.f32 %v1055, %v4217
        %v4242 = vmul.f32 %v1056, %v4218
        %v4243 = vmul.f32 %v1057, %v4219
        %v4244 = vmul.f32 %v1058, %v4220
        %v4245 = vmul.f32 %v1059, %v4221
        %v4246 = vmul.f32 %v1060, %v4214
        %v4247 = vmul.f32 %v1061, %v4215
        %v4248 = vmul.f32 %v1062, %v4216
        %v4249 = vmul.f32 %v1063, %v4217
        %v4250 = vmul.f32 %v1064, %v4218
        %v4251 = vmul.f32 %v1065, %v4219
        %v4252 = vmul.f32 %v1066, %v4220
        %v4253 = vmul.f32 %v1067, %v4221
        %4254 = vmatpush.xpose.msra.mxu0 0.0
        %4255 = vmatpush.xpose.msra.mxu0 0.0
        %4256 = vmatpush.xpose.msra.mxu0 0.0
        %4257 = vmatpush.xpose.msra.mxu0 0.0
        %4258 = vmatpush.xpose.msra.mxu0 0.0
        %4259 = vmatpush.xpose.msra.mxu0 0.0
        %4260 = vmatpush.xpose.msra.mxu0 0.0
        %4261 = vmatpush.xpose.msra.mxu0 0.0
        %4262 = vmatpush.xpose.msra.mxu0 0.0
        %4263 = vmatpush.xpose.msra.mxu0 0.0
        %4264 = vmatpush.xpose.msra.mxu0 0.0
        %4265 = vmatpush.xpose.msra.mxu0 0.0
        %4266 = vmatpush.xpose.msra.mxu0 %v1028
        %4267 = vmatpush.xpose.msra.mxu0 %v1020
        %4268 = vmatpush.xpose.msra.mxu0 %v1012
        %4269 = vmatpush.xpose.msra.mxu0 %v1004
        %4270 = vmatmul.f32.gmra.mxu0 %v4222
        %v4271 = vpop.f32.mrf.mxu0
        %v4272 = vadd.f32 0.0, %v4271
        %4273 = vmatmul.f32.gmra.mxu0 %v4230
        %v4274 = vpop.f32.mrf.mxu0
        %v4275 = vadd.f32 0.0, %v4274
        %4276 = vmatmul.f32.gmra.mxu0 %v4238
        %v4277 = vpop.f32.mrf.mxu0
        %v4278 = vadd.f32 0.0, %v4277
        %4279 = vmatmul.f32.gmra.mxu0 %v4246
        %v4280 = vpop.f32.mrf.mxu0
        %v4281 = vadd.f32 0.0, %v4280
        %4282 = vdwg.mxu0
        %4283 = vmatpush.xpose.msra.mxu0 0.0
        %4284 = vmatpush.xpose.msra.mxu0 0.0
        %4285 = vmatpush.xpose.msra.mxu0 0.0
        %4286 = vmatpush.xpose.msra.mxu0 0.0
        %4287 = vmatpush.xpose.msra.mxu0 0.0
        %4288 = vmatpush.xpose.msra.mxu0 0.0
        %4289 = vmatpush.xpose.msra.mxu0 0.0
        %4290 = vmatpush.xpose.msra.mxu0 0.0
        %4291 = vmatpush.xpose.msra.mxu0 0.0
        %4292 = vmatpush.xpose.msra.mxu0 0.0
        %4293 = vmatpush.xpose.msra.mxu0 0.0
        %4294 = vmatpush.xpose.msra.mxu0 0.0
        %4295 = vmatpush.xpose.msra.mxu0 %v1029
        %4296 = vmatpush.xpose.msra.mxu0 %v1021
        %4297 = vmatpush.xpose.msra.mxu0 %v1013
        %4298 = vmatpush.xpose.msra.mxu0 %v1005
        %4299 = vmatmul.f32.gmra.mxu0 %v4223
        %v4300 = vpop.f32.mrf.mxu0
        %v4301 = vadd.f32 %v4272, %v4300
        %4302 = vmatmul.f32.gmra.mxu0 %v4231
        %v4303 = vpop.f32.mrf.mxu0
        %v4304 = vadd.f32 %v4275, %v4303
        %4305 = vmatmul.f32.gmra.mxu0 %v4239
        %v4306 = vpop.f32.mrf.mxu0
        %v4307 = vadd.f32 %v4278, %v4306
        %4308 = vmatmul.f32.gmra.mxu0 %v4247
        %v4309 = vpop.f32.mrf.mxu0
        %v4310 = vadd.f32 %v4281, %v4309
        %4311 = vdwg.mxu0
        %4312 = vmatpush.xpose.msra.mxu0 0.0
        %4313 = vmatpush.xpose.msra.mxu0 0.0
        %4314 = vmatpush.xpose.msra.mxu0 0.0
        %4315 = vmatpush.xpose.msra.mxu0 0.0
        %4316 = vmatpush.xpose.msra.mxu0 0.0
        %4317 = vmatpush.xpose.msra.mxu0 0.0
        %4318 = vmatpush.xpose.msra.mxu0 0.0
        %4319 = vmatpush.xpose.msra.mxu0 0.0
        %4320 = vmatpush.xpose.msra.mxu0 0.0
        %4321 = vmatpush.xpose.msra.mxu0 0.0
        %4322 = vmatpush.xpose.msra.mxu0 0.0
        %4323 = vmatpush.xpose.msra.mxu0 0.0
        %4324 = vmatpush.xpose.msra.mxu0 %v1030
        %4325 = vmatpush.xpose.msra.mxu0 %v1022
        %4326 = vmatpush.xpose.msra.mxu0 %v1014
        %4327 = vmatpush.xpose.msra.mxu0 %v1006
        %4328 = vmatmul.f32.gmra.mxu0 %v4224
        %v4329 = vpop.f32.mrf.mxu0
        %v4330 = vadd.f32 %v4301, %v4329
        %4331 = vmatmul.f32.gmra.mxu0 %v4232
        %v4332 = vpop.f32.mrf.mxu0
        %v4333 = vadd.f32 %v4304, %v4332
        %4334 = vmatmul.f32.gmra.mxu0 %v4240
        %v4335 = vpop.f32.mrf.mxu0
        %v4336 = vadd.f32 %v4307, %v4335
        %4337 = vmatmul.f32.gmra.mxu0 %v4248
        %v4338 = vpop.f32.mrf.mxu0
        %v4339 = vadd.f32 %v4310, %v4338
        %4340 = vdwg.mxu0
        %4341 = vmatpush.xpose.msra.mxu0 0.0
        %4342 = vmatpush.xpose.msra.mxu0 0.0
        %4343 = vmatpush.xpose.msra.mxu0 0.0
        %4344 = vmatpush.xpose.msra.mxu0 0.0
        %4345 = vmatpush.xpose.msra.mxu0 0.0
        %4346 = vmatpush.xpose.msra.mxu0 0.0
        %4347 = vmatpush.xpose.msra.mxu0 0.0
        %4348 = vmatpush.xpose.msra.mxu0 0.0
        %4349 = vmatpush.xpose.msra.mxu0 0.0
        %4350 = vmatpush.xpose.msra.mxu0 0.0
        %4351 = vmatpush.xpose.msra.mxu0 0.0
        %4352 = vmatpush.xpose.msra.mxu0 0.0
        %4353 = vmatpush.xpose.msra.mxu0 %v1031
        %4354 = vmatpush.xpose.msra.mxu0 %v1023
        %4355 = vmatpush.xpose.msra.mxu0 %v1015
        %4356 = vmatpush.xpose.msra.mxu0 %v1007
        %4357 = vmatmul.f32.gmra.mxu0 %v4225
        %v4358 = vpop.f32.mrf.mxu0
        %v4359 = vadd.f32 %v4330, %v4358
        %4360 = vmatmul.f32.gmra.mxu0 %v4233
        %v4361 = vpop.f32.mrf.mxu0
        %v4362 = vadd.f32 %v4333, %v4361
        %4363 = vmatmul.f32.gmra.mxu0 %v4241
        %v4364 = vpop.f32.mrf.mxu0
        %v4365 = vadd.f32 %v4336, %v4364
        %4366 = vmatmul.f32.gmra.mxu0 %v4249
        %v4367 = vpop.f32.mrf.mxu0
        %v4368 = vadd.f32 %v4339, %v4367
        %4369 = vdwg.mxu0
        %4370 = vmatpush.xpose.msra.mxu0 0.0
        %4371 = vmatpush.xpose.msra.mxu0 0.0
        %4372 = vmatpush.xpose.msra.mxu0 0.0
        %4373 = vmatpush.xpose.msra.mxu0 0.0
        %4374 = vmatpush.xpose.msra.mxu0 0.0
        %4375 = vmatpush.xpose.msra.mxu0 0.0
        %4376 = vmatpush.xpose.msra.mxu0 0.0
        %4377 = vmatpush.xpose.msra.mxu0 0.0
        %4378 = vmatpush.xpose.msra.mxu0 0.0
        %4379 = vmatpush.xpose.msra.mxu0 0.0
        %4380 = vmatpush.xpose.msra.mxu0 0.0
        %4381 = vmatpush.xpose.msra.mxu0 0.0
        %4382 = vmatpush.xpose.msra.mxu0 %v1032
        %4383 = vmatpush.xpose.msra.mxu0 %v1024
        %4384 = vmatpush.xpose.msra.mxu0 %v1016
        %4385 = vmatpush.xpose.msra.mxu0 %v1008
        %4386 = vmatmul.f32.gmra.mxu0 %v4226
        %v4387 = vpop.f32.mrf.mxu0
        %v4388 = vadd.f32 %v4359, %v4387
        %4389 = vmatmul.f32.gmra.mxu0 %v4234
        %v4390 = vpop.f32.mrf.mxu0
        %v4391 = vadd.f32 %v4362, %v4390
        %4392 = vmatmul.f32.gmra.mxu0 %v4242
        %v4393 = vpop.f32.mrf.mxu0
        %v4394 = vadd.f32 %v4365, %v4393
        %4395 = vmatmul.f32.gmra.mxu0 %v4250
        %v4396 = vpop.f32.mrf.mxu0
        %v4397 = vadd.f32 %v4368, %v4396
        %4398 = vdwg.mxu0
        %4399 = vmatpush.xpose.msra.mxu0 0.0
        %4400 = vmatpush.xpose.msra.mxu0 0.0
        %4401 = vmatpush.xpose.msra.mxu0 0.0
        %4402 = vmatpush.xpose.msra.mxu0 0.0
        %4403 = vmatpush.xpose.msra.mxu0 0.0
        %4404 = vmatpush.xpose.msra.mxu0 0.0
        %4405 = vmatpush.xpose.msra.mxu0 0.0
        %4406 = vmatpush.xpose.msra.mxu0 0.0
        %4407 = vmatpush.xpose.msra.mxu0 0.0
        %4408 = vmatpush.xpose.msra.mxu0 0.0
        %4409 = vmatpush.xpose.msra.mxu0 0.0
        %4410 = vmatpush.xpose.msra.mxu0 0.0
        %4411 = vmatpush.xpose.msra.mxu0 %v1033
        %4412 = vmatpush.xpose.msra.mxu0 %v1025
        %4413 = vmatpush.xpose.msra.mxu0 %v1017
        %4414 = vmatpush.xpose.msra.mxu0 %v1009
        %4415 = vmatmul.f32.gmra.mxu0 %v4227
        %v4416 = vpop.f32.mrf.mxu0
        %v4417 = vadd.f32 %v4388, %v4416
        %4418 = vmatmul.f32.gmra.mxu0 %v4235
        %v4419 = vpop.f32.mrf.mxu0
        %v4420 = vadd.f32 %v4391, %v4419
        %4421 = vmatmul.f32.gmra.mxu0 %v4243
        %v4422 = vpop.f32.mrf.mxu0
        %v4423 = vadd.f32 %v4394, %v4422
        %4424 = vmatmul.f32.gmra.mxu0 %v4251
        %v4425 = vpop.f32.mrf.mxu0
        %v4426 = vadd.f32 %v4397, %v4425
        %4427 = vdwg.mxu0
        %4428 = vmatpush.xpose.msra.mxu0 0.0
        %4429 = vmatpush.xpose.msra.mxu0 0.0
        %4430 = vmatpush.xpose.msra.mxu0 0.0
        %4431 = vmatpush.xpose.msra.mxu0 0.0
        %4432 = vmatpush.xpose.msra.mxu0 0.0
        %4433 = vmatpush.xpose.msra.mxu0 0.0
        %4434 = vmatpush.xpose.msra.mxu0 0.0
        %4435 = vmatpush.xpose.msra.mxu0 0.0
        %4436 = vmatpush.xpose.msra.mxu0 0.0
        %4437 = vmatpush.xpose.msra.mxu0 0.0
        %4438 = vmatpush.xpose.msra.mxu0 0.0
        %4439 = vmatpush.xpose.msra.mxu0 0.0
        %4440 = vmatpush.xpose.msra.mxu0 %v1034
        %4441 = vmatpush.xpose.msra.mxu0 %v1026
        %4442 = vmatpush.xpose.msra.mxu0 %v1018
        %4443 = vmatpush.xpose.msra.mxu0 %v1010
        %4444 = vmatmul.f32.gmra.mxu0 %v4228
        %v4445 = vpop.f32.mrf.mxu0
        %v4446 = vadd.f32 %v4417, %v4445
        %4447 = vmatmul.f32.gmra.mxu0 %v4236
        %v4448 = vpop.f32.mrf.mxu0
        %v4449 = vadd.f32 %v4420, %v4448
        %4450 = vmatmul.f32.gmra.mxu0 %v4244
        %v4451 = vpop.f32.mrf.mxu0
        %v4452 = vadd.f32 %v4423, %v4451
        %4453 = vmatmul.f32.gmra.mxu0 %v4252
        %v4454 = vpop.f32.mrf.mxu0
        %v4455 = vadd.f32 %v4426, %v4454
        %4456 = vdwg.mxu0
        %4457 = vmatpush.xpose.msra.mxu0 0.0
        %4458 = vmatpush.xpose.msra.mxu0 0.0
        %4459 = vmatpush.xpose.msra.mxu0 0.0
        %4460 = vmatpush.xpose.msra.mxu0 0.0
        %4461 = vmatpush.xpose.msra.mxu0 0.0
        %4462 = vmatpush.xpose.msra.mxu0 0.0
        %4463 = vmatpush.xpose.msra.mxu0 0.0
        %4464 = vmatpush.xpose.msra.mxu0 0.0
        %4465 = vmatpush.xpose.msra.mxu0 0.0
        %4466 = vmatpush.xpose.msra.mxu0 0.0
        %4467 = vmatpush.xpose.msra.mxu0 0.0
        %4468 = vmatpush.xpose.msra.mxu0 0.0
        %4469 = vmatpush.xpose.msra.mxu0 %v1035
        %4470 = vmatpush.xpose.msra.mxu0 %v1027
        %4471 = vmatpush.xpose.msra.mxu0 %v1019
        %4472 = vmatpush.xpose.msra.mxu0 %v1011
        %4473 = vmatmul.f32.gmra.mxu0 %v4229
        %v4474 = vpop.f32.mrf.mxu0
        %v4475 = vadd.f32 %v4446, %v4474
        %4476 = vmatmul.f32.gmra.mxu0 %v4237
        %v4477 = vpop.f32.mrf.mxu0
        %v4478 = vadd.f32 %v4449, %v4477
        %4479 = vmatmul.f32.gmra.mxu0 %v4245
        %v4480 = vpop.f32.mrf.mxu0
        %v4481 = vadd.f32 %v4452, %v4480
        %4482 = vmatmul.f32.gmra.mxu0 %v4253
        %v4483 = vpop.f32.mrf.mxu0
        %v4484 = vadd.f32 %v4455, %v4483
        %4485 = vdwg.mxu0
        %v4486 = vperm.slane %v4072, 0
        %v4487 = vperm.slane %v4092, 0
        %v4488 = vperm.slane %v4112, 0
        %v4489 = vperm.slane %v4132, 0
        %v4490 = vperm.slane %v4152, 0
        %v4491 = vperm.slane %v4172, 0
        %v4492 = vperm.slane %v4192, 0
        %v4493 = vperm.slane %v4212, 0
        %v4494 = vmul.f32 %v1036, %v4486
        %v4495 = vmul.f32 %v1037, %v4487
        %v4496 = vmul.f32 %v1038, %v4488
        %v4497 = vmul.f32 %v1039, %v4489
        %v4498 = vmul.f32 %v1040, %v4490
        %v4499 = vmul.f32 %v1041, %v4491
        %v4500 = vmul.f32 %v1042, %v4492
        %v4501 = vmul.f32 %v1043, %v4493
        %v4502 = vmul.f32 %v1044, %v4486
        %v4503 = vmul.f32 %v1045, %v4487
        %v4504 = vmul.f32 %v1046, %v4488
        %v4505 = vmul.f32 %v1047, %v4489
        %v4506 = vmul.f32 %v1048, %v4490
        %v4507 = vmul.f32 %v1049, %v4491
        %v4508 = vmul.f32 %v1050, %v4492
        %v4509 = vmul.f32 %v1051, %v4493
        %v4510 = vmul.f32 %v1052, %v4486
        %v4511 = vmul.f32 %v1053, %v4487
        %v4512 = vmul.f32 %v1054, %v4488
        %v4513 = vmul.f32 %v1055, %v4489
        %v4514 = vmul.f32 %v1056, %v4490
        %v4515 = vmul.f32 %v1057, %v4491
        %v4516 = vmul.f32 %v1058, %v4492
        %v4517 = vmul.f32 %v1059, %v4493
        %v4518 = vmul.f32 %v1060, %v4486
        %v4519 = vmul.f32 %v1061, %v4487
        %v4520 = vmul.f32 %v1062, %v4488
        %v4521 = vmul.f32 %v1063, %v4489
        %v4522 = vmul.f32 %v1064, %v4490
        %v4523 = vmul.f32 %v1065, %v4491
        %v4524 = vmul.f32 %v1066, %v4492
        %v4525 = vmul.f32 %v1067, %v4493
        %4526 = vmatpush.xpose.msra.mxu0 0.0
        %4527 = vmatpush.xpose.msra.mxu0 0.0
        %4528 = vmatpush.xpose.msra.mxu0 0.0
        %4529 = vmatpush.xpose.msra.mxu0 0.0
        %4530 = vmatpush.xpose.msra.mxu0 0.0
        %4531 = vmatpush.xpose.msra.mxu0 0.0
        %4532 = vmatpush.xpose.msra.mxu0 0.0
        %4533 = vmatpush.xpose.msra.mxu0 0.0
        %4534 = vmatpush.xpose.msra.mxu0 0.0
        %4535 = vmatpush.xpose.msra.mxu0 0.0
        %4536 = vmatpush.xpose.msra.mxu0 0.0
        %4537 = vmatpush.xpose.msra.mxu0 0.0
        %4538 = vmatpush.xpose.msra.mxu0 %v1028
        %4539 = vmatpush.xpose.msra.mxu0 %v1020
        %4540 = vmatpush.xpose.msra.mxu0 %v1012
        %4541 = vmatpush.xpose.msra.mxu0 %v1004
        %4542 = vmatmul.f32.gmra.mxu0 %v4494
        %v4543 = vpop.f32.mrf.mxu0
        %v4544 = vadd.f32 0.0, %v4543
        %4545 = vmatmul.f32.gmra.mxu0 %v4502
        %v4546 = vpop.f32.mrf.mxu0
        %v4547 = vadd.f32 0.0, %v4546
        %4548 = vmatmul.f32.gmra.mxu0 %v4510
        %v4549 = vpop.f32.mrf.mxu0
        %v4550 = vadd.f32 0.0, %v4549
        %4551 = vmatmul.f32.gmra.mxu0 %v4518
        %v4552 = vpop.f32.mrf.mxu0
        %v4553 = vadd.f32 0.0, %v4552
        %4554 = vdwg.mxu0
        %4555 = vmatpush.xpose.msra.mxu0 0.0
        %4556 = vmatpush.xpose.msra.mxu0 0.0
        %4557 = vmatpush.xpose.msra.mxu0 0.0
        %4558 = vmatpush.xpose.msra.mxu0 0.0
        %4559 = vmatpush.xpose.msra.mxu0 0.0
        %4560 = vmatpush.xpose.msra.mxu0 0.0
        %4561 = vmatpush.xpose.msra.mxu0 0.0
        %4562 = vmatpush.xpose.msra.mxu0 0.0
        %4563 = vmatpush.xpose.msra.mxu0 0.0
        %4564 = vmatpush.xpose.msra.mxu0 0.0
        %4565 = vmatpush.xpose.msra.mxu0 0.0
        %4566 = vmatpush.xpose.msra.mxu0 0.0
        %4567 = vmatpush.xpose.msra.mxu0 %v1029
        %4568 = vmatpush.xpose.msra.mxu0 %v1021
        %4569 = vmatpush.xpose.msra.mxu0 %v1013
        %4570 = vmatpush.xpose.msra.mxu0 %v1005
        %4571 = vmatmul.f32.gmra.mxu0 %v4495
        %v4572 = vpop.f32.mrf.mxu0
        %v4573 = vadd.f32 %v4544, %v4572
        %4574 = vmatmul.f32.gmra.mxu0 %v4503
        %v4575 = vpop.f32.mrf.mxu0
        %v4576 = vadd.f32 %v4547, %v4575
        %4577 = vmatmul.f32.gmra.mxu0 %v4511
        %v4578 = vpop.f32.mrf.mxu0
        %v4579 = vadd.f32 %v4550, %v4578
        %4580 = vmatmul.f32.gmra.mxu0 %v4519
        %v4581 = vpop.f32.mrf.mxu0
        %v4582 = vadd.f32 %v4553, %v4581
        %4583 = vdwg.mxu0
        %4584 = vmatpush.xpose.msra.mxu0 0.0
        %4585 = vmatpush.xpose.msra.mxu0 0.0
        %4586 = vmatpush.xpose.msra.mxu0 0.0
        %4587 = vmatpush.xpose.msra.mxu0 0.0
        %4588 = vmatpush.xpose.msra.mxu0 0.0
        %4589 = vmatpush.xpose.msra.mxu0 0.0
        %4590 = vmatpush.xpose.msra.mxu0 0.0
        %4591 = vmatpush.xpose.msra.mxu0 0.0
        %4592 = vmatpush.xpose.msra.mxu0 0.0
        %4593 = vmatpush.xpose.msra.mxu0 0.0
        %4594 = vmatpush.xpose.msra.mxu0 0.0
        %4595 = vmatpush.xpose.msra.mxu0 0.0
        %4596 = vmatpush.xpose.msra.mxu0 %v1030
        %4597 = vmatpush.xpose.msra.mxu0 %v1022
        %4598 = vmatpush.xpose.msra.mxu0 %v1014
        %4599 = vmatpush.xpose.msra.mxu0 %v1006
        %4600 = vmatmul.f32.gmra.mxu0 %v4496
        %v4601 = vpop.f32.mrf.mxu0
        %v4602 = vadd.f32 %v4573, %v4601
        %4603 = vmatmul.f32.gmra.mxu0 %v4504
        %v4604 = vpop.f32.mrf.mxu0
        %v4605 = vadd.f32 %v4576, %v4604
        %4606 = vmatmul.f32.gmra.mxu0 %v4512
        %v4607 = vpop.f32.mrf.mxu0
        %v4608 = vadd.f32 %v4579, %v4607
        %4609 = vmatmul.f32.gmra.mxu0 %v4520
        %v4610 = vpop.f32.mrf.mxu0
        %v4611 = vadd.f32 %v4582, %v4610
        %4612 = vdwg.mxu0
        %4613 = vmatpush.xpose.msra.mxu0 0.0
        %4614 = vmatpush.xpose.msra.mxu0 0.0
        %4615 = vmatpush.xpose.msra.mxu0 0.0
        %4616 = vmatpush.xpose.msra.mxu0 0.0
        %4617 = vmatpush.xpose.msra.mxu0 0.0
        %4618 = vmatpush.xpose.msra.mxu0 0.0
        %4619 = vmatpush.xpose.msra.mxu0 0.0
        %4620 = vmatpush.xpose.msra.mxu0 0.0
        %4621 = vmatpush.xpose.msra.mxu0 0.0
        %4622 = vmatpush.xpose.msra.mxu0 0.0
        %4623 = vmatpush.xpose.msra.mxu0 0.0
        %4624 = vmatpush.xpose.msra.mxu0 0.0
        %4625 = vmatpush.xpose.msra.mxu0 %v1031
        %4626 = vmatpush.xpose.msra.mxu0 %v1023
        %4627 = vmatpush.xpose.msra.mxu0 %v1015
        %4628 = vmatpush.xpose.msra.mxu0 %v1007
        %4629 = vmatmul.f32.gmra.mxu0 %v4497
        %v4630 = vpop.f32.mrf.mxu0
        %v4631 = vadd.f32 %v4602, %v4630
        %4632 = vmatmul.f32.gmra.mxu0 %v4505
        %v4633 = vpop.f32.mrf.mxu0
        %v4634 = vadd.f32 %v4605, %v4633
        %4635 = vmatmul.f32.gmra.mxu0 %v4513
        %v4636 = vpop.f32.mrf.mxu0
        %v4637 = vadd.f32 %v4608, %v4636
        %4638 = vmatmul.f32.gmra.mxu0 %v4521
        %v4639 = vpop.f32.mrf.mxu0
        %v4640 = vadd.f32 %v4611, %v4639
        %4641 = vdwg.mxu0
        %4642 = vmatpush.xpose.msra.mxu0 0.0
        %4643 = vmatpush.xpose.msra.mxu0 0.0
        %4644 = vmatpush.xpose.msra.mxu0 0.0
        %4645 = vmatpush.xpose.msra.mxu0 0.0
        %4646 = vmatpush.xpose.msra.mxu0 0.0
        %4647 = vmatpush.xpose.msra.mxu0 0.0
        %4648 = vmatpush.xpose.msra.mxu0 0.0
        %4649 = vmatpush.xpose.msra.mxu0 0.0
        %4650 = vmatpush.xpose.msra.mxu0 0.0
        %4651 = vmatpush.xpose.msra.mxu0 0.0
        %4652 = vmatpush.xpose.msra.mxu0 0.0
        %4653 = vmatpush.xpose.msra.mxu0 0.0
        %4654 = vmatpush.xpose.msra.mxu0 %v1032
        %4655 = vmatpush.xpose.msra.mxu0 %v1024
        %4656 = vmatpush.xpose.msra.mxu0 %v1016
        %4657 = vmatpush.xpose.msra.mxu0 %v1008
        %4658 = vmatmul.f32.gmra.mxu0 %v4498
        %v4659 = vpop.f32.mrf.mxu0
        %v4660 = vadd.f32 %v4631, %v4659
        %4661 = vmatmul.f32.gmra.mxu0 %v4506
        %v4662 = vpop.f32.mrf.mxu0
        %v4663 = vadd.f32 %v4634, %v4662
        %4664 = vmatmul.f32.gmra.mxu0 %v4514
        %v4665 = vpop.f32.mrf.mxu0
        %v4666 = vadd.f32 %v4637, %v4665
        %4667 = vmatmul.f32.gmra.mxu0 %v4522
        %v4668 = vpop.f32.mrf.mxu0
        %v4669 = vadd.f32 %v4640, %v4668
        %4670 = vdwg.mxu0
        %4671 = vmatpush.xpose.msra.mxu0 0.0
        %4672 = vmatpush.xpose.msra.mxu0 0.0
        %4673 = vmatpush.xpose.msra.mxu0 0.0
        %4674 = vmatpush.xpose.msra.mxu0 0.0
        %4675 = vmatpush.xpose.msra.mxu0 0.0
        %4676 = vmatpush.xpose.msra.mxu0 0.0
        %4677 = vmatpush.xpose.msra.mxu0 0.0
        %4678 = vmatpush.xpose.msra.mxu0 0.0
        %4679 = vmatpush.xpose.msra.mxu0 0.0
        %4680 = vmatpush.xpose.msra.mxu0 0.0
        %4681 = vmatpush.xpose.msra.mxu0 0.0
        %4682 = vmatpush.xpose.msra.mxu0 0.0
        %4683 = vmatpush.xpose.msra.mxu0 %v1033
        %4684 = vmatpush.xpose.msra.mxu0 %v1025
        %4685 = vmatpush.xpose.msra.mxu0 %v1017
        %4686 = vmatpush.xpose.msra.mxu0 %v1009
        %4687 = vmatmul.f32.gmra.mxu0 %v4499
        %v4688 = vpop.f32.mrf.mxu0
        %v4689 = vadd.f32 %v4660, %v4688
        %4690 = vmatmul.f32.gmra.mxu0 %v4507
        %v4691 = vpop.f32.mrf.mxu0
        %v4692 = vadd.f32 %v4663, %v4691
        %4693 = vmatmul.f32.gmra.mxu0 %v4515
        %v4694 = vpop.f32.mrf.mxu0
        %v4695 = vadd.f32 %v4666, %v4694
        %4696 = vmatmul.f32.gmra.mxu0 %v4523
        %v4697 = vpop.f32.mrf.mxu0
        %v4698 = vadd.f32 %v4669, %v4697
        %4699 = vdwg.mxu0
        %4700 = vmatpush.xpose.msra.mxu0 0.0
        %4701 = vmatpush.xpose.msra.mxu0 0.0
        %4702 = vmatpush.xpose.msra.mxu0 0.0
        %4703 = vmatpush.xpose.msra.mxu0 0.0
        %4704 = vmatpush.xpose.msra.mxu0 0.0
        %4705 = vmatpush.xpose.msra.mxu0 0.0
        %4706 = vmatpush.xpose.msra.mxu0 0.0
        %4707 = vmatpush.xpose.msra.mxu0 0.0
        %4708 = vmatpush.xpose.msra.mxu0 0.0
        %4709 = vmatpush.xpose.msra.mxu0 0.0
        %4710 = vmatpush.xpose.msra.mxu0 0.0
        %4711 = vmatpush.xpose.msra.mxu0 0.0
        %4712 = vmatpush.xpose.msra.mxu0 %v1034
        %4713 = vmatpush.xpose.msra.mxu0 %v1026
        %4714 = vmatpush.xpose.msra.mxu0 %v1018
        %4715 = vmatpush.xpose.msra.mxu0 %v1010
        %4716 = vmatmul.f32.gmra.mxu0 %v4500
        %v4717 = vpop.f32.mrf.mxu0
        %v4718 = vadd.f32 %v4689, %v4717
        %4719 = vmatmul.f32.gmra.mxu0 %v4508
        %v4720 = vpop.f32.mrf.mxu0
        %v4721 = vadd.f32 %v4692, %v4720
        %4722 = vmatmul.f32.gmra.mxu0 %v4516
        %v4723 = vpop.f32.mrf.mxu0
        %v4724 = vadd.f32 %v4695, %v4723
        %4725 = vmatmul.f32.gmra.mxu0 %v4524
        %v4726 = vpop.f32.mrf.mxu0
        %v4727 = vadd.f32 %v4698, %v4726
        %4728 = vdwg.mxu0
        %4729 = vmatpush.xpose.msra.mxu0 0.0
        %4730 = vmatpush.xpose.msra.mxu0 0.0
        %4731 = vmatpush.xpose.msra.mxu0 0.0
        %4732 = vmatpush.xpose.msra.mxu0 0.0
        %4733 = vmatpush.xpose.msra.mxu0 0.0
        %4734 = vmatpush.xpose.msra.mxu0 0.0
        %4735 = vmatpush.xpose.msra.mxu0 0.0
        %4736 = vmatpush.xpose.msra.mxu0 0.0
        %4737 = vmatpush.xpose.msra.mxu0 0.0
        %4738 = vmatpush.xpose.msra.mxu0 0.0
        %4739 = vmatpush.xpose.msra.mxu0 0.0
        %4740 = vmatpush.xpose.msra.mxu0 0.0
        %4741 = vmatpush.xpose.msra.mxu0 %v1035
        %4742 = vmatpush.xpose.msra.mxu0 %v1027
        %4743 = vmatpush.xpose.msra.mxu0 %v1019
        %4744 = vmatpush.xpose.msra.mxu0 %v1011
        %4745 = vmatmul.f32.gmra.mxu0 %v4501
        %v4746 = vpop.f32.mrf.mxu0
        %v4747 = vadd.f32 %v4718, %v4746
        %4748 = vmatmul.f32.gmra.mxu0 %v4509
        %v4749 = vpop.f32.mrf.mxu0
        %v4750 = vadd.f32 %v4721, %v4749
        %4751 = vmatmul.f32.gmra.mxu0 %v4517
        %v4752 = vpop.f32.mrf.mxu0
        %v4753 = vadd.f32 %v4724, %v4752
        %4754 = vmatmul.f32.gmra.mxu0 %v4525
        %v4755 = vpop.f32.mrf.mxu0
        %v4756 = vadd.f32 %v4727, %v4755
        %4757 = vdwg.mxu0
        %v4759 = vsel %vm1264, %v4747, 0
        %v4762 = vsel %vm1264, %v4750, 0
        %v4765 = vsel %vm1264, %v4753, 0
        %v4768 = vsel %vm1264, %v4756, 0
        %4770 = vmatpush.msra.mxu0 0.0
        %4771 = vmatpush.msra.mxu0 0.0
        %4772 = vmatpush.msra.mxu0 0.0
        %4773 = vmatpush.msra.mxu0 0.0
        %4774 = vmatpush.msra.mxu0 0.0
        %4775 = vmatpush.msra.mxu0 0.0
        %4776 = vmatpush.msra.mxu0 0.0
        %4777 = vmatpush.msra.mxu0 0.0
        %4778 = vmatpush.msra.mxu0 0.0
        %4779 = vmatpush.msra.mxu0 0.0
        %4780 = vmatpush.msra.mxu0 0.0
        %4781 = vmatpush.msra.mxu0 0.0
        %4782 = vmatpush.msra.mxu0 %v1146
        %4783 = vmatpush.msra.mxu0 %v1144
        %4784 = vmatpush.msra.mxu0 %v1142
        %4785 = vmatpush.msra.mxu0 %v1140
        %4786 = vmatmul.f32.gmra.mxu0 %v4759
        %v4787 = vpop.f32.mrf.mxu0
        %v4788 = vadd.f32 0.0, %v4787
        %4789 = vmatmul.f32.gmra.mxu0 %v4762
        %v4790 = vpop.f32.mrf.mxu0
        %v4791 = vadd.f32 0.0, %v4790
        %4792 = vmatmul.f32.gmra.mxu0 %v4765
        %v4793 = vpop.f32.mrf.mxu0
        %v4794 = vadd.f32 0.0, %v4793
        %4795 = vmatmul.f32.gmra.mxu0 %v4768
        %v4796 = vpop.f32.mrf.mxu0
        %v4797 = vadd.f32 0.0, %v4796
        %4798 = vdwg.mxu0
        %4799 = vmatpush.msra.mxu0 0.0
        %4800 = vmatpush.msra.mxu0 0.0
        %4801 = vmatpush.msra.mxu0 0.0
        %4802 = vmatpush.msra.mxu0 0.0
        %4803 = vmatpush.msra.mxu0 0.0
        %4804 = vmatpush.msra.mxu0 0.0
        %4805 = vmatpush.msra.mxu0 0.0
        %4806 = vmatpush.msra.mxu0 0.0
        %4807 = vmatpush.msra.mxu0 0.0
        %4808 = vmatpush.msra.mxu0 0.0
        %4809 = vmatpush.msra.mxu0 0.0
        %4810 = vmatpush.msra.mxu0 0.0
        %4811 = vmatpush.msra.mxu0 %v1147
        %4812 = vmatpush.msra.mxu0 %v1145
        %4813 = vmatpush.msra.mxu0 %v1143
        %4814 = vmatpush.msra.mxu0 %v1141
        %4815 = vmatmul.f32.gmra.mxu0 %v4759
        %v4816 = vpop.f32.mrf.mxu0
        %v4817 = vadd.f32 0.0, %v4816
        %4818 = vmatmul.f32.gmra.mxu0 %v4762
        %v4819 = vpop.f32.mrf.mxu0
        %v4820 = vadd.f32 0.0, %v4819
        %4821 = vmatmul.f32.gmra.mxu0 %v4765
        %v4822 = vpop.f32.mrf.mxu0
        %v4823 = vadd.f32 0.0, %v4822
        %4824 = vmatmul.f32.gmra.mxu0 %v4768
        %v4825 = vpop.f32.mrf.mxu0
        %v4826 = vadd.f32 0.0, %v4825
        %4827 = vdwg.mxu0
        %v4829 = vsel %vm1264, %v4475, 0
        %v4832 = vsel %vm1264, %v4478, 0
        %v4835 = vsel %vm1264, %v4481, 0
        %v4838 = vsel %vm1264, %v4484, 0
        %4840 = vmatpush.msra.mxu0 0.0
        %4841 = vmatpush.msra.mxu0 0.0
        %4842 = vmatpush.msra.mxu0 0.0
        %4843 = vmatpush.msra.mxu0 0.0
        %4844 = vmatpush.msra.mxu0 0.0
        %4845 = vmatpush.msra.mxu0 0.0
        %4846 = vmatpush.msra.mxu0 0.0
        %4847 = vmatpush.msra.mxu0 0.0
        %4848 = vmatpush.msra.mxu0 0.0
        %4849 = vmatpush.msra.mxu0 0.0
        %4850 = vmatpush.msra.mxu0 0.0
        %4851 = vmatpush.msra.mxu0 0.0
        %4852 = vmatpush.msra.mxu0 %v1138
        %4853 = vmatpush.msra.mxu0 %v1136
        %4854 = vmatpush.msra.mxu0 %v1134
        %4855 = vmatpush.msra.mxu0 %v1132
        %4856 = vmatmul.f32.gmra.mxu0 %v4829
        %v4857 = vpop.f32.mrf.mxu0
        %v4858 = vadd.f32 %v4788, %v4857
        %4859 = vmatmul.f32.gmra.mxu0 %v4832
        %v4860 = vpop.f32.mrf.mxu0
        %v4861 = vadd.f32 %v4791, %v4860
        %4862 = vmatmul.f32.gmra.mxu0 %v4835
        %v4863 = vpop.f32.mrf.mxu0
        %v4864 = vadd.f32 %v4794, %v4863
        %4865 = vmatmul.f32.gmra.mxu0 %v4838
        %v4866 = vpop.f32.mrf.mxu0
        %v4867 = vadd.f32 %v4797, %v4866
        %4868 = vdwg.mxu0
        %4869 = vmatpush.msra.mxu0 0.0
        %4870 = vmatpush.msra.mxu0 0.0
        %4871 = vmatpush.msra.mxu0 0.0
        %4872 = vmatpush.msra.mxu0 0.0
        %4873 = vmatpush.msra.mxu0 0.0
        %4874 = vmatpush.msra.mxu0 0.0
        %4875 = vmatpush.msra.mxu0 0.0
        %4876 = vmatpush.msra.mxu0 0.0
        %4877 = vmatpush.msra.mxu0 0.0
        %4878 = vmatpush.msra.mxu0 0.0
        %4879 = vmatpush.msra.mxu0 0.0
        %4880 = vmatpush.msra.mxu0 0.0
        %4881 = vmatpush.msra.mxu0 %v1139
        %4882 = vmatpush.msra.mxu0 %v1137
        %4883 = vmatpush.msra.mxu0 %v1135
        %4884 = vmatpush.msra.mxu0 %v1133
        %4885 = vmatmul.f32.gmra.mxu0 %v4829
        %v4886 = vpop.f32.mrf.mxu0
        %v4887 = vadd.f32 %v4817, %v4886
        %4888 = vmatmul.f32.gmra.mxu0 %v4832
        %v4889 = vpop.f32.mrf.mxu0
        %v4890 = vadd.f32 %v4820, %v4889
        %4891 = vmatmul.f32.gmra.mxu0 %v4835
        %v4892 = vpop.f32.mrf.mxu0
        %v4893 = vadd.f32 %v4823, %v4892
        %4894 = vmatmul.f32.gmra.mxu0 %v4838
        %v4895 = vpop.f32.mrf.mxu0
        %v4896 = vadd.f32 %v4826, %v4895
        %4897 = vdwg.mxu0
        %v4898 = vmax.f32 %v4858, 0.0
        %v4899 = vmax.f32 %v4887, 0.0
        %v4900 = vmax.f32 %v4861, 0.0
        %v4901 = vmax.f32 %v4890, 0.0
        %v4902 = vmax.f32 %v4864, 0.0
        %v4903 = vmax.f32 %v4893, 0.0
        %v4904 = vmax.f32 %v4867, 0.0
        %v4905 = vmax.f32 %v4896, 0.0
        %v4906 = vadd.f32 %v3024, %v4898
        %v4907 = vadd.f32 %v3025, %v4899
        %v4908 = vadd.f32 %v3026, %v4900
        %v4909 = vadd.f32 %v3027, %v4901
        %v4910 = vadd.f32 %v3028, %v4902
        %v4911 = vadd.f32 %v3029, %v4903
        %v4912 = vadd.f32 %v3030, %v4904
        %v4913 = vadd.f32 %v3031, %v4905
        %4914 = vmatpush.msra.mxu0 %v1083
        %4915 = vmatpush.msra.mxu0 %v1082
        %4916 = vmatpush.msra.mxu0 %v1081
        %4917 = vmatpush.msra.mxu0 %v1080
        %4918 = vmatpush.msra.mxu0 %v1079
        %4919 = vmatpush.msra.mxu0 %v1078
        %4920 = vmatpush.msra.mxu0 %v1077
        %4921 = vmatpush.msra.mxu0 %v1076
        %4922 = vmatpush.msra.mxu0 %v1075
        %4923 = vmatpush.msra.mxu0 %v1074
        %4924 = vmatpush.msra.mxu0 %v1073
        %4925 = vmatpush.msra.mxu0 %v1072
        %4926 = vmatpush.msra.mxu0 %v1071
        %4927 = vmatpush.msra.mxu0 %v1070
        %4928 = vmatpush.msra.mxu0 %v1069
        %4929 = vmatpush.msra.mxu0 %v1068
        %4930 = vmatmul.f32.gmra.mxu0 %v4906
        %v4931 = vpop.f32.mrf.mxu0
        %v4932 = vadd.f32 0.0, %v4931
        %4933 = vmatmul.f32.gmra.mxu0 %v4908
        %v4934 = vpop.f32.mrf.mxu0
        %v4935 = vadd.f32 0.0, %v4934
        %4936 = vmatmul.f32.gmra.mxu0 %v4910
        %v4937 = vpop.f32.mrf.mxu0
        %v4938 = vadd.f32 0.0, %v4937
        %4939 = vmatmul.f32.gmra.mxu0 %v4912
        %v4940 = vpop.f32.mrf.mxu0
        %v4941 = vadd.f32 0.0, %v4940
        %4942 = vdwg.mxu0
        %4943 = vmatpush.msra.mxu0 %v1099
        %4944 = vmatpush.msra.mxu0 %v1098
        %4945 = vmatpush.msra.mxu0 %v1097
        %4946 = vmatpush.msra.mxu0 %v1096
        %4947 = vmatpush.msra.mxu0 %v1095
        %4948 = vmatpush.msra.mxu0 %v1094
        %4949 = vmatpush.msra.mxu0 %v1093
        %4950 = vmatpush.msra.mxu0 %v1092
        %4951 = vmatpush.msra.mxu0 %v1091
        %4952 = vmatpush.msra.mxu0 %v1090
        %4953 = vmatpush.msra.mxu0 %v1089
        %4954 = vmatpush.msra.mxu0 %v1088
        %4955 = vmatpush.msra.mxu0 %v1087
        %4956 = vmatpush.msra.mxu0 %v1086
        %4957 = vmatpush.msra.mxu0 %v1085
        %4958 = vmatpush.msra.mxu0 %v1084
        %4959 = vmatmul.f32.gmra.mxu0 %v4907
        %v4960 = vpop.f32.mrf.mxu0
        %v4961 = vadd.f32 %v4932, %v4960
        %4962 = vmatmul.f32.gmra.mxu0 %v4909
        %v4963 = vpop.f32.mrf.mxu0
        %v4964 = vadd.f32 %v4935, %v4963
        %4965 = vmatmul.f32.gmra.mxu0 %v4911
        %v4966 = vpop.f32.mrf.mxu0
        %v4967 = vadd.f32 %v4938, %v4966
        %4968 = vmatmul.f32.gmra.mxu0 %v4913
        %v4969 = vpop.f32.mrf.mxu0
        %v4970 = vadd.f32 %v4941, %v4969
        %4971 = vdwg.mxu0
        %4972 = vmatpush.msra.mxu0 %v1115
        %4973 = vmatpush.msra.mxu0 %v1114
        %4974 = vmatpush.msra.mxu0 %v1113
        %4975 = vmatpush.msra.mxu0 %v1112
        %4976 = vmatpush.msra.mxu0 %v1111
        %4977 = vmatpush.msra.mxu0 %v1110
        %4978 = vmatpush.msra.mxu0 %v1109
        %4979 = vmatpush.msra.mxu0 %v1108
        %4980 = vmatpush.msra.mxu0 %v1107
        %4981 = vmatpush.msra.mxu0 %v1106
        %4982 = vmatpush.msra.mxu0 %v1105
        %4983 = vmatpush.msra.mxu0 %v1104
        %4984 = vmatpush.msra.mxu0 %v1103
        %4985 = vmatpush.msra.mxu0 %v1102
        %4986 = vmatpush.msra.mxu0 %v1101
        %4987 = vmatpush.msra.mxu0 %v1100
        %4988 = vmatmul.f32.gmra.mxu0 %v4906
        %v4989 = vpop.f32.mrf.mxu0
        %v4990 = vadd.f32 0.0, %v4989
        %4991 = vmatmul.f32.gmra.mxu0 %v4908
        %v4992 = vpop.f32.mrf.mxu0
        %v4993 = vadd.f32 0.0, %v4992
        %4994 = vmatmul.f32.gmra.mxu0 %v4910
        %v4995 = vpop.f32.mrf.mxu0
        %v4996 = vadd.f32 0.0, %v4995
        %4997 = vmatmul.f32.gmra.mxu0 %v4912
        %v4998 = vpop.f32.mrf.mxu0
        %v4999 = vadd.f32 0.0, %v4998
        %5000 = vdwg.mxu0
        %5001 = vmatpush.msra.mxu0 %v1131
        %5002 = vmatpush.msra.mxu0 %v1130
        %5003 = vmatpush.msra.mxu0 %v1129
        %5004 = vmatpush.msra.mxu0 %v1128
        %5005 = vmatpush.msra.mxu0 %v1127
        %5006 = vmatpush.msra.mxu0 %v1126
        %5007 = vmatpush.msra.mxu0 %v1125
        %5008 = vmatpush.msra.mxu0 %v1124
        %5009 = vmatpush.msra.mxu0 %v1123
        %5010 = vmatpush.msra.mxu0 %v1122
        %5011 = vmatpush.msra.mxu0 %v1121
        %5012 = vmatpush.msra.mxu0 %v1120
        %5013 = vmatpush.msra.mxu0 %v1119
        %5014 = vmatpush.msra.mxu0 %v1118
        %5015 = vmatpush.msra.mxu0 %v1117
        %5016 = vmatpush.msra.mxu0 %v1116
        %5017 = vmatmul.f32.gmra.mxu0 %v4907
        %v5018 = vpop.f32.mrf.mxu0
        %v5019 = vadd.f32 %v4990, %v5018
        %5020 = vmatmul.f32.gmra.mxu0 %v4909
        %v5021 = vpop.f32.mrf.mxu0
        %v5022 = vadd.f32 %v4993, %v5021
        %5023 = vmatmul.f32.gmra.mxu0 %v4911
        %v5024 = vpop.f32.mrf.mxu0
        %v5025 = vadd.f32 %v4996, %v5024
        %5026 = vmatmul.f32.gmra.mxu0 %v4913
        %v5027 = vpop.f32.mrf.mxu0
        %v5028 = vadd.f32 %v4999, %v5027
        %5029 = vdwg.mxu0
        %v5031 = vsel %vm1264, %v4961, 0
        %v5034 = vsel %vm1264, %v4964, 0
        %v5037 = vsel %vm1264, %v4967, 0
        %v5040 = vsel %vm1264, %v4970, 0
        %5042 = vmatpush.msra.mxu0 0.0
        %5043 = vmatpush.msra.mxu0 0.0
        %5044 = vmatpush.msra.mxu0 0.0
        %5045 = vmatpush.msra.mxu0 0.0
        %5046 = vmatpush.msra.mxu0 0.0
        %5047 = vmatpush.msra.mxu0 0.0
        %5048 = vmatpush.msra.mxu0 0.0
        %5049 = vmatpush.msra.mxu0 0.0
        %5050 = vmatpush.msra.mxu0 0.0
        %5051 = vmatpush.msra.mxu0 0.0
        %5052 = vmatpush.msra.mxu0 0.0
        %5053 = vmatpush.msra.mxu0 0.0
        %5054 = vmatpush.msra.mxu0 %v1028
        %5055 = vmatpush.msra.mxu0 %v1020
        %5056 = vmatpush.msra.mxu0 %v1012
        %5057 = vmatpush.msra.mxu0 %v1004
        %5058 = vmatmul.f32.gmra.mxu0 %v5031
        %v5059 = vpop.f32.mrf.mxu0
        %v5060 = vadd.f32 0.0, %v5059
        %5061 = vmatmul.f32.gmra.mxu0 %v5034
        %v5062 = vpop.f32.mrf.mxu0
        %v5063 = vadd.f32 0.0, %v5062
        %5064 = vmatmul.f32.gmra.mxu0 %v5037
        %v5065 = vpop.f32.mrf.mxu0
        %v5066 = vadd.f32 0.0, %v5065
        %5067 = vmatmul.f32.gmra.mxu0 %v5040
        %v5068 = vpop.f32.mrf.mxu0
        %v5069 = vadd.f32 0.0, %v5068
        %5070 = vdwg.mxu0
        %5071 = vmatpush.msra.mxu0 0.0
        %5072 = vmatpush.msra.mxu0 0.0
        %5073 = vmatpush.msra.mxu0 0.0
        %5074 = vmatpush.msra.mxu0 0.0
        %5075 = vmatpush.msra.mxu0 0.0
        %5076 = vmatpush.msra.mxu0 0.0
        %5077 = vmatpush.msra.mxu0 0.0
        %5078 = vmatpush.msra.mxu0 0.0
        %5079 = vmatpush.msra.mxu0 0.0
        %5080 = vmatpush.msra.mxu0 0.0
        %5081 = vmatpush.msra.mxu0 0.0
        %5082 = vmatpush.msra.mxu0 0.0
        %5083 = vmatpush.msra.mxu0 %v1029
        %5084 = vmatpush.msra.mxu0 %v1021
        %5085 = vmatpush.msra.mxu0 %v1013
        %5086 = vmatpush.msra.mxu0 %v1005
        %5087 = vmatmul.f32.gmra.mxu0 %v5031
        %v5088 = vpop.f32.mrf.mxu0
        %v5089 = vadd.f32 0.0, %v5088
        %5090 = vmatmul.f32.gmra.mxu0 %v5034
        %v5091 = vpop.f32.mrf.mxu0
        %v5092 = vadd.f32 0.0, %v5091
        %5093 = vmatmul.f32.gmra.mxu0 %v5037
        %v5094 = vpop.f32.mrf.mxu0
        %v5095 = vadd.f32 0.0, %v5094
        %5096 = vmatmul.f32.gmra.mxu0 %v5040
        %v5097 = vpop.f32.mrf.mxu0
        %v5098 = vadd.f32 0.0, %v5097
        %5099 = vdwg.mxu0
        %5100 = vmatpush.msra.mxu0 0.0
        %5101 = vmatpush.msra.mxu0 0.0
        %5102 = vmatpush.msra.mxu0 0.0
        %5103 = vmatpush.msra.mxu0 0.0
        %5104 = vmatpush.msra.mxu0 0.0
        %5105 = vmatpush.msra.mxu0 0.0
        %5106 = vmatpush.msra.mxu0 0.0
        %5107 = vmatpush.msra.mxu0 0.0
        %5108 = vmatpush.msra.mxu0 0.0
        %5109 = vmatpush.msra.mxu0 0.0
        %5110 = vmatpush.msra.mxu0 0.0
        %5111 = vmatpush.msra.mxu0 0.0
        %5112 = vmatpush.msra.mxu0 %v1030
        %5113 = vmatpush.msra.mxu0 %v1022
        %5114 = vmatpush.msra.mxu0 %v1014
        %5115 = vmatpush.msra.mxu0 %v1006
        %5116 = vmatmul.f32.gmra.mxu0 %v5031
        %v5117 = vpop.f32.mrf.mxu0
        %v5118 = vadd.f32 0.0, %v5117
        %5119 = vmatmul.f32.gmra.mxu0 %v5034
        %v5120 = vpop.f32.mrf.mxu0
        %v5121 = vadd.f32 0.0, %v5120
        %5122 = vmatmul.f32.gmra.mxu0 %v5037
        %v5123 = vpop.f32.mrf.mxu0
        %v5124 = vadd.f32 0.0, %v5123
        %5125 = vmatmul.f32.gmra.mxu0 %v5040
        %v5126 = vpop.f32.mrf.mxu0
        %v5127 = vadd.f32 0.0, %v5126
        %5128 = vdwg.mxu0
        %5129 = vmatpush.msra.mxu0 0.0
        %5130 = vmatpush.msra.mxu0 0.0
        %5131 = vmatpush.msra.mxu0 0.0
        %5132 = vmatpush.msra.mxu0 0.0
        %5133 = vmatpush.msra.mxu0 0.0
        %5134 = vmatpush.msra.mxu0 0.0
        %5135 = vmatpush.msra.mxu0 0.0
        %5136 = vmatpush.msra.mxu0 0.0
        %5137 = vmatpush.msra.mxu0 0.0
        %5138 = vmatpush.msra.mxu0 0.0
        %5139 = vmatpush.msra.mxu0 0.0
        %5140 = vmatpush.msra.mxu0 0.0
        %5141 = vmatpush.msra.mxu0 %v1031
        %5142 = vmatpush.msra.mxu0 %v1023
        %5143 = vmatpush.msra.mxu0 %v1015
        %5144 = vmatpush.msra.mxu0 %v1007
        %5145 = vmatmul.f32.gmra.mxu0 %v5031
        %v5146 = vpop.f32.mrf.mxu0
        %v5147 = vadd.f32 0.0, %v5146
        %5148 = vmatmul.f32.gmra.mxu0 %v5034
        %v5149 = vpop.f32.mrf.mxu0
        %v5150 = vadd.f32 0.0, %v5149
        %5151 = vmatmul.f32.gmra.mxu0 %v5037
        %v5152 = vpop.f32.mrf.mxu0
        %v5153 = vadd.f32 0.0, %v5152
        %5154 = vmatmul.f32.gmra.mxu0 %v5040
        %v5155 = vpop.f32.mrf.mxu0
        %v5156 = vadd.f32 0.0, %v5155
        %5157 = vdwg.mxu0
        %5158 = vmatpush.msra.mxu0 0.0
        %5159 = vmatpush.msra.mxu0 0.0
        %5160 = vmatpush.msra.mxu0 0.0
        %5161 = vmatpush.msra.mxu0 0.0
        %5162 = vmatpush.msra.mxu0 0.0
        %5163 = vmatpush.msra.mxu0 0.0
        %5164 = vmatpush.msra.mxu0 0.0
        %5165 = vmatpush.msra.mxu0 0.0
        %5166 = vmatpush.msra.mxu0 0.0
        %5167 = vmatpush.msra.mxu0 0.0
        %5168 = vmatpush.msra.mxu0 0.0
        %5169 = vmatpush.msra.mxu0 0.0
        %5170 = vmatpush.msra.mxu0 %v1032
        %5171 = vmatpush.msra.mxu0 %v1024
        %5172 = vmatpush.msra.mxu0 %v1016
        %5173 = vmatpush.msra.mxu0 %v1008
        %5174 = vmatmul.f32.gmra.mxu0 %v5031
        %v5175 = vpop.f32.mrf.mxu0
        %v5176 = vadd.f32 0.0, %v5175
        %5177 = vmatmul.f32.gmra.mxu0 %v5034
        %v5178 = vpop.f32.mrf.mxu0
        %v5179 = vadd.f32 0.0, %v5178
        %5180 = vmatmul.f32.gmra.mxu0 %v5037
        %v5181 = vpop.f32.mrf.mxu0
        %v5182 = vadd.f32 0.0, %v5181
        %5183 = vmatmul.f32.gmra.mxu0 %v5040
        %v5184 = vpop.f32.mrf.mxu0
        %v5185 = vadd.f32 0.0, %v5184
        %5186 = vdwg.mxu0
        %5187 = vmatpush.msra.mxu0 0.0
        %5188 = vmatpush.msra.mxu0 0.0
        %5189 = vmatpush.msra.mxu0 0.0
        %5190 = vmatpush.msra.mxu0 0.0
        %5191 = vmatpush.msra.mxu0 0.0
        %5192 = vmatpush.msra.mxu0 0.0
        %5193 = vmatpush.msra.mxu0 0.0
        %5194 = vmatpush.msra.mxu0 0.0
        %5195 = vmatpush.msra.mxu0 0.0
        %5196 = vmatpush.msra.mxu0 0.0
        %5197 = vmatpush.msra.mxu0 0.0
        %5198 = vmatpush.msra.mxu0 0.0
        %5199 = vmatpush.msra.mxu0 %v1033
        %5200 = vmatpush.msra.mxu0 %v1025
        %5201 = vmatpush.msra.mxu0 %v1017
        %5202 = vmatpush.msra.mxu0 %v1009
        %5203 = vmatmul.f32.gmra.mxu0 %v5031
        %v5204 = vpop.f32.mrf.mxu0
        %v5205 = vadd.f32 0.0, %v5204
        %5206 = vmatmul.f32.gmra.mxu0 %v5034
        %v5207 = vpop.f32.mrf.mxu0
        %v5208 = vadd.f32 0.0, %v5207
        %5209 = vmatmul.f32.gmra.mxu0 %v5037
        %v5210 = vpop.f32.mrf.mxu0
        %v5211 = vadd.f32 0.0, %v5210
        %5212 = vmatmul.f32.gmra.mxu0 %v5040
        %v5213 = vpop.f32.mrf.mxu0
        %v5214 = vadd.f32 0.0, %v5213
        %5215 = vdwg.mxu0
        %5216 = vmatpush.msra.mxu0 0.0
        %5217 = vmatpush.msra.mxu0 0.0
        %5218 = vmatpush.msra.mxu0 0.0
        %5219 = vmatpush.msra.mxu0 0.0
        %5220 = vmatpush.msra.mxu0 0.0
        %5221 = vmatpush.msra.mxu0 0.0
        %5222 = vmatpush.msra.mxu0 0.0
        %5223 = vmatpush.msra.mxu0 0.0
        %5224 = vmatpush.msra.mxu0 0.0
        %5225 = vmatpush.msra.mxu0 0.0
        %5226 = vmatpush.msra.mxu0 0.0
        %5227 = vmatpush.msra.mxu0 0.0
        %5228 = vmatpush.msra.mxu0 %v1034
        %5229 = vmatpush.msra.mxu0 %v1026
        %5230 = vmatpush.msra.mxu0 %v1018
        %5231 = vmatpush.msra.mxu0 %v1010
        %5232 = vmatmul.f32.gmra.mxu0 %v5031
        %v5233 = vpop.f32.mrf.mxu0
        %v5234 = vadd.f32 0.0, %v5233
        %5235 = vmatmul.f32.gmra.mxu0 %v5034
        %v5236 = vpop.f32.mrf.mxu0
        %v5237 = vadd.f32 0.0, %v5236
        %5238 = vmatmul.f32.gmra.mxu0 %v5037
        %v5239 = vpop.f32.mrf.mxu0
        %v5240 = vadd.f32 0.0, %v5239
        %5241 = vmatmul.f32.gmra.mxu0 %v5040
        %v5242 = vpop.f32.mrf.mxu0
        %v5243 = vadd.f32 0.0, %v5242
        %5244 = vdwg.mxu0
        %5245 = vmatpush.msra.mxu0 0.0
        %5246 = vmatpush.msra.mxu0 0.0
        %5247 = vmatpush.msra.mxu0 0.0
        %5248 = vmatpush.msra.mxu0 0.0
        %5249 = vmatpush.msra.mxu0 0.0
        %5250 = vmatpush.msra.mxu0 0.0
        %5251 = vmatpush.msra.mxu0 0.0
        %5252 = vmatpush.msra.mxu0 0.0
        %5253 = vmatpush.msra.mxu0 0.0
        %5254 = vmatpush.msra.mxu0 0.0
        %5255 = vmatpush.msra.mxu0 0.0
        %5256 = vmatpush.msra.mxu0 0.0
        %5257 = vmatpush.msra.mxu0 %v1035
        %5258 = vmatpush.msra.mxu0 %v1027
        %5259 = vmatpush.msra.mxu0 %v1019
        %5260 = vmatpush.msra.mxu0 %v1011
        %5261 = vmatmul.f32.gmra.mxu0 %v5031
        %v5262 = vpop.f32.mrf.mxu0
        %v5263 = vadd.f32 0.0, %v5262
        %5264 = vmatmul.f32.gmra.mxu0 %v5034
        %v5265 = vpop.f32.mrf.mxu0
        %v5266 = vadd.f32 0.0, %v5265
        %5267 = vmatmul.f32.gmra.mxu0 %v5037
        %v5268 = vpop.f32.mrf.mxu0
        %v5269 = vadd.f32 0.0, %v5268
        %5270 = vmatmul.f32.gmra.mxu0 %v5040
        %v5271 = vpop.f32.mrf.mxu0
        %v5272 = vadd.f32 0.0, %v5271
        %5273 = vdwg.mxu0
        %v5275 = vsel %vm1264, %v5019, 0
        %v5278 = vsel %vm1264, %v5022, 0
        %v5281 = vsel %vm1264, %v5025, 0
        %v5284 = vsel %vm1264, %v5028, 0
        %5286 = vmatpush.msra.mxu0 0.0
        %5287 = vmatpush.msra.mxu0 0.0
        %5288 = vmatpush.msra.mxu0 0.0
        %5289 = vmatpush.msra.mxu0 0.0
        %5290 = vmatpush.msra.mxu0 0.0
        %5291 = vmatpush.msra.mxu0 0.0
        %5292 = vmatpush.msra.mxu0 0.0
        %5293 = vmatpush.msra.mxu0 0.0
        %5294 = vmatpush.msra.mxu0 0.0
        %5295 = vmatpush.msra.mxu0 0.0
        %5296 = vmatpush.msra.mxu0 0.0
        %5297 = vmatpush.msra.mxu0 0.0
        %5298 = vmatpush.msra.mxu0 %v1028
        %5299 = vmatpush.msra.mxu0 %v1020
        %5300 = vmatpush.msra.mxu0 %v1012
        %5301 = vmatpush.msra.mxu0 %v1004
        %5302 = vmatmul.f32.gmra.mxu0 %v5275
        %v5303 = vpop.f32.mrf.mxu0
        %v5304 = vadd.f32 0.0, %v5303
        %5305 = vmatmul.f32.gmra.mxu0 %v5278
        %v5306 = vpop.f32.mrf.mxu0
        %v5307 = vadd.f32 0.0, %v5306
        %5308 = vmatmul.f32.gmra.mxu0 %v5281
        %v5309 = vpop.f32.mrf.mxu0
        %v5310 = vadd.f32 0.0, %v5309
        %5311 = vmatmul.f32.gmra.mxu0 %v5284
        %v5312 = vpop.f32.mrf.mxu0
        %v5313 = vadd.f32 0.0, %v5312
        %5314 = vdwg.mxu0
        %5315 = vmatpush.msra.mxu0 0.0
        %5316 = vmatpush.msra.mxu0 0.0
        %5317 = vmatpush.msra.mxu0 0.0
        %5318 = vmatpush.msra.mxu0 0.0
        %5319 = vmatpush.msra.mxu0 0.0
        %5320 = vmatpush.msra.mxu0 0.0
        %5321 = vmatpush.msra.mxu0 0.0
        %5322 = vmatpush.msra.mxu0 0.0
        %5323 = vmatpush.msra.mxu0 0.0
        %5324 = vmatpush.msra.mxu0 0.0
        %5325 = vmatpush.msra.mxu0 0.0
        %5326 = vmatpush.msra.mxu0 0.0
        %5327 = vmatpush.msra.mxu0 %v1029
        %5328 = vmatpush.msra.mxu0 %v1021
        %5329 = vmatpush.msra.mxu0 %v1013
        %5330 = vmatpush.msra.mxu0 %v1005
        %5331 = vmatmul.f32.gmra.mxu0 %v5275
        %v5332 = vpop.f32.mrf.mxu0
        %v5333 = vadd.f32 0.0, %v5332
        %5334 = vmatmul.f32.gmra.mxu0 %v5278
        %v5335 = vpop.f32.mrf.mxu0
        %v5336 = vadd.f32 0.0, %v5335
        %5337 = vmatmul.f32.gmra.mxu0 %v5281
        %v5338 = vpop.f32.mrf.mxu0
        %v5339 = vadd.f32 0.0, %v5338
        %5340 = vmatmul.f32.gmra.mxu0 %v5284
        %v5341 = vpop.f32.mrf.mxu0
        %v5342 = vadd.f32 0.0, %v5341
        %5343 = vdwg.mxu0
        %5344 = vmatpush.msra.mxu0 0.0
        %5345 = vmatpush.msra.mxu0 0.0
        %5346 = vmatpush.msra.mxu0 0.0
        %5347 = vmatpush.msra.mxu0 0.0
        %5348 = vmatpush.msra.mxu0 0.0
        %5349 = vmatpush.msra.mxu0 0.0
        %5350 = vmatpush.msra.mxu0 0.0
        %5351 = vmatpush.msra.mxu0 0.0
        %5352 = vmatpush.msra.mxu0 0.0
        %5353 = vmatpush.msra.mxu0 0.0
        %5354 = vmatpush.msra.mxu0 0.0
        %5355 = vmatpush.msra.mxu0 0.0
        %5356 = vmatpush.msra.mxu0 %v1030
        %5357 = vmatpush.msra.mxu0 %v1022
        %5358 = vmatpush.msra.mxu0 %v1014
        %5359 = vmatpush.msra.mxu0 %v1006
        %5360 = vmatmul.f32.gmra.mxu0 %v5275
        %v5361 = vpop.f32.mrf.mxu0
        %v5362 = vadd.f32 0.0, %v5361
        %5363 = vmatmul.f32.gmra.mxu0 %v5278
        %v5364 = vpop.f32.mrf.mxu0
        %v5365 = vadd.f32 0.0, %v5364
        %5366 = vmatmul.f32.gmra.mxu0 %v5281
        %v5367 = vpop.f32.mrf.mxu0
        %v5368 = vadd.f32 0.0, %v5367
        %5369 = vmatmul.f32.gmra.mxu0 %v5284
        %v5370 = vpop.f32.mrf.mxu0
        %v5371 = vadd.f32 0.0, %v5370
        %5372 = vdwg.mxu0
        %5373 = vmatpush.msra.mxu0 0.0
        %5374 = vmatpush.msra.mxu0 0.0
        %5375 = vmatpush.msra.mxu0 0.0
        %5376 = vmatpush.msra.mxu0 0.0
        %5377 = vmatpush.msra.mxu0 0.0
        %5378 = vmatpush.msra.mxu0 0.0
        %5379 = vmatpush.msra.mxu0 0.0
        %5380 = vmatpush.msra.mxu0 0.0
        %5381 = vmatpush.msra.mxu0 0.0
        %5382 = vmatpush.msra.mxu0 0.0
        %5383 = vmatpush.msra.mxu0 0.0
        %5384 = vmatpush.msra.mxu0 0.0
        %5385 = vmatpush.msra.mxu0 %v1031
        %5386 = vmatpush.msra.mxu0 %v1023
        %5387 = vmatpush.msra.mxu0 %v1015
        %5388 = vmatpush.msra.mxu0 %v1007
        %5389 = vmatmul.f32.gmra.mxu0 %v5275
        %v5390 = vpop.f32.mrf.mxu0
        %v5391 = vadd.f32 0.0, %v5390
        %5392 = vmatmul.f32.gmra.mxu0 %v5278
        %v5393 = vpop.f32.mrf.mxu0
        %v5394 = vadd.f32 0.0, %v5393
        %5395 = vmatmul.f32.gmra.mxu0 %v5281
        %v5396 = vpop.f32.mrf.mxu0
        %v5397 = vadd.f32 0.0, %v5396
        %5398 = vmatmul.f32.gmra.mxu0 %v5284
        %v5399 = vpop.f32.mrf.mxu0
        %v5400 = vadd.f32 0.0, %v5399
        %5401 = vdwg.mxu0
        %5402 = vmatpush.msra.mxu0 0.0
        %5403 = vmatpush.msra.mxu0 0.0
        %5404 = vmatpush.msra.mxu0 0.0
        %5405 = vmatpush.msra.mxu0 0.0
        %5406 = vmatpush.msra.mxu0 0.0
        %5407 = vmatpush.msra.mxu0 0.0
        %5408 = vmatpush.msra.mxu0 0.0
        %5409 = vmatpush.msra.mxu0 0.0
        %5410 = vmatpush.msra.mxu0 0.0
        %5411 = vmatpush.msra.mxu0 0.0
        %5412 = vmatpush.msra.mxu0 0.0
        %5413 = vmatpush.msra.mxu0 0.0
        %5414 = vmatpush.msra.mxu0 %v1032
        %5415 = vmatpush.msra.mxu0 %v1024
        %5416 = vmatpush.msra.mxu0 %v1016
        %5417 = vmatpush.msra.mxu0 %v1008
        %5418 = vmatmul.f32.gmra.mxu0 %v5275
        %v5419 = vpop.f32.mrf.mxu0
        %v5420 = vadd.f32 0.0, %v5419
        %5421 = vmatmul.f32.gmra.mxu0 %v5278
        %v5422 = vpop.f32.mrf.mxu0
        %v5423 = vadd.f32 0.0, %v5422
        %5424 = vmatmul.f32.gmra.mxu0 %v5281
        %v5425 = vpop.f32.mrf.mxu0
        %v5426 = vadd.f32 0.0, %v5425
        %5427 = vmatmul.f32.gmra.mxu0 %v5284
        %v5428 = vpop.f32.mrf.mxu0
        %v5429 = vadd.f32 0.0, %v5428
        %5430 = vdwg.mxu0
        %5431 = vmatpush.msra.mxu0 0.0
        %5432 = vmatpush.msra.mxu0 0.0
        %5433 = vmatpush.msra.mxu0 0.0
        %5434 = vmatpush.msra.mxu0 0.0
        %5435 = vmatpush.msra.mxu0 0.0
        %5436 = vmatpush.msra.mxu0 0.0
        %5437 = vmatpush.msra.mxu0 0.0
        %5438 = vmatpush.msra.mxu0 0.0
        %5439 = vmatpush.msra.mxu0 0.0
        %5440 = vmatpush.msra.mxu0 0.0
        %5441 = vmatpush.msra.mxu0 0.0
        %5442 = vmatpush.msra.mxu0 0.0
        %5443 = vmatpush.msra.mxu0 %v1033
        %5444 = vmatpush.msra.mxu0 %v1025
        %5445 = vmatpush.msra.mxu0 %v1017
        %5446 = vmatpush.msra.mxu0 %v1009
        %5447 = vmatmul.f32.gmra.mxu0 %v5275
        %v5448 = vpop.f32.mrf.mxu0
        %v5449 = vadd.f32 0.0, %v5448
        %5450 = vmatmul.f32.gmra.mxu0 %v5278
        %v5451 = vpop.f32.mrf.mxu0
        %v5452 = vadd.f32 0.0, %v5451
        %5453 = vmatmul.f32.gmra.mxu0 %v5281
        %v5454 = vpop.f32.mrf.mxu0
        %v5455 = vadd.f32 0.0, %v5454
        %5456 = vmatmul.f32.gmra.mxu0 %v5284
        %v5457 = vpop.f32.mrf.mxu0
        %v5458 = vadd.f32 0.0, %v5457
        %5459 = vdwg.mxu0
        %5460 = vmatpush.msra.mxu0 0.0
        %5461 = vmatpush.msra.mxu0 0.0
        %5462 = vmatpush.msra.mxu0 0.0
        %5463 = vmatpush.msra.mxu0 0.0
        %5464 = vmatpush.msra.mxu0 0.0
        %5465 = vmatpush.msra.mxu0 0.0
        %5466 = vmatpush.msra.mxu0 0.0
        %5467 = vmatpush.msra.mxu0 0.0
        %5468 = vmatpush.msra.mxu0 0.0
        %5469 = vmatpush.msra.mxu0 0.0
        %5470 = vmatpush.msra.mxu0 0.0
        %5471 = vmatpush.msra.mxu0 0.0
        %5472 = vmatpush.msra.mxu0 %v1034
        %5473 = vmatpush.msra.mxu0 %v1026
        %5474 = vmatpush.msra.mxu0 %v1018
        %5475 = vmatpush.msra.mxu0 %v1010
        %5476 = vmatmul.f32.gmra.mxu0 %v5275
        %v5477 = vpop.f32.mrf.mxu0
        %v5478 = vadd.f32 0.0, %v5477
        %5479 = vmatmul.f32.gmra.mxu0 %v5278
        %v5480 = vpop.f32.mrf.mxu0
        %v5481 = vadd.f32 0.0, %v5480
        %5482 = vmatmul.f32.gmra.mxu0 %v5281
        %v5483 = vpop.f32.mrf.mxu0
        %v5484 = vadd.f32 0.0, %v5483
        %5485 = vmatmul.f32.gmra.mxu0 %v5284
        %v5486 = vpop.f32.mrf.mxu0
        %v5487 = vadd.f32 0.0, %v5486
        %5488 = vdwg.mxu0
        %5489 = vmatpush.msra.mxu0 0.0
        %5490 = vmatpush.msra.mxu0 0.0
        %5491 = vmatpush.msra.mxu0 0.0
        %5492 = vmatpush.msra.mxu0 0.0
        %5493 = vmatpush.msra.mxu0 0.0
        %5494 = vmatpush.msra.mxu0 0.0
        %5495 = vmatpush.msra.mxu0 0.0
        %5496 = vmatpush.msra.mxu0 0.0
        %5497 = vmatpush.msra.mxu0 0.0
        %5498 = vmatpush.msra.mxu0 0.0
        %5499 = vmatpush.msra.mxu0 0.0
        %5500 = vmatpush.msra.mxu0 0.0
        %5501 = vmatpush.msra.mxu0 %v1035
        %5502 = vmatpush.msra.mxu0 %v1027
        %5503 = vmatpush.msra.mxu0 %v1019
        %5504 = vmatpush.msra.mxu0 %v1011
        %5505 = vmatmul.f32.gmra.mxu0 %v5275
        %v5506 = vpop.f32.mrf.mxu0
        %v5507 = vadd.f32 0.0, %v5506
        %5508 = vmatmul.f32.gmra.mxu0 %v5278
        %v5509 = vpop.f32.mrf.mxu0
        %v5510 = vadd.f32 0.0, %v5509
        %5511 = vmatmul.f32.gmra.mxu0 %v5281
        %v5512 = vpop.f32.mrf.mxu0
        %v5513 = vadd.f32 0.0, %v5512
        %5514 = vmatmul.f32.gmra.mxu0 %v5284
        %v5515 = vpop.f32.mrf.mxu0
        %v5516 = vadd.f32 0.0, %v5515
        %5517 = vdwg.mxu0
        %s5518 = scalar_lea.vmem %s10, 512
        %v5519 = vld [vmem:[%s5518] sm:$0xff]
        %v5520 = vld [vmem:[%s5518 + $0x8] sm:$0xff]
        %v5521 = vld [vmem:[%s5518 + $0x10] sm:$0xff]
        %v5522 = vld [vmem:[%s5518 + $0x18] sm:$0xff]
        %v5523 = vld [vmem:[%s5518 + $0x20] sm:$0xff]
        %v5524 = vld [vmem:[%s5518 + $0x28] sm:$0xff]
        %v5525 = vld [vmem:[%s5518 + $0x30] sm:$0xff]
        %v5526 = vld [vmem:[%s5518 + $0x38] sm:$0xff]
        %v5527 = vld [vmem:[%s5518 + $0x40] sm:$0xff]
        %v5528 = vld [vmem:[%s5518 + $0x48] sm:$0xff]
        %v5529 = vld [vmem:[%s5518 + $0x50] sm:$0xff]
        %v5530 = vld [vmem:[%s5518 + $0x58] sm:$0xff]
        %v5531 = vld [vmem:[%s5518 + $0x60] sm:$0xff]
        %v5532 = vld [vmem:[%s5518 + $0x68] sm:$0xff]
        %v5533 = vld [vmem:[%s5518 + $0x70] sm:$0xff]
        %v5534 = vld [vmem:[%s5518 + $0x78] sm:$0xff]
        %v5535 = vld [vmem:[%s5518 + $0x80] sm:$0xff]
        %v5536 = vld [vmem:[%s5518 + $0x88] sm:$0xff]
        %v5537 = vld [vmem:[%s5518 + $0x90] sm:$0xff]
        %v5538 = vld [vmem:[%s5518 + $0x98] sm:$0xff]
        %v5539 = vld [vmem:[%s5518 + $0xa0] sm:$0xff]
        %v5540 = vld [vmem:[%s5518 + $0xa8] sm:$0xff]
        %v5541 = vld [vmem:[%s5518 + $0xb0] sm:$0xff]
        %v5542 = vld [vmem:[%s5518 + $0xb8] sm:$0xff]
        %v5543 = vld [vmem:[%s5518 + $0xc0] sm:$0xff]
        %v5544 = vld [vmem:[%s5518 + $0xc8] sm:$0xff]
        %v5545 = vld [vmem:[%s5518 + $0xd0] sm:$0xff]
        %v5546 = vld [vmem:[%s5518 + $0xd8] sm:$0xff]
        %v5547 = vld [vmem:[%s5518 + $0xe0] sm:$0xff]
        %v5548 = vld [vmem:[%s5518 + $0xe8] sm:$0xff]
        %v5549 = vld [vmem:[%s5518 + $0xf0] sm:$0xff]
        %v5550 = vld [vmem:[%s5518 + $0xf8] sm:$0xff]
        %s5551 = scalar_lea.vmem [#allocation3], 512
        %v5552 = vld [vmem:[%s5551] sm:$0xff]
        %v5553 = vld [vmem:[%s5551 + $0x8] sm:$0xff]
        %v5554 = vld [vmem:[%s5551 + $0x10] sm:$0xff]
        %v5555 = vld [vmem:[%s5551 + $0x18] sm:$0xff]
        %v5556 = vld [vmem:[%s5551 + $0x20] sm:$0xff]
        %v5557 = vld [vmem:[%s5551 + $0x28] sm:$0xff]
        %v5558 = vld [vmem:[%s5551 + $0x30] sm:$0xff]
        %v5559 = vld [vmem:[%s5551 + $0x38] sm:$0xff]
        %v5560 = vld [vmem:[%s5551 + $0x40] sm:$0xff]
        %v5561 = vld [vmem:[%s5551 + $0x48] sm:$0xff]
        %v5562 = vld [vmem:[%s5551 + $0x50] sm:$0xff]
        %v5563 = vld [vmem:[%s5551 + $0x58] sm:$0xff]
        %v5564 = vld [vmem:[%s5551 + $0x60] sm:$0xff]
        %v5565 = vld [vmem:[%s5551 + $0x68] sm:$0xff]
        %v5566 = vld [vmem:[%s5551 + $0x70] sm:$0xff]
        %v5567 = vld [vmem:[%s5551 + $0x78] sm:$0xff]
        %v5568 = vld [vmem:[%s5551 + $0x80] sm:$0xff]
        %v5569 = vld [vmem:[%s5551 + $0x88] sm:$0xff]
        %v5570 = vld [vmem:[%s5551 + $0x90] sm:$0xff]
        %v5571 = vld [vmem:[%s5551 + $0x98] sm:$0xff]
        %v5572 = vld [vmem:[%s5551 + $0xa0] sm:$0xff]
        %v5573 = vld [vmem:[%s5551 + $0xa8] sm:$0xff]
        %v5574 = vld [vmem:[%s5551 + $0xb0] sm:$0xff]
        %v5575 = vld [vmem:[%s5551 + $0xb8] sm:$0xff]
        %v5576 = vld [vmem:[%s5551 + $0xc0] sm:$0xff]
        %v5577 = vld [vmem:[%s5551 + $0xc8] sm:$0xff]
        %v5578 = vld [vmem:[%s5551 + $0xd0] sm:$0xff]
        %v5579 = vld [vmem:[%s5551 + $0xd8] sm:$0xff]
        %v5580 = vld [vmem:[%s5551 + $0xe0] sm:$0xff]
        %v5581 = vld [vmem:[%s5551 + $0xe8] sm:$0xff]
        %v5582 = vld [vmem:[%s5551 + $0xf0] sm:$0xff]
        %v5583 = vld [vmem:[%s5551 + $0xf8] sm:$0xff]
        %v5584 = vmul.f32 %v5060, %v5519
        %v5585 = vmul.f32 %v5089, %v5520
        %v5586 = vmul.f32 %v5118, %v5521
        %v5587 = vmul.f32 %v5147, %v5522
        %v5588 = vmul.f32 %v5176, %v5523
        %v5589 = vmul.f32 %v5205, %v5524
        %v5590 = vmul.f32 %v5234, %v5525
        %v5591 = vmul.f32 %v5263, %v5526
        %v5592 = vmul.f32 %v5063, %v5527
        %v5593 = vmul.f32 %v5092, %v5528
        %v5594 = vmul.f32 %v5121, %v5529
        %v5595 = vmul.f32 %v5150, %v5530
        %v5596 = vmul.f32 %v5179, %v5531
        %v5597 = vmul.f32 %v5208, %v5532
        %v5598 = vmul.f32 %v5237, %v5533
        %v5599 = vmul.f32 %v5266, %v5534
        %v5600 = vmul.f32 %v5066, %v5535
        %v5601 = vmul.f32 %v5095, %v5536
        %v5602 = vmul.f32 %v5124, %v5537
        %v5603 = vmul.f32 %v5153, %v5538
        %v5604 = vmul.f32 %v5182, %v5539
        %v5605 = vmul.f32 %v5211, %v5540
        %v5606 = vmul.f32 %v5240, %v5541
        %v5607 = vmul.f32 %v5269, %v5542
        %v5608 = vmul.f32 %v5069, %v5543
        %v5609 = vmul.f32 %v5098, %v5544
        %v5610 = vmul.f32 %v5127, %v5545
        %v5611 = vmul.f32 %v5156, %v5546
        %v5612 = vmul.f32 %v5185, %v5547
        %v5613 = vmul.f32 %v5214, %v5548
        %v5614 = vmul.f32 %v5243, %v5549
        %v5615 = vmul.f32 %v5272, %v5550
        %v5616 = vmul.f32 %v5304, %v5552
        %v5617 = vmul.f32 %v5333, %v5553
        %v5618 = vmul.f32 %v5362, %v5554
        %v5619 = vmul.f32 %v5391, %v5555
        %v5620 = vmul.f32 %v5420, %v5556
        %v5621 = vmul.f32 %v5449, %v5557
        %v5622 = vmul.f32 %v5478, %v5558
        %v5623 = vmul.f32 %v5507, %v5559
        %v5624 = vmul.f32 %v5307, %v5560
        %v5625 = vmul.f32 %v5336, %v5561
        %v5626 = vmul.f32 %v5365, %v5562
        %v5627 = vmul.f32 %v5394, %v5563
        %v5628 = vmul.f32 %v5423, %v5564
        %v5629 = vmul.f32 %v5452, %v5565
        %v5630 = vmul.f32 %v5481, %v5566
        %v5631 = vmul.f32 %v5510, %v5567
        %v5632 = vmul.f32 %v5310, %v5568
        %v5633 = vmul.f32 %v5339, %v5569
        %v5634 = vmul.f32 %v5368, %v5570
        %v5635 = vmul.f32 %v5397, %v5571
        %v5636 = vmul.f32 %v5426, %v5572
        %v5637 = vmul.f32 %v5455, %v5573
        %v5638 = vmul.f32 %v5484, %v5574
        %v5639 = vmul.f32 %v5513, %v5575
        %v5640 = vmul.f32 %v5313, %v5576
        %v5641 = vmul.f32 %v5342, %v5577
        %v5642 = vmul.f32 %v5371, %v5578
        %v5643 = vmul.f32 %v5400, %v5579
        %v5644 = vmul.f32 %v5429, %v5580
        %v5645 = vmul.f32 %v5458, %v5581
        %v5646 = vmul.f32 %v5487, %v5582
        %v5647 = vmul.f32 %v5516, %v5583
        %v5648 = vsub.f32 %v5584, %v5616
        %v5649 = vsub.f32 %v5585, %v5617
        %v5650 = vsub.f32 %v5586, %v5618
        %v5651 = vsub.f32 %v5587, %v5619
        %v5652 = vsub.f32 %v5588, %v5620
        %v5653 = vsub.f32 %v5589, %v5621
        %v5654 = vsub.f32 %v5590, %v5622
        %v5655 = vsub.f32 %v5591, %v5623
        %v5656 = vsub.f32 %v5592, %v5624
        %v5657 = vsub.f32 %v5593, %v5625
        %v5658 = vsub.f32 %v5594, %v5626
        %v5659 = vsub.f32 %v5595, %v5627
        %v5660 = vsub.f32 %v5596, %v5628
        %v5661 = vsub.f32 %v5597, %v5629
        %v5662 = vsub.f32 %v5598, %v5630
        %v5663 = vsub.f32 %v5599, %v5631
        %v5664 = vsub.f32 %v5600, %v5632
        %v5665 = vsub.f32 %v5601, %v5633
        %v5666 = vsub.f32 %v5602, %v5634
        %v5667 = vsub.f32 %v5603, %v5635
        %v5668 = vsub.f32 %v5604, %v5636
        %v5669 = vsub.f32 %v5605, %v5637
        %v5670 = vsub.f32 %v5606, %v5638
        %v5671 = vsub.f32 %v5607, %v5639
        %v5672 = vsub.f32 %v5608, %v5640
        %v5673 = vsub.f32 %v5609, %v5641
        %v5674 = vsub.f32 %v5610, %v5642
        %v5675 = vsub.f32 %v5611, %v5643
        %v5676 = vsub.f32 %v5612, %v5644
        %v5677 = vsub.f32 %v5613, %v5645
        %v5678 = vsub.f32 %v5614, %v5646
        %v5679 = vsub.f32 %v5615, %v5647
        %v5680 = vmul.f32 %v5060, %v5552
        %v5681 = vmul.f32 %v5089, %v5553
        %v5682 = vmul.f32 %v5118, %v5554
        %v5683 = vmul.f32 %v5147, %v5555
        %v5684 = vmul.f32 %v5176, %v5556
        %v5685 = vmul.f32 %v5205, %v5557
        %v5686 = vmul.f32 %v5234, %v5558
        %v5687 = vmul.f32 %v5263, %v5559
        %v5688 = vmul.f32 %v5063, %v5560
        %v5689 = vmul.f32 %v5092, %v5561
        %v5690 = vmul.f32 %v5121, %v5562
        %v5691 = vmul.f32 %v5150, %v5563
        %v5692 = vmul.f32 %v5179, %v5564
        %v5693 = vmul.f32 %v5208, %v5565
        %v5694 = vmul.f32 %v5237, %v5566
        %v5695 = vmul.f32 %v5266, %v5567
        %v5696 = vmul.f32 %v5066, %v5568
        %v5697 = vmul.f32 %v5095, %v5569
        %v5698 = vmul.f32 %v5124, %v5570
        %v5699 = vmul.f32 %v5153, %v5571
        %v5700 = vmul.f32 %v5182, %v5572
        %v5701 = vmul.f32 %v5211, %v5573
        %v5702 = vmul.f32 %v5240, %v5574
        %v5703 = vmul.f32 %v5269, %v5575
        %v5704 = vmul.f32 %v5069, %v5576
        %v5705 = vmul.f32 %v5098, %v5577
        %v5706 = vmul.f32 %v5127, %v5578
        %v5707 = vmul.f32 %v5156, %v5579
        %v5708 = vmul.f32 %v5185, %v5580
        %v5709 = vmul.f32 %v5214, %v5581
        %v5710 = vmul.f32 %v5243, %v5582
        %v5711 = vmul.f32 %v5272, %v5583
        %v5712 = vmul.f32 %v5304, %v5519
        %v5713 = vmul.f32 %v5333, %v5520
        %v5714 = vmul.f32 %v5362, %v5521
        %v5715 = vmul.f32 %v5391, %v5522
        %v5716 = vmul.f32 %v5420, %v5523
        %v5717 = vmul.f32 %v5449, %v5524
        %v5718 = vmul.f32 %v5478, %v5525
        %v5719 = vmul.f32 %v5507, %v5526
        %v5720 = vmul.f32 %v5307, %v5527
        %v5721 = vmul.f32 %v5336, %v5528
        %v5722 = vmul.f32 %v5365, %v5529
        %v5723 = vmul.f32 %v5394, %v5530
        %v5724 = vmul.f32 %v5423, %v5531
        %v5725 = vmul.f32 %v5452, %v5532
        %v5726 = vmul.f32 %v5481, %v5533
        %v5727 = vmul.f32 %v5510, %v5534
        %v5728 = vmul.f32 %v5310, %v5535
        %v5729 = vmul.f32 %v5339, %v5536
        %v5730 = vmul.f32 %v5368, %v5537
        %v5731 = vmul.f32 %v5397, %v5538
        %v5732 = vmul.f32 %v5426, %v5539
        %v5733 = vmul.f32 %v5455, %v5540
        %v5734 = vmul.f32 %v5484, %v5541
        %v5735 = vmul.f32 %v5513, %v5542
        %v5736 = vmul.f32 %v5313, %v5543
        %v5737 = vmul.f32 %v5342, %v5544
        %v5738 = vmul.f32 %v5371, %v5545
        %v5739 = vmul.f32 %v5400, %v5546
        %v5740 = vmul.f32 %v5429, %v5547
        %v5741 = vmul.f32 %v5458, %v5548
        %v5742 = vmul.f32 %v5487, %v5549
        %v5743 = vmul.f32 %v5516, %v5550
        %v5744 = vadd.f32 %v5680, %v5712
        %v5745 = vadd.f32 %v5681, %v5713
        %v5746 = vadd.f32 %v5682, %v5714
        %v5747 = vadd.f32 %v5683, %v5715
        %v5748 = vadd.f32 %v5684, %v5716
        %v5749 = vadd.f32 %v5685, %v5717
        %v5750 = vadd.f32 %v5686, %v5718
        %v5751 = vadd.f32 %v5687, %v5719
        %v5752 = vadd.f32 %v5688, %v5720
        %v5753 = vadd.f32 %v5689, %v5721
        %v5754 = vadd.f32 %v5690, %v5722
        %v5755 = vadd.f32 %v5691, %v5723
        %v5756 = vadd.f32 %v5692, %v5724
        %v5757 = vadd.f32 %v5693, %v5725
        %v5758 = vadd.f32 %v5694, %v5726
        %v5759 = vadd.f32 %v5695, %v5727
        %v5760 = vadd.f32 %v5696, %v5728
        %v5761 = vadd.f32 %v5697, %v5729
        %v5762 = vadd.f32 %v5698, %v5730
        %v5763 = vadd.f32 %v5699, %v5731
        %v5764 = vadd.f32 %v5700, %v5732
        %v5765 = vadd.f32 %v5701, %v5733
        %v5766 = vadd.f32 %v5702, %v5734
        %v5767 = vadd.f32 %v5703, %v5735
        %v5768 = vadd.f32 %v5704, %v5736
        %v5769 = vadd.f32 %v5705, %v5737
        %v5770 = vadd.f32 %v5706, %v5738
        %v5771 = vadd.f32 %v5707, %v5739
        %v5772 = vadd.f32 %v5708, %v5740
        %v5773 = vadd.f32 %v5709, %v5741
        %v5774 = vadd.f32 %v5710, %v5742
        %v5775 = vadd.f32 %v5711, %v5743
        %5776 = vmatpush.msra.mxu0 0.0
        %5777 = vmatpush.msra.mxu0 0.0
        %5778 = vmatpush.msra.mxu0 0.0
        %5779 = vmatpush.msra.mxu0 0.0
        %5780 = vmatpush.msra.mxu0 0.0
        %5781 = vmatpush.msra.mxu0 0.0
        %5782 = vmatpush.msra.mxu0 0.0
        %5783 = vmatpush.msra.mxu0 0.0
        %5784 = vmatpush.msra.mxu0 0.0
        %5785 = vmatpush.msra.mxu0 0.0
        %5786 = vmatpush.msra.mxu0 0.0
        %5787 = vmatpush.msra.mxu0 0.0
        %5788 = vmatpush.msra.mxu0 %v5672
        %5789 = vmatpush.msra.mxu0 %v5664
        %5790 = vmatpush.msra.mxu0 %v5656
        %5791 = vmatpush.msra.mxu0 %v5648
        %5792 = vmatmul.f32.gmra.mxu0 %v2010
        %v5793 = vpop.f32.mrf.mxu0
        %v5794 = vadd.f32 0.0, %v5793
        %5795 = vdwg.mxu0
        %5796 = vmatpush.msra.mxu0 0.0
        %5797 = vmatpush.msra.mxu0 0.0
        %5798 = vmatpush.msra.mxu0 0.0
        %5799 = vmatpush.msra.mxu0 0.0
        %5800 = vmatpush.msra.mxu0 0.0
        %5801 = vmatpush.msra.mxu0 0.0
        %5802 = vmatpush.msra.mxu0 0.0
        %5803 = vmatpush.msra.mxu0 0.0
        %5804 = vmatpush.msra.mxu0 0.0
        %5805 = vmatpush.msra.mxu0 0.0
        %5806 = vmatpush.msra.mxu0 0.0
        %5807 = vmatpush.msra.mxu0 0.0
        %5808 = vmatpush.msra.mxu0 %v5673
        %5809 = vmatpush.msra.mxu0 %v5665
        %5810 = vmatpush.msra.mxu0 %v5657
        %5811 = vmatpush.msra.mxu0 %v5649
        %5812 = vmatmul.f32.gmra.mxu0 %v2010
        %v5813 = vpop.f32.mrf.mxu0
        %v5814 = vadd.f32 0.0, %v5813
        %5815 = vdwg.mxu0
        %5816 = vmatpush.msra.mxu0 0.0
        %5817 = vmatpush.msra.mxu0 0.0
        %5818 = vmatpush.msra.mxu0 0.0
        %5819 = vmatpush.msra.mxu0 0.0
        %5820 = vmatpush.msra.mxu0 0.0
        %5821 = vmatpush.msra.mxu0 0.0
        %5822 = vmatpush.msra.mxu0 0.0
        %5823 = vmatpush.msra.mxu0 0.0
        %5824 = vmatpush.msra.mxu0 0.0
        %5825 = vmatpush.msra.mxu0 0.0
        %5826 = vmatpush.msra.mxu0 0.0
        %5827 = vmatpush.msra.mxu0 0.0
        %5828 = vmatpush.msra.mxu0 %v5674
        %5829 = vmatpush.msra.mxu0 %v5666
        %5830 = vmatpush.msra.mxu0 %v5658
        %5831 = vmatpush.msra.mxu0 %v5650
        %5832 = vmatmul.f32.gmra.mxu0 %v2010
        %v5833 = vpop.f32.mrf.mxu0
        %v5834 = vadd.f32 0.0, %v5833
        %5835 = vdwg.mxu0
        %5836 = vmatpush.msra.mxu0 0.0
        %5837 = vmatpush.msra.mxu0 0.0
        %5838 = vmatpush.msra.mxu0 0.0
        %5839 = vmatpush.msra.mxu0 0.0
        %5840 = vmatpush.msra.mxu0 0.0
        %5841 = vmatpush.msra.mxu0 0.0
        %5842 = vmatpush.msra.mxu0 0.0
        %5843 = vmatpush.msra.mxu0 0.0
        %5844 = vmatpush.msra.mxu0 0.0
        %5845 = vmatpush.msra.mxu0 0.0
        %5846 = vmatpush.msra.mxu0 0.0
        %5847 = vmatpush.msra.mxu0 0.0
        %5848 = vmatpush.msra.mxu0 %v5675
        %5849 = vmatpush.msra.mxu0 %v5667
        %5850 = vmatpush.msra.mxu0 %v5659
        %5851 = vmatpush.msra.mxu0 %v5651
        %5852 = vmatmul.f32.gmra.mxu0 %v2010
        %v5853 = vpop.f32.mrf.mxu0
        %v5854 = vadd.f32 0.0, %v5853
        %5855 = vdwg.mxu0
        %5856 = vmatpush.msra.mxu0 0.0
        %5857 = vmatpush.msra.mxu0 0.0
        %5858 = vmatpush.msra.mxu0 0.0
        %5859 = vmatpush.msra.mxu0 0.0
        %5860 = vmatpush.msra.mxu0 0.0
        %5861 = vmatpush.msra.mxu0 0.0
        %5862 = vmatpush.msra.mxu0 0.0
        %5863 = vmatpush.msra.mxu0 0.0
        %5864 = vmatpush.msra.mxu0 0.0
        %5865 = vmatpush.msra.mxu0 0.0
        %5866 = vmatpush.msra.mxu0 0.0
        %5867 = vmatpush.msra.mxu0 0.0
        %5868 = vmatpush.msra.mxu0 %v5676
        %5869 = vmatpush.msra.mxu0 %v5668
        %5870 = vmatpush.msra.mxu0 %v5660
        %5871 = vmatpush.msra.mxu0 %v5652
        %5872 = vmatmul.f32.gmra.mxu0 %v2010
        %v5873 = vpop.f32.mrf.mxu0
        %v5874 = vadd.f32 0.0, %v5873
        %5875 = vdwg.mxu0
        %5876 = vmatpush.msra.mxu0 0.0
        %5877 = vmatpush.msra.mxu0 0.0
        %5878 = vmatpush.msra.mxu0 0.0
        %5879 = vmatpush.msra.mxu0 0.0
        %5880 = vmatpush.msra.mxu0 0.0
        %5881 = vmatpush.msra.mxu0 0.0
        %5882 = vmatpush.msra.mxu0 0.0
        %5883 = vmatpush.msra.mxu0 0.0
        %5884 = vmatpush.msra.mxu0 0.0
        %5885 = vmatpush.msra.mxu0 0.0
        %5886 = vmatpush.msra.mxu0 0.0
        %5887 = vmatpush.msra.mxu0 0.0
        %5888 = vmatpush.msra.mxu0 %v5677
        %5889 = vmatpush.msra.mxu0 %v5669
        %5890 = vmatpush.msra.mxu0 %v5661
        %5891 = vmatpush.msra.mxu0 %v5653
        %5892 = vmatmul.f32.gmra.mxu0 %v2010
        %v5893 = vpop.f32.mrf.mxu0
        %v5894 = vadd.f32 0.0, %v5893
        %5895 = vdwg.mxu0
        %5896 = vmatpush.msra.mxu0 0.0
        %5897 = vmatpush.msra.mxu0 0.0
        %5898 = vmatpush.msra.mxu0 0.0
        %5899 = vmatpush.msra.mxu0 0.0
        %5900 = vmatpush.msra.mxu0 0.0
        %5901 = vmatpush.msra.mxu0 0.0
        %5902 = vmatpush.msra.mxu0 0.0
        %5903 = vmatpush.msra.mxu0 0.0
        %5904 = vmatpush.msra.mxu0 0.0
        %5905 = vmatpush.msra.mxu0 0.0
        %5906 = vmatpush.msra.mxu0 0.0
        %5907 = vmatpush.msra.mxu0 0.0
        %5908 = vmatpush.msra.mxu0 %v5678
        %5909 = vmatpush.msra.mxu0 %v5670
        %5910 = vmatpush.msra.mxu0 %v5662
        %5911 = vmatpush.msra.mxu0 %v5654
        %5912 = vmatmul.f32.gmra.mxu0 %v2010
        %v5913 = vpop.f32.mrf.mxu0
        %v5914 = vadd.f32 0.0, %v5913
        %5915 = vdwg.mxu0
        %5916 = vmatpush.msra.mxu0 0.0
        %5917 = vmatpush.msra.mxu0 0.0
        %5918 = vmatpush.msra.mxu0 0.0
        %5919 = vmatpush.msra.mxu0 0.0
        %5920 = vmatpush.msra.mxu0 0.0
        %5921 = vmatpush.msra.mxu0 0.0
        %5922 = vmatpush.msra.mxu0 0.0
        %5923 = vmatpush.msra.mxu0 0.0
        %5924 = vmatpush.msra.mxu0 0.0
        %5925 = vmatpush.msra.mxu0 0.0
        %5926 = vmatpush.msra.mxu0 0.0
        %5927 = vmatpush.msra.mxu0 0.0
        %5928 = vmatpush.msra.mxu0 %v5679
        %5929 = vmatpush.msra.mxu0 %v5671
        %5930 = vmatpush.msra.mxu0 %v5663
        %5931 = vmatpush.msra.mxu0 %v5655
        %5932 = vmatmul.f32.gmra.mxu0 %v2010
        %v5933 = vpop.f32.mrf.mxu0
        %v5934 = vadd.f32 0.0, %v5933
        %5935 = vdwg.mxu0
        %5936 = vmatpush.msra.mxu0 0.0
        %5937 = vmatpush.msra.mxu0 0.0
        %5938 = vmatpush.msra.mxu0 0.0
        %5939 = vmatpush.msra.mxu0 0.0
        %5940 = vmatpush.msra.mxu0 0.0
        %5941 = vmatpush.msra.mxu0 0.0
        %5942 = vmatpush.msra.mxu0 0.0
        %5943 = vmatpush.msra.mxu0 0.0
        %5944 = vmatpush.msra.mxu0 0.0
        %5945 = vmatpush.msra.mxu0 0.0
        %5946 = vmatpush.msra.mxu0 0.0
        %5947 = vmatpush.msra.mxu0 0.0
        %5948 = vmatpush.msra.mxu0 %v5768
        %5949 = vmatpush.msra.mxu0 %v5760
        %5950 = vmatpush.msra.mxu0 %v5752
        %5951 = vmatpush.msra.mxu0 %v5744
        %5952 = vmatmul.f32.gmra.mxu0 %v2010
        %v5953 = vpop.f32.mrf.mxu0
        %v5954 = vadd.f32 0.0, %v5953
        %5955 = vdwg.mxu0
        %5956 = vmatpush.msra.mxu0 0.0
        %5957 = vmatpush.msra.mxu0 0.0
        %5958 = vmatpush.msra.mxu0 0.0
        %5959 = vmatpush.msra.mxu0 0.0
        %5960 = vmatpush.msra.mxu0 0.0
        %5961 = vmatpush.msra.mxu0 0.0
        %5962 = vmatpush.msra.mxu0 0.0
        %5963 = vmatpush.msra.mxu0 0.0
        %5964 = vmatpush.msra.mxu0 0.0
        %5965 = vmatpush.msra.mxu0 0.0
        %5966 = vmatpush.msra.mxu0 0.0
        %5967 = vmatpush.msra.mxu0 0.0
        %5968 = vmatpush.msra.mxu0 %v5769
        %5969 = vmatpush.msra.mxu0 %v5761
        %5970 = vmatpush.msra.mxu0 %v5753
        %5971 = vmatpush.msra.mxu0 %v5745
        %5972 = vmatmul.f32.gmra.mxu0 %v2010
        %v5973 = vpop.f32.mrf.mxu0
        %v5974 = vadd.f32 0.0, %v5973
        %5975 = vdwg.mxu0
        %5976 = vmatpush.msra.mxu0 0.0
        %5977 = vmatpush.msra.mxu0 0.0
        %5978 = vmatpush.msra.mxu0 0.0
        %5979 = vmatpush.msra.mxu0 0.0
        %5980 = vmatpush.msra.mxu0 0.0
        %5981 = vmatpush.msra.mxu0 0.0
        %5982 = vmatpush.msra.mxu0 0.0
        %5983 = vmatpush.msra.mxu0 0.0
        %5984 = vmatpush.msra.mxu0 0.0
        %5985 = vmatpush.msra.mxu0 0.0
        %5986 = vmatpush.msra.mxu0 0.0
        %5987 = vmatpush.msra.mxu0 0.0
        %5988 = vmatpush.msra.mxu0 %v5770
        %5989 = vmatpush.msra.mxu0 %v5762
        %5990 = vmatpush.msra.mxu0 %v5754
        %5991 = vmatpush.msra.mxu0 %v5746
        %5992 = vmatmul.f32.gmra.mxu0 %v2010
        %v5993 = vpop.f32.mrf.mxu0
        %v5994 = vadd.f32 0.0, %v5993
        %5995 = vdwg.mxu0
        %5996 = vmatpush.msra.mxu0 0.0
        %5997 = vmatpush.msra.mxu0 0.0
        %5998 = vmatpush.msra.mxu0 0.0
        %5999 = vmatpush.msra.mxu0 0.0
        %6000 = vmatpush.msra.mxu0 0.0
        %6001 = vmatpush.msra.mxu0 0.0
        %6002 = vmatpush.msra.mxu0 0.0
        %6003 = vmatpush.msra.mxu0 0.0
        %6004 = vmatpush.msra.mxu0 0.0
        %6005 = vmatpush.msra.mxu0 0.0
        %6006 = vmatpush.msra.mxu0 0.0
        %6007 = vmatpush.msra.mxu0 0.0
        %6008 = vmatpush.msra.mxu0 %v5771
        %6009 = vmatpush.msra.mxu0 %v5763
        %6010 = vmatpush.msra.mxu0 %v5755
        %6011 = vmatpush.msra.mxu0 %v5747
        %6012 = vmatmul.f32.gmra.mxu0 %v2010
        %v6013 = vpop.f32.mrf.mxu0
        %v6014 = vadd.f32 0.0, %v6013
        %6015 = vdwg.mxu0
        %6016 = vmatpush.msra.mxu0 0.0
        %6017 = vmatpush.msra.mxu0 0.0
        %6018 = vmatpush.msra.mxu0 0.0
        %6019 = vmatpush.msra.mxu0 0.0
        %6020 = vmatpush.msra.mxu0 0.0
        %6021 = vmatpush.msra.mxu0 0.0
        %6022 = vmatpush.msra.mxu0 0.0
        %6023 = vmatpush.msra.mxu0 0.0
        %6024 = vmatpush.msra.mxu0 0.0
        %6025 = vmatpush.msra.mxu0 0.0
        %6026 = vmatpush.msra.mxu0 0.0
        %6027 = vmatpush.msra.mxu0 0.0
        %6028 = vmatpush.msra.mxu0 %v5772
        %6029 = vmatpush.msra.mxu0 %v5764
        %6030 = vmatpush.msra.mxu0 %v5756
        %6031 = vmatpush.msra.mxu0 %v5748
        %6032 = vmatmul.f32.gmra.mxu0 %v2010
        %v6033 = vpop.f32.mrf.mxu0
        %v6034 = vadd.f32 0.0, %v6033
        %6035 = vdwg.mxu0
        %6036 = vmatpush.msra.mxu0 0.0
        %6037 = vmatpush.msra.mxu0 0.0
        %6038 = vmatpush.msra.mxu0 0.0
        %6039 = vmatpush.msra.mxu0 0.0
        %6040 = vmatpush.msra.mxu0 0.0
        %6041 = vmatpush.msra.mxu0 0.0
        %6042 = vmatpush.msra.mxu0 0.0
        %6043 = vmatpush.msra.mxu0 0.0
        %6044 = vmatpush.msra.mxu0 0.0
        %6045 = vmatpush.msra.mxu0 0.0
        %6046 = vmatpush.msra.mxu0 0.0
        %6047 = vmatpush.msra.mxu0 0.0
        %6048 = vmatpush.msra.mxu0 %v5773
        %6049 = vmatpush.msra.mxu0 %v5765
        %6050 = vmatpush.msra.mxu0 %v5757
        %6051 = vmatpush.msra.mxu0 %v5749
        %6052 = vmatmul.f32.gmra.mxu0 %v2010
        %v6053 = vpop.f32.mrf.mxu0
        %v6054 = vadd.f32 0.0, %v6053
        %6055 = vdwg.mxu0
        %6056 = vmatpush.msra.mxu0 0.0
        %6057 = vmatpush.msra.mxu0 0.0
        %6058 = vmatpush.msra.mxu0 0.0
        %6059 = vmatpush.msra.mxu0 0.0
        %6060 = vmatpush.msra.mxu0 0.0
        %6061 = vmatpush.msra.mxu0 0.0
        %6062 = vmatpush.msra.mxu0 0.0
        %6063 = vmatpush.msra.mxu0 0.0
        %6064 = vmatpush.msra.mxu0 0.0
        %6065 = vmatpush.msra.mxu0 0.0
        %6066 = vmatpush.msra.mxu0 0.0
        %6067 = vmatpush.msra.mxu0 0.0
        %6068 = vmatpush.msra.mxu0 %v5774
        %6069 = vmatpush.msra.mxu0 %v5766
        %6070 = vmatpush.msra.mxu0 %v5758
        %6071 = vmatpush.msra.mxu0 %v5750
        %6072 = vmatmul.f32.gmra.mxu0 %v2010
        %v6073 = vpop.f32.mrf.mxu0
        %v6074 = vadd.f32 0.0, %v6073
        %6075 = vdwg.mxu0
        %6076 = vmatpush.msra.mxu0 0.0
        %6077 = vmatpush.msra.mxu0 0.0
        %6078 = vmatpush.msra.mxu0 0.0
        %6079 = vmatpush.msra.mxu0 0.0
        %6080 = vmatpush.msra.mxu0 0.0
        %6081 = vmatpush.msra.mxu0 0.0
        %6082 = vmatpush.msra.mxu0 0.0
        %6083 = vmatpush.msra.mxu0 0.0
        %6084 = vmatpush.msra.mxu0 0.0
        %6085 = vmatpush.msra.mxu0 0.0
        %6086 = vmatpush.msra.mxu0 0.0
        %6087 = vmatpush.msra.mxu0 0.0
        %6088 = vmatpush.msra.mxu0 %v5775
        %6089 = vmatpush.msra.mxu0 %v5767
        %6090 = vmatpush.msra.mxu0 %v5759
        %6091 = vmatpush.msra.mxu0 %v5751
        %6092 = vmatmul.f32.gmra.mxu0 %v2010
        %v6093 = vpop.f32.mrf.mxu0
        %v6094 = vadd.f32 0.0, %v6093
        %6095 = vdwg.mxu0
        %v6096 = vperm.slane %v5794, 0
        %v6097 = vperm.slane %v5814, 0
        %v6098 = vperm.slane %v5834, 0
        %v6099 = vperm.slane %v5854, 0
        %v6100 = vperm.slane %v5874, 0
        %v6101 = vperm.slane %v5894, 0
        %v6102 = vperm.slane %v5914, 0
        %v6103 = vperm.slane %v5934, 0
        %v6104 = vmul.f32 %v1036, %v6096
        %v6105 = vmul.f32 %v1037, %v6097
        %v6106 = vmul.f32 %v1038, %v6098
        %v6107 = vmul.f32 %v1039, %v6099
        %v6108 = vmul.f32 %v1040, %v6100
        %v6109 = vmul.f32 %v1041, %v6101
        %v6110 = vmul.f32 %v1042, %v6102
        %v6111 = vmul.f32 %v1043, %v6103
        %v6112 = vmul.f32 %v1044, %v6096
        %v6113 = vmul.f32 %v1045, %v6097
        %v6114 = vmul.f32 %v1046, %v6098
        %v6115 = vmul.f32 %v1047, %v6099
        %v6116 = vmul.f32 %v1048, %v6100
        %v6117 = vmul.f32 %v1049, %v6101
        %v6118 = vmul.f32 %v1050, %v6102
        %v6119 = vmul.f32 %v1051, %v6103
        %v6120 = vmul.f32 %v1052, %v6096
        %v6121 = vmul.f32 %v1053, %v6097
        %v6122 = vmul.f32 %v1054, %v6098
        %v6123 = vmul.f32 %v1055, %v6099
        %v6124 = vmul.f32 %v1056, %v6100
        %v6125 = vmul.f32 %v1057, %v6101
        %v6126 = vmul.f32 %v1058, %v6102
        %v6127 = vmul.f32 %v1059, %v6103
        %v6128 = vmul.f32 %v1060, %v6096
        %v6129 = vmul.f32 %v1061, %v6097
        %v6130 = vmul.f32 %v1062, %v6098
        %v6131 = vmul.f32 %v1063, %v6099
        %v6132 = vmul.f32 %v1064, %v6100
        %v6133 = vmul.f32 %v1065, %v6101
        %v6134 = vmul.f32 %v1066, %v6102
        %v6135 = vmul.f32 %v1067, %v6103
        %6136 = vmatpush.xpose.msra.mxu0 0.0
        %6137 = vmatpush.xpose.msra.mxu0 0.0
        %6138 = vmatpush.xpose.msra.mxu0 0.0
        %6139 = vmatpush.xpose.msra.mxu0 0.0
        %6140 = vmatpush.xpose.msra.mxu0 0.0
        %6141 = vmatpush.xpose.msra.mxu0 0.0
        %6142 = vmatpush.xpose.msra.mxu0 0.0
        %6143 = vmatpush.xpose.msra.mxu0 0.0
        %6144 = vmatpush.xpose.msra.mxu0 0.0
        %6145 = vmatpush.xpose.msra.mxu0 0.0
        %6146 = vmatpush.xpose.msra.mxu0 0.0
        %6147 = vmatpush.xpose.msra.mxu0 0.0
        %6148 = vmatpush.xpose.msra.mxu0 %v1028
        %6149 = vmatpush.xpose.msra.mxu0 %v1020
        %6150 = vmatpush.xpose.msra.mxu0 %v1012
        %6151 = vmatpush.xpose.msra.mxu0 %v1004
        %6152 = vmatmul.f32.gmra.mxu0 %v6104
        %v6153 = vpop.f32.mrf.mxu0
        %v6154 = vadd.f32 0.0, %v6153
        %6155 = vmatmul.f32.gmra.mxu0 %v6112
        %v6156 = vpop.f32.mrf.mxu0
        %v6157 = vadd.f32 0.0, %v6156
        %6158 = vmatmul.f32.gmra.mxu0 %v6120
        %v6159 = vpop.f32.mrf.mxu0
        %v6160 = vadd.f32 0.0, %v6159
        %6161 = vmatmul.f32.gmra.mxu0 %v6128
        %v6162 = vpop.f32.mrf.mxu0
        %v6163 = vadd.f32 0.0, %v6162
        %6164 = vdwg.mxu0
        %6165 = vmatpush.xpose.msra.mxu0 0.0
        %6166 = vmatpush.xpose.msra.mxu0 0.0
        %6167 = vmatpush.xpose.msra.mxu0 0.0
        %6168 = vmatpush.xpose.msra.mxu0 0.0
        %6169 = vmatpush.xpose.msra.mxu0 0.0
        %6170 = vmatpush.xpose.msra.mxu0 0.0
        %6171 = vmatpush.xpose.msra.mxu0 0.0
        %6172 = vmatpush.xpose.msra.mxu0 0.0
        %6173 = vmatpush.xpose.msra.mxu0 0.0
        %6174 = vmatpush.xpose.msra.mxu0 0.0
        %6175 = vmatpush.xpose.msra.mxu0 0.0
        %6176 = vmatpush.xpose.msra.mxu0 0.0
        %6177 = vmatpush.xpose.msra.mxu0 %v1029
        %6178 = vmatpush.xpose.msra.mxu0 %v1021
        %6179 = vmatpush.xpose.msra.mxu0 %v1013
        %6180 = vmatpush.xpose.msra.mxu0 %v1005
        %6181 = vmatmul.f32.gmra.mxu0 %v6105
        %v6182 = vpop.f32.mrf.mxu0
        %v6183 = vadd.f32 %v6154, %v6182
        %6184 = vmatmul.f32.gmra.mxu0 %v6113
        %v6185 = vpop.f32.mrf.mxu0
        %v6186 = vadd.f32 %v6157, %v6185
        %6187 = vmatmul.f32.gmra.mxu0 %v6121
        %v6188 = vpop.f32.mrf.mxu0
        %v6189 = vadd.f32 %v6160, %v6188
        %6190 = vmatmul.f32.gmra.mxu0 %v6129
        %v6191 = vpop.f32.mrf.mxu0
        %v6192 = vadd.f32 %v6163, %v6191
        %6193 = vdwg.mxu0
        %6194 = vmatpush.xpose.msra.mxu0 0.0
        %6195 = vmatpush.xpose.msra.mxu0 0.0
        %6196 = vmatpush.xpose.msra.mxu0 0.0
        %6197 = vmatpush.xpose.msra.mxu0 0.0
        %6198 = vmatpush.xpose.msra.mxu0 0.0
        %6199 = vmatpush.xpose.msra.mxu0 0.0
        %6200 = vmatpush.xpose.msra.mxu0 0.0
        %6201 = vmatpush.xpose.msra.mxu0 0.0
        %6202 = vmatpush.xpose.msra.mxu0 0.0
        %6203 = vmatpush.xpose.msra.mxu0 0.0
        %6204 = vmatpush.xpose.msra.mxu0 0.0
        %6205 = vmatpush.xpose.msra.mxu0 0.0
        %6206 = vmatpush.xpose.msra.mxu0 %v1030
        %6207 = vmatpush.xpose.msra.mxu0 %v1022
        %6208 = vmatpush.xpose.msra.mxu0 %v1014
        %6209 = vmatpush.xpose.msra.mxu0 %v1006
        %6210 = vmatmul.f32.gmra.mxu0 %v6106
        %v6211 = vpop.f32.mrf.mxu0
        %v6212 = vadd.f32 %v6183, %v6211
        %6213 = vmatmul.f32.gmra.mxu0 %v6114
        %v6214 = vpop.f32.mrf.mxu0
        %v6215 = vadd.f32 %v6186, %v6214
        %6216 = vmatmul.f32.gmra.mxu0 %v6122
        %v6217 = vpop.f32.mrf.mxu0
        %v6218 = vadd.f32 %v6189, %v6217
        %6219 = vmatmul.f32.gmra.mxu0 %v6130
        %v6220 = vpop.f32.mrf.mxu0
        %v6221 = vadd.f32 %v6192, %v6220
        %6222 = vdwg.mxu0
        %6223 = vmatpush.xpose.msra.mxu0 0.0
        %6224 = vmatpush.xpose.msra.mxu0 0.0
        %6225 = vmatpush.xpose.msra.mxu0 0.0
        %6226 = vmatpush.xpose.msra.mxu0 0.0
        %6227 = vmatpush.xpose.msra.mxu0 0.0
        %6228 = vmatpush.xpose.msra.mxu0 0.0
        %6229 = vmatpush.xpose.msra.mxu0 0.0
        %6230 = vmatpush.xpose.msra.mxu0 0.0
        %6231 = vmatpush.xpose.msra.mxu0 0.0
        %6232 = vmatpush.xpose.msra.mxu0 0.0
        %6233 = vmatpush.xpose.msra.mxu0 0.0
        %6234 = vmatpush.xpose.msra.mxu0 0.0
        %6235 = vmatpush.xpose.msra.mxu0 %v1031
        %6236 = vmatpush.xpose.msra.mxu0 %v1023
        %6237 = vmatpush.xpose.msra.mxu0 %v1015
        %6238 = vmatpush.xpose.msra.mxu0 %v1007
        %6239 = vmatmul.f32.gmra.mxu0 %v6107
        %v6240 = vpop.f32.mrf.mxu0
        %v6241 = vadd.f32 %v6212, %v6240
        %6242 = vmatmul.f32.gmra.mxu0 %v6115
        %v6243 = vpop.f32.mrf.mxu0
        %v6244 = vadd.f32 %v6215, %v6243
        %6245 = vmatmul.f32.gmra.mxu0 %v6123
        %v6246 = vpop.f32.mrf.mxu0
        %v6247 = vadd.f32 %v6218, %v6246
        %6248 = vmatmul.f32.gmra.mxu0 %v6131
        %v6249 = vpop.f32.mrf.mxu0
        %v6250 = vadd.f32 %v6221, %v6249
        %6251 = vdwg.mxu0
        %6252 = vmatpush.xpose.msra.mxu0 0.0
        %6253 = vmatpush.xpose.msra.mxu0 0.0
        %6254 = vmatpush.xpose.msra.mxu0 0.0
        %6255 = vmatpush.xpose.msra.mxu0 0.0
        %6256 = vmatpush.xpose.msra.mxu0 0.0
        %6257 = vmatpush.xpose.msra.mxu0 0.0
        %6258 = vmatpush.xpose.msra.mxu0 0.0
        %6259 = vmatpush.xpose.msra.mxu0 0.0
        %6260 = vmatpush.xpose.msra.mxu0 0.0
        %6261 = vmatpush.xpose.msra.mxu0 0.0
        %6262 = vmatpush.xpose.msra.mxu0 0.0
        %6263 = vmatpush.xpose.msra.mxu0 0.0
        %6264 = vmatpush.xpose.msra.mxu0 %v1032
        %6265 = vmatpush.xpose.msra.mxu0 %v1024
        %6266 = vmatpush.xpose.msra.mxu0 %v1016
        %6267 = vmatpush.xpose.msra.mxu0 %v1008
        %6268 = vmatmul.f32.gmra.mxu0 %v6108
        %v6269 = vpop.f32.mrf.mxu0
        %v6270 = vadd.f32 %v6241, %v6269
        %6271 = vmatmul.f32.gmra.mxu0 %v6116
        %v6272 = vpop.f32.mrf.mxu0
        %v6273 = vadd.f32 %v6244, %v6272
        %6274 = vmatmul.f32.gmra.mxu0 %v6124
        %v6275 = vpop.f32.mrf.mxu0
        %v6276 = vadd.f32 %v6247, %v6275
        %6277 = vmatmul.f32.gmra.mxu0 %v6132
        %v6278 = vpop.f32.mrf.mxu0
        %v6279 = vadd.f32 %v6250, %v6278
        %6280 = vdwg.mxu0
        %6281 = vmatpush.xpose.msra.mxu0 0.0
        %6282 = vmatpush.xpose.msra.mxu0 0.0
        %6283 = vmatpush.xpose.msra.mxu0 0.0
        %6284 = vmatpush.xpose.msra.mxu0 0.0
        %6285 = vmatpush.xpose.msra.mxu0 0.0
        %6286 = vmatpush.xpose.msra.mxu0 0.0
        %6287 = vmatpush.xpose.msra.mxu0 0.0
        %6288 = vmatpush.xpose.msra.mxu0 0.0
        %6289 = vmatpush.xpose.msra.mxu0 0.0
        %6290 = vmatpush.xpose.msra.mxu0 0.0
        %6291 = vmatpush.xpose.msra.mxu0 0.0
        %6292 = vmatpush.xpose.msra.mxu0 0.0
        %6293 = vmatpush.xpose.msra.mxu0 %v1033
        %6294 = vmatpush.xpose.msra.mxu0 %v1025
        %6295 = vmatpush.xpose.msra.mxu0 %v1017
        %6296 = vmatpush.xpose.msra.mxu0 %v1009
        %6297 = vmatmul.f32.gmra.mxu0 %v6109
        %v6298 = vpop.f32.mrf.mxu0
        %v6299 = vadd.f32 %v6270, %v6298
        %6300 = vmatmul.f32.gmra.mxu0 %v6117
        %v6301 = vpop.f32.mrf.mxu0
        %v6302 = vadd.f32 %v6273, %v6301
        %6303 = vmatmul.f32.gmra.mxu0 %v6125
        %v6304 = vpop.f32.mrf.mxu0
        %v6305 = vadd.f32 %v6276, %v6304
        %6306 = vmatmul.f32.gmra.mxu0 %v6133
        %v6307 = vpop.f32.mrf.mxu0
        %v6308 = vadd.f32 %v6279, %v6307
        %6309 = vdwg.mxu0
        %6310 = vmatpush.xpose.msra.mxu0 0.0
        %6311 = vmatpush.xpose.msra.mxu0 0.0
        %6312 = vmatpush.xpose.msra.mxu0 0.0
        %6313 = vmatpush.xpose.msra.mxu0 0.0
        %6314 = vmatpush.xpose.msra.mxu0 0.0
        %6315 = vmatpush.xpose.msra.mxu0 0.0
        %6316 = vmatpush.xpose.msra.mxu0 0.0
        %6317 = vmatpush.xpose.msra.mxu0 0.0
        %6318 = vmatpush.xpose.msra.mxu0 0.0
        %6319 = vmatpush.xpose.msra.mxu0 0.0
        %6320 = vmatpush.xpose.msra.mxu0 0.0
        %6321 = vmatpush.xpose.msra.mxu0 0.0
        %6322 = vmatpush.xpose.msra.mxu0 %v1034
        %6323 = vmatpush.xpose.msra.mxu0 %v1026
        %6324 = vmatpush.xpose.msra.mxu0 %v1018
        %6325 = vmatpush.xpose.msra.mxu0 %v1010
        %6326 = vmatmul.f32.gmra.mxu0 %v6110
        %v6327 = vpop.f32.mrf.mxu0
        %v6328 = vadd.f32 %v6299, %v6327
        %6329 = vmatmul.f32.gmra.mxu0 %v6118
        %v6330 = vpop.f32.mrf.mxu0
        %v6331 = vadd.f32 %v6302, %v6330
        %6332 = vmatmul.f32.gmra.mxu0 %v6126
        %v6333 = vpop.f32.mrf.mxu0
        %v6334 = vadd.f32 %v6305, %v6333
        %6335 = vmatmul.f32.gmra.mxu0 %v6134
        %v6336 = vpop.f32.mrf.mxu0
        %v6337 = vadd.f32 %v6308, %v6336
        %6338 = vdwg.mxu0
        %6339 = vmatpush.xpose.msra.mxu0 0.0
        %6340 = vmatpush.xpose.msra.mxu0 0.0
        %6341 = vmatpush.xpose.msra.mxu0 0.0
        %6342 = vmatpush.xpose.msra.mxu0 0.0
        %6343 = vmatpush.xpose.msra.mxu0 0.0
        %6344 = vmatpush.xpose.msra.mxu0 0.0
        %6345 = vmatpush.xpose.msra.mxu0 0.0
        %6346 = vmatpush.xpose.msra.mxu0 0.0
        %6347 = vmatpush.xpose.msra.mxu0 0.0
        %6348 = vmatpush.xpose.msra.mxu0 0.0
        %6349 = vmatpush.xpose.msra.mxu0 0.0
        %6350 = vmatpush.xpose.msra.mxu0 0.0
        %6351 = vmatpush.xpose.msra.mxu0 %v1035
        %6352 = vmatpush.xpose.msra.mxu0 %v1027
        %6353 = vmatpush.xpose.msra.mxu0 %v1019
        %6354 = vmatpush.xpose.msra.mxu0 %v1011
        %6355 = vmatmul.f32.gmra.mxu0 %v6111
        %v6356 = vpop.f32.mrf.mxu0
        %v6357 = vadd.f32 %v6328, %v6356
        %6358 = vmatmul.f32.gmra.mxu0 %v6119
        %v6359 = vpop.f32.mrf.mxu0
        %v6360 = vadd.f32 %v6331, %v6359
        %6361 = vmatmul.f32.gmra.mxu0 %v6127
        %v6362 = vpop.f32.mrf.mxu0
        %v6363 = vadd.f32 %v6334, %v6362
        %6364 = vmatmul.f32.gmra.mxu0 %v6135
        %v6365 = vpop.f32.mrf.mxu0
        %v6366 = vadd.f32 %v6337, %v6365
        %6367 = vdwg.mxu0
        %v6368 = vperm.slane %v5954, 0
        %v6369 = vperm.slane %v5974, 0
        %v6370 = vperm.slane %v5994, 0
        %v6371 = vperm.slane %v6014, 0
        %v6372 = vperm.slane %v6034, 0
        %v6373 = vperm.slane %v6054, 0
        %v6374 = vperm.slane %v6074, 0
        %v6375 = vperm.slane %v6094, 0
        %v6376 = vmul.f32 %v1036, %v6368
        %v6377 = vmul.f32 %v1037, %v6369
        %v6378 = vmul.f32 %v1038, %v6370
        %v6379 = vmul.f32 %v1039, %v6371
        %v6380 = vmul.f32 %v1040, %v6372
        %v6381 = vmul.f32 %v1041, %v6373
        %v6382 = vmul.f32 %v1042, %v6374
        %v6383 = vmul.f32 %v1043, %v6375
        %v6384 = vmul.f32 %v1044, %v6368
        %v6385 = vmul.f32 %v1045, %v6369
        %v6386 = vmul.f32 %v1046, %v6370
        %v6387 = vmul.f32 %v1047, %v6371
        %v6388 = vmul.f32 %v1048, %v6372
        %v6389 = vmul.f32 %v1049, %v6373
        %v6390 = vmul.f32 %v1050, %v6374
        %v6391 = vmul.f32 %v1051, %v6375
        %v6392 = vmul.f32 %v1052, %v6368
        %v6393 = vmul.f32 %v1053, %v6369
        %v6394 = vmul.f32 %v1054, %v6370
        %v6395 = vmul.f32 %v1055, %v6371
        %v6396 = vmul.f32 %v1056, %v6372
        %v6397 = vmul.f32 %v1057, %v6373
        %v6398 = vmul.f32 %v1058, %v6374
        %v6399 = vmul.f32 %v1059, %v6375
        %v6400 = vmul.f32 %v1060, %v6368
        %v6401 = vmul.f32 %v1061, %v6369
        %v6402 = vmul.f32 %v1062, %v6370
        %v6403 = vmul.f32 %v1063, %v6371
        %v6404 = vmul.f32 %v1064, %v6372
        %v6405 = vmul.f32 %v1065, %v6373
        %v6406 = vmul.f32 %v1066, %v6374
        %v6407 = vmul.f32 %v1067, %v6375
        %6408 = vmatpush.xpose.msra.mxu0 0.0
        %6409 = vmatpush.xpose.msra.mxu0 0.0
        %6410 = vmatpush.xpose.msra.mxu0 0.0
        %6411 = vmatpush.xpose.msra.mxu0 0.0
        %6412 = vmatpush.xpose.msra.mxu0 0.0
        %6413 = vmatpush.xpose.msra.mxu0 0.0
        %6414 = vmatpush.xpose.msra.mxu0 0.0
        %6415 = vmatpush.xpose.msra.mxu0 0.0
        %6416 = vmatpush.xpose.msra.mxu0 0.0
        %6417 = vmatpush.xpose.msra.mxu0 0.0
        %6418 = vmatpush.xpose.msra.mxu0 0.0
        %6419 = vmatpush.xpose.msra.mxu0 0.0
        %6420 = vmatpush.xpose.msra.mxu0 %v1028
        %6421 = vmatpush.xpose.msra.mxu0 %v1020
        %6422 = vmatpush.xpose.msra.mxu0 %v1012
        %6423 = vmatpush.xpose.msra.mxu0 %v1004
        %6424 = vmatmul.f32.gmra.mxu0 %v6376
        %v6425 = vpop.f32.mrf.mxu0
        %v6426 = vadd.f32 0.0, %v6425
        %6427 = vmatmul.f32.gmra.mxu0 %v6384
        %v6428 = vpop.f32.mrf.mxu0
        %v6429 = vadd.f32 0.0, %v6428
        %6430 = vmatmul.f32.gmra.mxu0 %v6392
        %v6431 = vpop.f32.mrf.mxu0
        %v6432 = vadd.f32 0.0, %v6431
        %6433 = vmatmul.f32.gmra.mxu0 %v6400
        %v6434 = vpop.f32.mrf.mxu0
        %v6435 = vadd.f32 0.0, %v6434
        %6436 = vdwg.mxu0
        %6437 = vmatpush.xpose.msra.mxu0 0.0
        %6438 = vmatpush.xpose.msra.mxu0 0.0
        %6439 = vmatpush.xpose.msra.mxu0 0.0
        %6440 = vmatpush.xpose.msra.mxu0 0.0
        %6441 = vmatpush.xpose.msra.mxu0 0.0
        %6442 = vmatpush.xpose.msra.mxu0 0.0
        %6443 = vmatpush.xpose.msra.mxu0 0.0
        %6444 = vmatpush.xpose.msra.mxu0 0.0
        %6445 = vmatpush.xpose.msra.mxu0 0.0
        %6446 = vmatpush.xpose.msra.mxu0 0.0
        %6447 = vmatpush.xpose.msra.mxu0 0.0
        %6448 = vmatpush.xpose.msra.mxu0 0.0
        %6449 = vmatpush.xpose.msra.mxu0 %v1029
        %6450 = vmatpush.xpose.msra.mxu0 %v1021
        %6451 = vmatpush.xpose.msra.mxu0 %v1013
        %6452 = vmatpush.xpose.msra.mxu0 %v1005
        %6453 = vmatmul.f32.gmra.mxu0 %v6377
        %v6454 = vpop.f32.mrf.mxu0
        %v6455 = vadd.f32 %v6426, %v6454
        %6456 = vmatmul.f32.gmra.mxu0 %v6385
        %v6457 = vpop.f32.mrf.mxu0
        %v6458 = vadd.f32 %v6429, %v6457
        %6459 = vmatmul.f32.gmra.mxu0 %v6393
        %v6460 = vpop.f32.mrf.mxu0
        %v6461 = vadd.f32 %v6432, %v6460
        %6462 = vmatmul.f32.gmra.mxu0 %v6401
        %v6463 = vpop.f32.mrf.mxu0
        %v6464 = vadd.f32 %v6435, %v6463
        %6465 = vdwg.mxu0
        %6466 = vmatpush.xpose.msra.mxu0 0.0
        %6467 = vmatpush.xpose.msra.mxu0 0.0
        %6468 = vmatpush.xpose.msra.mxu0 0.0
        %6469 = vmatpush.xpose.msra.mxu0 0.0
        %6470 = vmatpush.xpose.msra.mxu0 0.0
        %6471 = vmatpush.xpose.msra.mxu0 0.0
        %6472 = vmatpush.xpose.msra.mxu0 0.0
        %6473 = vmatpush.xpose.msra.mxu0 0.0
        %6474 = vmatpush.xpose.msra.mxu0 0.0
        %6475 = vmatpush.xpose.msra.mxu0 0.0
        %6476 = vmatpush.xpose.msra.mxu0 0.0
        %6477 = vmatpush.xpose.msra.mxu0 0.0
        %6478 = vmatpush.xpose.msra.mxu0 %v1030
        %6479 = vmatpush.xpose.msra.mxu0 %v1022
        %6480 = vmatpush.xpose.msra.mxu0 %v1014
        %6481 = vmatpush.xpose.msra.mxu0 %v1006
        %6482 = vmatmul.f32.gmra.mxu0 %v6378
        %v6483 = vpop.f32.mrf.mxu0
        %v6484 = vadd.f32 %v6455, %v6483
        %6485 = vmatmul.f32.gmra.mxu0 %v6386
        %v6486 = vpop.f32.mrf.mxu0
        %v6487 = vadd.f32 %v6458, %v6486
        %6488 = vmatmul.f32.gmra.mxu0 %v6394
        %v6489 = vpop.f32.mrf.mxu0
        %v6490 = vadd.f32 %v6461, %v6489
        %6491 = vmatmul.f32.gmra.mxu0 %v6402
        %v6492 = vpop.f32.mrf.mxu0
        %v6493 = vadd.f32 %v6464, %v6492
        %6494 = vdwg.mxu0
        %6495 = vmatpush.xpose.msra.mxu0 0.0
        %6496 = vmatpush.xpose.msra.mxu0 0.0
        %6497 = vmatpush.xpose.msra.mxu0 0.0
        %6498 = vmatpush.xpose.msra.mxu0 0.0
        %6499 = vmatpush.xpose.msra.mxu0 0.0
        %6500 = vmatpush.xpose.msra.mxu0 0.0
        %6501 = vmatpush.xpose.msra.mxu0 0.0
        %6502 = vmatpush.xpose.msra.mxu0 0.0
        %6503 = vmatpush.xpose.msra.mxu0 0.0
        %6504 = vmatpush.xpose.msra.mxu0 0.0
        %6505 = vmatpush.xpose.msra.mxu0 0.0
        %6506 = vmatpush.xpose.msra.mxu0 0.0
        %6507 = vmatpush.xpose.msra.mxu0 %v1031
        %6508 = vmatpush.xpose.msra.mxu0 %v1023
        %6509 = vmatpush.xpose.msra.mxu0 %v1015
        %6510 = vmatpush.xpose.msra.mxu0 %v1007
        %6511 = vmatmul.f32.gmra.mxu0 %v6379
        %v6512 = vpop.f32.mrf.mxu0
        %v6513 = vadd.f32 %v6484, %v6512
        %6514 = vmatmul.f32.gmra.mxu0 %v6387
        %v6515 = vpop.f32.mrf.mxu0
        %v6516 = vadd.f32 %v6487, %v6515
        %6517 = vmatmul.f32.gmra.mxu0 %v6395
        %v6518 = vpop.f32.mrf.mxu0
        %v6519 = vadd.f32 %v6490, %v6518
        %6520 = vmatmul.f32.gmra.mxu0 %v6403
        %v6521 = vpop.f32.mrf.mxu0
        %v6522 = vadd.f32 %v6493, %v6521
        %6523 = vdwg.mxu0
        %6524 = vmatpush.xpose.msra.mxu0 0.0
        %6525 = vmatpush.xpose.msra.mxu0 0.0
        %6526 = vmatpush.xpose.msra.mxu0 0.0
        %6527 = vmatpush.xpose.msra.mxu0 0.0
        %6528 = vmatpush.xpose.msra.mxu0 0.0
        %6529 = vmatpush.xpose.msra.mxu0 0.0
        %6530 = vmatpush.xpose.msra.mxu0 0.0
        %6531 = vmatpush.xpose.msra.mxu0 0.0
        %6532 = vmatpush.xpose.msra.mxu0 0.0
        %6533 = vmatpush.xpose.msra.mxu0 0.0
        %6534 = vmatpush.xpose.msra.mxu0 0.0
        %6535 = vmatpush.xpose.msra.mxu0 0.0
        %6536 = vmatpush.xpose.msra.mxu0 %v1032
        %6537 = vmatpush.xpose.msra.mxu0 %v1024
        %6538 = vmatpush.xpose.msra.mxu0 %v1016
        %6539 = vmatpush.xpose.msra.mxu0 %v1008
        %6540 = vmatmul.f32.gmra.mxu0 %v6380
        %v6541 = vpop.f32.mrf.mxu0
        %v6542 = vadd.f32 %v6513, %v6541
        %6543 = vmatmul.f32.gmra.mxu0 %v6388
        %v6544 = vpop.f32.mrf.mxu0
        %v6545 = vadd.f32 %v6516, %v6544
        %6546 = vmatmul.f32.gmra.mxu0 %v6396
        %v6547 = vpop.f32.mrf.mxu0
        %v6548 = vadd.f32 %v6519, %v6547
        %6549 = vmatmul.f32.gmra.mxu0 %v6404
        %v6550 = vpop.f32.mrf.mxu0
        %v6551 = vadd.f32 %v6522, %v6550
        %6552 = vdwg.mxu0
        %6553 = vmatpush.xpose.msra.mxu0 0.0
        %6554 = vmatpush.xpose.msra.mxu0 0.0
        %6555 = vmatpush.xpose.msra.mxu0 0.0
        %6556 = vmatpush.xpose.msra.mxu0 0.0
        %6557 = vmatpush.xpose.msra.mxu0 0.0
        %6558 = vmatpush.xpose.msra.mxu0 0.0
        %6559 = vmatpush.xpose.msra.mxu0 0.0
        %6560 = vmatpush.xpose.msra.mxu0 0.0
        %6561 = vmatpush.xpose.msra.mxu0 0.0
        %6562 = vmatpush.xpose.msra.mxu0 0.0
        %6563 = vmatpush.xpose.msra.mxu0 0.0
        %6564 = vmatpush.xpose.msra.mxu0 0.0
        %6565 = vmatpush.xpose.msra.mxu0 %v1033
        %6566 = vmatpush.xpose.msra.mxu0 %v1025
        %6567 = vmatpush.xpose.msra.mxu0 %v1017
        %6568 = vmatpush.xpose.msra.mxu0 %v1009
        %6569 = vmatmul.f32.gmra.mxu0 %v6381
        %v6570 = vpop.f32.mrf.mxu0
        %v6571 = vadd.f32 %v6542, %v6570
        %6572 = vmatmul.f32.gmra.mxu0 %v6389
        %v6573 = vpop.f32.mrf.mxu0
        %v6574 = vadd.f32 %v6545, %v6573
        %6575 = vmatmul.f32.gmra.mxu0 %v6397
        %v6576 = vpop.f32.mrf.mxu0
        %v6577 = vadd.f32 %v6548, %v6576
        %6578 = vmatmul.f32.gmra.mxu0 %v6405
        %v6579 = vpop.f32.mrf.mxu0
        %v6580 = vadd.f32 %v6551, %v6579
        %6581 = vdwg.mxu0
        %6582 = vmatpush.xpose.msra.mxu0 0.0
        %6583 = vmatpush.xpose.msra.mxu0 0.0
        %6584 = vmatpush.xpose.msra.mxu0 0.0
        %6585 = vmatpush.xpose.msra.mxu0 0.0
        %6586 = vmatpush.xpose.msra.mxu0 0.0
        %6587 = vmatpush.xpose.msra.mxu0 0.0
        %6588 = vmatpush.xpose.msra.mxu0 0.0
        %6589 = vmatpush.xpose.msra.mxu0 0.0
        %6590 = vmatpush.xpose.msra.mxu0 0.0
        %6591 = vmatpush.xpose.msra.mxu0 0.0
        %6592 = vmatpush.xpose.msra.mxu0 0.0
        %6593 = vmatpush.xpose.msra.mxu0 0.0
        %6594 = vmatpush.xpose.msra.mxu0 %v1034
        %6595 = vmatpush.xpose.msra.mxu0 %v1026
        %6596 = vmatpush.xpose.msra.mxu0 %v1018
        %6597 = vmatpush.xpose.msra.mxu0 %v1010
        %6598 = vmatmul.f32.gmra.mxu0 %v6382
        %v6599 = vpop.f32.mrf.mxu0
        %v6600 = vadd.f32 %v6571, %v6599
        %6601 = vmatmul.f32.gmra.mxu0 %v6390
        %v6602 = vpop.f32.mrf.mxu0
        %v6603 = vadd.f32 %v6574, %v6602
        %6604 = vmatmul.f32.gmra.mxu0 %v6398
        %v6605 = vpop.f32.mrf.mxu0
        %v6606 = vadd.f32 %v6577, %v6605
        %6607 = vmatmul.f32.gmra.mxu0 %v6406
        %v6608 = vpop.f32.mrf.mxu0
        %v6609 = vadd.f32 %v6580, %v6608
        %6610 = vdwg.mxu0
        %6611 = vmatpush.xpose.msra.mxu0 0.0
        %6612 = vmatpush.xpose.msra.mxu0 0.0
        %6613 = vmatpush.xpose.msra.mxu0 0.0
        %6614 = vmatpush.xpose.msra.mxu0 0.0
        %6615 = vmatpush.xpose.msra.mxu0 0.0
        %6616 = vmatpush.xpose.msra.mxu0 0.0
        %6617 = vmatpush.xpose.msra.mxu0 0.0
        %6618 = vmatpush.xpose.msra.mxu0 0.0
        %6619 = vmatpush.xpose.msra.mxu0 0.0
        %6620 = vmatpush.xpose.msra.mxu0 0.0
        %6621 = vmatpush.xpose.msra.mxu0 0.0
        %6622 = vmatpush.xpose.msra.mxu0 0.0
        %6623 = vmatpush.xpose.msra.mxu0 %v1035
        %6624 = vmatpush.xpose.msra.mxu0 %v1027
        %6625 = vmatpush.xpose.msra.mxu0 %v1019
        %6626 = vmatpush.xpose.msra.mxu0 %v1011
        %6627 = vmatmul.f32.gmra.mxu0 %v6383
        %v6628 = vpop.f32.mrf.mxu0
        %v6629 = vadd.f32 %v6600, %v6628
        %6630 = vmatmul.f32.gmra.mxu0 %v6391
        %v6631 = vpop.f32.mrf.mxu0
        %v6632 = vadd.f32 %v6603, %v6631
        %6633 = vmatmul.f32.gmra.mxu0 %v6399
        %v6634 = vpop.f32.mrf.mxu0
        %v6635 = vadd.f32 %v6606, %v6634
        %6636 = vmatmul.f32.gmra.mxu0 %v6407
        %v6637 = vpop.f32.mrf.mxu0
        %v6638 = vadd.f32 %v6609, %v6637
        %6639 = vdwg.mxu0
        %v6641 = vsel %vm1264, %v6629, 0
        %v6644 = vsel %vm1264, %v6632, 0
        %v6647 = vsel %vm1264, %v6635, 0
        %v6650 = vsel %vm1264, %v6638, 0
        %6652 = vmatpush.msra.mxu0 0.0
        %6653 = vmatpush.msra.mxu0 0.0
        %6654 = vmatpush.msra.mxu0 0.0
        %6655 = vmatpush.msra.mxu0 0.0
        %6656 = vmatpush.msra.mxu0 0.0
        %6657 = vmatpush.msra.mxu0 0.0
        %6658 = vmatpush.msra.mxu0 0.0
        %6659 = vmatpush.msra.mxu0 0.0
        %6660 = vmatpush.msra.mxu0 0.0
        %6661 = vmatpush.msra.mxu0 0.0
        %6662 = vmatpush.msra.mxu0 0.0
        %6663 = vmatpush.msra.mxu0 0.0
        %6664 = vmatpush.msra.mxu0 %v1146
        %6665 = vmatpush.msra.mxu0 %v1144
        %6666 = vmatpush.msra.mxu0 %v1142
        %6667 = vmatpush.msra.mxu0 %v1140
        %6668 = vmatmul.f32.gmra.mxu0 %v6641
        %v6669 = vpop.f32.mrf.mxu0
        %v6670 = vadd.f32 0.0, %v6669
        %6671 = vmatmul.f32.gmra.mxu0 %v6644
        %v6672 = vpop.f32.mrf.mxu0
        %v6673 = vadd.f32 0.0, %v6672
        %6674 = vmatmul.f32.gmra.mxu0 %v6647
        %v6675 = vpop.f32.mrf.mxu0
        %v6676 = vadd.f32 0.0, %v6675
        %6677 = vmatmul.f32.gmra.mxu0 %v6650
        %v6678 = vpop.f32.mrf.mxu0
        %v6679 = vadd.f32 0.0, %v6678
        %6680 = vdwg.mxu0
        %6681 = vmatpush.msra.mxu0 0.0
        %6682 = vmatpush.msra.mxu0 0.0
        %6683 = vmatpush.msra.mxu0 0.0
        %6684 = vmatpush.msra.mxu0 0.0
        %6685 = vmatpush.msra.mxu0 0.0
        %6686 = vmatpush.msra.mxu0 0.0
        %6687 = vmatpush.msra.mxu0 0.0
        %6688 = vmatpush.msra.mxu0 0.0
        %6689 = vmatpush.msra.mxu0 0.0
        %6690 = vmatpush.msra.mxu0 0.0
        %6691 = vmatpush.msra.mxu0 0.0
        %6692 = vmatpush.msra.mxu0 0.0
        %6693 = vmatpush.msra.mxu0 %v1147
        %6694 = vmatpush.msra.mxu0 %v1145
        %6695 = vmatpush.msra.mxu0 %v1143
        %6696 = vmatpush.msra.mxu0 %v1141
        %6697 = vmatmul.f32.gmra.mxu0 %v6641
        %v6698 = vpop.f32.mrf.mxu0
        %v6699 = vadd.f32 0.0, %v6698
        %6700 = vmatmul.f32.gmra.mxu0 %v6644
        %v6701 = vpop.f32.mrf.mxu0
        %v6702 = vadd.f32 0.0, %v6701
        %6703 = vmatmul.f32.gmra.mxu0 %v6647
        %v6704 = vpop.f32.mrf.mxu0
        %v6705 = vadd.f32 0.0, %v6704
        %6706 = vmatmul.f32.gmra.mxu0 %v6650
        %v6707 = vpop.f32.mrf.mxu0
        %v6708 = vadd.f32 0.0, %v6707
        %6709 = vdwg.mxu0
        %v6711 = vsel %vm1264, %v6357, 0
        %v6714 = vsel %vm1264, %v6360, 0
        %v6717 = vsel %vm1264, %v6363, 0
        %v6720 = vsel %vm1264, %v6366, 0
        %6722 = vmatpush.msra.mxu0 0.0
        %6723 = vmatpush.msra.mxu0 0.0
        %6724 = vmatpush.msra.mxu0 0.0
        %6725 = vmatpush.msra.mxu0 0.0
        %6726 = vmatpush.msra.mxu0 0.0
        %6727 = vmatpush.msra.mxu0 0.0
        %6728 = vmatpush.msra.mxu0 0.0
        %6729 = vmatpush.msra.mxu0 0.0
        %6730 = vmatpush.msra.mxu0 0.0
        %6731 = vmatpush.msra.mxu0 0.0
        %6732 = vmatpush.msra.mxu0 0.0
        %6733 = vmatpush.msra.mxu0 0.0
        %6734 = vmatpush.msra.mxu0 %v1138
        %6735 = vmatpush.msra.mxu0 %v1136
        %6736 = vmatpush.msra.mxu0 %v1134
        %6737 = vmatpush.msra.mxu0 %v1132
        %6738 = vmatmul.f32.gmra.mxu0 %v6711
        %v6739 = vpop.f32.mrf.mxu0
        %v6740 = vadd.f32 %v6670, %v6739
        %6741 = vmatmul.f32.gmra.mxu0 %v6714
        %v6742 = vpop.f32.mrf.mxu0
        %v6743 = vadd.f32 %v6673, %v6742
        %6744 = vmatmul.f32.gmra.mxu0 %v6717
        %v6745 = vpop.f32.mrf.mxu0
        %v6746 = vadd.f32 %v6676, %v6745
        %6747 = vmatmul.f32.gmra.mxu0 %v6720
        %v6748 = vpop.f32.mrf.mxu0
        %v6749 = vadd.f32 %v6679, %v6748
        %6750 = vdwg.mxu0
        %6751 = vmatpush.msra.mxu0 0.0
        %6752 = vmatpush.msra.mxu0 0.0
        %6753 = vmatpush.msra.mxu0 0.0
        %6754 = vmatpush.msra.mxu0 0.0
        %6755 = vmatpush.msra.mxu0 0.0
        %6756 = vmatpush.msra.mxu0 0.0
        %6757 = vmatpush.msra.mxu0 0.0
        %6758 = vmatpush.msra.mxu0 0.0
        %6759 = vmatpush.msra.mxu0 0.0
        %6760 = vmatpush.msra.mxu0 0.0
        %6761 = vmatpush.msra.mxu0 0.0
        %6762 = vmatpush.msra.mxu0 0.0
        %6763 = vmatpush.msra.mxu0 %v1139
        %6764 = vmatpush.msra.mxu0 %v1137
        %6765 = vmatpush.msra.mxu0 %v1135
        %6766 = vmatpush.msra.mxu0 %v1133
        %6767 = vmatmul.f32.gmra.mxu0 %v6711
        %v6768 = vpop.f32.mrf.mxu0
        %v6769 = vadd.f32 %v6699, %v6768
        %6770 = vmatmul.f32.gmra.mxu0 %v6714
        %v6771 = vpop.f32.mrf.mxu0
        %v6772 = vadd.f32 %v6702, %v6771
        %6773 = vmatmul.f32.gmra.mxu0 %v6717
        %v6774 = vpop.f32.mrf.mxu0
        %v6775 = vadd.f32 %v6705, %v6774
        %6776 = vmatmul.f32.gmra.mxu0 %v6720
        %v6777 = vpop.f32.mrf.mxu0
        %v6778 = vadd.f32 %v6708, %v6777
        %6779 = vdwg.mxu0
        %v6780 = vmax.f32 %v6740, 0.0
        %v6781 = vmax.f32 %v6769, 0.0
        %v6782 = vmax.f32 %v6743, 0.0
        %v6783 = vmax.f32 %v6772, 0.0
        %v6784 = vmax.f32 %v6746, 0.0
        %v6785 = vmax.f32 %v6775, 0.0
        %v6786 = vmax.f32 %v6749, 0.0
        %v6787 = vmax.f32 %v6778, 0.0
        %v6788 = vadd.f32 %v4906, %v6780
        %v6789 = vadd.f32 %v4907, %v6781
        %v6790 = vadd.f32 %v4908, %v6782
        %v6791 = vadd.f32 %v4909, %v6783
        %v6792 = vadd.f32 %v4910, %v6784
        %v6793 = vadd.f32 %v4911, %v6785
        %v6794 = vadd.f32 %v4912, %v6786
        %v6795 = vadd.f32 %v4913, %v6787
        %v6796 = vld [vmem:[%s14] sm:$0xff]
        %v6797 = vld [vmem:[%s14 + $0x8] sm:$0xff]
        %v6798 = vld [vmem:[%s15] sm:$0xff]
        %v6799 = vld [vmem:[%s15 + $0x8] sm:$0xff]
        %6801 = vset.pattern.permute.xlu0 0
        %6802 = vperm.xlu0 %6801, %v6798
        %v6803 = vpop.permute.xlu0 %6802
        %6806 = vset.pattern.permute.xlu0 0
        %6807 = vperm.xlu0 %6806, %v6799
        %v6808 = vpop.permute.xlu0 %6807
        %v6811 = vsel %vm1264, %v6796, 0
        %v6814 = vsel %vm1264, %v6797, 0
        %6816 = vmatpush.msra.mxu0 0.0
        %6817 = vmatpush.msra.mxu0 0.0
        %6818 = vmatpush.msra.mxu0 0.0
        %6819 = vmatpush.msra.mxu0 0.0
        %6820 = vmatpush.msra.mxu0 0.0
        %6821 = vmatpush.msra.mxu0 0.0
        %6822 = vmatpush.msra.mxu0 0.0
        %6823 = vmatpush.msra.mxu0 0.0
        %6824 = vmatpush.msra.mxu0 0.0
        %6825 = vmatpush.msra.mxu0 0.0
        %6826 = vmatpush.msra.mxu0 0.0
        %6827 = vmatpush.msra.mxu0 0.0
        %6828 = vmatpush.msra.mxu0 %v6794
        %6829 = vmatpush.msra.mxu0 %v6792
        %6830 = vmatpush.msra.mxu0 %v6790
        %6831 = vmatpush.msra.mxu0 %v6788
        %6832 = vmatmul.f32.gmra.mxu0 %v6811
        %v6833 = vpop.f32.mrf.mxu0
        %v6834 = vadd.f32 %v6803, %v6833
        %6835 = vmatmul.f32.gmra.mxu0 %v6814
        %v6836 = vpop.f32.mrf.mxu0
        %v6837 = vadd.f32 %v6808, %v6836
        %6838 = vdwg.mxu0
        %6839 = vmatpush.msra.mxu0 0.0
        %6840 = vmatpush.msra.mxu0 0.0
        %6841 = vmatpush.msra.mxu0 0.0
        %6842 = vmatpush.msra.mxu0 0.0
        %6843 = vmatpush.msra.mxu0 0.0
        %6844 = vmatpush.msra.mxu0 0.0
        %6845 = vmatpush.msra.mxu0 0.0
        %6846 = vmatpush.msra.mxu0 0.0
        %6847 = vmatpush.msra.mxu0 0.0
        %6848 = vmatpush.msra.mxu0 0.0
        %6849 = vmatpush.msra.mxu0 0.0
        %6850 = vmatpush.msra.mxu0 0.0
        %6851 = vmatpush.msra.mxu0 %v6795
        %6852 = vmatpush.msra.mxu0 %v6793
        %6853 = vmatpush.msra.mxu0 %v6791
        %6854 = vmatpush.msra.mxu0 %v6789
        %6855 = vmatmul.f32.gmra.mxu0 %v6811
        %v6856 = vpop.f32.mrf.mxu0
        %v6857 = vadd.f32 %v6803, %v6856
        %6858 = vmatmul.f32.gmra.mxu0 %v6814
        %v6859 = vpop.f32.mrf.mxu0
        %v6860 = vadd.f32 %v6808, %v6859
        %6861 = vdwg.mxu0
        %v6862 = vmax.f32 %v6834, 0.0
        %v6863 = vmax.f32 %v6857, 0.0
        %v6864 = vmax.f32 %v6837, 0.0
        %v6865 = vmax.f32 %v6860, 0.0
        %v6866 = vld [vmem:[%s16] sm:$0x1]
        %v6867 = vld [vmem:[#allocation2] sm:$0x1]
        %6869 = vset.pattern.permute.xlu0 0
        %6870 = vperm.xlu0 %6869, %v6867
        %v6871 = vpop.permute.xlu0 %6870
        %v6873 = vperm.slane %v6871, 0
        %v6875 = vsel %vm875, %v6866, 0
        %6877 = vmatpush.msra.mxu0 0.0
        %6878 = vmatpush.msra.mxu0 0.0
        %6879 = vmatpush.msra.mxu0 0.0
        %6880 = vmatpush.msra.mxu0 0.0
        %6881 = vmatpush.msra.mxu0 0.0
        %6882 = vmatpush.msra.mxu0 0.0
        %6883 = vmatpush.msra.mxu0 0.0
        %6884 = vmatpush.msra.mxu0 0.0
        %6885 = vmatpush.msra.mxu0 0.0
        %6886 = vmatpush.msra.mxu0 0.0
        %6887 = vmatpush.msra.mxu0 0.0
        %6888 = vmatpush.msra.mxu0 0.0
        %6889 = vmatpush.msra.mxu0 0.0
        %6890 = vmatpush.msra.mxu0 0.0
        %6891 = vmatpush.msra.mxu0 %v6864
        %6892 = vmatpush.msra.mxu0 %v6862
        %6893 = vmatmul.f32.gmra.mxu0 %v6875
        %v6894 = vpop.f32.mrf.mxu0
        %v6895 = vadd.f32 %v6873, %v6894
        %6896 = vdwg.mxu0
        %6897 = vmatpush.msra.mxu0 0.0
        %6898 = vmatpush.msra.mxu0 0.0
        %6899 = vmatpush.msra.mxu0 0.0
        %6900 = vmatpush.msra.mxu0 0.0
        %6901 = vmatpush.msra.mxu0 0.0
        %6902 = vmatpush.msra.mxu0 0.0
        %6903 = vmatpush.msra.mxu0 0.0
        %6904 = vmatpush.msra.mxu0 0.0
        %6905 = vmatpush.msra.mxu0 0.0
        %6906 = vmatpush.msra.mxu0 0.0
        %6907 = vmatpush.msra.mxu0 0.0
        %6908 = vmatpush.msra.mxu0 0.0
        %6909 = vmatpush.msra.mxu0 0.0
        %6910 = vmatpush.msra.mxu0 0.0
        %6911 = vmatpush.msra.mxu0 %v6865
        %6912 = vmatpush.msra.mxu0 %v6863
        %6913 = vmatmul.f32.gmra.mxu0 %v6875
        %v6914 = vpop.f32.mrf.mxu0
        %v6915 = vadd.f32 %v6873, %v6914
        %6916 = vdwg.mxu0
        %v6919 = vrot.slane %v6915, 7
        %v6920 = vsel %vm622, %v6895, %v6919
        %v6922 = vlaneseq
        %vm6923 = vcmp.ge.s32.totalorder %v6922, 0
        %vm6924 = vcmp.lt.s32.totalorder %v6922, 256
        %vm6925 = vmand %vm6923, %vm6924
        %6926 = vst.msk [vmem:[%s592] sm:$0x3] %vm6925, %v6920
        %p6927 = scmp.lt.s32.totalorder %s32, 1
        %s6928 = scalar_select %p6927, %s32, 1
        %s6929 = smul.addr %s6928, 2
        %s6930 = scalar_lea.vmem %s18, %s6929
        // Predicated region
        $region97: #{neural_operator_forward.1} parent=91 // pred_check
          %p6931 = pneg %p433
        $region98: #{neural_operator_forward.1} parent=91 // pred_check_branch
          %6933 = sbr.rel (%p6931) target = $region100
        $region99: #{neural_operator_forward.1} parent=91 // pred_region
          _
        $region100: #{neural_operator_forward.1} parent=91 // pred_fallthru
          _
      $region92: #{neural_operator_forward.1} parent=5 // pred_fallthru
        _
      %p6934 = scmp.le.s32.totalorder 2, %s27
      // Predicated region
      $region101: #{neural_operator_forward.1} parent=5 // pred_check
        %p6935 = pneg %p6934
      $region102: #{neural_operator_forward.1} parent=5 // pred_check_branch
        %6937 = sbr.rel (%p6935) target = $region104
      $region103: #{neural_operator_forward.1} parent=5 // pred_region
        %s6938 = ssub.s32 %s27, 2
        // Predicated region
        $region105: #{neural_operator_forward.1} parent=103 // pred_check
          %p6939 = pneg %p439
        $region106: #{neural_operator_forward.1} parent=103 // pred_check_branch
          %6941 = sbr.rel (%p6939) target = $region108
        $region107: #{neural_operator_forward.1} parent=103 // pred_region
          %p6942 = scmp.lt.s32.totalorder %s33, 1
          %s6943 = scalar_select %p6942, %s33, 1
          %s6944 = smul.addr %s6943, 2
          %s6945 = scalar_lea.vmem %s18, %s6944
        $region108: #{neural_operator_forward.1} parent=103 // pred_fallthru
          _
      $region104: #{neural_operator_forward.1} parent=5 // pred_fallthru
        _
    $region6: #{neural_operator_forward.1} parent=1 // loop_footer
      %s31 = sadd.s32 1, %s27
    $region7: #{neural_operator_forward.1} parent=1 // loop_footer_branch
      %26 = sbr.rel target = $region3
    $region8: #{neural_operator_forward.1} parent=1 // loop_exit
      _
    %6946 = vsyncpa [#allocation4], 1
    %s6947 = scalar_lea.sflag [#allocation4], 1
    %6948 = vsyncpa %s6947, 1

</llo_original>
